<compile_context>
chip_gen: v7x
topology: tpu7x:2x2x1
jax: 0.10.0
libtpu: 0.0.40
codegen_flags: <defaults>
</compile_context>

<pallas_src>
import jax
import jax.numpy as jnp
from jax.experimental import pallas as pl
from jax.experimental.pallas import tpu as pltpu


_VMEM = pl.BlockSpec(memory_space=pltpu.MemorySpace.VMEM)
_SMEM = pl.BlockSpec(memory_space=pltpu.MemorySpace.SMEM)


def _round_up(x, m):
    return ((x + m - 1) // m) * m


# ----------------------------------------------------------------------------
# Fused forward
# ----------------------------------------------------------------------------
def alibaba_encoder_decoder_forward(params, x, additional):
    """Mirrors AlibabaEncoderDecoder.forward with a single fused Pallas kernel."""
    B, T, D = x.shape
    H = params["enc_whh"].shape[0]
    C, H2 = params["wc"].shape
    O = params["wfc_h"].shape[1]

    BP = _round_up(B, 8)          # sublane tile
    DP = _round_up(D, 128)        # lane tile
    HP = _round_up(H, 128)
    H2P = _round_up(H2, 128)
    CP = _round_up(C, 128)
    OP = _round_up(O, 128)
    G = 4 * HP

    # ---- zero-pad parameters to (8,128)-friendly tiles (math stays exact) --
    def pad_gate_cols(w):
        # (rows, 4H) -> (rows, 4HP): pad each i/f/g/o block independently so
        # gate k occupies columns [k*HP, (k+1)*HP) -> lane-aligned slices.
        blocks = [jnp.pad(w[:, k * H:(k + 1) * H], ((0, 0), (0, HP - H)))
                  for k in range(4)]
        return jnp.concatenate(blocks, axis=1)

    def pad_rows(w, rows):
        return jnp.pad(w, ((0, rows - w.shape[0]), (0, 0)))

    e_wih = pad_rows(pad_gate_cols(params["enc_wih"]), DP)     # (DP, 4HP)
    e_whh = pad_rows(pad_gate_cols(params["enc_whh"]), HP)     # (HP, 4HP)
    e_b = pad_gate_cols(params["enc_b"])                       # (1, 4HP)
    d_wih = pad_rows(pad_gate_cols(params["dec_wih"]), HP)
    d_whh = pad_rows(pad_gate_cols(params["dec_whh"]), HP)
    d_b = pad_gate_cols(params["dec_b"])

    wc = jnp.pad(params["wc"], ((0, CP - C), (0, H2P - H2)))
    bc = jnp.pad(params["bc"], ((0, 0), (0, H2P - H2)))
    wfc_h = jnp.pad(params["wfc_h"], ((0, HP - H), (0, OP - O)))
    wfc_a = jnp.pad(params["wfc_a"], ((0, H2P - H2), (0, OP - O)))
    bfc = jnp.pad(params["bfc"], ((0, 0), (0, OP - O)))
    alpha = params["alpha"]                                    # (1, 1) -> SMEM

    # ---- single transpose + pad of the activations, then time-major flat ---
    x_tbd = jnp.transpose(x, (1, 0, 2))                        # (T, B, D)
    x_tbd = jnp.pad(x_tbd, ((0, 0), (0, BP - B), (0, DP - D)))
    x2d = x_tbd.reshape(T * BP, DP)                            # (T*BP, DP)
    addp = jnp.pad(additional, ((0, BP - B), (0, CP - C)))     # (BP, CP)

    def kernel(x_ref, ewih_ref, ewhh_ref, eb_ref,
               dwih_ref, dwhh_ref, db_ref,
               add_ref, wc_ref, bc_ref, alpha_ref,
               wfch_ref, wfca_ref, bfc_ref,
               out_ref, seq_ref, gx_ref):
        # seq_ref: (T*BP, HP)  current decoder-input sequence (starts = enc out)
        # gx_ref : (T*BP, 4HP) hoisted x @ W_ih + b for the whole sequence

        def make_step(whh_ref):
            def step(t, carry):
                h, c = carry
                r = pl.multiple_of(t * BP, BP)
                gates = (gx_ref[pl.ds(r, BP), :]
                         + jnp.dot(h, whh_ref[...],
                                   preferred_element_type=jnp.float32))
                i = jax.nn.sigmoid(gates[:, 0 * HP:1 * HP])
                f = jax.nn.sigmoid(gates[:, 1 * HP:2 * HP])
                g = jnp.tanh(gates[:, 2 * HP:3 * HP])
                o = jax.nn.sigmoid(gates[:, 3 * HP:4 * HP])
                c_new = f * c + i * g
                h_new = o * jnp.tanh(c_new)
                seq_ref[pl.ds(r, BP), :] = h_new
                return h_new, c_new
            return step

        # ------------------------- encoder -------------------------
        gx_ref[...] = (jnp.dot(x_ref[...], ewih_ref[...],
                               preferred_element_type=jnp.float32)
                       + eb_ref[...])
        zeros = jnp.zeros((BP, HP), jnp.float32)
        h, c = jax.lax.fori_loop(0, T, make_step(ewhh_ref), (zeros, zeros),
                                 unroll=True)

        # --------------- decoder: T passes over the sequence ---------------
        dec_step = make_step(dwhh_ref)

        def dec_pass(_, carry):
            h, c = carry
            # One big input-projection matmul per pass (hoisted out of the
            # recurrence); the time loop then overwrites seq_ref in place,
            # which is safe because gx_ref was computed from the old sequence.
            gx_ref[...] = (jnp.dot(seq_ref[...], dwih_ref[...],
                                   preferred_element_type=jnp.float32)
                           + db_ref[...])
            return jax.lax.fori_loop(0, T, dec_step, (h, c), unroll=True)

        h, c = jax.lax.fori_loop(0, T, dec_pass, (h, c))

        # --------------------------- head ---------------------------
        a = (jnp.dot(add_ref[...], wc_ref[...],
                     preferred_element_type=jnp.float32) + bc_ref[...])
        alpha_s = alpha_ref[0, 0]
        a = jnp.where(a >= 0, a, alpha_s * a)                   # PReLU
        out_ref[...] = (jnp.dot(h, wfch_ref[...],
                                preferred_element_type=jnp.float32)
                        + jnp.dot(a, wfca_ref[...],
                                  preferred_element_type=jnp.float32)
                        + bfc_ref[...])

    out = pl.pallas_call(
        kernel,
        out_shape=jax.ShapeDtypeStruct((BP, OP), jnp.float32),
        in_specs=[_VMEM] * 10 + [_SMEM] + [_VMEM] * 3,
        out_specs=_VMEM,
        scratch_shapes=[pltpu.VMEM((T * BP, HP), jnp.float32),
                        pltpu.VMEM((T * BP, G), jnp.float32)],
    )(x2d, e_wih, e_whh, e_b, d_wih, d_whh, d_b,
      addp, wc, bc, alpha, wfc_h, wfc_a, bfc)

    return out[:B, :O]


# ----------------------------------------------------------------------------
# Deterministic parameter initialization (mimicking the module's __init__)
# ----------------------------------------------------------------------------
def init_params(key, input_size, hidden_size, concat_size, hidden_size_2,
                output_size):
    ks = jax.random.split(key, 8)
    H, H2, O = hidden_size, hidden_size_2, output_size

    def xavier(k, fan_in, fan_out):
        # torch weight shape is (fan_out, fan_in); we store the transpose.
        bound = jnp.sqrt(6.0 / (fan_in + fan_out))
        return jax.random.uniform(k, (fan_in, fan_out), jnp.float32,
                                  -bound, bound)

    # Encoder / decoder LSTM weights: Xavier, biases = 1 (so b_ih + b_hh = 2)
    enc_wih = xavier(ks[0], input_size, 4 * H)
    enc_whh = xavier(ks[1], H, 4 * H)
    enc_b = jnp.full((1, 4 * H), 2.0, jnp.float32)
    dec_wih = xavier(ks[2], H, 4 * H)
    dec_whh = xavier(ks[3], H, 4 * H)
    dec_b = jnp.full((1, 4 * H), 2.0, jnp.float32)

    # fc_concat: He (kaiming normal, fan_in, relu), bias = 0
    wc = jax.random.normal(ks[4], (concat_size, H2), jnp.float32) \
        * jnp.sqrt(2.0 / concat_size)
    bc = jnp.zeros((1, H2), jnp.float32)

    # fc: Normal(0, 0.01), bias = 0  (split along the concat axis)
    wfc = jax.random.normal(ks[5], (H + H2, O), jnp.float32) * 0.01
    wfc_h, wfc_a = wfc[:H], wfc[H:]
    bfc = jnp.zeros((1, O), jnp.float32)

    # PReLU: single shared slope, default 0.25
    alpha = jnp.full((1, 1), 0.25, jnp.float32)

    return dict(enc_wih=enc_wih, enc_whh=enc_whh, enc_b=enc_b,
                dec_wih=dec_wih, dec_whh=dec_whh, dec_b=dec_b,
                wc=wc, bc=bc, wfc_h=wfc_h, wfc_a=wfc_a, bfc=bfc, alpha=alpha)


# ----------------------------------------------------------------------------
# Pure-JAX reference (same math, no Pallas, unpadded) for a correctness check
# ----------------------------------------------------------------------------
def _lstm_ref(x, w_ih, w_hh, b, h0, c0):
    H = h0.shape[1]
    h, c = h0, c0
    outs = []
    for t in range(x.shape[1]):
        g = x[:, t, :] @ w_ih + h @ w_hh + b
        i = jax.nn.sigmoid(g[:, :H])
        f = jax.nn.sigmoid(g[:, H:2 * H])
        gg = jnp.tanh(g[:, 2 * H:3 * H])
        o = jax.nn.sigmoid(g[:, 3 * H:])
        c = f * c + i * gg
        h = o * jnp.tanh(c)
        outs.append(h)
    return jnp.stack(outs, axis=1), h, c


def _forward_ref(params, x, additional):
    B, T, _ = x.shape
    H = params["enc_whh"].shape[0]
    h0 = jnp.zeros((B, H), jnp.float32)
    c0 = jnp.zeros((B, H), jnp.float32)
    enc_out, h, c = _lstm_ref(x, params["enc_wih"], params["enc_whh"],
                              params["enc_b"], h0, c0)
    dec_in = enc_out
    for _ in range(T):
        dec_in, h, c = _lstm_ref(dec_in, params["dec_wih"], params["dec_whh"],
                                 params["dec_b"], h, c)
    a = additional @ params["wc"] + params["bc"]
    a = jnp.where(a >= 0, a, params["alpha"][0, 0] * a)
    return h @ params["wfc_h"] + a @ params["wfc_a"] + params["bfc"]


# ----------------------------------------------------------------------------
if __name__ == "__main__":
    # Small shapes consistent with the module's forward signature
    B, T = 4, 8
    input_size, hidden_size = 6, 32
    concat_size, hidden_size_2, output_size = 5, 16, 3

    key = jax.random.PRNGKey(0)
    k_params, k_x, k_add = jax.random.split(key, 3)

    params = init_params(k_params, input_size, hidden_size,
                         concat_size, hidden_size_2, output_size)
    x = jax.random.normal(k_x, (B, T, input_size), jnp.float32)
    additional = jax.random.normal(k_add, (B, concat_size), jnp.float32)

    fwd = jax.jit(alibaba_encoder_decoder_forward)
    out = fwd(params, x, additional)
    out = jax.block_until_ready(out)

    ref = _forward_ref(params, x, additional)
    assert out.shape == (B, output_size), out.shape
    assert jnp.allclose(out, ref, atol=1e-3, rtol=1e-3), \
        f"max abs diff {jnp.max(jnp.abs(out - ref))}"

    print("KERNEL_OK")
</pallas_src>

<mosaic_0001>
module attributes {stable_mosaic.version = 11 : i64} {
  func.func @kernel(%arg0: memref<64x128xf32, #tpu.memory_space<vmem>>, %arg1: memref<128x512xf32, #tpu.memory_space<vmem>>, %arg2: memref<128x512xf32, #tpu.memory_space<vmem>>, %arg3: memref<1x512xf32, #tpu.memory_space<vmem>>, %arg4: memref<128x512xf32, #tpu.memory_space<vmem>>, %arg5: memref<128x512xf32, #tpu.memory_space<vmem>>, %arg6: memref<1x512xf32, #tpu.memory_space<vmem>>, %arg7: memref<8x128xf32, #tpu.memory_space<vmem>>, %arg8: memref<128x128xf32, #tpu.memory_space<vmem>>, %arg9: memref<1x128xf32, #tpu.memory_space<vmem>>, %arg10: memref<1x1xf32, #tpu.memory_space<smem>>, %arg11: memref<128x128xf32, #tpu.memory_space<vmem>>, %arg12: memref<128x128xf32, #tpu.memory_space<vmem>>, %arg13: memref<1x128xf32, #tpu.memory_space<vmem>>, %arg14: memref<8x128xf32, #tpu.memory_space<vmem>>, %arg15: memref<64x128xf32, #tpu.memory_space<vmem>>, %arg16: memref<64x512xf32, #tpu.memory_space<vmem>>) attributes {dimension_semantics = [], scalar_prefetch = 0 : i64, scratch_operands = 2 : i64, tpu.core_type = #tpu.core_type<tc>} {
    %c0 = arith.constant 0 : index
    %c0_0 = arith.constant 0 : index
    %0 = vector.load %arg0[%c0, %c0_0] : memref<64x128xf32, #tpu.memory_space<vmem>>, vector<64x128xf32>
    %c0_1 = arith.constant 0 : index
    %c0_2 = arith.constant 0 : index
    %1 = vector.load %arg1[%c0_1, %c0_2] : memref<128x512xf32, #tpu.memory_space<vmem>>, vector<128x512xf32>
    %cst = arith.constant dense<0.000000e+00> : vector<64x512xf32>
    %2 = tpu.matmul %0, %1, %cst {dimension_numbers = #tpu.dot_dimension_numbers<[1], [0], [0], [1], [0, 0, 1, 1], [], []>} : vector<64x128xf32>, vector<128x512xf32>, vector<64x512xf32> -> vector<64x512xf32>
    %c0_3 = arith.constant 0 : index
    %c0_4 = arith.constant 0 : index
    %3 = vector.load %arg3[%c0_3, %c0_4] : memref<1x512xf32, #tpu.memory_space<vmem>>, vector<1x512xf32>
    %4 = vector.broadcast %3 : vector<1x512xf32> to vector<64x512xf32>
    %5 = arith.addf %2, %4 : vector<64x512xf32>
    %c0_5 = arith.constant 0 : index
    %c0_6 = arith.constant 0 : index
    %6 = vector.load %arg16[%c0_5, %c0_6] : memref<64x512xf32, #tpu.memory_space<vmem>>, vector<64x512xf32>
    tpu.vector_store %arg16[%c0_5, %c0_6], %5 {strides = array<i32>} : memref<64x512xf32, #tpu.memory_space<vmem>>, vector<64x512xf32>,
    %cst_7 = arith.constant 0.000000e+00 : f32
    %7 = vector.broadcast %cst_7 : f32 to vector<8x128xf32>
    %c0_i32 = arith.constant 0 : i32
    %c8_i32 = arith.constant 8 : i32
    %8 = arith.muli %c0_i32, %c8_i32 : i32
    %9 = tpu.assume_multiple %8, 8 : i32
    %10 = arith.index_cast %9 : i32 to index
    %c0_8 = arith.constant 0 : index
    %11 = vector.load %arg16[%10, %c0_8] : memref<64x512xf32, #tpu.memory_space<vmem>>, vector<8x512xf32>
    %c0_9 = arith.constant 0 : index
    %c0_10 = arith.constant 0 : index
    %12 = vector.load %arg2[%c0_9, %c0_10] : memref<128x512xf32, #tpu.memory_space<vmem>>, vector<128x512xf32>
    %cst_11 = arith.constant dense<0.000000e+00> : vector<8x512xf32>
    %13 = tpu.matmul %7, %12, %cst_11 {dimension_numbers = #tpu.dot_dimension_numbers<[1], [0], [0], [1], [0, 0, 1, 1], [], []>} : vector<8x128xf32>, vector<128x512xf32>, vector<8x512xf32> -> vector<8x512xf32>
    %14 = arith.addf %11, %13 : vector<8x512xf32>
    %15 = vector.extract_strided_slice %14 {offsets = [0, 0], sizes = [8, 128], strides = [1, 1]} : vector<8x512xf32> to vector<8x128xf32>
    %16 = arith.negf %15 : vector<8x128xf32>
    %17 = math.exp %16 : vector<8x128xf32>
    %cst_12 = arith.constant 1.000000e+00 : f32
    %18 = vector.broadcast %cst_12 : f32 to vector<8x128xf32>
    %19 = arith.addf %18, %17 : vector<8x128xf32>
    %20 = arith.divf %18, %19 : vector<8x128xf32>
    %21 = vector.extract_strided_slice %14 {offsets = [0, 128], sizes = [8, 128], strides = [1, 1]} : vector<8x512xf32> to vector<8x128xf32>
    %22 = arith.negf %21 : vector<8x128xf32>
    %23 = math.exp %22 : vector<8x128xf32>
    %cst_13 = arith.constant 1.000000e+00 : f32
    %24 = vector.broadcast %cst_13 : f32 to vector<8x128xf32>
    %25 = arith.addf %24, %23 : vector<8x128xf32>
    %26 = arith.divf %24, %25 : vector<8x128xf32>
    %27 = vector.extract_strided_slice %14 {offsets = [0, 256], sizes = [8, 128], strides = [1, 1]} : vector<8x512xf32> to vector<8x128xf32>
    %28 = math.tanh %27 : vector<8x128xf32>
    %29 = vector.extract_strided_slice %14 {offsets = [0, 384], sizes = [8, 128], strides = [1, 1]} : vector<8x512xf32> to vector<8x128xf32>
    %30 = arith.negf %29 : vector<8x128xf32>
    %31 = math.exp %30 : vector<8x128xf32>
    %cst_14 = arith.constant 1.000000e+00 : f32
    %32 = vector.broadcast %cst_14 : f32 to vector<8x128xf32>
    %33 = arith.addf %32, %31 : vector<8x128xf32>
    %34 = arith.divf %32, %33 : vector<8x128xf32>
    %35 = arith.mulf %26, %7 : vector<8x128xf32>
    %36 = arith.mulf %20, %28 : vector<8x128xf32>
    %37 = arith.addf %35, %36 : vector<8x128xf32>
    %38 = math.tanh %37 : vector<8x128xf32>
    %39 = arith.mulf %34, %38 : vector<8x128xf32>
    %40 = arith.index_cast %9 : i32 to index
    %c0_15 = arith.constant 0 : index
    %41 = vector.load %arg15[%40, %c0_15] : memref<64x128xf32, #tpu.memory_space<vmem>>, vector<8x128xf32>
    tpu.vector_store %arg15[%40, %c0_15], %39 {strides = array<i32>} : memref<64x128xf32, #tpu.memory_space<vmem>>, vector<8x128xf32>,
    %c1_i32 = arith.constant 1 : i32
    %c8_i32_16 = arith.constant 8 : i32
    %42 = arith.muli %c1_i32, %c8_i32_16 : i32
    %43 = tpu.assume_multiple %42, 8 : i32
    %44 = arith.index_cast %43 : i32 to index
    %c0_17 = arith.constant 0 : index
    %45 = vector.load %arg16[%44, %c0_17] : memref<64x512xf32, #tpu.memory_space<vmem>>, vector<8x512xf32>
    %c0_18 = arith.constant 0 : index
    %c0_19 = arith.constant 0 : index
    %46 = vector.load %arg2[%c0_18, %c0_19] : memref<128x512xf32, #tpu.memory_space<vmem>>, vector<128x512xf32>
    %cst_20 = arith.constant dense<0.000000e+00> : vector<8x512xf32>
    %47 = tpu.matmul %39, %46, %cst_20 {dimension_numbers = #tpu.dot_dimension_numbers<[1], [0], [0], [1], [0, 0, 1, 1], [], []>} : vector<8x128xf32>, vector<128x512xf32>, vector<8x512xf32> -> vector<8x512xf32>
    %48 = arith.addf %45, %47 : vector<8x512xf32>
    %49 = vector.extract_strided_slice %48 {offsets = [0, 0], sizes = [8, 128], strides = [1, 1]} : vector<8x512xf32> to vector<8x128xf32>
    %50 = arith.negf %49 : vector<8x128xf32>
    %51 = math.exp %50 : vector<8x128xf32>
    %cst_21 = arith.constant 1.000000e+00 : f32
    %52 = vector.broadcast %cst_21 : f32 to vector<8x128xf32>
    %53 = arith.addf %52, %51 : vector<8x128xf32>
    %54 = arith.divf %52, %53 : vector<8x128xf32>
    %55 = vector.extract_strided_slice %48 {offsets = [0, 128], sizes = [8, 128], strides = [1, 1]} : vector<8x512xf32> to vector<8x128xf32>
    %56 = arith.negf %55 : vector<8x128xf32>
    %57 = math.exp %56 : vector<8x128xf32>
    %cst_22 = arith.constant 1.000000e+00 : f32
    %58 = vector.broadcast %cst_22 : f32 to vector<8x128xf32>
    %59 = arith.addf %58, %57 : vector<8x128xf32>
    %60 = arith.divf %58, %59 : vector<8x128xf32>
    %61 = vector.extract_strided_slice %48 {offsets = [0, 256], sizes = [8, 128], strides = [1, 1]} : vector<8x512xf32> to vector<8x128xf32>
    %62 = math.tanh %61 : vector<8x128xf32>
    %63 = vector.extract_strided_slice %48 {offsets = [0, 384], sizes = [8, 128], strides = [1, 1]} : vector<8x512xf32> to vector<8x128xf32>
    %64 = arith.negf %63 : vector<8x128xf32>
    %65 = math.exp %64 : vector<8x128xf32>
    %cst_23 = arith.constant 1.000000e+00 : f32
    %66 = vector.broadcast %cst_23 : f32 to vector<8x128xf32>
    %67 = arith.addf %66, %65 : vector<8x128xf32>
    %68 = arith.divf %66, %67 : vector<8x128xf32>
    %69 = arith.mulf %60, %37 : vector<8x128xf32>
    %70 = arith.mulf %54, %62 : vector<8x128xf32>
    %71 = arith.addf %69, %70 : vector<8x128xf32>
    %72 = math.tanh %71 : vector<8x128xf32>
    %73 = arith.mulf %68, %72 : vector<8x128xf32>
    %74 = arith.index_cast %43 : i32 to index
    %c0_24 = arith.constant 0 : index
    %75 = vector.load %arg15[%74, %c0_24] : memref<64x128xf32, #tpu.memory_space<vmem>>, vector<8x128xf32>
    tpu.vector_store %arg15[%74, %c0_24], %73 {strides = array<i32>} : memref<64x128xf32, #tpu.memory_space<vmem>>, vector<8x128xf32>,
    %c2_i32 = arith.constant 2 : i32
    %c8_i32_25 = arith.constant 8 : i32
    %76 = arith.muli %c2_i32, %c8_i32_25 : i32
    %77 = tpu.assume_multiple %76, 8 : i32
    %78 = arith.index_cast %77 : i32 to index
    %c0_26 = arith.constant 0 : index
    %79 = vector.load %arg16[%78, %c0_26] : memref<64x512xf32, #tpu.memory_space<vmem>>, vector<8x512xf32>
    %c0_27 = arith.constant 0 : index
    %c0_28 = arith.constant 0 : index
    %80 = vector.load %arg2[%c0_27, %c0_28] : memref<128x512xf32, #tpu.memory_space<vmem>>, vector<128x512xf32>
    %cst_29 = arith.constant dense<0.000000e+00> : vector<8x512xf32>
    %81 = tpu.matmul %73, %80, %cst_29 {dimension_numbers = #tpu.dot_dimension_numbers<[1], [0], [0], [1], [0, 0, 1, 1], [], []>} : vector<8x128xf32>, vector<128x512xf32>, vector<8x512xf32> -> vector<8x512xf32>
    %82 = arith.addf %79, %81 : vector<8x512xf32>
    %83 = vector.extract_strided_slice %82 {offsets = [0, 0], sizes = [8, 128], strides = [1, 1]} : vector<8x512xf32> to vector<8x128xf32>
    %84 = arith.negf %83 : vector<8x128xf32>
    %85 = math.exp %84 : vector<8x128xf32>
    %cst_30 = arith.constant 1.000000e+00 : f32
    %86 = vector.broadcast %cst_30 : f32 to vector<8x128xf32>
    %87 = arith.addf %86, %85 : vector<8x128xf32>
    %88 = arith.divf %86, %87 : vector<8x128xf32>
    %89 = vector.extract_strided_slice %82 {offsets = [0, 128], sizes = [8, 128], strides = [1, 1]} : vector<8x512xf32> to vector<8x128xf32>
    %90 = arith.negf %89 : vector<8x128xf32>
    %91 = math.exp %90 : vector<8x128xf32>
    %cst_31 = arith.constant 1.000000e+00 : f32
    %92 = vector.broadcast %cst_31 : f32 to vector<8x128xf32>
    %93 = arith.addf %92, %91 : vector<8x128xf32>
    %94 = arith.divf %92, %93 : vector<8x128xf32>
    %95 = vector.extract_strided_slice %82 {offsets = [0, 256], sizes = [8, 128], strides = [1, 1]} : vector<8x512xf32> to vector<8x128xf32>
    %96 = math.tanh %95 : vector<8x128xf32>
    %97 = vector.extract_strided_slice %82 {offsets = [0, 384], sizes = [8, 128], strides = [1, 1]} : vector<8x512xf32> to vector<8x128xf32>
    %98 = arith.negf %97 : vector<8x128xf32>
    %99 = math.exp %98 : vector<8x128xf32>
    %cst_32 = arith.constant 1.000000e+00 : f32
    %100 = vector.broadcast %cst_32 : f32 to vector<8x128xf32>
    %101 = arith.addf %100, %99 : vector<8x128xf32>
    %102 = arith.divf %100, %101 : vector<8x128xf32>
    %103 = arith.mulf %94, %71 : vector<8x128xf32>
    %104 = arith.mulf %88, %96 : vector<8x128xf32>
    %105 = arith.addf %103, %104 : vector<8x128xf32>
    %106 = math.tanh %105 : vector<8x128xf32>
    %107 = arith.mulf %102, %106 : vector<8x128xf32>
    %108 = arith.index_cast %77 : i32 to index
    %c0_33 = arith.constant 0 : index
    %109 = vector.load %arg15[%108, %c0_33] : memref<64x128xf32, #tpu.memory_space<vmem>>, vector<8x128xf32>
    tpu.vector_store %arg15[%108, %c0_33], %107 {strides = array<i32>} : memref<64x128xf32, #tpu.memory_space<vmem>>, vector<8x128xf32>,
    %c3_i32 = arith.constant 3 : i32
    %c8_i32_34 = arith.constant 8 : i32
    %110 = arith.muli %c3_i32, %c8_i32_34 : i32
    %111 = tpu.assume_multiple %110, 8 : i32
    %112 = arith.index_cast %111 : i32 to index
    %c0_35 = arith.constant 0 : index
    %113 = vector.load %arg16[%112, %c0_35] : memref<64x512xf32, #tpu.memory_space<vmem>>, vector<8x512xf32>
    %c0_36 = arith.constant 0 : index
    %c0_37 = arith.constant 0 : index
    %114 = vector.load %arg2[%c0_36, %c0_37] : memref<128x512xf32, #tpu.memory_space<vmem>>, vector<128x512xf32>
    %cst_38 = arith.constant dense<0.000000e+00> : vector<8x512xf32>
    %115 = tpu.matmul %107, %114, %cst_38 {dimension_numbers = #tpu.dot_dimension_numbers<[1], [0], [0], [1], [0, 0, 1, 1], [], []>} : vector<8x128xf32>, vector<128x512xf32>, vector<8x512xf32> -> vector<8x512xf32>
    %116 = arith.addf %113, %115 : vector<8x512xf32>
    %117 = vector.extract_strided_slice %116 {offsets = [0, 0], sizes = [8, 128], strides = [1, 1]} : vector<8x512xf32> to vector<8x128xf32>
    %118 = arith.negf %117 : vector<8x128xf32>
    %119 = math.exp %118 : vector<8x128xf32>
    %cst_39 = arith.constant 1.000000e+00 : f32
    %120 = vector.broadcast %cst_39 : f32 to vector<8x128xf32>
    %121 = arith.addf %120, %119 : vector<8x128xf32>
    %122 = arith.divf %120, %121 : vector<8x128xf32>
    %123 = vector.extract_strided_slice %116 {offsets = [0, 128], sizes = [8, 128], strides = [1, 1]} : vector<8x512xf32> to vector<8x128xf32>
    %124 = arith.negf %123 : vector<8x128xf32>
    %125 = math.exp %124 : vector<8x128xf32>
    %cst_40 = arith.constant 1.000000e+00 : f32
    %126 = vector.broadcast %cst_40 : f32 to vector<8x128xf32>
    %127 = arith.addf %126, %125 : vector<8x128xf32>
    %128 = arith.divf %126, %127 : vector<8x128xf32>
    %129 = vector.extract_strided_slice %116 {offsets = [0, 256], sizes = [8, 128], strides = [1, 1]} : vector<8x512xf32> to vector<8x128xf32>
    %130 = math.tanh %129 : vector<8x128xf32>
    %131 = vector.extract_strided_slice %116 {offsets = [0, 384], sizes = [8, 128], strides = [1, 1]} : vector<8x512xf32> to vector<8x128xf32>
    %132 = arith.negf %131 : vector<8x128xf32>
    %133 = math.exp %132 : vector<8x128xf32>
    %cst_41 = arith.constant 1.000000e+00 : f32
    %134 = vector.broadcast %cst_41 : f32 to vector<8x128xf32>
    %135 = arith.addf %134, %133 : vector<8x128xf32>
    %136 = arith.divf %134, %135 : vector<8x128xf32>
    %137 = arith.mulf %128, %105 : vector<8x128xf32>
    %138 = arith.mulf %122, %130 : vector<8x128xf32>
    %139 = arith.addf %137, %138 : vector<8x128xf32>
    %140 = math.tanh %139 : vector<8x128xf32>
    %141 = arith.mulf %136, %140 : vector<8x128xf32>
    %142 = arith.index_cast %111 : i32 to index
    %c0_42 = arith.constant 0 : index
    %143 = vector.load %arg15[%142, %c0_42] : memref<64x128xf32, #tpu.memory_space<vmem>>, vector<8x128xf32>
    tpu.vector_store %arg15[%142, %c0_42], %141 {strides = array<i32>} : memref<64x128xf32, #tpu.memory_space<vmem>>, vector<8x128xf32>,
    %c4_i32 = arith.constant 4 : i32
    %c8_i32_43 = arith.constant 8 : i32
    %144 = arith.muli %c4_i32, %c8_i32_43 : i32
    %145 = tpu.assume_multiple %144, 8 : i32
    %146 = arith.index_cast %145 : i32 to index
    %c0_44 = arith.constant 0 : index
    %147 = vector.load %arg16[%146, %c0_44] : memref<64x512xf32, #tpu.memory_space<vmem>>, vector<8x512xf32>
    %c0_45 = arith.constant 0 : index
    %c0_46 = arith.constant 0 : index
    %148 = vector.load %arg2[%c0_45, %c0_46] : memref<128x512xf32, #tpu.memory_space<vmem>>, vector<128x512xf32>
    %cst_47 = arith.constant dense<0.000000e+00> : vector<8x512xf32>
    %149 = tpu.matmul %141, %148, %cst_47 {dimension_numbers = #tpu.dot_dimension_numbers<[1], [0], [0], [1], [0, 0, 1, 1], [], []>} : vector<8x128xf32>, vector<128x512xf32>, vector<8x512xf32> -> vector<8x512xf32>
    %150 = arith.addf %147, %149 : vector<8x512xf32>
    %151 = vector.extract_strided_slice %150 {offsets = [0, 0], sizes = [8, 128], strides = [1, 1]} : vector<8x512xf32> to vector<8x128xf32>
    %152 = arith.negf %151 : vector<8x128xf32>
    %153 = math.exp %152 : vector<8x128xf32>
    %cst_48 = arith.constant 1.000000e+00 : f32
    %154 = vector.broadcast %cst_48 : f32 to vector<8x128xf32>
    %155 = arith.addf %154, %153 : vector<8x128xf32>
    %156 = arith.divf %154, %155 : vector<8x128xf32>
    %157 = vector.extract_strided_slice %150 {offsets = [0, 128], sizes = [8, 128], strides = [1, 1]} : vector<8x512xf32> to vector<8x128xf32>
    %158 = arith.negf %157 : vector<8x128xf32>
    %159 = math.exp %158 : vector<8x128xf32>
    %cst_49 = arith.constant 1.000000e+00 : f32
    %160 = vector.broadcast %cst_49 : f32 to vector<8x128xf32>
    %161 = arith.addf %160, %159 : vector<8x128xf32>
    %162 = arith.divf %160, %161 : vector<8x128xf32>
    %163 = vector.extract_strided_slice %150 {offsets = [0, 256], sizes = [8, 128], strides = [1, 1]} : vector<8x512xf32> to vector<8x128xf32>
    %164 = math.tanh %163 : vector<8x128xf32>
    %165 = vector.extract_strided_slice %150 {offsets = [0, 384], sizes = [8, 128], strides = [1, 1]} : vector<8x512xf32> to vector<8x128xf32>
    %166 = arith.negf %165 : vector<8x128xf32>
    %167 = math.exp %166 : vector<8x128xf32>
    %cst_50 = arith.constant 1.000000e+00 : f32
    %168 = vector.broadcast %cst_50 : f32 to vector<8x128xf32>
    %169 = arith.addf %168, %167 : vector<8x128xf32>
    %170 = arith.divf %168, %169 : vector<8x128xf32>
    %171 = arith.mulf %162, %139 : vector<8x128xf32>
    %172 = arith.mulf %156, %164 : vector<8x128xf32>
    %173 = arith.addf %171, %172 : vector<8x128xf32>
    %174 = math.tanh %173 : vector<8x128xf32>
    %175 = arith.mulf %170, %174 : vector<8x128xf32>
    %176 = arith.index_cast %145 : i32 to index
    %c0_51 = arith.constant 0 : index
    %177 = vector.load %arg15[%176, %c0_51] : memref<64x128xf32, #tpu.memory_space<vmem>>, vector<8x128xf32>
    tpu.vector_store %arg15[%176, %c0_51], %175 {strides = array<i32>} : memref<64x128xf32, #tpu.memory_space<vmem>>, vector<8x128xf32>,
    %c5_i32 = arith.constant 5 : i32
    %c8_i32_52 = arith.constant 8 : i32
    %178 = arith.muli %c5_i32, %c8_i32_52 : i32
    %179 = tpu.assume_multiple %178, 8 : i32
    %180 = arith.index_cast %179 : i32 to index
    %c0_53 = arith.constant 0 : index
    %181 = vector.load %arg16[%180, %c0_53] : memref<64x512xf32, #tpu.memory_space<vmem>>, vector<8x512xf32>
    %c0_54 = arith.constant 0 : index
    %c0_55 = arith.constant 0 : index
    %182 = vector.load %arg2[%c0_54, %c0_55] : memref<128x512xf32, #tpu.memory_space<vmem>>, vector<128x512xf32>
    %cst_56 = arith.constant dense<0.000000e+00> : vector<8x512xf32>
    %183 = tpu.matmul %175, %182, %cst_56 {dimension_numbers = #tpu.dot_dimension_numbers<[1], [0], [0], [1], [0, 0, 1, 1], [], []>} : vector<8x128xf32>, vector<128x512xf32>, vector<8x512xf32> -> vector<8x512xf32>
    %184 = arith.addf %181, %183 : vector<8x512xf32>
    %185 = vector.extract_strided_slice %184 {offsets = [0, 0], sizes = [8, 128], strides = [1, 1]} : vector<8x512xf32> to vector<8x128xf32>
    %186 = arith.negf %185 : vector<8x128xf32>
    %187 = math.exp %186 : vector<8x128xf32>
    %cst_57 = arith.constant 1.000000e+00 : f32
    %188 = vector.broadcast %cst_57 : f32 to vector<8x128xf32>
    %189 = arith.addf %188, %187 : vector<8x128xf32>
    %190 = arith.divf %188, %189 : vector<8x128xf32>
    %191 = vector.extract_strided_slice %184 {offsets = [0, 128], sizes = [8, 128], strides = [1, 1]} : vector<8x512xf32> to vector<8x128xf32>
    %192 = arith.negf %191 : vector<8x128xf32>
    %193 = math.exp %192 : vector<8x128xf32>
    %cst_58 = arith.constant 1.000000e+00 : f32
    %194 = vector.broadcast %cst_58 : f32 to vector<8x128xf32>
    %195 = arith.addf %194, %193 : vector<8x128xf32>
    %196 = arith.divf %194, %195 : vector<8x128xf32>
    %197 = vector.extract_strided_slice %184 {offsets = [0, 256], sizes = [8, 128], strides = [1, 1]} : vector<8x512xf32> to vector<8x128xf32>
    %198 = math.tanh %197 : vector<8x128xf32>
    %199 = vector.extract_strided_slice %184 {offsets = [0, 384], sizes = [8, 128], strides = [1, 1]} : vector<8x512xf32> to vector<8x128xf32>
    %200 = arith.negf %199 : vector<8x128xf32>
    %201 = math.exp %200 : vector<8x128xf32>
    %cst_59 = arith.constant 1.000000e+00 : f32
    %202 = vector.broadcast %cst_59 : f32 to vector<8x128xf32>
    %203 = arith.addf %202, %201 : vector<8x128xf32>
    %204 = arith.divf %202, %203 : vector<8x128xf32>
    %205 = arith.mulf %196, %173 : vector<8x128xf32>
    %206 = arith.mulf %190, %198 : vector<8x128xf32>
    %207 = arith.addf %205, %206 : vector<8x128xf32>
    %208 = math.tanh %207 : vector<8x128xf32>
    %209 = arith.mulf %204, %208 : vector<8x128xf32>
    %210 = arith.index_cast %179 : i32 to index
    %c0_60 = arith.constant 0 : index
    %211 = vector.load %arg15[%210, %c0_60] : memref<64x128xf32, #tpu.memory_space<vmem>>, vector<8x128xf32>
    tpu.vector_store %arg15[%210, %c0_60], %209 {strides = array<i32>} : memref<64x128xf32, #tpu.memory_space<vmem>>, vector<8x128xf32>,
    %c6_i32 = arith.constant 6 : i32
    %c8_i32_61 = arith.constant 8 : i32
    %212 = arith.muli %c6_i32, %c8_i32_61 : i32
    %213 = tpu.assume_multiple %212, 8 : i32
    %214 = arith.index_cast %213 : i32 to index
    %c0_62 = arith.constant 0 : index
    %215 = vector.load %arg16[%214, %c0_62] : memref<64x512xf32, #tpu.memory_space<vmem>>, vector<8x512xf32>
    %c0_63 = arith.constant 0 : index
    %c0_64 = arith.constant 0 : index
    %216 = vector.load %arg2[%c0_63, %c0_64] : memref<128x512xf32, #tpu.memory_space<vmem>>, vector<128x512xf32>
    %cst_65 = arith.constant dense<0.000000e+00> : vector<8x512xf32>
    %217 = tpu.matmul %209, %216, %cst_65 {dimension_numbers = #tpu.dot_dimension_numbers<[1], [0], [0], [1], [0, 0, 1, 1], [], []>} : vector<8x128xf32>, vector<128x512xf32>, vector<8x512xf32> -> vector<8x512xf32>
    %218 = arith.addf %215, %217 : vector<8x512xf32>
    %219 = vector.extract_strided_slice %218 {offsets = [0, 0], sizes = [8, 128], strides = [1, 1]} : vector<8x512xf32> to vector<8x128xf32>
    %220 = arith.negf %219 : vector<8x128xf32>
    %221 = math.exp %220 : vector<8x128xf32>
    %cst_66 = arith.constant 1.000000e+00 : f32
    %222 = vector.broadcast %cst_66 : f32 to vector<8x128xf32>
    %223 = arith.addf %222, %221 : vector<8x128xf32>
    %224 = arith.divf %222, %223 : vector<8x128xf32>
    %225 = vector.extract_strided_slice %218 {offsets = [0, 128], sizes = [8, 128], strides = [1, 1]} : vector<8x512xf32> to vector<8x128xf32>
    %226 = arith.negf %225 : vector<8x128xf32>
    %227 = math.exp %226 : vector<8x128xf32>
    %cst_67 = arith.constant 1.000000e+00 : f32
    %228 = vector.broadcast %cst_67 : f32 to vector<8x128xf32>
    %229 = arith.addf %228, %227 : vector<8x128xf32>
    %230 = arith.divf %228, %229 : vector<8x128xf32>
    %231 = vector.extract_strided_slice %218 {offsets = [0, 256], sizes = [8, 128], strides = [1, 1]} : vector<8x512xf32> to vector<8x128xf32>
    %232 = math.tanh %231 : vector<8x128xf32>
    %233 = vector.extract_strided_slice %218 {offsets = [0, 384], sizes = [8, 128], strides = [1, 1]} : vector<8x512xf32> to vector<8x128xf32>
    %234 = arith.negf %233 : vector<8x128xf32>
    %235 = math.exp %234 : vector<8x128xf32>
    %cst_68 = arith.constant 1.000000e+00 : f32
    %236 = vector.broadcast %cst_68 : f32 to vector<8x128xf32>
    %237 = arith.addf %236, %235 : vector<8x128xf32>
    %238 = arith.divf %236, %237 : vector<8x128xf32>
    %239 = arith.mulf %230, %207 : vector<8x128xf32>
    %240 = arith.mulf %224, %232 : vector<8x128xf32>
    %241 = arith.addf %239, %240 : vector<8x128xf32>
    %242 = math.tanh %241 : vector<8x128xf32>
    %243 = arith.mulf %238, %242 : vector<8x128xf32>
    %244 = arith.index_cast %213 : i32 to index
    %c0_69 = arith.constant 0 : index
    %245 = vector.load %arg15[%244, %c0_69] : memref<64x128xf32, #tpu.memory_space<vmem>>, vector<8x128xf32>
    tpu.vector_store %arg15[%244, %c0_69], %243 {strides = array<i32>} : memref<64x128xf32, #tpu.memory_space<vmem>>, vector<8x128xf32>,
    %c7_i32 = arith.constant 7 : i32
    %c8_i32_70 = arith.constant 8 : i32
    %246 = arith.muli %c7_i32, %c8_i32_70 : i32
    %247 = tpu.assume_multiple %246, 8 : i32
    %248 = arith.index_cast %247 : i32 to index
    %c0_71 = arith.constant 0 : index
    %249 = vector.load %arg16[%248, %c0_71] : memref<64x512xf32, #tpu.memory_space<vmem>>, vector<8x512xf32>
    %c0_72 = arith.constant 0 : index
    %c0_73 = arith.constant 0 : index
    %250 = vector.load %arg2[%c0_72, %c0_73] : memref<128x512xf32, #tpu.memory_space<vmem>>, vector<128x512xf32>
    %cst_74 = arith.constant dense<0.000000e+00> : vector<8x512xf32>
    %251 = tpu.matmul %243, %250, %cst_74 {dimension_numbers = #tpu.dot_dimension_numbers<[1], [0], [0], [1], [0, 0, 1, 1], [], []>} : vector<8x128xf32>, vector<128x512xf32>, vector<8x512xf32> -> vector<8x512xf32>
    %252 = arith.addf %249, %251 : vector<8x512xf32>
    %253 = vector.extract_strided_slice %252 {offsets = [0, 0], sizes = [8, 128], strides = [1, 1]} : vector<8x512xf32> to vector<8x128xf32>
    %254 = arith.negf %253 : vector<8x128xf32>
    %255 = math.exp %254 : vector<8x128xf32>
    %cst_75 = arith.constant 1.000000e+00 : f32
    %256 = vector.broadcast %cst_75 : f32 to vector<8x128xf32>
    %257 = arith.addf %256, %255 : vector<8x128xf32>
    %258 = arith.divf %256, %257 : vector<8x128xf32>
    %259 = vector.extract_strided_slice %252 {offsets = [0, 128], sizes = [8, 128], strides = [1, 1]} : vector<8x512xf32> to vector<8x128xf32>
    %260 = arith.negf %259 : vector<8x128xf32>
    %261 = math.exp %260 : vector<8x128xf32>
    %cst_76 = arith.constant 1.000000e+00 : f32
    %262 = vector.broadcast %cst_76 : f32 to vector<8x128xf32>
    %263 = arith.addf %262, %261 : vector<8x128xf32>
    %264 = arith.divf %262, %263 : vector<8x128xf32>
    %265 = vector.extract_strided_slice %252 {offsets = [0, 256], sizes = [8, 128], strides = [1, 1]} : vector<8x512xf32> to vector<8x128xf32>
    %266 = math.tanh %265 : vector<8x128xf32>
    %267 = vector.extract_strided_slice %252 {offsets = [0, 384], sizes = [8, 128], strides = [1, 1]} : vector<8x512xf32> to vector<8x128xf32>
    %268 = arith.negf %267 : vector<8x128xf32>
    %269 = math.exp %268 : vector<8x128xf32>
    %cst_77 = arith.constant 1.000000e+00 : f32
    %270 = vector.broadcast %cst_77 : f32 to vector<8x128xf32>
    %271 = arith.addf %270, %269 : vector<8x128xf32>
    %272 = arith.divf %270, %271 : vector<8x128xf32>
    %273 = arith.mulf %264, %241 : vector<8x128xf32>
    %274 = arith.mulf %258, %266 : vector<8x128xf32>
    %275 = arith.addf %273, %274 : vector<8x128xf32>
    %276 = math.tanh %275 : vector<8x128xf32>
    %277 = arith.mulf %272, %276 : vector<8x128xf32>
    %278 = arith.index_cast %247 : i32 to index
    %c0_78 = arith.constant 0 : index
    %279 = vector.load %arg15[%278, %c0_78] : memref<64x128xf32, #tpu.memory_space<vmem>>, vector<8x128xf32>
    tpu.vector_store %arg15[%278, %c0_78], %277 {strides = array<i32>} : memref<64x128xf32, #tpu.memory_space<vmem>>, vector<8x128xf32>,
    %c8_i32_79 = arith.constant 8 : i32
    %c0_i32_80 = arith.constant 0 : i32
    %c8_i32_81 = arith.constant 8 : i32
    %280 = arith.addi %c0_i32_80, %c8_i32_81 : i32
    %c1_i32_82 = arith.constant 1 : i32
    %281:2 = scf.for %arg17 = %c0_i32_80 to %280 step %c1_i32_82 iter_args(%arg18 = %277, %arg19 = %275) -> (vector<8x128xf32>, vector<8x128xf32>)  : i32 {
      %c0_103 = arith.constant 0 : index
      %c0_104 = arith.constant 0 : index
      %303 = vector.load %arg15[%c0_103, %c0_104] : memref<64x128xf32, #tpu.memory_space<vmem>>, vector<64x128xf32>
      %c0_105 = arith.constant 0 : index
      %c0_106 = arith.constant 0 : index
      %304 = vector.load %arg4[%c0_105, %c0_106] : memref<128x512xf32, #tpu.memory_space<vmem>>, vector<128x512xf32>
      %cst_107 = arith.constant dense<0.000000e+00> : vector<64x512xf32>
      %305 = tpu.matmul %303, %304, %cst_107 {dimension_numbers = #tpu.dot_dimension_numbers<[1], [0], [0], [1], [0, 0, 1, 1], [], []>} : vector<64x128xf32>, vector<128x512xf32>, vector<64x512xf32> -> vector<64x512xf32>
      %c0_108 = arith.constant 0 : index
      %c0_109 = arith.constant 0 : index
      %306 = vector.load %arg6[%c0_108, %c0_109] : memref<1x512xf32, #tpu.memory_space<vmem>>, vector<1x512xf32>
      %307 = vector.broadcast %306 : vector<1x512xf32> to vector<64x512xf32>
      %308 = arith.addf %305, %307 : vector<64x512xf32>
      %c0_110 = arith.constant 0 : index
      %c0_111 = arith.constant 0 : index
      %309 = vector.load %arg16[%c0_110, %c0_111] : memref<64x512xf32, #tpu.memory_space<vmem>>, vector<64x512xf32>
      tpu.vector_store %arg16[%c0_110, %c0_111], %308 {strides = array<i32>} : memref<64x512xf32, #tpu.memory_space<vmem>>, vector<64x512xf32>,
      %c0_i32_112 = arith.constant 0 : i32
      %c8_i32_113 = arith.constant 8 : i32
      %310 = arith.muli %c0_i32_112, %c8_i32_113 : i32
      %311 = tpu.assume_multiple %310, 8 : i32
      %312 = arith.index_cast %311 : i32 to index
      %c0_114 = arith.constant 0 : index
      %313 = vector.load %arg16[%312, %c0_114] : memref<64x512xf32, #tpu.memory_space<vmem>>, vector<8x512xf32>
      %c0_115 = arith.constant 0 : index
      %c0_116 = arith.constant 0 : index
      %314 = vector.load %arg5[%c0_115, %c0_116] : memref<128x512xf32, #tpu.memory_space<vmem>>, vector<128x512xf32>
      %cst_117 = arith.constant dense<0.000000e+00> : vector<8x512xf32>
      %315 = tpu.matmul %arg18, %314, %cst_117 {dimension_numbers = #tpu.dot_dimension_numbers<[1], [0], [0], [1], [0, 0, 1, 1], [], []>} : vector<8x128xf32>, vector<128x512xf32>, vector<8x512xf32> -> vector<8x512xf32>
      %316 = arith.addf %313, %315 : vector<8x512xf32>
      %317 = vector.extract_strided_slice %316 {offsets = [0, 0], sizes = [8, 128], strides = [1, 1]} : vector<8x512xf32> to vector<8x128xf32>
      %318 = arith.negf %317 : vector<8x128xf32>
      %319 = math.exp %318 : vector<8x128xf32>
      %cst_118 = arith.constant 1.000000e+00 : f32
      %320 = vector.broadcast %cst_118 : f32 to vector<8x128xf32>
      %321 = arith.addf %320, %319 : vector<8x128xf32>
      %322 = arith.divf %320, %321 : vector<8x128xf32>
      %323 = vector.extract_strided_slice %316 {offsets = [0, 128], sizes = [8, 128], strides = [1, 1]} : vector<8x512xf32> to vector<8x128xf32>
      %324 = arith.negf %323 : vector<8x128xf32>
      %325 = math.exp %324 : vector<8x128xf32>
      %cst_119 = arith.constant 1.000000e+00 : f32
      %326 = vector.broadcast %cst_119 : f32 to vector<8x128xf32>
      %327 = arith.addf %326, %325 : vector<8x128xf32>
      %328 = arith.divf %326, %327 : vector<8x128xf32>
      %329 = vector.extract_strided_slice %316 {offsets = [0, 256], sizes = [8, 128], strides = [1, 1]} : vector<8x512xf32> to vector<8x128xf32>
      %330 = math.tanh %329 : vector<8x128xf32>
      %331 = vector.extract_strided_slice %316 {offsets = [0, 384], sizes = [8, 128], strides = [1, 1]} : vector<8x512xf32> to vector<8x128xf32>
      %332 = arith.negf %331 : vector<8x128xf32>
      %333 = math.exp %332 : vector<8x128xf32>
      %cst_120 = arith.constant 1.000000e+00 : f32
      %334 = vector.broadcast %cst_120 : f32 to vector<8x128xf32>
      %335 = arith.addf %334, %333 : vector<8x128xf32>
      %336 = arith.divf %334, %335 : vector<8x128xf32>
      %337 = arith.mulf %328, %arg19 : vector<8x128xf32>
      %338 = arith.mulf %322, %330 : vector<8x128xf32>
      %339 = arith.addf %337, %338 : vector<8x128xf32>
      %340 = math.tanh %339 : vector<8x128xf32>
      %341 = arith.mulf %336, %340 : vector<8x128xf32>
      %342 = arith.index_cast %311 : i32 to index
      %c0_121 = arith.constant 0 : index
      %343 = vector.load %arg15[%342, %c0_121] : memref<64x128xf32, #tpu.memory_space<vmem>>, vector<8x128xf32>
      tpu.vector_store %arg15[%342, %c0_121], %341 {strides = array<i32>} : memref<64x128xf32, #tpu.memory_space<vmem>>, vector<8x128xf32>,
      %c1_i32_122 = arith.constant 1 : i32
      %c8_i32_123 = arith.constant 8 : i32
      %344 = arith.muli %c1_i32_122, %c8_i32_123 : i32
      %345 = tpu.assume_multiple %344, 8 : i32
      %346 = arith.index_cast %345 : i32 to index
      %c0_124 = arith.constant 0 : index
      %347 = vector.load %arg16[%346, %c0_124] : memref<64x512xf32, #tpu.memory_space<vmem>>, vector<8x512xf32>
      %c0_125 = arith.constant 0 : index
      %c0_126 = arith.constant 0 : index
      %348 = vector.load %arg5[%c0_125, %c0_126] : memref<128x512xf32, #tpu.memory_space<vmem>>, vector<128x512xf32>
      %cst_127 = arith.constant dense<0.000000e+00> : vector<8x512xf32>
      %349 = tpu.matmul %341, %348, %cst_127 {dimension_numbers = #tpu.dot_dimension_numbers<[1], [0], [0], [1], [0, 0, 1, 1], [], []>} : vector<8x128xf32>, vector<128x512xf32>, vector<8x512xf32> -> vector<8x512xf32>
      %350 = arith.addf %347, %349 : vector<8x512xf32>
      %351 = vector.extract_strided_slice %350 {offsets = [0, 0], sizes = [8, 128], strides = [1, 1]} : vector<8x512xf32> to vector<8x128xf32>
      %352 = arith.negf %351 : vector<8x128xf32>
      %353 = math.exp %352 : vector<8x128xf32>
      %cst_128 = arith.constant 1.000000e+00 : f32
      %354 = vector.broadcast %cst_128 : f32 to vector<8x128xf32>
      %355 = arith.addf %354, %353 : vector<8x128xf32>
      %356 = arith.divf %354, %355 : vector<8x128xf32>
      %357 = vector.extract_strided_slice %350 {offsets = [0, 128], sizes = [8, 128], strides = [1, 1]} : vector<8x512xf32> to vector<8x128xf32>
      %358 = arith.negf %357 : vector<8x128xf32>
      %359 = math.exp %358 : vector<8x128xf32>
      %cst_129 = arith.constant 1.000000e+00 : f32
      %360 = vector.broadcast %cst_129 : f32 to vector<8x128xf32>
      %361 = arith.addf %360, %359 : vector<8x128xf32>
      %362 = arith.divf %360, %361 : vector<8x128xf32>
      %363 = vector.extract_strided_slice %350 {offsets = [0, 256], sizes = [8, 128], strides = [1, 1]} : vector<8x512xf32> to vector<8x128xf32>
      %364 = math.tanh %363 : vector<8x128xf32>
      %365 = vector.extract_strided_slice %350 {offsets = [0, 384], sizes = [8, 128], strides = [1, 1]} : vector<8x512xf32> to vector<8x128xf32>
      %366 = arith.negf %365 : vector<8x128xf32>
      %367 = math.exp %366 : vector<8x128xf32>
      %cst_130 = arith.constant 1.000000e+00 : f32
      %368 = vector.broadcast %cst_130 : f32 to vector<8x128xf32>
      %369 = arith.addf %368, %367 : vector<8x128xf32>
      %370 = arith.divf %368, %369 : vector<8x128xf32>
      %371 = arith.mulf %362, %339 : vector<8x128xf32>
      %372 = arith.mulf %356, %364 : vector<8x128xf32>
      %373 = arith.addf %371, %372 : vector<8x128xf32>
      %374 = math.tanh %373 : vector<8x128xf32>
      %375 = arith.mulf %370, %374 : vector<8x128xf32>
      %376 = arith.index_cast %345 : i32 to index
      %c0_131 = arith.constant 0 : index
      %377 = vector.load %arg15[%376, %c0_131] : memref<64x128xf32, #tpu.memory_space<vmem>>, vector<8x128xf32>
      tpu.vector_store %arg15[%376, %c0_131], %375 {strides = array<i32>} : memref<64x128xf32, #tpu.memory_space<vmem>>, vector<8x128xf32>,
      %c2_i32_132 = arith.constant 2 : i32
      %c8_i32_133 = arith.constant 8 : i32
      %378 = arith.muli %c2_i32_132, %c8_i32_133 : i32
      %379 = tpu.assume_multiple %378, 8 : i32
      %380 = arith.index_cast %379 : i32 to index
      %c0_134 = arith.constant 0 : index
      %381 = vector.load %arg16[%380, %c0_134] : memref<64x512xf32, #tpu.memory_space<vmem>>, vector<8x512xf32>
      %c0_135 = arith.constant 0 : index
      %c0_136 = arith.constant 0 : index
      %382 = vector.load %arg5[%c0_135, %c0_136] : memref<128x512xf32, #tpu.memory_space<vmem>>, vector<128x512xf32>
      %cst_137 = arith.constant dense<0.000000e+00> : vector<8x512xf32>
      %383 = tpu.matmul %375, %382, %cst_137 {dimension_numbers = #tpu.dot_dimension_numbers<[1], [0], [0], [1], [0, 0, 1, 1], [], []>} : vector<8x128xf32>, vector<128x512xf32>, vector<8x512xf32> -> vector<8x512xf32>
      %384 = arith.addf %381, %383 : vector<8x512xf32>
      %385 = vector.extract_strided_slice %384 {offsets = [0, 0], sizes = [8, 128], strides = [1, 1]} : vector<8x512xf32> to vector<8x128xf32>
      %386 = arith.negf %385 : vector<8x128xf32>
      %387 = math.exp %386 : vector<8x128xf32>
      %cst_138 = arith.constant 1.000000e+00 : f32
      %388 = vector.broadcast %cst_138 : f32 to vector<8x128xf32>
      %389 = arith.addf %388, %387 : vector<8x128xf32>
      %390 = arith.divf %388, %389 : vector<8x128xf32>
      %391 = vector.extract_strided_slice %384 {offsets = [0, 128], sizes = [8, 128], strides = [1, 1]} : vector<8x512xf32> to vector<8x128xf32>
      %392 = arith.negf %391 : vector<8x128xf32>
      %393 = math.exp %392 : vector<8x128xf32>
      %cst_139 = arith.constant 1.000000e+00 : f32
      %394 = vector.broadcast %cst_139 : f32 to vector<8x128xf32>
      %395 = arith.addf %394, %393 : vector<8x128xf32>
      %396 = arith.divf %394, %395 : vector<8x128xf32>
      %397 = vector.extract_strided_slice %384 {offsets = [0, 256], sizes = [8, 128], strides = [1, 1]} : vector<8x512xf32> to vector<8x128xf32>
      %398 = math.tanh %397 : vector<8x128xf32>
      %399 = vector.extract_strided_slice %384 {offsets = [0, 384], sizes = [8, 128], strides = [1, 1]} : vector<8x512xf32> to vector<8x128xf32>
      %400 = arith.negf %399 : vector<8x128xf32>
      %401 = math.exp %400 : vector<8x128xf32>
      %cst_140 = arith.constant 1.000000e+00 : f32
      %402 = vector.broadcast %cst_140 : f32 to vector<8x128xf32>
      %403 = arith.addf %402, %401 : vector<8x128xf32>
      %404 = arith.divf %402, %403 : vector<8x128xf32>
      %405 = arith.mulf %396, %373 : vector<8x128xf32>
      %406 = arith.mulf %390, %398 : vector<8x128xf32>
      %407 = arith.addf %405, %406 : vector<8x128xf32>
      %408 = math.tanh %407 : vector<8x128xf32>
      %409 = arith.mulf %404, %408 : vector<8x128xf32>
      %410 = arith.index_cast %379 : i32 to index
      %c0_141 = arith.constant 0 : index
      %411 = vector.load %arg15[%410, %c0_141] : memref<64x128xf32, #tpu.memory_space<vmem>>, vector<8x128xf32>
      tpu.vector_store %arg15[%410, %c0_141], %409 {strides = array<i32>} : memref<64x128xf32, #tpu.memory_space<vmem>>, vector<8x128xf32>,
      %c3_i32_142 = arith.constant 3 : i32
      %c8_i32_143 = arith.constant 8 : i32
      %412 = arith.muli %c3_i32_142, %c8_i32_143 : i32
      %413 = tpu.assume_multiple %412, 8 : i32
      %414 = arith.index_cast %413 : i32 to index
      %c0_144 = arith.constant 0 : index
      %415 = vector.load %arg16[%414, %c0_144] : memref<64x512xf32, #tpu.memory_space<vmem>>, vector<8x512xf32>
      %c0_145 = arith.constant 0 : index
      %c0_146 = arith.constant 0 : index
      %416 = vector.load %arg5[%c0_145, %c0_146] : memref<128x512xf32, #tpu.memory_space<vmem>>, vector<128x512xf32>
      %cst_147 = arith.constant dense<0.000000e+00> : vector<8x512xf32>
      %417 = tpu.matmul %409, %416, %cst_147 {dimension_numbers = #tpu.dot_dimension_numbers<[1], [0], [0], [1], [0, 0, 1, 1], [], []>} : vector<8x128xf32>, vector<128x512xf32>, vector<8x512xf32> -> vector<8x512xf32>
      %418 = arith.addf %415, %417 : vector<8x512xf32>
      %419 = vector.extract_strided_slice %418 {offsets = [0, 0], sizes = [8, 128], strides = [1, 1]} : vector<8x512xf32> to vector<8x128xf32>
      %420 = arith.negf %419 : vector<8x128xf32>
      %421 = math.exp %420 : vector<8x128xf32>
      %cst_148 = arith.constant 1.000000e+00 : f32
      %422 = vector.broadcast %cst_148 : f32 to vector<8x128xf32>
      %423 = arith.addf %422, %421 : vector<8x128xf32>
      %424 = arith.divf %422, %423 : vector<8x128xf32>
      %425 = vector.extract_strided_slice %418 {offsets = [0, 128], sizes = [8, 128], strides = [1, 1]} : vector<8x512xf32> to vector<8x128xf32>
      %426 = arith.negf %425 : vector<8x128xf32>
      %427 = math.exp %426 : vector<8x128xf32>
      %cst_149 = arith.constant 1.000000e+00 : f32
      %428 = vector.broadcast %cst_149 : f32 to vector<8x128xf32>
      %429 = arith.addf %428, %427 : vector<8x128xf32>
      %430 = arith.divf %428, %429 : vector<8x128xf32>
      %431 = vector.extract_strided_slice %418 {offsets = [0, 256], sizes = [8, 128], strides = [1, 1]} : vector<8x512xf32> to vector<8x128xf32>
      %432 = math.tanh %431 : vector<8x128xf32>
      %433 = vector.extract_strided_slice %418 {offsets = [0, 384], sizes = [8, 128], strides = [1, 1]} : vector<8x512xf32> to vector<8x128xf32>
      %434 = arith.negf %433 : vector<8x128xf32>
      %435 = math.exp %434 : vector<8x128xf32>
      %cst_150 = arith.constant 1.000000e+00 : f32
      %436 = vector.broadcast %cst_150 : f32 to vector<8x128xf32>
      %437 = arith.addf %436, %435 : vector<8x128xf32>
      %438 = arith.divf %436, %437 : vector<8x128xf32>
      %439 = arith.mulf %430, %407 : vector<8x128xf32>
      %440 = arith.mulf %424, %432 : vector<8x128xf32>
      %441 = arith.addf %439, %440 : vector<8x128xf32>
      %442 = math.tanh %441 : vector<8x128xf32>
      %443 = arith.mulf %438, %442 : vector<8x128xf32>
      %444 = arith.index_cast %413 : i32 to index
      %c0_151 = arith.constant 0 : index
      %445 = vector.load %arg15[%444, %c0_151] : memref<64x128xf32, #tpu.memory_space<vmem>>, vector<8x128xf32>
      tpu.vector_store %arg15[%444, %c0_151], %443 {strides = array<i32>} : memref<64x128xf32, #tpu.memory_space<vmem>>, vector<8x128xf32>,
      %c4_i32_152 = arith.constant 4 : i32
      %c8_i32_153 = arith.constant 8 : i32
      %446 = arith.muli %c4_i32_152, %c8_i32_153 : i32
      %447 = tpu.assume_multiple %446, 8 : i32
      %448 = arith.index_cast %447 : i32 to index
      %c0_154 = arith.constant 0 : index
      %449 = vector.load %arg16[%448, %c0_154] : memref<64x512xf32, #tpu.memory_space<vmem>>, vector<8x512xf32>
      %c0_155 = arith.constant 0 : index
      %c0_156 = arith.constant 0 : index
      %450 = vector.load %arg5[%c0_155, %c0_156] : memref<128x512xf32, #tpu.memory_space<vmem>>, vector<128x512xf32>
      %cst_157 = arith.constant dense<0.000000e+00> : vector<8x512xf32>
      %451 = tpu.matmul %443, %450, %cst_157 {dimension_numbers = #tpu.dot_dimension_numbers<[1], [0], [0], [1], [0, 0, 1, 1], [], []>} : vector<8x128xf32>, vector<128x512xf32>, vector<8x512xf32> -> vector<8x512xf32>
      %452 = arith.addf %449, %451 : vector<8x512xf32>
      %453 = vector.extract_strided_slice %452 {offsets = [0, 0], sizes = [8, 128], strides = [1, 1]} : vector<8x512xf32> to vector<8x128xf32>
      %454 = arith.negf %453 : vector<8x128xf32>
      %455 = math.exp %454 : vector<8x128xf32>
      %cst_158 = arith.constant 1.000000e+00 : f32
      %456 = vector.broadcast %cst_158 : f32 to vector<8x128xf32>
      %457 = arith.addf %456, %455 : vector<8x128xf32>
      %458 = arith.divf %456, %457 : vector<8x128xf32>
      %459 = vector.extract_strided_slice %452 {offsets = [0, 128], sizes = [8, 128], strides = [1, 1]} : vector<8x512xf32> to vector<8x128xf32>
      %460 = arith.negf %459 : vector<8x128xf32>
      %461 = math.exp %460 : vector<8x128xf32>
      %cst_159 = arith.constant 1.000000e+00 : f32
      %462 = vector.broadcast %cst_159 : f32 to vector<8x128xf32>
      %463 = arith.addf %462, %461 : vector<8x128xf32>
      %464 = arith.divf %462, %463 : vector<8x128xf32>
      %465 = vector.extract_strided_slice %452 {offsets = [0, 256], sizes = [8, 128], strides = [1, 1]} : vector<8x512xf32> to vector<8x128xf32>
      %466 = math.tanh %465 : vector<8x128xf32>
      %467 = vector.extract_strided_slice %452 {offsets = [0, 384], sizes = [8, 128], strides = [1, 1]} : vector<8x512xf32> to vector<8x128xf32>
      %468 = arith.negf %467 : vector<8x128xf32>
      %469 = math.exp %468 : vector<8x128xf32>
      %cst_160 = arith.constant 1.000000e+00 : f32
      %470 = vector.broadcast %cst_160 : f32 to vector<8x128xf32>
      %471 = arith.addf %470, %469 : vector<8x128xf32>
      %472 = arith.divf %470, %471 : vector<8x128xf32>
      %473 = arith.mulf %464, %441 : vector<8x128xf32>
      %474 = arith.mulf %458, %466 : vector<8x128xf32>
      %475 = arith.addf %473, %474 : vector<8x128xf32>
      %476 = math.tanh %475 : vector<8x128xf32>
      %477 = arith.mulf %472, %476 : vector<8x128xf32>
      %478 = arith.index_cast %447 : i32 to index
      %c0_161 = arith.constant 0 : index
      %479 = vector.load %arg15[%478, %c0_161] : memref<64x128xf32, #tpu.memory_space<vmem>>, vector<8x128xf32>
      tpu.vector_store %arg15[%478, %c0_161], %477 {strides = array<i32>} : memref<64x128xf32, #tpu.memory_space<vmem>>, vector<8x128xf32>,
      %c5_i32_162 = arith.constant 5 : i32
      %c8_i32_163 = arith.constant 8 : i32
      %480 = arith.muli %c5_i32_162, %c8_i32_163 : i32
      %481 = tpu.assume_multiple %480, 8 : i32
      %482 = arith.index_cast %481 : i32 to index
      %c0_164 = arith.constant 0 : index
      %483 = vector.load %arg16[%482, %c0_164] : memref<64x512xf32, #tpu.memory_space<vmem>>, vector<8x512xf32>
      %c0_165 = arith.constant 0 : index
      %c0_166 = arith.constant 0 : index
      %484 = vector.load %arg5[%c0_165, %c0_166] : memref<128x512xf32, #tpu.memory_space<vmem>>, vector<128x512xf32>
      %cst_167 = arith.constant dense<0.000000e+00> : vector<8x512xf32>
      %485 = tpu.matmul %477, %484, %cst_167 {dimension_numbers = #tpu.dot_dimension_numbers<[1], [0], [0], [1], [0, 0, 1, 1], [], []>} : vector<8x128xf32>, vector<128x512xf32>, vector<8x512xf32> -> vector<8x512xf32>
      %486 = arith.addf %483, %485 : vector<8x512xf32>
      %487 = vector.extract_strided_slice %486 {offsets = [0, 0], sizes = [8, 128], strides = [1, 1]} : vector<8x512xf32> to vector<8x128xf32>
      %488 = arith.negf %487 : vector<8x128xf32>
      %489 = math.exp %488 : vector<8x128xf32>
      %cst_168 = arith.constant 1.000000e+00 : f32
      %490 = vector.broadcast %cst_168 : f32 to vector<8x128xf32>
      %491 = arith.addf %490, %489 : vector<8x128xf32>
      %492 = arith.divf %490, %491 : vector<8x128xf32>
      %493 = vector.extract_strided_slice %486 {offsets = [0, 128], sizes = [8, 128], strides = [1, 1]} : vector<8x512xf32> to vector<8x128xf32>
      %494 = arith.negf %493 : vector<8x128xf32>
      %495 = math.exp %494 : vector<8x128xf32>
      %cst_169 = arith.constant 1.000000e+00 : f32
      %496 = vector.broadcast %cst_169 : f32 to vector<8x128xf32>
      %497 = arith.addf %496, %495 : vector<8x128xf32>
      %498 = arith.divf %496, %497 : vector<8x128xf32>
      %499 = vector.extract_strided_slice %486 {offsets = [0, 256], sizes = [8, 128], strides = [1, 1]} : vector<8x512xf32> to vector<8x128xf32>
      %500 = math.tanh %499 : vector<8x128xf32>
      %501 = vector.extract_strided_slice %486 {offsets = [0, 384], sizes = [8, 128], strides = [1, 1]} : vector<8x512xf32> to vector<8x128xf32>
      %502 = arith.negf %501 : vector<8x128xf32>
      %503 = math.exp %502 : vector<8x128xf32>
      %cst_170 = arith.constant 1.000000e+00 : f32
      %504 = vector.broadcast %cst_170 : f32 to vector<8x128xf32>
      %505 = arith.addf %504, %503 : vector<8x128xf32>
      %506 = arith.divf %504, %505 : vector<8x128xf32>
      %507 = arith.mulf %498, %475 : vector<8x128xf32>
      %508 = arith.mulf %492, %500 : vector<8x128xf32>
      %509 = arith.addf %507, %508 : vector<8x128xf32>
      %510 = math.tanh %509 : vector<8x128xf32>
      %511 = arith.mulf %506, %510 : vector<8x128xf32>
      %512 = arith.index_cast %481 : i32 to index
      %c0_171 = arith.constant 0 : index
      %513 = vector.load %arg15[%512, %c0_171] : memref<64x128xf32, #tpu.memory_space<vmem>>, vector<8x128xf32>
      tpu.vector_store %arg15[%512, %c0_171], %511 {strides = array<i32>} : memref<64x128xf32, #tpu.memory_space<vmem>>, vector<8x128xf32>,
      %c6_i32_172 = arith.constant 6 : i32
      %c8_i32_173 = arith.constant 8 : i32
      %514 = arith.muli %c6_i32_172, %c8_i32_173 : i32
      %515 = tpu.assume_multiple %514, 8 : i32
      %516 = arith.index_cast %515 : i32 to index
      %c0_174 = arith.constant 0 : index
      %517 = vector.load %arg16[%516, %c0_174] : memref<64x512xf32, #tpu.memory_space<vmem>>, vector<8x512xf32>
      %c0_175 = arith.constant 0 : index
      %c0_176 = arith.constant 0 : index
      %518 = vector.load %arg5[%c0_175, %c0_176] : memref<128x512xf32, #tpu.memory_space<vmem>>, vector<128x512xf32>
      %cst_177 = arith.constant dense<0.000000e+00> : vector<8x512xf32>
      %519 = tpu.matmul %511, %518, %cst_177 {dimension_numbers = #tpu.dot_dimension_numbers<[1], [0], [0], [1], [0, 0, 1, 1], [], []>} : vector<8x128xf32>, vector<128x512xf32>, vector<8x512xf32> -> vector<8x512xf32>
      %520 = arith.addf %517, %519 : vector<8x512xf32>
      %521 = vector.extract_strided_slice %520 {offsets = [0, 0], sizes = [8, 128], strides = [1, 1]} : vector<8x512xf32> to vector<8x128xf32>
      %522 = arith.negf %521 : vector<8x128xf32>
      %523 = math.exp %522 : vector<8x128xf32>
      %cst_178 = arith.constant 1.000000e+00 : f32
      %524 = vector.broadcast %cst_178 : f32 to vector<8x128xf32>
      %525 = arith.addf %524, %523 : vector<8x128xf32>
      %526 = arith.divf %524, %525 : vector<8x128xf32>
      %527 = vector.extract_strided_slice %520 {offsets = [0, 128], sizes = [8, 128], strides = [1, 1]} : vector<8x512xf32> to vector<8x128xf32>
      %528 = arith.negf %527 : vector<8x128xf32>
      %529 = math.exp %528 : vector<8x128xf32>
      %cst_179 = arith.constant 1.000000e+00 : f32
      %530 = vector.broadcast %cst_179 : f32 to vector<8x128xf32>
      %531 = arith.addf %530, %529 : vector<8x128xf32>
      %532 = arith.divf %530, %531 : vector<8x128xf32>
      %533 = vector.extract_strided_slice %520 {offsets = [0, 256], sizes = [8, 128], strides = [1, 1]} : vector<8x512xf32> to vector<8x128xf32>
      %534 = math.tanh %533 : vector<8x128xf32>
      %535 = vector.extract_strided_slice %520 {offsets = [0, 384], sizes = [8, 128], strides = [1, 1]} : vector<8x512xf32> to vector<8x128xf32>
      %536 = arith.negf %535 : vector<8x128xf32>
      %537 = math.exp %536 : vector<8x128xf32>
      %cst_180 = arith.constant 1.000000e+00 : f32
      %538 = vector.broadcast %cst_180 : f32 to vector<8x128xf32>
      %539 = arith.addf %538, %537 : vector<8x128xf32>
      %540 = arith.divf %538, %539 : vector<8x128xf32>
      %541 = arith.mulf %532, %509 : vector<8x128xf32>
      %542 = arith.mulf %526, %534 : vector<8x128xf32>
      %543 = arith.addf %541, %542 : vector<8x128xf32>
      %544 = math.tanh %543 : vector<8x128xf32>
      %545 = arith.mulf %540, %544 : vector<8x128xf32>
      %546 = arith.index_cast %515 : i32 to index
      %c0_181 = arith.constant 0 : index
      %547 = vector.load %arg15[%546, %c0_181] : memref<64x128xf32, #tpu.memory_space<vmem>>, vector<8x128xf32>
      tpu.vector_store %arg15[%546, %c0_181], %545 {strides = array<i32>} : memref<64x128xf32, #tpu.memory_space<vmem>>, vector<8x128xf32>,
      %c7_i32_182 = arith.constant 7 : i32
      %c8_i32_183 = arith.constant 8 : i32
      %548 = arith.muli %c7_i32_182, %c8_i32_183 : i32
      %549 = tpu.assume_multiple %548, 8 : i32
      %550 = arith.index_cast %549 : i32 to index
      %c0_184 = arith.constant 0 : index
      %551 = vector.load %arg16[%550, %c0_184] : memref<64x512xf32, #tpu.memory_space<vmem>>, vector<8x512xf32>
      %c0_185 = arith.constant 0 : index
      %c0_186 = arith.constant 0 : index
      %552 = vector.load %arg5[%c0_185, %c0_186] : memref<128x512xf32, #tpu.memory_space<vmem>>, vector<128x512xf32>
      %cst_187 = arith.constant dense<0.000000e+00> : vector<8x512xf32>
      %553 = tpu.matmul %545, %552, %cst_187 {dimension_numbers = #tpu.dot_dimension_numbers<[1], [0], [0], [1], [0, 0, 1, 1], [], []>} : vector<8x128xf32>, vector<128x512xf32>, vector<8x512xf32> -> vector<8x512xf32>
      %554 = arith.addf %551, %553 : vector<8x512xf32>
      %555 = vector.extract_strided_slice %554 {offsets = [0, 0], sizes = [8, 128], strides = [1, 1]} : vector<8x512xf32> to vector<8x128xf32>
      %556 = arith.negf %555 : vector<8x128xf32>
      %557 = math.exp %556 : vector<8x128xf32>
      %cst_188 = arith.constant 1.000000e+00 : f32
      %558 = vector.broadcast %cst_188 : f32 to vector<8x128xf32>
      %559 = arith.addf %558, %557 : vector<8x128xf32>
      %560 = arith.divf %558, %559 : vector<8x128xf32>
      %561 = vector.extract_strided_slice %554 {offsets = [0, 128], sizes = [8, 128], strides = [1, 1]} : vector<8x512xf32> to vector<8x128xf32>
      %562 = arith.negf %561 : vector<8x128xf32>
      %563 = math.exp %562 : vector<8x128xf32>
      %cst_189 = arith.constant 1.000000e+00 : f32
      %564 = vector.broadcast %cst_189 : f32 to vector<8x128xf32>
      %565 = arith.addf %564, %563 : vector<8x128xf32>
      %566 = arith.divf %564, %565 : vector<8x128xf32>
      %567 = vector.extract_strided_slice %554 {offsets = [0, 256], sizes = [8, 128], strides = [1, 1]} : vector<8x512xf32> to vector<8x128xf32>
      %568 = math.tanh %567 : vector<8x128xf32>
      %569 = vector.extract_strided_slice %554 {offsets = [0, 384], sizes = [8, 128], strides = [1, 1]} : vector<8x512xf32> to vector<8x128xf32>
      %570 = arith.negf %569 : vector<8x128xf32>
      %571 = math.exp %570 : vector<8x128xf32>
      %cst_190 = arith.constant 1.000000e+00 : f32
      %572 = vector.broadcast %cst_190 : f32 to vector<8x128xf32>
      %573 = arith.addf %572, %571 : vector<8x128xf32>
      %574 = arith.divf %572, %573 : vector<8x128xf32>
      %575 = arith.mulf %566, %543 : vector<8x128xf32>
      %576 = arith.mulf %560, %568 : vector<8x128xf32>
      %577 = arith.addf %575, %576 : vector<8x128xf32>
      %578 = math.tanh %577 : vector<8x128xf32>
      %579 = arith.mulf %574, %578 : vector<8x128xf32>
      %580 = arith.index_cast %549 : i32 to index
      %c0_191 = arith.constant 0 : index
      %581 = vector.load %arg15[%580, %c0_191] : memref<64x128xf32, #tpu.memory_space<vmem>>, vector<8x128xf32>
      tpu.vector_store %arg15[%580, %c0_191], %579 {strides = array<i32>} : memref<64x128xf32, #tpu.memory_space<vmem>>, vector<8x128xf32>,
      %c8_i32_192 = arith.constant 8 : i32
      scf.yield %579, %577 : vector<8x128xf32>, vector<8x128xf32>
    }
    %c0_83 = arith.constant 0 : index
    %c0_84 = arith.constant 0 : index
    %282 = vector.load %arg7[%c0_83, %c0_84] : memref<8x128xf32, #tpu.memory_space<vmem>>, vector<8x128xf32>
    %c0_85 = arith.constant 0 : index
    %c0_86 = arith.constant 0 : index
    %283 = vector.load %arg8[%c0_85, %c0_86] : memref<128x128xf32, #tpu.memory_space<vmem>>, vector<128x128xf32>
    %cst_87 = arith.constant dense<0.000000e+00> : vector<8x128xf32>
    %284 = tpu.matmul %282, %283, %cst_87 {dimension_numbers = #tpu.dot_dimension_numbers<[1], [0], [0], [1], [0, 0, 1, 1], [], []>} : vector<8x128xf32>, vector<128x128xf32>, vector<8x128xf32> -> vector<8x128xf32>
    %c0_88 = arith.constant 0 : index
    %c0_89 = arith.constant 0 : index
    %285 = vector.load %arg9[%c0_88, %c0_89] : memref<1x128xf32, #tpu.memory_space<vmem>>, vector<1x128xf32>
    %286 = vector.broadcast %285 : vector<1x128xf32> to vector<8x128xf32>
    %287 = arith.addf %284, %286 : vector<8x128xf32>
    %c0_90 = arith.constant 0 : index
    %c0_91 = arith.constant 0 : index
    %288 = memref.load %arg10[%c0_90, %c0_91] : memref<1x1xf32, #tpu.memory_space<smem>>
    %cst_92 = arith.constant 0.000000e+00 : f32
    %289 = vector.broadcast %cst_92 : f32 to vector<8x128xf32>
    %290 = arith.cmpf oge, %287, %289 : vector<8x128xf32>
    %291 = vector.broadcast %288 : f32 to vector<8x128xf32>
    %292 = arith.mulf %291, %287 : vector<8x128xf32>
    %293 = arith.select %290, %287, %292 : vector<8x128xi1>, vector<8x128xf32>
    %c0_93 = arith.constant 0 : index
    %c0_94 = arith.constant 0 : index
    %294 = vector.load %arg11[%c0_93, %c0_94] : memref<128x128xf32, #tpu.memory_space<vmem>>, vector<128x128xf32>
    %cst_95 = arith.constant dense<0.000000e+00> : vector<8x128xf32>
    %295 = tpu.matmul %281#0, %294, %cst_95 {dimension_numbers = #tpu.dot_dimension_numbers<[1], [0], [0], [1], [0, 0, 1, 1], [], []>} : vector<8x128xf32>, vector<128x128xf32>, vector<8x128xf32> -> vector<8x128xf32>
    %c0_96 = arith.constant 0 : index
    %c0_97 = arith.constant 0 : index
    %296 = vector.load %arg12[%c0_96, %c0_97] : memref<128x128xf32, #tpu.memory_space<vmem>>, vector<128x128xf32>
    %cst_98 = arith.constant dense<0.000000e+00> : vector<8x128xf32>
    %297 = tpu.matmul %293, %296, %cst_98 {dimension_numbers = #tpu.dot_dimension_numbers<[1], [0], [0], [1], [0, 0, 1, 1], [], []>} : vector<8x128xf32>, vector<128x128xf32>, vector<8x128xf32> -> vector<8x128xf32>
    %298 = arith.addf %295, %297 : vector<8x128xf32>
    %c0_99 = arith.constant 0 : index
    %c0_100 = arith.constant 0 : index
    %299 = vector.load %arg13[%c0_99, %c0_100] : memref<1x128xf32, #tpu.memory_space<vmem>>, vector<1x128xf32>
    %300 = vector.broadcast %299 : vector<1x128xf32> to vector<8x128xf32>
    %301 = arith.addf %298, %300 : vector<8x128xf32>
    %c0_101 = arith.constant 0 : index
    %c0_102 = arith.constant 0 : index
    %302 = vector.load %arg14[%c0_101, %c0_102] : memref<8x128xf32, #tpu.memory_space<vmem>>, vector<8x128xf32>
    tpu.vector_store %arg14[%c0_101, %c0_102], %301 {strides = array<i32>} : memref<8x128xf32, #tpu.memory_space<vmem>>, vector<8x128xf32>,
    return
  }
}

</mosaic_0001>

<llo_original>
// kernel: alibaba_encoder_decoder_forward.1
$region0: #{alibaba_encoder_decoder_forward.1}
  #allocation0 [shape = 'u32[]', space=smem, size = 0x4, offset = 0x4, fixed_abs, tag = 'smem constant byte address 0x4 - core index']
  #allocation1 [shape = 'u32[144,128]{1,0:T(1,128)}', space=vmem, size = 0x12000, scoped, tag = 'internal scratch']
  #allocation2 [shape = 'f32[64,128]{1,0:T(8,128)}', space=vmem, size = 0x8000, scoped, tag = 'scratch operand']
  #allocation3 [shape = 'f32[64,512]{1,0:T(8,128)}', space=vmem, size = 0x20000, scoped, tag = 'scratch operand']
  #allocation4 [shape = 'f32[1,1]{1,0:T(1,128)S(6)}', space=smem, size = 0x200, scoped, tag = 'scoped memory for alibaba_encoder_decoder_forward.1']
  %s0 = inlined_call_operand.vmem [shape: f32[64,128], index: 0, kind: input, shape index: {}]
  %s1 = inlined_call_operand.vmem [shape: f32[128,512], index: 1, kind: input, shape index: {}]
  %s2 = inlined_call_operand.vmem [shape: f32[128,512], index: 2, kind: input, shape index: {}]
  %s3 = inlined_call_operand.vmem [shape: f32[1,512], index: 3, kind: input, shape index: {}]
  %s4 = inlined_call_operand.vmem [shape: f32[128,512], index: 4, kind: input, shape index: {}]
  %s5 = inlined_call_operand.vmem [shape: f32[128,512], index: 5, kind: input, shape index: {}]
  %s6 = inlined_call_operand.vmem [shape: f32[1,512], index: 6, kind: input, shape index: {}]
  %s7 = inlined_call_operand.vmem [shape: f32[8,128], index: 7, kind: input, shape index: {}]
  %s8 = inlined_call_operand.vmem [shape: f32[128,128], index: 8, kind: input, shape index: {}]
  %s9 = inlined_call_operand.vmem [shape: f32[1,128], index: 9, kind: input, shape index: {}]
  %s10 = inlined_call_operand.<no memory space> [shape: f32[1,1], index: 10, kind: input, shape index: {}]
  %s11 = inlined_call_operand.vmem [shape: f32[128,128], index: 11, kind: input, shape index: {}]
  %s12 = inlined_call_operand.vmem [shape: f32[128,128], index: 12, kind: input, shape index: {}]
  %s13 = inlined_call_operand.vmem [shape: f32[1,128], index: 13, kind: input, shape index: {}]
  %s14 = inlined_call_operand.vmem [shape: f32[8,128], index: 14, kind: output, shape index: {}]
  %s15 = sld [smem:[#allocation0]]
  $region73: #{alibaba_encoder_decoder_forward.1} parent=0
    _
  %s17 = ssub.s32 1, %s15
  %s18 = scalar_select 0, %s17, %s15
  %19 = sst [smem:[#allocation4]] %s10
  // Predicated region
  $region2: #{alibaba_encoder_decoder_forward.1} parent=0 // pred_check
    _
  $region3: #{alibaba_encoder_decoder_forward.1} parent=0 // pred_check_branch
    %21 = sbr.rel (0) target = $region5
  $region4: #{alibaba_encoder_decoder_forward.1} parent=0 // pred_region
    _
  $region5: #{alibaba_encoder_decoder_forward.1} parent=0 // pred_fallthru
    _
  // Predicated region
  $region6: #{alibaba_encoder_decoder_forward.1} parent=0 // pred_check
    _
  $region7: #{alibaba_encoder_decoder_forward.1} parent=0 // pred_check_branch
    %23 = sbr.rel (0) target = $region9
  $region8: #{alibaba_encoder_decoder_forward.1} parent=0 // pred_region
    _
  $region9: #{alibaba_encoder_decoder_forward.1} parent=0 // pred_fallthru
    _
  // Predicated region
  $region10: #{alibaba_encoder_decoder_forward.1} parent=0 // pred_check
    _
  $region11: #{alibaba_encoder_decoder_forward.1} parent=0 // pred_check_branch
    %25 = sbr.rel (0) target = $region13
  $region12: #{alibaba_encoder_decoder_forward.1} parent=0 // pred_region
    _
  $region13: #{alibaba_encoder_decoder_forward.1} parent=0 // pred_fallthru
    _
  // Predicated region
  $region14: #{alibaba_encoder_decoder_forward.1} parent=0 // pred_check
    _
  $region15: #{alibaba_encoder_decoder_forward.1} parent=0 // pred_check_branch
    %27 = sbr.rel (0) target = $region17
  $region16: #{alibaba_encoder_decoder_forward.1} parent=0 // pred_region
    _
  $region17: #{alibaba_encoder_decoder_forward.1} parent=0 // pred_fallthru
    _
  // Predicated region
  $region18: #{alibaba_encoder_decoder_forward.1} parent=0 // pred_check
    _
  $region19: #{alibaba_encoder_decoder_forward.1} parent=0 // pred_check_branch
    %29 = sbr.rel (0) target = $region21
  $region20: #{alibaba_encoder_decoder_forward.1} parent=0 // pred_region
    _
  $region21: #{alibaba_encoder_decoder_forward.1} parent=0 // pred_fallthru
    _
  // Predicated region
  $region22: #{alibaba_encoder_decoder_forward.1} parent=0 // pred_check
    _
  $region23: #{alibaba_encoder_decoder_forward.1} parent=0 // pred_check_branch
    %31 = sbr.rel (0) target = $region25
  $region24: #{alibaba_encoder_decoder_forward.1} parent=0 // pred_region
    _
  $region25: #{alibaba_encoder_decoder_forward.1} parent=0 // pred_fallthru
    _
  // Predicated region
  $region26: #{alibaba_encoder_decoder_forward.1} parent=0 // pred_check
    _
  $region27: #{alibaba_encoder_decoder_forward.1} parent=0 // pred_check_branch
    %33 = sbr.rel (0) target = $region29
  $region28: #{alibaba_encoder_decoder_forward.1} parent=0 // pred_region
    _
  $region29: #{alibaba_encoder_decoder_forward.1} parent=0 // pred_fallthru
    _
  // Predicated region
  $region30: #{alibaba_encoder_decoder_forward.1} parent=0 // pred_check
    _
  $region31: #{alibaba_encoder_decoder_forward.1} parent=0 // pred_check_branch
    %35 = sbr.rel (0) target = $region33
  $region32: #{alibaba_encoder_decoder_forward.1} parent=0 // pred_region
    _
  $region33: #{alibaba_encoder_decoder_forward.1} parent=0 // pred_fallthru
    _
  // Predicated region
  $region34: #{alibaba_encoder_decoder_forward.1} parent=0 // pred_check
    _
  $region35: #{alibaba_encoder_decoder_forward.1} parent=0 // pred_check_branch
    %37 = sbr.rel (0) target = $region37
  $region36: #{alibaba_encoder_decoder_forward.1} parent=0 // pred_region
    _
  $region37: #{alibaba_encoder_decoder_forward.1} parent=0 // pred_fallthru
    _
  // Predicated region
  $region38: #{alibaba_encoder_decoder_forward.1} parent=0 // pred_check
    _
  $region39: #{alibaba_encoder_decoder_forward.1} parent=0 // pred_check_branch
    %39 = sbr.rel (0) target = $region41
  $region40: #{alibaba_encoder_decoder_forward.1} parent=0 // pred_region
    _
  $region41: #{alibaba_encoder_decoder_forward.1} parent=0 // pred_fallthru
    _
  // Predicated region
  $region42: #{alibaba_encoder_decoder_forward.1} parent=0 // pred_check
    _
  $region43: #{alibaba_encoder_decoder_forward.1} parent=0 // pred_check_branch
    %41 = sbr.rel (0) target = $region45
  $region44: #{alibaba_encoder_decoder_forward.1} parent=0 // pred_region
    _
  $region45: #{alibaba_encoder_decoder_forward.1} parent=0 // pred_fallthru
    _
  // Predicated region
  $region46: #{alibaba_encoder_decoder_forward.1} parent=0 // pred_check
    _
  $region47: #{alibaba_encoder_decoder_forward.1} parent=0 // pred_check_branch
    %43 = sbr.rel (0) target = $region49
  $region48: #{alibaba_encoder_decoder_forward.1} parent=0 // pred_region
    _
  $region49: #{alibaba_encoder_decoder_forward.1} parent=0 // pred_fallthru
    _
  // Predicated region
  $region50: #{alibaba_encoder_decoder_forward.1} parent=0 // pred_check
    _
  $region51: #{alibaba_encoder_decoder_forward.1} parent=0 // pred_check_branch
    %45 = sbr.rel (0) target = $region53
  $region52: #{alibaba_encoder_decoder_forward.1} parent=0 // pred_region
    _
  $region53: #{alibaba_encoder_decoder_forward.1} parent=0 // pred_fallthru
    _
  // Predicated region
  $region54: #{alibaba_encoder_decoder_forward.1} parent=0 // pred_check
    _
  $region55: #{alibaba_encoder_decoder_forward.1} parent=0 // pred_check_branch
    %47 = sbr.rel (0) target = $region57
  $region56: #{alibaba_encoder_decoder_forward.1} parent=0 // pred_region
    _
  $region57: #{alibaba_encoder_decoder_forward.1} parent=0 // pred_fallthru
    _
  %v48 = vld [vmem:[%s0] sm:$0xff]
  %v49 = vld [vmem:[%s0 + $0x8] sm:$0xff]
  %v50 = vld [vmem:[%s0 + $0x10] sm:$0xff]
  %v51 = vld [vmem:[%s0 + $0x18] sm:$0xff]
  %v52 = vld [vmem:[%s0 + $0x20] sm:$0xff]
  %v53 = vld [vmem:[%s0 + $0x28] sm:$0xff]
  %v54 = vld [vmem:[%s0 + $0x30] sm:$0xff]
  %v55 = vld [vmem:[%s0 + $0x38] sm:$0xff]
  %v56 = vld [vmem:[%s1] sm:$0xff]
  %v57 = vld [vmem:[%s1 + $0x8] sm:$0xff]
  %v58 = vld [vmem:[%s1 + $0x10] sm:$0xff]
  %v59 = vld [vmem:[%s1 + $0x18] sm:$0xff]
  %v60 = vld [vmem:[%s1 + $0x20] sm:$0xff]
  %v61 = vld [vmem:[%s1 + $0x28] sm:$0xff]
  %v62 = vld [vmem:[%s1 + $0x30] sm:$0xff]
  %v63 = vld [vmem:[%s1 + $0x38] sm:$0xff]
  %v64 = vld [vmem:[%s1 + $0x40] sm:$0xff]
  %v65 = vld [vmem:[%s1 + $0x48] sm:$0xff]
  %v66 = vld [vmem:[%s1 + $0x50] sm:$0xff]
  %v67 = vld [vmem:[%s1 + $0x58] sm:$0xff]
  %v68 = vld [vmem:[%s1 + $0x60] sm:$0xff]
  %v69 = vld [vmem:[%s1 + $0x68] sm:$0xff]
  %v70 = vld [vmem:[%s1 + $0x70] sm:$0xff]
  %v71 = vld [vmem:[%s1 + $0x78] sm:$0xff]
  %v72 = vld [vmem:[%s1 + $0x80] sm:$0xff]
  %v73 = vld [vmem:[%s1 + $0x88] sm:$0xff]
  %v74 = vld [vmem:[%s1 + $0x90] sm:$0xff]
  %v75 = vld [vmem:[%s1 + $0x98] sm:$0xff]
  %v76 = vld [vmem:[%s1 + $0xa0] sm:$0xff]
  %v77 = vld [vmem:[%s1 + $0xa8] sm:$0xff]
  %v78 = vld [vmem:[%s1 + $0xb0] sm:$0xff]
  %v79 = vld [vmem:[%s1 + $0xb8] sm:$0xff]
  %v80 = vld [vmem:[%s1 + $0xc0] sm:$0xff]
  %v81 = vld [vmem:[%s1 + $0xc8] sm:$0xff]
  %v82 = vld [vmem:[%s1 + $0xd0] sm:$0xff]
  %v83 = vld [vmem:[%s1 + $0xd8] sm:$0xff]
  %v84 = vld [vmem:[%s1 + $0xe0] sm:$0xff]
  %v85 = vld [vmem:[%s1 + $0xe8] sm:$0xff]
  %v86 = vld [vmem:[%s1 + $0xf0] sm:$0xff]
  %v87 = vld [vmem:[%s1 + $0xf8] sm:$0xff]
  %v88 = vld [vmem:[%s1 + $0x100] sm:$0xff]
  %v89 = vld [vmem:[%s1 + $0x108] sm:$0xff]
  %v90 = vld [vmem:[%s1 + $0x110] sm:$0xff]
  %v91 = vld [vmem:[%s1 + $0x118] sm:$0xff]
  %v92 = vld [vmem:[%s1 + $0x120] sm:$0xff]
  %v93 = vld [vmem:[%s1 + $0x128] sm:$0xff]
  %v94 = vld [vmem:[%s1 + $0x130] sm:$0xff]
  %v95 = vld [vmem:[%s1 + $0x138] sm:$0xff]
  %v96 = vld [vmem:[%s1 + $0x140] sm:$0xff]
  %v97 = vld [vmem:[%s1 + $0x148] sm:$0xff]
  %v98 = vld [vmem:[%s1 + $0x150] sm:$0xff]
  %v99 = vld [vmem:[%s1 + $0x158] sm:$0xff]
  %v100 = vld [vmem:[%s1 + $0x160] sm:$0xff]
  %v101 = vld [vmem:[%s1 + $0x168] sm:$0xff]
  %v102 = vld [vmem:[%s1 + $0x170] sm:$0xff]
  %v103 = vld [vmem:[%s1 + $0x178] sm:$0xff]
  %v104 = vld [vmem:[%s1 + $0x180] sm:$0xff]
  %v105 = vld [vmem:[%s1 + $0x188] sm:$0xff]
  %v106 = vld [vmem:[%s1 + $0x190] sm:$0xff]
  %v107 = vld [vmem:[%s1 + $0x198] sm:$0xff]
  %v108 = vld [vmem:[%s1 + $0x1a0] sm:$0xff]
  %v109 = vld [vmem:[%s1 + $0x1a8] sm:$0xff]
  %v110 = vld [vmem:[%s1 + $0x1b0] sm:$0xff]
  %v111 = vld [vmem:[%s1 + $0x1b8] sm:$0xff]
  %v112 = vld [vmem:[%s1 + $0x1c0] sm:$0xff]
  %v113 = vld [vmem:[%s1 + $0x1c8] sm:$0xff]
  %v114 = vld [vmem:[%s1 + $0x1d0] sm:$0xff]
  %v115 = vld [vmem:[%s1 + $0x1d8] sm:$0xff]
  %v116 = vld [vmem:[%s1 + $0x1e0] sm:$0xff]
  %v117 = vld [vmem:[%s1 + $0x1e8] sm:$0xff]
  %v118 = vld [vmem:[%s1 + $0x1f0] sm:$0xff]
  %v119 = vld [vmem:[%s1 + $0x1f8] sm:$0xff]
  %v120 = vld [vmem:[%s3] sm:$0xf]
  %v122 = vlaneseq
  %v123 = vshrl.u32 %v122, 7
  %v124 = vsub.s32 0, %v123
  %v125 = vrot.slane %v120, %v124
  %v126 = vlaneseq
  %v127 = vshrl.u32 %v126, 7
  %v128 = vsub.s32 1, %v127
  %v129 = vrot.slane %v120, %v128
  %v130 = vlaneseq
  %v131 = vshrl.u32 %v130, 7
  %v132 = vsub.s32 2, %v131
  %v133 = vrot.slane %v120, %v132
  %v134 = vlaneseq
  %v135 = vshrl.u32 %v134, 7
  %v136 = vsub.s32 3, %v135
  %v137 = vrot.slane %v120, %v136
  %142 = vmatprep.subr.mxu0 %v57
  %143 = vmatpush1.msra.mxu0 %v56
  %144 = vmatprep.subr.mxu0 %v61
  %145 = vmatpush1.msra.mxu0 %v60
  %146 = vmatprep.subr.mxu0 %v65
  %147 = vmatpush1.msra.mxu0 %v64
  %148 = vmatprep.subr.mxu0 %v69
  %149 = vmatpush1.msra.mxu0 %v68
  %150 = vmatprep.subr.mxu0 %v73
  %151 = vmatpush1.msra.mxu0 %v72
  %152 = vmatprep.subr.mxu0 %v77
  %153 = vmatpush1.msra.mxu0 %v76
  %154 = vmatprep.subr.mxu0 %v81
  %155 = vmatpush1.msra.mxu0 %v80
  %156 = vmatprep.subr.mxu0 %v85
  %157 = vmatpush1.msra.mxu0 %v84
  %158 = vmatprep.subr.mxu0 %v89
  %159 = vmatpush1.msra.mxu0 %v88
  %160 = vmatprep.subr.mxu0 %v93
  %161 = vmatpush1.msra.mxu0 %v92
  %162 = vmatprep.subr.mxu0 %v97
  %163 = vmatpush1.msra.mxu0 %v96
  %164 = vmatprep.subr.mxu0 %v101
  %165 = vmatpush1.msra.mxu0 %v100
  %166 = vmatprep.subr.mxu0 %v105
  %167 = vmatpush1.msra.mxu0 %v104
  %168 = vmatprep.subr.mxu0 %v109
  %169 = vmatpush1.msra.mxu0 %v108
  %170 = vmatprep.subr.mxu0 %v113
  %171 = vmatpush1.msra.mxu0 %v112
  %172 = vmatprep.subr.mxu0 %v117
  %173 = vmatpush1.msra.mxu0 %v116
  %174 = vmatprep.subr.mxu0 0.0
  %175 = vmatpush1.msra.mxu0 0.0
  %176 = vmatprep.subr.mxu0 0.0
  %177 = vmatpush1.msra.mxu0 0.0
  %178 = vmatprep.subr.mxu0 0.0
  %179 = vmatpush1.msra.mxu0 0.0
  %180 = vmatprep.subr.mxu0 0.0
  %181 = vmatpush1.msra.mxu0 0.0
  %182 = vmatprep.subr.mxu0 0.0
  %183 = vmatpush1.msra.mxu0 0.0
  %184 = vmatprep.subr.mxu0 0.0
  %185 = vmatpush1.msra.mxu0 0.0
  %186 = vmatprep.subr.mxu0 0.0
  %187 = vmatpush1.msra.mxu0 0.0
  %188 = vmatprep.subr.mxu0 0.0
  %189 = vmatpush1.msra.mxu0 0.0
  %190 = vmatprep.subr.mxu0 0.0
  %191 = vmatpush1.msra.mxu0 0.0
  %192 = vmatprep.subr.mxu0 0.0
  %193 = vmatpush1.msra.mxu0 0.0
  %194 = vmatprep.subr.mxu0 0.0
  %195 = vmatpush1.msra.mxu0 0.0
  %196 = vmatprep.subr.mxu0 0.0
  %197 = vmatpush1.msra.mxu0 0.0
  %198 = vmatprep.subr.mxu0 0.0
  %199 = vmatpush1.msra.mxu0 0.0
  %200 = vmatprep.subr.mxu0 0.0
  %201 = vmatpush1.msra.mxu0 0.0
  %202 = vmatprep.subr.mxu0 0.0
  %203 = vmatpush1.msra.mxu0 0.0
  %204 = vmatprep.subr.mxu0 0.0
  %205 = vmatpush1.msra.mxu0 0.0
  %206 = vmatprep.mubr.f32.mxu0 0.0
  %207 = vmatmul.mubr.f32.gmra.mrb[0].mxu0 %v48
  %v208 = vpop.f32.mrb[0].mxu0
  %v209 = vadd.f32 %v125, %v208
  %v210 = vpop.f32.mrb[0].mxu0
  %v211 = vadd.f32 %v129, %v210
  %212 = vmatprep.mubr.f32.mxu0 0.0
  %213 = vmatmul.mubr.f32.gmra.mrb[0].mxu0 %v49
  %v214 = vpop.f32.mrb[0].mxu0
  %v215 = vadd.f32 %v125, %v214
  %v216 = vpop.f32.mrb[0].mxu0
  %v217 = vadd.f32 %v129, %v216
  %218 = vmatprep.mubr.f32.mxu0 0.0
  %219 = vmatmul.mubr.f32.gmra.mrb[0].mxu0 %v50
  %v220 = vpop.f32.mrb[0].mxu0
  %v221 = vadd.f32 %v125, %v220
  %v222 = vpop.f32.mrb[0].mxu0
  %v223 = vadd.f32 %v129, %v222
  %224 = vmatprep.mubr.f32.mxu0 0.0
  %225 = vmatmul.mubr.f32.gmra.mrb[0].mxu0 %v51
  %v226 = vpop.f32.mrb[0].mxu0
  %v227 = vadd.f32 %v125, %v226
  %v228 = vpop.f32.mrb[0].mxu0
  %v229 = vadd.f32 %v129, %v228
  %230 = vmatprep.mubr.f32.mxu0 0.0
  %231 = vmatmul.mubr.f32.gmra.mrb[0].mxu0 %v52
  %v232 = vpop.f32.mrb[0].mxu0
  %v233 = vadd.f32 %v125, %v232
  %v234 = vpop.f32.mrb[0].mxu0
  %v235 = vadd.f32 %v129, %v234
  %236 = vmatprep.mubr.f32.mxu0 0.0
  %237 = vmatmul.mubr.f32.gmra.mrb[0].mxu0 %v53
  %v238 = vpop.f32.mrb[0].mxu0
  %v239 = vadd.f32 %v125, %v238
  %v240 = vpop.f32.mrb[0].mxu0
  %v241 = vadd.f32 %v129, %v240
  %242 = vmatprep.mubr.f32.mxu0 0.0
  %243 = vmatmul.mubr.f32.gmra.mrb[0].mxu0 %v54
  %v244 = vpop.f32.mrb[0].mxu0
  %v245 = vadd.f32 %v125, %v244
  %v246 = vpop.f32.mrb[0].mxu0
  %v247 = vadd.f32 %v129, %v246
  %248 = vmatprep.mubr.f32.mxu0 0.0
  %249 = vmatmul.mubr.f32.gmra.mrb[0].mxu0 %v55
  %v250 = vpop.f32.mrb[0].mxu0
  %v251 = vadd.f32 %v125, %v250
  %v252 = vpop.f32.mrb[0].mxu0
  %v253 = vadd.f32 %v129, %v252
  %254 = vdwg.mxu0
  %255 = vmatprep.subr.mxu0 %v59
  %256 = vmatpush1.msra.mxu0 %v58
  %257 = vmatprep.subr.mxu0 %v63
  %258 = vmatpush1.msra.mxu0 %v62
  %259 = vmatprep.subr.mxu0 %v67
  %260 = vmatpush1.msra.mxu0 %v66
  %261 = vmatprep.subr.mxu0 %v71
  %262 = vmatpush1.msra.mxu0 %v70
  %263 = vmatprep.subr.mxu0 %v75
  %264 = vmatpush1.msra.mxu0 %v74
  %265 = vmatprep.subr.mxu0 %v79
  %266 = vmatpush1.msra.mxu0 %v78
  %267 = vmatprep.subr.mxu0 %v83
  %268 = vmatpush1.msra.mxu0 %v82
  %269 = vmatprep.subr.mxu0 %v87
  %270 = vmatpush1.msra.mxu0 %v86
  %271 = vmatprep.subr.mxu0 %v91
  %272 = vmatpush1.msra.mxu0 %v90
  %273 = vmatprep.subr.mxu0 %v95
  %274 = vmatpush1.msra.mxu0 %v94
  %275 = vmatprep.subr.mxu0 %v99
  %276 = vmatpush1.msra.mxu0 %v98
  %277 = vmatprep.subr.mxu0 %v103
  %278 = vmatpush1.msra.mxu0 %v102
  %279 = vmatprep.subr.mxu0 %v107
  %280 = vmatpush1.msra.mxu0 %v106
  %281 = vmatprep.subr.mxu0 %v111
  %282 = vmatpush1.msra.mxu0 %v110
  %283 = vmatprep.subr.mxu0 %v115
  %284 = vmatpush1.msra.mxu0 %v114
  %285 = vmatprep.subr.mxu0 %v119
  %286 = vmatpush1.msra.mxu0 %v118
  %287 = vmatprep.subr.mxu0 0.0
  %288 = vmatpush1.msra.mxu0 0.0
  %289 = vmatprep.subr.mxu0 0.0
  %290 = vmatpush1.msra.mxu0 0.0
  %291 = vmatprep.subr.mxu0 0.0
  %292 = vmatpush1.msra.mxu0 0.0
  %293 = vmatprep.subr.mxu0 0.0
  %294 = vmatpush1.msra.mxu0 0.0
  %295 = vmatprep.subr.mxu0 0.0
  %296 = vmatpush1.msra.mxu0 0.0
  %297 = vmatprep.subr.mxu0 0.0
  %298 = vmatpush1.msra.mxu0 0.0
  %299 = vmatprep.subr.mxu0 0.0
  %300 = vmatpush1.msra.mxu0 0.0
  %301 = vmatprep.subr.mxu0 0.0
  %302 = vmatpush1.msra.mxu0 0.0
  %303 = vmatprep.subr.mxu0 0.0
  %304 = vmatpush1.msra.mxu0 0.0
  %305 = vmatprep.subr.mxu0 0.0
  %306 = vmatpush1.msra.mxu0 0.0
  %307 = vmatprep.subr.mxu0 0.0
  %308 = vmatpush1.msra.mxu0 0.0
  %309 = vmatprep.subr.mxu0 0.0
  %310 = vmatpush1.msra.mxu0 0.0
  %311 = vmatprep.subr.mxu0 0.0
  %312 = vmatpush1.msra.mxu0 0.0
  %313 = vmatprep.subr.mxu0 0.0
  %314 = vmatpush1.msra.mxu0 0.0
  %315 = vmatprep.subr.mxu0 0.0
  %316 = vmatpush1.msra.mxu0 0.0
  %317 = vmatprep.subr.mxu0 0.0
  %318 = vmatpush1.msra.mxu0 0.0
  %319 = vmatprep.mubr.f32.mxu0 0.0
  %320 = vmatmul.mubr.f32.gmra.mrb[0].mxu0 %v48
  %v321 = vpop.f32.mrb[0].mxu0
  %v322 = vadd.f32 %v133, %v321
  %v323 = vpop.f32.mrb[0].mxu0
  %v324 = vadd.f32 %v137, %v323
  %325 = vmatprep.mubr.f32.mxu0 0.0
  %326 = vmatmul.mubr.f32.gmra.mrb[0].mxu0 %v49
  %v327 = vpop.f32.mrb[0].mxu0
  %v328 = vadd.f32 %v133, %v327
  %v329 = vpop.f32.mrb[0].mxu0
  %v330 = vadd.f32 %v137, %v329
  %331 = vmatprep.mubr.f32.mxu0 0.0
  %332 = vmatmul.mubr.f32.gmra.mrb[0].mxu0 %v50
  %v333 = vpop.f32.mrb[0].mxu0
  %v334 = vadd.f32 %v133, %v333
  %v335 = vpop.f32.mrb[0].mxu0
  %v336 = vadd.f32 %v137, %v335
  %337 = vmatprep.mubr.f32.mxu0 0.0
  %338 = vmatmul.mubr.f32.gmra.mrb[0].mxu0 %v51
  %v339 = vpop.f32.mrb[0].mxu0
  %v340 = vadd.f32 %v133, %v339
  %v341 = vpop.f32.mrb[0].mxu0
  %v342 = vadd.f32 %v137, %v341
  %343 = vmatprep.mubr.f32.mxu0 0.0
  %344 = vmatmul.mubr.f32.gmra.mrb[0].mxu0 %v52
  %v345 = vpop.f32.mrb[0].mxu0
  %v346 = vadd.f32 %v133, %v345
  %v347 = vpop.f32.mrb[0].mxu0
  %v348 = vadd.f32 %v137, %v347
  %349 = vmatprep.mubr.f32.mxu0 0.0
  %350 = vmatmul.mubr.f32.gmra.mrb[0].mxu0 %v53
  %v351 = vpop.f32.mrb[0].mxu0
  %v352 = vadd.f32 %v133, %v351
  %v353 = vpop.f32.mrb[0].mxu0
  %v354 = vadd.f32 %v137, %v353
  %355 = vmatprep.mubr.f32.mxu0 0.0
  %356 = vmatmul.mubr.f32.gmra.mrb[0].mxu0 %v54
  %v357 = vpop.f32.mrb[0].mxu0
  %v358 = vadd.f32 %v133, %v357
  %v359 = vpop.f32.mrb[0].mxu0
  %v360 = vadd.f32 %v137, %v359
  %361 = vmatprep.mubr.f32.mxu0 0.0
  %362 = vmatmul.mubr.f32.gmra.mrb[0].mxu0 %v55
  %v363 = vpop.f32.mrb[0].mxu0
  %v364 = vadd.f32 %v133, %v363
  %v365 = vpop.f32.mrb[0].mxu0
  %v366 = vadd.f32 %v137, %v365
  %367 = vdwg.mxu0
  %368 = vst [vmem:[#allocation3] sm:$0xff] %v209
  %369 = vst [vmem:[#allocation3 + $0x8] sm:$0xff] %v211
  %370 = vst [vmem:[#allocation3 + $0x10] sm:$0xff] %v322
  %371 = vst [vmem:[#allocation3 + $0x18] sm:$0xff] %v324
  %372 = vst [vmem:[#allocation3 + $0x20] sm:$0xff] %v215
  %373 = vst [vmem:[#allocation3 + $0x28] sm:$0xff] %v217
  %374 = vst [vmem:[#allocation3 + $0x30] sm:$0xff] %v328
  %375 = vst [vmem:[#allocation3 + $0x38] sm:$0xff] %v330
  %376 = vst [vmem:[#allocation3 + $0x40] sm:$0xff] %v221
  %377 = vst [vmem:[#allocation3 + $0x48] sm:$0xff] %v223
  %378 = vst [vmem:[#allocation3 + $0x50] sm:$0xff] %v334
  %379 = vst [vmem:[#allocation3 + $0x58] sm:$0xff] %v336
  %380 = vst [vmem:[#allocation3 + $0x60] sm:$0xff] %v227
  %381 = vst [vmem:[#allocation3 + $0x68] sm:$0xff] %v229
  %382 = vst [vmem:[#allocation3 + $0x70] sm:$0xff] %v340
  %383 = vst [vmem:[#allocation3 + $0x78] sm:$0xff] %v342
  %384 = vst [vmem:[#allocation3 + $0x80] sm:$0xff] %v233
  %385 = vst [vmem:[#allocation3 + $0x88] sm:$0xff] %v235
  %386 = vst [vmem:[#allocation3 + $0x90] sm:$0xff] %v346
  %387 = vst [vmem:[#allocation3 + $0x98] sm:$0xff] %v348
  %388 = vst [vmem:[#allocation3 + $0xa0] sm:$0xff] %v239
  %389 = vst [vmem:[#allocation3 + $0xa8] sm:$0xff] %v241
  %390 = vst [vmem:[#allocation3 + $0xb0] sm:$0xff] %v352
  %391 = vst [vmem:[#allocation3 + $0xb8] sm:$0xff] %v354
  %392 = vst [vmem:[#allocation3 + $0xc0] sm:$0xff] %v245
  %393 = vst [vmem:[#allocation3 + $0xc8] sm:$0xff] %v247
  %394 = vst [vmem:[#allocation3 + $0xd0] sm:$0xff] %v358
  %395 = vst [vmem:[#allocation3 + $0xd8] sm:$0xff] %v360
  %396 = vst [vmem:[#allocation3 + $0xe0] sm:$0xff] %v251
  %397 = vst [vmem:[#allocation3 + $0xe8] sm:$0xff] %v253
  %398 = vst [vmem:[#allocation3 + $0xf0] sm:$0xff] %v364
  %399 = vst [vmem:[#allocation3 + $0xf8] sm:$0xff] %v366
  %s400 = smul.u32 0, 4
  %s401 = smul.addr %s400, 8
  %s402 = scalar_lea.vmem [#allocation3], %s401
  %v403 = vld [vmem:[%s402] sm:$0xff]
  %v404 = vld [vmem:[%s402 + $0x8] sm:$0xff]
  %v405 = vld [vmem:[%s402 + $0x10] sm:$0xff]
  %v406 = vld [vmem:[%s402 + $0x18] sm:$0xff]
  %v407 = vld [vmem:[%s2] sm:$0xff]
  %v408 = vld [vmem:[%s2 + $0x8] sm:$0xff]
  %v409 = vld [vmem:[%s2 + $0x10] sm:$0xff]
  %v410 = vld [vmem:[%s2 + $0x18] sm:$0xff]
  %v411 = vld [vmem:[%s2 + $0x20] sm:$0xff]
  %v412 = vld [vmem:[%s2 + $0x28] sm:$0xff]
  %v413 = vld [vmem:[%s2 + $0x30] sm:$0xff]
  %v414 = vld [vmem:[%s2 + $0x38] sm:$0xff]
  %v415 = vld [vmem:[%s2 + $0x40] sm:$0xff]
  %v416 = vld [vmem:[%s2 + $0x48] sm:$0xff]
  %v417 = vld [vmem:[%s2 + $0x50] sm:$0xff]
  %v418 = vld [vmem:[%s2 + $0x58] sm:$0xff]
  %v419 = vld [vmem:[%s2 + $0x60] sm:$0xff]
  %v420 = vld [vmem:[%s2 + $0x68] sm:$0xff]
  %v421 = vld [vmem:[%s2 + $0x70] sm:$0xff]
  %v422 = vld [vmem:[%s2 + $0x78] sm:$0xff]
  %v423 = vld [vmem:[%s2 + $0x80] sm:$0xff]
  %v424 = vld [vmem:[%s2 + $0x88] sm:$0xff]
  %v425 = vld [vmem:[%s2 + $0x90] sm:$0xff]
  %v426 = vld [vmem:[%s2 + $0x98] sm:$0xff]
  %v427 = vld [vmem:[%s2 + $0xa0] sm:$0xff]
  %v428 = vld [vmem:[%s2 + $0xa8] sm:$0xff]
  %v429 = vld [vmem:[%s2 + $0xb0] sm:$0xff]
  %v430 = vld [vmem:[%s2 + $0xb8] sm:$0xff]
  %v431 = vld [vmem:[%s2 + $0xc0] sm:$0xff]
  %v432 = vld [vmem:[%s2 + $0xc8] sm:$0xff]
  %v433 = vld [vmem:[%s2 + $0xd0] sm:$0xff]
  %v434 = vld [vmem:[%s2 + $0xd8] sm:$0xff]
  %v435 = vld [vmem:[%s2 + $0xe0] sm:$0xff]
  %v436 = vld [vmem:[%s2 + $0xe8] sm:$0xff]
  %v437 = vld [vmem:[%s2 + $0xf0] sm:$0xff]
  %v438 = vld [vmem:[%s2 + $0xf8] sm:$0xff]
  %v439 = vld [vmem:[%s2 + $0x100] sm:$0xff]
  %v440 = vld [vmem:[%s2 + $0x108] sm:$0xff]
  %v441 = vld [vmem:[%s2 + $0x110] sm:$0xff]
  %v442 = vld [vmem:[%s2 + $0x118] sm:$0xff]
  %v443 = vld [vmem:[%s2 + $0x120] sm:$0xff]
  %v444 = vld [vmem:[%s2 + $0x128] sm:$0xff]
  %v445 = vld [vmem:[%s2 + $0x130] sm:$0xff]
  %v446 = vld [vmem:[%s2 + $0x138] sm:$0xff]
  %v447 = vld [vmem:[%s2 + $0x140] sm:$0xff]
  %v448 = vld [vmem:[%s2 + $0x148] sm:$0xff]
  %v449 = vld [vmem:[%s2 + $0x150] sm:$0xff]
  %v450 = vld [vmem:[%s2 + $0x158] sm:$0xff]
  %v451 = vld [vmem:[%s2 + $0x160] sm:$0xff]
  %v452 = vld [vmem:[%s2 + $0x168] sm:$0xff]
  %v453 = vld [vmem:[%s2 + $0x170] sm:$0xff]
  %v454 = vld [vmem:[%s2 + $0x178] sm:$0xff]
  %v455 = vld [vmem:[%s2 + $0x180] sm:$0xff]
  %v456 = vld [vmem:[%s2 + $0x188] sm:$0xff]
  %v457 = vld [vmem:[%s2 + $0x190] sm:$0xff]
  %v458 = vld [vmem:[%s2 + $0x198] sm:$0xff]
  %v459 = vld [vmem:[%s2 + $0x1a0] sm:$0xff]
  %v460 = vld [vmem:[%s2 + $0x1a8] sm:$0xff]
  %v461 = vld [vmem:[%s2 + $0x1b0] sm:$0xff]
  %v462 = vld [vmem:[%s2 + $0x1b8] sm:$0xff]
  %v463 = vld [vmem:[%s2 + $0x1c0] sm:$0xff]
  %v464 = vld [vmem:[%s2 + $0x1c8] sm:$0xff]
  %v465 = vld [vmem:[%s2 + $0x1d0] sm:$0xff]
  %v466 = vld [vmem:[%s2 + $0x1d8] sm:$0xff]
  %v467 = vld [vmem:[%s2 + $0x1e0] sm:$0xff]
  %v468 = vld [vmem:[%s2 + $0x1e8] sm:$0xff]
  %v469 = vld [vmem:[%s2 + $0x1f0] sm:$0xff]
  %v470 = vld [vmem:[%s2 + $0x1f8] sm:$0xff]
  %471 = vmatprep.subr.mxu0 %v408
  %472 = vmatpush1.msra.mxu0 %v407
  %473 = vmatprep.subr.mxu0 %v412
  %474 = vmatpush1.msra.mxu0 %v411
  %475 = vmatprep.subr.mxu0 %v416
  %476 = vmatpush1.msra.mxu0 %v415
  %477 = vmatprep.subr.mxu0 %v420
  %478 = vmatpush1.msra.mxu0 %v419
  %479 = vmatprep.subr.mxu0 %v424
  %480 = vmatpush1.msra.mxu0 %v423
  %481 = vmatprep.subr.mxu0 %v428
  %482 = vmatpush1.msra.mxu0 %v427
  %483 = vmatprep.subr.mxu0 %v432
  %484 = vmatpush1.msra.mxu0 %v431
  %485 = vmatprep.subr.mxu0 %v436
  %486 = vmatpush1.msra.mxu0 %v435
  %487 = vmatprep.subr.mxu0 %v440
  %488 = vmatpush1.msra.mxu0 %v439
  %489 = vmatprep.subr.mxu0 %v444
  %490 = vmatpush1.msra.mxu0 %v443
  %491 = vmatprep.subr.mxu0 %v448
  %492 = vmatpush1.msra.mxu0 %v447
  %493 = vmatprep.subr.mxu0 %v452
  %494 = vmatpush1.msra.mxu0 %v451
  %495 = vmatprep.subr.mxu0 %v456
  %496 = vmatpush1.msra.mxu0 %v455
  %497 = vmatprep.subr.mxu0 %v460
  %498 = vmatpush1.msra.mxu0 %v459
  %499 = vmatprep.subr.mxu0 %v464
  %500 = vmatpush1.msra.mxu0 %v463
  %501 = vmatprep.subr.mxu0 %v468
  %502 = vmatpush1.msra.mxu0 %v467
  %503 = vmatprep.subr.mxu0 0.0
  %504 = vmatpush1.msra.mxu0 0.0
  %505 = vmatprep.subr.mxu0 0.0
  %506 = vmatpush1.msra.mxu0 0.0
  %507 = vmatprep.subr.mxu0 0.0
  %508 = vmatpush1.msra.mxu0 0.0
  %509 = vmatprep.subr.mxu0 0.0
  %510 = vmatpush1.msra.mxu0 0.0
  %511 = vmatprep.subr.mxu0 0.0
  %512 = vmatpush1.msra.mxu0 0.0
  %513 = vmatprep.subr.mxu0 0.0
  %514 = vmatpush1.msra.mxu0 0.0
  %515 = vmatprep.subr.mxu0 0.0
  %516 = vmatpush1.msra.mxu0 0.0
  %517 = vmatprep.subr.mxu0 0.0
  %518 = vmatpush1.msra.mxu0 0.0
  %519 = vmatprep.subr.mxu0 0.0
  %520 = vmatpush1.msra.mxu0 0.0
  %521 = vmatprep.subr.mxu0 0.0
  %522 = vmatpush1.msra.mxu0 0.0
  %523 = vmatprep.subr.mxu0 0.0
  %524 = vmatpush1.msra.mxu0 0.0
  %525 = vmatprep.subr.mxu0 0.0
  %526 = vmatpush1.msra.mxu0 0.0
  %527 = vmatprep.subr.mxu0 0.0
  %528 = vmatpush1.msra.mxu0 0.0
  %529 = vmatprep.subr.mxu0 0.0
  %530 = vmatpush1.msra.mxu0 0.0
  %531 = vmatprep.subr.mxu0 0.0
  %532 = vmatpush1.msra.mxu0 0.0
  %533 = vmatprep.subr.mxu0 0.0
  %534 = vmatpush1.msra.mxu0 0.0
  %535 = vmatprep.mubr.f32.mxu0 0.0
  %536 = vmatmul.mubr.f32.gmra.mrb[0].mxu0 0.0
  %v537 = vpop.f32.mrb[0].mxu0
  %v538 = vadd.f32 0.0, %v537
  %v539 = vpop.f32.mrb[0].mxu0
  %v540 = vadd.f32 0.0, %v539
  %541 = vdwg.mxu0
  %542 = vmatprep.subr.mxu0 %v410
  %543 = vmatpush1.msra.mxu0 %v409
  %544 = vmatprep.subr.mxu0 %v414
  %545 = vmatpush1.msra.mxu0 %v413
  %546 = vmatprep.subr.mxu0 %v418
  %547 = vmatpush1.msra.mxu0 %v417
  %548 = vmatprep.subr.mxu0 %v422
  %549 = vmatpush1.msra.mxu0 %v421
  %550 = vmatprep.subr.mxu0 %v426
  %551 = vmatpush1.msra.mxu0 %v425
  %552 = vmatprep.subr.mxu0 %v430
  %553 = vmatpush1.msra.mxu0 %v429
  %554 = vmatprep.subr.mxu0 %v434
  %555 = vmatpush1.msra.mxu0 %v433
  %556 = vmatprep.subr.mxu0 %v438
  %557 = vmatpush1.msra.mxu0 %v437
  %558 = vmatprep.subr.mxu0 %v442
  %559 = vmatpush1.msra.mxu0 %v441
  %560 = vmatprep.subr.mxu0 %v446
  %561 = vmatpush1.msra.mxu0 %v445
  %562 = vmatprep.subr.mxu0 %v450
  %563 = vmatpush1.msra.mxu0 %v449
  %564 = vmatprep.subr.mxu0 %v454
  %565 = vmatpush1.msra.mxu0 %v453
  %566 = vmatprep.subr.mxu0 %v458
  %567 = vmatpush1.msra.mxu0 %v457
  %568 = vmatprep.subr.mxu0 %v462
  %569 = vmatpush1.msra.mxu0 %v461
  %570 = vmatprep.subr.mxu0 %v466
  %571 = vmatpush1.msra.mxu0 %v465
  %572 = vmatprep.subr.mxu0 %v470
  %573 = vmatpush1.msra.mxu0 %v469
  %574 = vmatprep.subr.mxu0 0.0
  %575 = vmatpush1.msra.mxu0 0.0
  %576 = vmatprep.subr.mxu0 0.0
  %577 = vmatpush1.msra.mxu0 0.0
  %578 = vmatprep.subr.mxu0 0.0
  %579 = vmatpush1.msra.mxu0 0.0
  %580 = vmatprep.subr.mxu0 0.0
  %581 = vmatpush1.msra.mxu0 0.0
  %582 = vmatprep.subr.mxu0 0.0
  %583 = vmatpush1.msra.mxu0 0.0
  %584 = vmatprep.subr.mxu0 0.0
  %585 = vmatpush1.msra.mxu0 0.0
  %586 = vmatprep.subr.mxu0 0.0
  %587 = vmatpush1.msra.mxu0 0.0
  %588 = vmatprep.subr.mxu0 0.0
  %589 = vmatpush1.msra.mxu0 0.0
  %590 = vmatprep.subr.mxu0 0.0
  %591 = vmatpush1.msra.mxu0 0.0
  %592 = vmatprep.subr.mxu0 0.0
  %593 = vmatpush1.msra.mxu0 0.0
  %594 = vmatprep.subr.mxu0 0.0
  %595 = vmatpush1.msra.mxu0 0.0
  %596 = vmatprep.subr.mxu0 0.0
  %597 = vmatpush1.msra.mxu0 0.0
  %598 = vmatprep.subr.mxu0 0.0
  %599 = vmatpush1.msra.mxu0 0.0
  %600 = vmatprep.subr.mxu0 0.0
  %601 = vmatpush1.msra.mxu0 0.0
  %602 = vmatprep.subr.mxu0 0.0
  %603 = vmatpush1.msra.mxu0 0.0
  %604 = vmatprep.subr.mxu0 0.0
  %605 = vmatpush1.msra.mxu0 0.0
  %606 = vmatprep.mubr.f32.mxu0 0.0
  %607 = vmatmul.mubr.f32.gmra.mrb[0].mxu0 0.0
  %v608 = vpop.f32.mrb[0].mxu0
  %v609 = vadd.f32 0.0, %v608
  %v610 = vpop.f32.mrb[0].mxu0
  %v611 = vadd.f32 0.0, %v610
  %612 = vdwg.mxu0
  %v613 = vadd.f32 %v403, %v538
  %v614 = vadd.f32 %v404, %v540
  %v615 = vadd.f32 %v405, %v609
  %v616 = vadd.f32 %v406, %v611
  %v617 = vxor.u32 %v613, 2147483648
  %v618 = vmul.f32 %v617, 1.442695
  %v619 = vpow.pop %v618
  %v620 = vadd.f32 %v619, 1.0
  %v621 = vrcp.pop %v620
  %v622 = vmul.f32 1.0, %v621
  %v623 = vxor.u32 %v614, 2147483648
  %v624 = vmul.f32 %v623, 1.442695
  %v625 = vpow.pop %v624
  %v626 = vadd.f32 %v625, 1.0
  %v627 = vrcp.pop %v626
  %v628 = vmul.f32 1.0, %v627
  %v629 = vtanh.pop %v615
  %v630 = vxor.u32 %v616, 2147483648
  %v631 = vmul.f32 %v630, 1.442695
  %v632 = vpow.pop %v631
  %v633 = vadd.f32 %v632, 1.0
  %v634 = vrcp.pop %v633
  %v635 = vmul.f32 1.0, %v634
  %v636 = vmul.f32 %v628, 0.0
  %v637 = vmul.f32 %v622, %v629
  %v638 = vadd.f32 %v636, %v637
  %v639 = vtanh.pop %v638
  %v640 = vmul.f32 %v635, %v639
  %641 = vst [vmem:[#allocation2] sm:$0xff] %v640
  %s642 = smul.u32 1, 4
  %s643 = smul.addr %s642, 8
  %s644 = scalar_lea.vmem [#allocation3], %s643
  %v645 = vld [vmem:[%s644] sm:$0xff]
  %v646 = vld [vmem:[%s644 + $0x8] sm:$0xff]
  %v647 = vld [vmem:[%s644 + $0x10] sm:$0xff]
  %v648 = vld [vmem:[%s644 + $0x18] sm:$0xff]
  %v649 = vld [vmem:[%s2] sm:$0xff]
  %v650 = vld [vmem:[%s2 + $0x8] sm:$0xff]
  %v651 = vld [vmem:[%s2 + $0x10] sm:$0xff]
  %v652 = vld [vmem:[%s2 + $0x18] sm:$0xff]
  %v653 = vld [vmem:[%s2 + $0x20] sm:$0xff]
  %v654 = vld [vmem:[%s2 + $0x28] sm:$0xff]
  %v655 = vld [vmem:[%s2 + $0x30] sm:$0xff]
  %v656 = vld [vmem:[%s2 + $0x38] sm:$0xff]
  %v657 = vld [vmem:[%s2 + $0x40] sm:$0xff]
  %v658 = vld [vmem:[%s2 + $0x48] sm:$0xff]
  %v659 = vld [vmem:[%s2 + $0x50] sm:$0xff]
  %v660 = vld [vmem:[%s2 + $0x58] sm:$0xff]
  %v661 = vld [vmem:[%s2 + $0x60] sm:$0xff]
  %v662 = vld [vmem:[%s2 + $0x68] sm:$0xff]
  %v663 = vld [vmem:[%s2 + $0x70] sm:$0xff]
  %v664 = vld [vmem:[%s2 + $0x78] sm:$0xff]
  %v665 = vld [vmem:[%s2 + $0x80] sm:$0xff]
  %v666 = vld [vmem:[%s2 + $0x88] sm:$0xff]
  %v667 = vld [vmem:[%s2 + $0x90] sm:$0xff]
  %v668 = vld [vmem:[%s2 + $0x98] sm:$0xff]
  %v669 = vld [vmem:[%s2 + $0xa0] sm:$0xff]
  %v670 = vld [vmem:[%s2 + $0xa8] sm:$0xff]
  %v671 = vld [vmem:[%s2 + $0xb0] sm:$0xff]
  %v672 = vld [vmem:[%s2 + $0xb8] sm:$0xff]
  %v673 = vld [vmem:[%s2 + $0xc0] sm:$0xff]
  %v674 = vld [vmem:[%s2 + $0xc8] sm:$0xff]
  %v675 = vld [vmem:[%s2 + $0xd0] sm:$0xff]
  %v676 = vld [vmem:[%s2 + $0xd8] sm:$0xff]
  %v677 = vld [vmem:[%s2 + $0xe0] sm:$0xff]
  %v678 = vld [vmem:[%s2 + $0xe8] sm:$0xff]
  %v679 = vld [vmem:[%s2 + $0xf0] sm:$0xff]
  %v680 = vld [vmem:[%s2 + $0xf8] sm:$0xff]
  %v681 = vld [vmem:[%s2 + $0x100] sm:$0xff]
  %v682 = vld [vmem:[%s2 + $0x108] sm:$0xff]
  %v683 = vld [vmem:[%s2 + $0x110] sm:$0xff]
  %v684 = vld [vmem:[%s2 + $0x118] sm:$0xff]
  %v685 = vld [vmem:[%s2 + $0x120] sm:$0xff]
  %v686 = vld [vmem:[%s2 + $0x128] sm:$0xff]
  %v687 = vld [vmem:[%s2 + $0x130] sm:$0xff]
  %v688 = vld [vmem:[%s2 + $0x138] sm:$0xff]
  %v689 = vld [vmem:[%s2 + $0x140] sm:$0xff]
  %v690 = vld [vmem:[%s2 + $0x148] sm:$0xff]
  %v691 = vld [vmem:[%s2 + $0x150] sm:$0xff]
  %v692 = vld [vmem:[%s2 + $0x158] sm:$0xff]
  %v693 = vld [vmem:[%s2 + $0x160] sm:$0xff]
  %v694 = vld [vmem:[%s2 + $0x168] sm:$0xff]
  %v695 = vld [vmem:[%s2 + $0x170] sm:$0xff]
  %v696 = vld [vmem:[%s2 + $0x178] sm:$0xff]
  %v697 = vld [vmem:[%s2 + $0x180] sm:$0xff]
  %v698 = vld [vmem:[%s2 + $0x188] sm:$0xff]
  %v699 = vld [vmem:[%s2 + $0x190] sm:$0xff]
  %v700 = vld [vmem:[%s2 + $0x198] sm:$0xff]
  %v701 = vld [vmem:[%s2 + $0x1a0] sm:$0xff]
  %v702 = vld [vmem:[%s2 + $0x1a8] sm:$0xff]
  %v703 = vld [vmem:[%s2 + $0x1b0] sm:$0xff]
  %v704 = vld [vmem:[%s2 + $0x1b8] sm:$0xff]
  %v705 = vld [vmem:[%s2 + $0x1c0] sm:$0xff]
  %v706 = vld [vmem:[%s2 + $0x1c8] sm:$0xff]
  %v707 = vld [vmem:[%s2 + $0x1d0] sm:$0xff]
  %v708 = vld [vmem:[%s2 + $0x1d8] sm:$0xff]
  %v709 = vld [vmem:[%s2 + $0x1e0] sm:$0xff]
  %v710 = vld [vmem:[%s2 + $0x1e8] sm:$0xff]
  %v711 = vld [vmem:[%s2 + $0x1f0] sm:$0xff]
  %v712 = vld [vmem:[%s2 + $0x1f8] sm:$0xff]
  %713 = vmatprep.subr.mxu0 %v650
  %714 = vmatpush1.msra.mxu0 %v649
  %715 = vmatprep.subr.mxu0 %v654
  %716 = vmatpush1.msra.mxu0 %v653
  %717 = vmatprep.subr.mxu0 %v658
  %718 = vmatpush1.msra.mxu0 %v657
  %719 = vmatprep.subr.mxu0 %v662
  %720 = vmatpush1.msra.mxu0 %v661
  %721 = vmatprep.subr.mxu0 %v666
  %722 = vmatpush1.msra.mxu0 %v665
  %723 = vmatprep.subr.mxu0 %v670
  %724 = vmatpush1.msra.mxu0 %v669
  %725 = vmatprep.subr.mxu0 %v674
  %726 = vmatpush1.msra.mxu0 %v673
  %727 = vmatprep.subr.mxu0 %v678
  %728 = vmatpush1.msra.mxu0 %v677
  %729 = vmatprep.subr.mxu0 %v682
  %730 = vmatpush1.msra.mxu0 %v681
  %731 = vmatprep.subr.mxu0 %v686
  %732 = vmatpush1.msra.mxu0 %v685
  %733 = vmatprep.subr.mxu0 %v690
  %734 = vmatpush1.msra.mxu0 %v689
  %735 = vmatprep.subr.mxu0 %v694
  %736 = vmatpush1.msra.mxu0 %v693
  %737 = vmatprep.subr.mxu0 %v698
  %738 = vmatpush1.msra.mxu0 %v697
  %739 = vmatprep.subr.mxu0 %v702
  %740 = vmatpush1.msra.mxu0 %v701
  %741 = vmatprep.subr.mxu0 %v706
  %742 = vmatpush1.msra.mxu0 %v705
  %743 = vmatprep.subr.mxu0 %v710
  %744 = vmatpush1.msra.mxu0 %v709
  %745 = vmatprep.subr.mxu0 0.0
  %746 = vmatpush1.msra.mxu0 0.0
  %747 = vmatprep.subr.mxu0 0.0
  %748 = vmatpush1.msra.mxu0 0.0
  %749 = vmatprep.subr.mxu0 0.0
  %750 = vmatpush1.msra.mxu0 0.0
  %751 = vmatprep.subr.mxu0 0.0
  %752 = vmatpush1.msra.mxu0 0.0
  %753 = vmatprep.subr.mxu0 0.0
  %754 = vmatpush1.msra.mxu0 0.0
  %755 = vmatprep.subr.mxu0 0.0
  %756 = vmatpush1.msra.mxu0 0.0
  %757 = vmatprep.subr.mxu0 0.0
  %758 = vmatpush1.msra.mxu0 0.0
  %759 = vmatprep.subr.mxu0 0.0
  %760 = vmatpush1.msra.mxu0 0.0
  %761 = vmatprep.subr.mxu0 0.0
  %762 = vmatpush1.msra.mxu0 0.0
  %763 = vmatprep.subr.mxu0 0.0
  %764 = vmatpush1.msra.mxu0 0.0
  %765 = vmatprep.subr.mxu0 0.0
  %766 = vmatpush1.msra.mxu0 0.0
  %767 = vmatprep.subr.mxu0 0.0
  %768 = vmatpush1.msra.mxu0 0.0
  %769 = vmatprep.subr.mxu0 0.0
  %770 = vmatpush1.msra.mxu0 0.0
  %771 = vmatprep.subr.mxu0 0.0
  %772 = vmatpush1.msra.mxu0 0.0
  %773 = vmatprep.subr.mxu0 0.0
  %774 = vmatpush1.msra.mxu0 0.0
  %775 = vmatprep.subr.mxu0 0.0
  %776 = vmatpush1.msra.mxu0 0.0
  %777 = vmatprep.mubr.f32.mxu0 0.0
  %778 = vmatmul.mubr.f32.gmra.mrb[0].mxu0 %v640
  %v779 = vpop.f32.mrb[0].mxu0
  %v780 = vadd.f32 0.0, %v779
  %v781 = vpop.f32.mrb[0].mxu0
  %v782 = vadd.f32 0.0, %v781
  %783 = vdwg.mxu0
  %784 = vmatprep.subr.mxu0 %v652
  %785 = vmatpush1.msra.mxu0 %v651
  %786 = vmatprep.subr.mxu0 %v656
  %787 = vmatpush1.msra.mxu0 %v655
  %788 = vmatprep.subr.mxu0 %v660
  %789 = vmatpush1.msra.mxu0 %v659
  %790 = vmatprep.subr.mxu0 %v664
  %791 = vmatpush1.msra.mxu0 %v663
  %792 = vmatprep.subr.mxu0 %v668
  %793 = vmatpush1.msra.mxu0 %v667
  %794 = vmatprep.subr.mxu0 %v672
  %795 = vmatpush1.msra.mxu0 %v671
  %796 = vmatprep.subr.mxu0 %v676
  %797 = vmatpush1.msra.mxu0 %v675
  %798 = vmatprep.subr.mxu0 %v680
  %799 = vmatpush1.msra.mxu0 %v679
  %800 = vmatprep.subr.mxu0 %v684
  %801 = vmatpush1.msra.mxu0 %v683
  %802 = vmatprep.subr.mxu0 %v688
  %803 = vmatpush1.msra.mxu0 %v687
  %804 = vmatprep.subr.mxu0 %v692
  %805 = vmatpush1.msra.mxu0 %v691
  %806 = vmatprep.subr.mxu0 %v696
  %807 = vmatpush1.msra.mxu0 %v695
  %808 = vmatprep.subr.mxu0 %v700
  %809 = vmatpush1.msra.mxu0 %v699
  %810 = vmatprep.subr.mxu0 %v704
  %811 = vmatpush1.msra.mxu0 %v703
  %812 = vmatprep.subr.mxu0 %v708
  %813 = vmatpush1.msra.mxu0 %v707
  %814 = vmatprep.subr.mxu0 %v712
  %815 = vmatpush1.msra.mxu0 %v711
  %816 = vmatprep.subr.mxu0 0.0
  %817 = vmatpush1.msra.mxu0 0.0
  %818 = vmatprep.subr.mxu0 0.0
  %819 = vmatpush1.msra.mxu0 0.0
  %820 = vmatprep.subr.mxu0 0.0
  %821 = vmatpush1.msra.mxu0 0.0
  %822 = vmatprep.subr.mxu0 0.0
  %823 = vmatpush1.msra.mxu0 0.0
  %824 = vmatprep.subr.mxu0 0.0
  %825 = vmatpush1.msra.mxu0 0.0
  %826 = vmatprep.subr.mxu0 0.0
  %827 = vmatpush1.msra.mxu0 0.0
  %828 = vmatprep.subr.mxu0 0.0
  %829 = vmatpush1.msra.mxu0 0.0
  %830 = vmatprep.subr.mxu0 0.0
  %831 = vmatpush1.msra.mxu0 0.0
  %832 = vmatprep.subr.mxu0 0.0
  %833 = vmatpush1.msra.mxu0 0.0
  %834 = vmatprep.subr.mxu0 0.0
  %835 = vmatpush1.msra.mxu0 0.0
  %836 = vmatprep.subr.mxu0 0.0
  %837 = vmatpush1.msra.mxu0 0.0
  %838 = vmatprep.subr.mxu0 0.0
  %839 = vmatpush1.msra.mxu0 0.0
  %840 = vmatprep.subr.mxu0 0.0
  %841 = vmatpush1.msra.mxu0 0.0
  %842 = vmatprep.subr.mxu0 0.0
  %843 = vmatpush1.msra.mxu0 0.0
  %844 = vmatprep.subr.mxu0 0.0
  %845 = vmatpush1.msra.mxu0 0.0
  %846 = vmatprep.subr.mxu0 0.0
  %847 = vmatpush1.msra.mxu0 0.0
  %848 = vmatprep.mubr.f32.mxu0 0.0
  %849 = vmatmul.mubr.f32.gmra.mrb[0].mxu0 %v640
  %v850 = vpop.f32.mrb[0].mxu0
  %v851 = vadd.f32 0.0, %v850
  %v852 = vpop.f32.mrb[0].mxu0
  %v853 = vadd.f32 0.0, %v852
  %854 = vdwg.mxu0
  %v855 = vadd.f32 %v645, %v780
  %v856 = vadd.f32 %v646, %v782
  %v857 = vadd.f32 %v647, %v851
  %v858 = vadd.f32 %v648, %v853
  %v859 = vxor.u32 %v855, 2147483648
  %v860 = vmul.f32 %v859, 1.442695
  %v861 = vpow.pop %v860
  %v862 = vadd.f32 %v861, 1.0
  %v863 = vrcp.pop %v862
  %v864 = vmul.f32 1.0, %v863
  %v865 = vxor.u32 %v856, 2147483648
  %v866 = vmul.f32 %v865, 1.442695
  %v867 = vpow.pop %v866
  %v868 = vadd.f32 %v867, 1.0
  %v869 = vrcp.pop %v868
  %v870 = vmul.f32 1.0, %v869
  %v871 = vtanh.pop %v857
  %v872 = vxor.u32 %v858, 2147483648
  %v873 = vmul.f32 %v872, 1.442695
  %v874 = vpow.pop %v873
  %v875 = vadd.f32 %v874, 1.0
  %v876 = vrcp.pop %v875
  %v877 = vmul.f32 1.0, %v876
  %v878 = vmul.f32 %v870, %v638
  %v879 = vmul.f32 %v864, %v871
  %v880 = vadd.f32 %v878, %v879
  %v881 = vtanh.pop %v880
  %v882 = vmul.f32 %v877, %v881
  %s883 = scalar_lea.vmem [#allocation2], 8
  %884 = vst [vmem:[%s883] sm:$0xff] %v882
  %s885 = smul.u32 2, 4
  %s886 = smul.addr %s885, 8
  %s887 = scalar_lea.vmem [#allocation3], %s886
  %v888 = vld [vmem:[%s887] sm:$0xff]
  %v889 = vld [vmem:[%s887 + $0x8] sm:$0xff]
  %v890 = vld [vmem:[%s887 + $0x10] sm:$0xff]
  %v891 = vld [vmem:[%s887 + $0x18] sm:$0xff]
  %v892 = vld [vmem:[%s2] sm:$0xff]
  %v893 = vld [vmem:[%s2 + $0x8] sm:$0xff]
  %v894 = vld [vmem:[%s2 + $0x10] sm:$0xff]
  %v895 = vld [vmem:[%s2 + $0x18] sm:$0xff]
  %v896 = vld [vmem:[%s2 + $0x20] sm:$0xff]
  %v897 = vld [vmem:[%s2 + $0x28] sm:$0xff]
  %v898 = vld [vmem:[%s2 + $0x30] sm:$0xff]
  %v899 = vld [vmem:[%s2 + $0x38] sm:$0xff]
  %v900 = vld [vmem:[%s2 + $0x40] sm:$0xff]
  %v901 = vld [vmem:[%s2 + $0x48] sm:$0xff]
  %v902 = vld [vmem:[%s2 + $0x50] sm:$0xff]
  %v903 = vld [vmem:[%s2 + $0x58] sm:$0xff]
  %v904 = vld [vmem:[%s2 + $0x60] sm:$0xff]
  %v905 = vld [vmem:[%s2 + $0x68] sm:$0xff]
  %v906 = vld [vmem:[%s2 + $0x70] sm:$0xff]
  %v907 = vld [vmem:[%s2 + $0x78] sm:$0xff]
  %v908 = vld [vmem:[%s2 + $0x80] sm:$0xff]
  %v909 = vld [vmem:[%s2 + $0x88] sm:$0xff]
  %v910 = vld [vmem:[%s2 + $0x90] sm:$0xff]
  %v911 = vld [vmem:[%s2 + $0x98] sm:$0xff]
  %v912 = vld [vmem:[%s2 + $0xa0] sm:$0xff]
  %v913 = vld [vmem:[%s2 + $0xa8] sm:$0xff]
  %v914 = vld [vmem:[%s2 + $0xb0] sm:$0xff]
  %v915 = vld [vmem:[%s2 + $0xb8] sm:$0xff]
  %v916 = vld [vmem:[%s2 + $0xc0] sm:$0xff]
  %v917 = vld [vmem:[%s2 + $0xc8] sm:$0xff]
  %v918 = vld [vmem:[%s2 + $0xd0] sm:$0xff]
  %v919 = vld [vmem:[%s2 + $0xd8] sm:$0xff]
  %v920 = vld [vmem:[%s2 + $0xe0] sm:$0xff]
  %v921 = vld [vmem:[%s2 + $0xe8] sm:$0xff]
  %v922 = vld [vmem:[%s2 + $0xf0] sm:$0xff]
  %v923 = vld [vmem:[%s2 + $0xf8] sm:$0xff]
  %v924 = vld [vmem:[%s2 + $0x100] sm:$0xff]
  %v925 = vld [vmem:[%s2 + $0x108] sm:$0xff]
  %v926 = vld [vmem:[%s2 + $0x110] sm:$0xff]
  %v927 = vld [vmem:[%s2 + $0x118] sm:$0xff]
  %v928 = vld [vmem:[%s2 + $0x120] sm:$0xff]
  %v929 = vld [vmem:[%s2 + $0x128] sm:$0xff]
  %v930 = vld [vmem:[%s2 + $0x130] sm:$0xff]
  %v931 = vld [vmem:[%s2 + $0x138] sm:$0xff]
  %v932 = vld [vmem:[%s2 + $0x140] sm:$0xff]
  %v933 = vld [vmem:[%s2 + $0x148] sm:$0xff]
  %v934 = vld [vmem:[%s2 + $0x150] sm:$0xff]
  %v935 = vld [vmem:[%s2 + $0x158] sm:$0xff]
  %v936 = vld [vmem:[%s2 + $0x160] sm:$0xff]
  %v937 = vld [vmem:[%s2 + $0x168] sm:$0xff]
  %v938 = vld [vmem:[%s2 + $0x170] sm:$0xff]
  %v939 = vld [vmem:[%s2 + $0x178] sm:$0xff]
  %v940 = vld [vmem:[%s2 + $0x180] sm:$0xff]
  %v941 = vld [vmem:[%s2 + $0x188] sm:$0xff]
  %v942 = vld [vmem:[%s2 + $0x190] sm:$0xff]
  %v943 = vld [vmem:[%s2 + $0x198] sm:$0xff]
  %v944 = vld [vmem:[%s2 + $0x1a0] sm:$0xff]
  %v945 = vld [vmem:[%s2 + $0x1a8] sm:$0xff]
  %v946 = vld [vmem:[%s2 + $0x1b0] sm:$0xff]
  %v947 = vld [vmem:[%s2 + $0x1b8] sm:$0xff]
  %v948 = vld [vmem:[%s2 + $0x1c0] sm:$0xff]
  %v949 = vld [vmem:[%s2 + $0x1c8] sm:$0xff]
  %v950 = vld [vmem:[%s2 + $0x1d0] sm:$0xff]
  %v951 = vld [vmem:[%s2 + $0x1d8] sm:$0xff]
  %v952 = vld [vmem:[%s2 + $0x1e0] sm:$0xff]
  %v953 = vld [vmem:[%s2 + $0x1e8] sm:$0xff]
  %v954 = vld [vmem:[%s2 + $0x1f0] sm:$0xff]
  %v955 = vld [vmem:[%s2 + $0x1f8] sm:$0xff]
  %956 = vmatprep.subr.mxu0 %v893
  %957 = vmatpush1.msra.mxu0 %v892
  %958 = vmatprep.subr.mxu0 %v897
  %959 = vmatpush1.msra.mxu0 %v896
  %960 = vmatprep.subr.mxu0 %v901
  %961 = vmatpush1.msra.mxu0 %v900
  %962 = vmatprep.subr.mxu0 %v905
  %963 = vmatpush1.msra.mxu0 %v904
  %964 = vmatprep.subr.mxu0 %v909
  %965 = vmatpush1.msra.mxu0 %v908
  %966 = vmatprep.subr.mxu0 %v913
  %967 = vmatpush1.msra.mxu0 %v912
  %968 = vmatprep.subr.mxu0 %v917
  %969 = vmatpush1.msra.mxu0 %v916
  %970 = vmatprep.subr.mxu0 %v921
  %971 = vmatpush1.msra.mxu0 %v920
  %972 = vmatprep.subr.mxu0 %v925
  %973 = vmatpush1.msra.mxu0 %v924
  %974 = vmatprep.subr.mxu0 %v929
  %975 = vmatpush1.msra.mxu0 %v928
  %976 = vmatprep.subr.mxu0 %v933
  %977 = vmatpush1.msra.mxu0 %v932
  %978 = vmatprep.subr.mxu0 %v937
  %979 = vmatpush1.msra.mxu0 %v936
  %980 = vmatprep.subr.mxu0 %v941
  %981 = vmatpush1.msra.mxu0 %v940
  %982 = vmatprep.subr.mxu0 %v945
  %983 = vmatpush1.msra.mxu0 %v944
  %984 = vmatprep.subr.mxu0 %v949
  %985 = vmatpush1.msra.mxu0 %v948
  %986 = vmatprep.subr.mxu0 %v953
  %987 = vmatpush1.msra.mxu0 %v952
  %988 = vmatprep.subr.mxu0 0.0
  %989 = vmatpush1.msra.mxu0 0.0
  %990 = vmatprep.subr.mxu0 0.0
  %991 = vmatpush1.msra.mxu0 0.0
  %992 = vmatprep.subr.mxu0 0.0
  %993 = vmatpush1.msra.mxu0 0.0
  %994 = vmatprep.subr.mxu0 0.0
  %995 = vmatpush1.msra.mxu0 0.0
  %996 = vmatprep.subr.mxu0 0.0
  %997 = vmatpush1.msra.mxu0 0.0
  %998 = vmatprep.subr.mxu0 0.0
  %999 = vmatpush1.msra.mxu0 0.0
  %1000 = vmatprep.subr.mxu0 0.0
  %1001 = vmatpush1.msra.mxu0 0.0
  %1002 = vmatprep.subr.mxu0 0.0
  %1003 = vmatpush1.msra.mxu0 0.0
  %1004 = vmatprep.subr.mxu0 0.0
  %1005 = vmatpush1.msra.mxu0 0.0
  %1006 = vmatprep.subr.mxu0 0.0
  %1007 = vmatpush1.msra.mxu0 0.0
  %1008 = vmatprep.subr.mxu0 0.0
  %1009 = vmatpush1.msra.mxu0 0.0
  %1010 = vmatprep.subr.mxu0 0.0
  %1011 = vmatpush1.msra.mxu0 0.0
  %1012 = vmatprep.subr.mxu0 0.0
  %1013 = vmatpush1.msra.mxu0 0.0
  %1014 = vmatprep.subr.mxu0 0.0
  %1015 = vmatpush1.msra.mxu0 0.0
  %1016 = vmatprep.subr.mxu0 0.0
  %1017 = vmatpush1.msra.mxu0 0.0
  %1018 = vmatprep.subr.mxu0 0.0
  %1019 = vmatpush1.msra.mxu0 0.0
  %1020 = vmatprep.mubr.f32.mxu0 0.0
  %1021 = vmatmul.mubr.f32.gmra.mrb[0].mxu0 %v882
  %v1022 = vpop.f32.mrb[0].mxu0
  %v1023 = vadd.f32 0.0, %v1022
  %v1024 = vpop.f32.mrb[0].mxu0
  %v1025 = vadd.f32 0.0, %v1024
  %1026 = vdwg.mxu0
  %1027 = vmatprep.subr.mxu0 %v895
  %1028 = vmatpush1.msra.mxu0 %v894
  %1029 = vmatprep.subr.mxu0 %v899
  %1030 = vmatpush1.msra.mxu0 %v898
  %1031 = vmatprep.subr.mxu0 %v903
  %1032 = vmatpush1.msra.mxu0 %v902
  %1033 = vmatprep.subr.mxu0 %v907
  %1034 = vmatpush1.msra.mxu0 %v906
  %1035 = vmatprep.subr.mxu0 %v911
  %1036 = vmatpush1.msra.mxu0 %v910
  %1037 = vmatprep.subr.mxu0 %v915
  %1038 = vmatpush1.msra.mxu0 %v914
  %1039 = vmatprep.subr.mxu0 %v919
  %1040 = vmatpush1.msra.mxu0 %v918
  %1041 = vmatprep.subr.mxu0 %v923
  %1042 = vmatpush1.msra.mxu0 %v922
  %1043 = vmatprep.subr.mxu0 %v927
  %1044 = vmatpush1.msra.mxu0 %v926
  %1045 = vmatprep.subr.mxu0 %v931
  %1046 = vmatpush1.msra.mxu0 %v930
  %1047 = vmatprep.subr.mxu0 %v935
  %1048 = vmatpush1.msra.mxu0 %v934
  %1049 = vmatprep.subr.mxu0 %v939
  %1050 = vmatpush1.msra.mxu0 %v938
  %1051 = vmatprep.subr.mxu0 %v943
  %1052 = vmatpush1.msra.mxu0 %v942
  %1053 = vmatprep.subr.mxu0 %v947
  %1054 = vmatpush1.msra.mxu0 %v946
  %1055 = vmatprep.subr.mxu0 %v951
  %1056 = vmatpush1.msra.mxu0 %v950
  %1057 = vmatprep.subr.mxu0 %v955
  %1058 = vmatpush1.msra.mxu0 %v954
  %1059 = vmatprep.subr.mxu0 0.0
  %1060 = vmatpush1.msra.mxu0 0.0
  %1061 = vmatprep.subr.mxu0 0.0
  %1062 = vmatpush1.msra.mxu0 0.0
  %1063 = vmatprep.subr.mxu0 0.0
  %1064 = vmatpush1.msra.mxu0 0.0
  %1065 = vmatprep.subr.mxu0 0.0
  %1066 = vmatpush1.msra.mxu0 0.0
  %1067 = vmatprep.subr.mxu0 0.0
  %1068 = vmatpush1.msra.mxu0 0.0
  %1069 = vmatprep.subr.mxu0 0.0
  %1070 = vmatpush1.msra.mxu0 0.0
  %1071 = vmatprep.subr.mxu0 0.0
  %1072 = vmatpush1.msra.mxu0 0.0
  %1073 = vmatprep.subr.mxu0 0.0
  %1074 = vmatpush1.msra.mxu0 0.0
  %1075 = vmatprep.subr.mxu0 0.0
  %1076 = vmatpush1.msra.mxu0 0.0
  %1077 = vmatprep.subr.mxu0 0.0
  %1078 = vmatpush1.msra.mxu0 0.0
  %1079 = vmatprep.subr.mxu0 0.0
  %1080 = vmatpush1.msra.mxu0 0.0
  %1081 = vmatprep.subr.mxu0 0.0
  %1082 = vmatpush1.msra.mxu0 0.0
  %1083 = vmatprep.subr.mxu0 0.0
  %1084 = vmatpush1.msra.mxu0 0.0
  %1085 = vmatprep.subr.mxu0 0.0
  %1086 = vmatpush1.msra.mxu0 0.0
  %1087 = vmatprep.subr.mxu0 0.0
  %1088 = vmatpush1.msra.mxu0 0.0
  %1089 = vmatprep.subr.mxu0 0.0
  %1090 = vmatpush1.msra.mxu0 0.0
  %1091 = vmatprep.mubr.f32.mxu0 0.0
  %1092 = vmatmul.mubr.f32.gmra.mrb[0].mxu0 %v882
  %v1093 = vpop.f32.mrb[0].mxu0
  %v1094 = vadd.f32 0.0, %v1093
  %v1095 = vpop.f32.mrb[0].mxu0
  %v1096 = vadd.f32 0.0, %v1095
  %1097 = vdwg.mxu0
  %v1098 = vadd.f32 %v888, %v1023
  %v1099 = vadd.f32 %v889, %v1025
  %v1100 = vadd.f32 %v890, %v1094
  %v1101 = vadd.f32 %v891, %v1096
  %v1102 = vxor.u32 %v1098, 2147483648
  %v1103 = vmul.f32 %v1102, 1.442695
  %v1104 = vpow.pop %v1103
  %v1105 = vadd.f32 %v1104, 1.0
  %v1106 = vrcp.pop %v1105
  %v1107 = vmul.f32 1.0, %v1106
  %v1108 = vxor.u32 %v1099, 2147483648
  %v1109 = vmul.f32 %v1108, 1.442695
  %v1110 = vpow.pop %v1109
  %v1111 = vadd.f32 %v1110, 1.0
  %v1112 = vrcp.pop %v1111
  %v1113 = vmul.f32 1.0, %v1112
  %v1114 = vtanh.pop %v1100
  %v1115 = vxor.u32 %v1101, 2147483648
  %v1116 = vmul.f32 %v1115, 1.442695
  %v1117 = vpow.pop %v1116
  %v1118 = vadd.f32 %v1117, 1.0
  %v1119 = vrcp.pop %v1118
  %v1120 = vmul.f32 1.0, %v1119
  %v1121 = vmul.f32 %v1113, %v880
  %v1122 = vmul.f32 %v1107, %v1114
  %v1123 = vadd.f32 %v1121, %v1122
  %v1124 = vtanh.pop %v1123
  %v1125 = vmul.f32 %v1120, %v1124
  %s1126 = scalar_lea.vmem [#allocation2], 16
  %1127 = vst [vmem:[%s1126] sm:$0xff] %v1125
  %s1128 = smul.u32 3, 4
  %s1129 = smul.addr %s1128, 8
  %s1130 = scalar_lea.vmem [#allocation3], %s1129
  %v1131 = vld [vmem:[%s1130] sm:$0xff]
  %v1132 = vld [vmem:[%s1130 + $0x8] sm:$0xff]
  %v1133 = vld [vmem:[%s1130 + $0x10] sm:$0xff]
  %v1134 = vld [vmem:[%s1130 + $0x18] sm:$0xff]
  %v1135 = vld [vmem:[%s2] sm:$0xff]
  %v1136 = vld [vmem:[%s2 + $0x8] sm:$0xff]
  %v1137 = vld [vmem:[%s2 + $0x10] sm:$0xff]
  %v1138 = vld [vmem:[%s2 + $0x18] sm:$0xff]
  %v1139 = vld [vmem:[%s2 + $0x20] sm:$0xff]
  %v1140 = vld [vmem:[%s2 + $0x28] sm:$0xff]
  %v1141 = vld [vmem:[%s2 + $0x30] sm:$0xff]
  %v1142 = vld [vmem:[%s2 + $0x38] sm:$0xff]
  %v1143 = vld [vmem:[%s2 + $0x40] sm:$0xff]
  %v1144 = vld [vmem:[%s2 + $0x48] sm:$0xff]
  %v1145 = vld [vmem:[%s2 + $0x50] sm:$0xff]
  %v1146 = vld [vmem:[%s2 + $0x58] sm:$0xff]
  %v1147 = vld [vmem:[%s2 + $0x60] sm:$0xff]
  %v1148 = vld [vmem:[%s2 + $0x68] sm:$0xff]
  %v1149 = vld [vmem:[%s2 + $0x70] sm:$0xff]
  %v1150 = vld [vmem:[%s2 + $0x78] sm:$0xff]
  %v1151 = vld [vmem:[%s2 + $0x80] sm:$0xff]
  %v1152 = vld [vmem:[%s2 + $0x88] sm:$0xff]
  %v1153 = vld [vmem:[%s2 + $0x90] sm:$0xff]
  %v1154 = vld [vmem:[%s2 + $0x98] sm:$0xff]
  %v1155 = vld [vmem:[%s2 + $0xa0] sm:$0xff]
  %v1156 = vld [vmem:[%s2 + $0xa8] sm:$0xff]
  %v1157 = vld [vmem:[%s2 + $0xb0] sm:$0xff]
  %v1158 = vld [vmem:[%s2 + $0xb8] sm:$0xff]
  %v1159 = vld [vmem:[%s2 + $0xc0] sm:$0xff]
  %v1160 = vld [vmem:[%s2 + $0xc8] sm:$0xff]
  %v1161 = vld [vmem:[%s2 + $0xd0] sm:$0xff]
  %v1162 = vld [vmem:[%s2 + $0xd8] sm:$0xff]
  %v1163 = vld [vmem:[%s2 + $0xe0] sm:$0xff]
  %v1164 = vld [vmem:[%s2 + $0xe8] sm:$0xff]
  %v1165 = vld [vmem:[%s2 + $0xf0] sm:$0xff]
  %v1166 = vld [vmem:[%s2 + $0xf8] sm:$0xff]
  %v1167 = vld [vmem:[%s2 + $0x100] sm:$0xff]
  %v1168 = vld [vmem:[%s2 + $0x108] sm:$0xff]
  %v1169 = vld [vmem:[%s2 + $0x110] sm:$0xff]
  %v1170 = vld [vmem:[%s2 + $0x118] sm:$0xff]
  %v1171 = vld [vmem:[%s2 + $0x120] sm:$0xff]
  %v1172 = vld [vmem:[%s2 + $0x128] sm:$0xff]
  %v1173 = vld [vmem:[%s2 + $0x130] sm:$0xff]
  %v1174 = vld [vmem:[%s2 + $0x138] sm:$0xff]
  %v1175 = vld [vmem:[%s2 + $0x140] sm:$0xff]
  %v1176 = vld [vmem:[%s2 + $0x148] sm:$0xff]
  %v1177 = vld [vmem:[%s2 + $0x150] sm:$0xff]
  %v1178 = vld [vmem:[%s2 + $0x158] sm:$0xff]
  %v1179 = vld [vmem:[%s2 + $0x160] sm:$0xff]
  %v1180 = vld [vmem:[%s2 + $0x168] sm:$0xff]
  %v1181 = vld [vmem:[%s2 + $0x170] sm:$0xff]
  %v1182 = vld [vmem:[%s2 + $0x178] sm:$0xff]
  %v1183 = vld [vmem:[%s2 + $0x180] sm:$0xff]
  %v1184 = vld [vmem:[%s2 + $0x188] sm:$0xff]
  %v1185 = vld [vmem:[%s2 + $0x190] sm:$0xff]
  %v1186 = vld [vmem:[%s2 + $0x198] sm:$0xff]
  %v1187 = vld [vmem:[%s2 + $0x1a0] sm:$0xff]
  %v1188 = vld [vmem:[%s2 + $0x1a8] sm:$0xff]
  %v1189 = vld [vmem:[%s2 + $0x1b0] sm:$0xff]
  %v1190 = vld [vmem:[%s2 + $0x1b8] sm:$0xff]
  %v1191 = vld [vmem:[%s2 + $0x1c0] sm:$0xff]
  %v1192 = vld [vmem:[%s2 + $0x1c8] sm:$0xff]
  %v1193 = vld [vmem:[%s2 + $0x1d0] sm:$0xff]
  %v1194 = vld [vmem:[%s2 + $0x1d8] sm:$0xff]
  %v1195 = vld [vmem:[%s2 + $0x1e0] sm:$0xff]
  %v1196 = vld [vmem:[%s2 + $0x1e8] sm:$0xff]
  %v1197 = vld [vmem:[%s2 + $0x1f0] sm:$0xff]
  %v1198 = vld [vmem:[%s2 + $0x1f8] sm:$0xff]
  %1199 = vmatprep.subr.mxu0 %v1136
  %1200 = vmatpush1.msra.mxu0 %v1135
  %1201 = vmatprep.subr.mxu0 %v1140
  %1202 = vmatpush1.msra.mxu0 %v1139
  %1203 = vmatprep.subr.mxu0 %v1144
  %1204 = vmatpush1.msra.mxu0 %v1143
  %1205 = vmatprep.subr.mxu0 %v1148
  %1206 = vmatpush1.msra.mxu0 %v1147
  %1207 = vmatprep.subr.mxu0 %v1152
  %1208 = vmatpush1.msra.mxu0 %v1151
  %1209 = vmatprep.subr.mxu0 %v1156
  %1210 = vmatpush1.msra.mxu0 %v1155
  %1211 = vmatprep.subr.mxu0 %v1160
  %1212 = vmatpush1.msra.mxu0 %v1159
  %1213 = vmatprep.subr.mxu0 %v1164
  %1214 = vmatpush1.msra.mxu0 %v1163
  %1215 = vmatprep.subr.mxu0 %v1168
  %1216 = vmatpush1.msra.mxu0 %v1167
  %1217 = vmatprep.subr.mxu0 %v1172
  %1218 = vmatpush1.msra.mxu0 %v1171
  %1219 = vmatprep.subr.mxu0 %v1176
  %1220 = vmatpush1.msra.mxu0 %v1175
  %1221 = vmatprep.subr.mxu0 %v1180
  %1222 = vmatpush1.msra.mxu0 %v1179
  %1223 = vmatprep.subr.mxu0 %v1184
  %1224 = vmatpush1.msra.mxu0 %v1183
  %1225 = vmatprep.subr.mxu0 %v1188
  %1226 = vmatpush1.msra.mxu0 %v1187
  %1227 = vmatprep.subr.mxu0 %v1192
  %1228 = vmatpush1.msra.mxu0 %v1191
  %1229 = vmatprep.subr.mxu0 %v1196
  %1230 = vmatpush1.msra.mxu0 %v1195
  %1231 = vmatprep.subr.mxu0 0.0
  %1232 = vmatpush1.msra.mxu0 0.0
  %1233 = vmatprep.subr.mxu0 0.0
  %1234 = vmatpush1.msra.mxu0 0.0
  %1235 = vmatprep.subr.mxu0 0.0
  %1236 = vmatpush1.msra.mxu0 0.0
  %1237 = vmatprep.subr.mxu0 0.0
  %1238 = vmatpush1.msra.mxu0 0.0
  %1239 = vmatprep.subr.mxu0 0.0
  %1240 = vmatpush1.msra.mxu0 0.0
  %1241 = vmatprep.subr.mxu0 0.0
  %1242 = vmatpush1.msra.mxu0 0.0
  %1243 = vmatprep.subr.mxu0 0.0
  %1244 = vmatpush1.msra.mxu0 0.0
  %1245 = vmatprep.subr.mxu0 0.0
  %1246 = vmatpush1.msra.mxu0 0.0
  %1247 = vmatprep.subr.mxu0 0.0
  %1248 = vmatpush1.msra.mxu0 0.0
  %1249 = vmatprep.subr.mxu0 0.0
  %1250 = vmatpush1.msra.mxu0 0.0
  %1251 = vmatprep.subr.mxu0 0.0
  %1252 = vmatpush1.msra.mxu0 0.0
  %1253 = vmatprep.subr.mxu0 0.0
  %1254 = vmatpush1.msra.mxu0 0.0
  %1255 = vmatprep.subr.mxu0 0.0
  %1256 = vmatpush1.msra.mxu0 0.0
  %1257 = vmatprep.subr.mxu0 0.0
  %1258 = vmatpush1.msra.mxu0 0.0
  %1259 = vmatprep.subr.mxu0 0.0
  %1260 = vmatpush1.msra.mxu0 0.0
  %1261 = vmatprep.subr.mxu0 0.0
  %1262 = vmatpush1.msra.mxu0 0.0
  %1263 = vmatprep.mubr.f32.mxu0 0.0
  %1264 = vmatmul.mubr.f32.gmra.mrb[0].mxu0 %v1125
  %v1265 = vpop.f32.mrb[0].mxu0
  %v1266 = vadd.f32 0.0, %v1265
  %v1267 = vpop.f32.mrb[0].mxu0
  %v1268 = vadd.f32 0.0, %v1267
  %1269 = vdwg.mxu0
  %1270 = vmatprep.subr.mxu0 %v1138
  %1271 = vmatpush1.msra.mxu0 %v1137
  %1272 = vmatprep.subr.mxu0 %v1142
  %1273 = vmatpush1.msra.mxu0 %v1141
  %1274 = vmatprep.subr.mxu0 %v1146
  %1275 = vmatpush1.msra.mxu0 %v1145
  %1276 = vmatprep.subr.mxu0 %v1150
  %1277 = vmatpush1.msra.mxu0 %v1149
  %1278 = vmatprep.subr.mxu0 %v1154
  %1279 = vmatpush1.msra.mxu0 %v1153
  %1280 = vmatprep.subr.mxu0 %v1158
  %1281 = vmatpush1.msra.mxu0 %v1157
  %1282 = vmatprep.subr.mxu0 %v1162
  %1283 = vmatpush1.msra.mxu0 %v1161
  %1284 = vmatprep.subr.mxu0 %v1166
  %1285 = vmatpush1.msra.mxu0 %v1165
  %1286 = vmatprep.subr.mxu0 %v1170
  %1287 = vmatpush1.msra.mxu0 %v1169
  %1288 = vmatprep.subr.mxu0 %v1174
  %1289 = vmatpush1.msra.mxu0 %v1173
  %1290 = vmatprep.subr.mxu0 %v1178
  %1291 = vmatpush1.msra.mxu0 %v1177
  %1292 = vmatprep.subr.mxu0 %v1182
  %1293 = vmatpush1.msra.mxu0 %v1181
  %1294 = vmatprep.subr.mxu0 %v1186
  %1295 = vmatpush1.msra.mxu0 %v1185
  %1296 = vmatprep.subr.mxu0 %v1190
  %1297 = vmatpush1.msra.mxu0 %v1189
  %1298 = vmatprep.subr.mxu0 %v1194
  %1299 = vmatpush1.msra.mxu0 %v1193
  %1300 = vmatprep.subr.mxu0 %v1198
  %1301 = vmatpush1.msra.mxu0 %v1197
  %1302 = vmatprep.subr.mxu0 0.0
  %1303 = vmatpush1.msra.mxu0 0.0
  %1304 = vmatprep.subr.mxu0 0.0
  %1305 = vmatpush1.msra.mxu0 0.0
  %1306 = vmatprep.subr.mxu0 0.0
  %1307 = vmatpush1.msra.mxu0 0.0
  %1308 = vmatprep.subr.mxu0 0.0
  %1309 = vmatpush1.msra.mxu0 0.0
  %1310 = vmatprep.subr.mxu0 0.0
  %1311 = vmatpush1.msra.mxu0 0.0
  %1312 = vmatprep.subr.mxu0 0.0
  %1313 = vmatpush1.msra.mxu0 0.0
  %1314 = vmatprep.subr.mxu0 0.0
  %1315 = vmatpush1.msra.mxu0 0.0
  %1316 = vmatprep.subr.mxu0 0.0
  %1317 = vmatpush1.msra.mxu0 0.0
  %1318 = vmatprep.subr.mxu0 0.0
  %1319 = vmatpush1.msra.mxu0 0.0
  %1320 = vmatprep.subr.mxu0 0.0
  %1321 = vmatpush1.msra.mxu0 0.0
  %1322 = vmatprep.subr.mxu0 0.0
  %1323 = vmatpush1.msra.mxu0 0.0
  %1324 = vmatprep.subr.mxu0 0.0
  %1325 = vmatpush1.msra.mxu0 0.0
  %1326 = vmatprep.subr.mxu0 0.0
  %1327 = vmatpush1.msra.mxu0 0.0
  %1328 = vmatprep.subr.mxu0 0.0
  %1329 = vmatpush1.msra.mxu0 0.0
  %1330 = vmatprep.subr.mxu0 0.0
  %1331 = vmatpush1.msra.mxu0 0.0
  %1332 = vmatprep.subr.mxu0 0.0
  %1333 = vmatpush1.msra.mxu0 0.0
  %1334 = vmatprep.mubr.f32.mxu0 0.0
  %1335 = vmatmul.mubr.f32.gmra.mrb[0].mxu0 %v1125
  %v1336 = vpop.f32.mrb[0].mxu0
  %v1337 = vadd.f32 0.0, %v1336
  %v1338 = vpop.f32.mrb[0].mxu0
  %v1339 = vadd.f32 0.0, %v1338
  %1340 = vdwg.mxu0
  %v1341 = vadd.f32 %v1131, %v1266
  %v1342 = vadd.f32 %v1132, %v1268
  %v1343 = vadd.f32 %v1133, %v1337
  %v1344 = vadd.f32 %v1134, %v1339
  %v1345 = vxor.u32 %v1341, 2147483648
  %v1346 = vmul.f32 %v1345, 1.442695
  %v1347 = vpow.pop %v1346
  %v1348 = vadd.f32 %v1347, 1.0
  %v1349 = vrcp.pop %v1348
  %v1350 = vmul.f32 1.0, %v1349
  %v1351 = vxor.u32 %v1342, 2147483648
  %v1352 = vmul.f32 %v1351, 1.442695
  %v1353 = vpow.pop %v1352
  %v1354 = vadd.f32 %v1353, 1.0
  %v1355 = vrcp.pop %v1354
  %v1356 = vmul.f32 1.0, %v1355
  %v1357 = vtanh.pop %v1343
  %v1358 = vxor.u32 %v1344, 2147483648
  %v1359 = vmul.f32 %v1358, 1.442695
  %v1360 = vpow.pop %v1359
  %v1361 = vadd.f32 %v1360, 1.0
  %v1362 = vrcp.pop %v1361
  %v1363 = vmul.f32 1.0, %v1362
  %v1364 = vmul.f32 %v1356, %v1123
  %v1365 = vmul.f32 %v1350, %v1357
  %v1366 = vadd.f32 %v1364, %v1365
  %v1367 = vtanh.pop %v1366
  %v1368 = vmul.f32 %v1363, %v1367
  %s1369 = scalar_lea.vmem [#allocation2], 24
  %1370 = vst [vmem:[%s1369] sm:$0xff] %v1368
  %s1371 = smul.u32 4, 4
  %s1372 = smul.addr %s1371, 8
  %s1373 = scalar_lea.vmem [#allocation3], %s1372
  %v1374 = vld [vmem:[%s1373] sm:$0xff]
  %v1375 = vld [vmem:[%s1373 + $0x8] sm:$0xff]
  %v1376 = vld [vmem:[%s1373 + $0x10] sm:$0xff]
  %v1377 = vld [vmem:[%s1373 + $0x18] sm:$0xff]
  %v1378 = vld [vmem:[%s2] sm:$0xff]
  %v1379 = vld [vmem:[%s2 + $0x8] sm:$0xff]
  %v1380 = vld [vmem:[%s2 + $0x10] sm:$0xff]
  %v1381 = vld [vmem:[%s2 + $0x18] sm:$0xff]
  %v1382 = vld [vmem:[%s2 + $0x20] sm:$0xff]
  %v1383 = vld [vmem:[%s2 + $0x28] sm:$0xff]
  %v1384 = vld [vmem:[%s2 + $0x30] sm:$0xff]
  %v1385 = vld [vmem:[%s2 + $0x38] sm:$0xff]
  %v1386 = vld [vmem:[%s2 + $0x40] sm:$0xff]
  %v1387 = vld [vmem:[%s2 + $0x48] sm:$0xff]
  %v1388 = vld [vmem:[%s2 + $0x50] sm:$0xff]
  %v1389 = vld [vmem:[%s2 + $0x58] sm:$0xff]
  %v1390 = vld [vmem:[%s2 + $0x60] sm:$0xff]
  %v1391 = vld [vmem:[%s2 + $0x68] sm:$0xff]
  %v1392 = vld [vmem:[%s2 + $0x70] sm:$0xff]
  %v1393 = vld [vmem:[%s2 + $0x78] sm:$0xff]
  %v1394 = vld [vmem:[%s2 + $0x80] sm:$0xff]
  %v1395 = vld [vmem:[%s2 + $0x88] sm:$0xff]
  %v1396 = vld [vmem:[%s2 + $0x90] sm:$0xff]
  %v1397 = vld [vmem:[%s2 + $0x98] sm:$0xff]
  %v1398 = vld [vmem:[%s2 + $0xa0] sm:$0xff]
  %v1399 = vld [vmem:[%s2 + $0xa8] sm:$0xff]
  %v1400 = vld [vmem:[%s2 + $0xb0] sm:$0xff]
  %v1401 = vld [vmem:[%s2 + $0xb8] sm:$0xff]
  %v1402 = vld [vmem:[%s2 + $0xc0] sm:$0xff]
  %v1403 = vld [vmem:[%s2 + $0xc8] sm:$0xff]
  %v1404 = vld [vmem:[%s2 + $0xd0] sm:$0xff]
  %v1405 = vld [vmem:[%s2 + $0xd8] sm:$0xff]
  %v1406 = vld [vmem:[%s2 + $0xe0] sm:$0xff]
  %v1407 = vld [vmem:[%s2 + $0xe8] sm:$0xff]
  %v1408 = vld [vmem:[%s2 + $0xf0] sm:$0xff]
  %v1409 = vld [vmem:[%s2 + $0xf8] sm:$0xff]
  %v1410 = vld [vmem:[%s2 + $0x100] sm:$0xff]
  %v1411 = vld [vmem:[%s2 + $0x108] sm:$0xff]
  %v1412 = vld [vmem:[%s2 + $0x110] sm:$0xff]
  %v1413 = vld [vmem:[%s2 + $0x118] sm:$0xff]
  %v1414 = vld [vmem:[%s2 + $0x120] sm:$0xff]
  %v1415 = vld [vmem:[%s2 + $0x128] sm:$0xff]
  %v1416 = vld [vmem:[%s2 + $0x130] sm:$0xff]
  %v1417 = vld [vmem:[%s2 + $0x138] sm:$0xff]
  %v1418 = vld [vmem:[%s2 + $0x140] sm:$0xff]
  %v1419 = vld [vmem:[%s2 + $0x148] sm:$0xff]
  %v1420 = vld [vmem:[%s2 + $0x150] sm:$0xff]
  %v1421 = vld [vmem:[%s2 + $0x158] sm:$0xff]
  %v1422 = vld [vmem:[%s2 + $0x160] sm:$0xff]
  %v1423 = vld [vmem:[%s2 + $0x168] sm:$0xff]
  %v1424 = vld [vmem:[%s2 + $0x170] sm:$0xff]
  %v1425 = vld [vmem:[%s2 + $0x178] sm:$0xff]
  %v1426 = vld [vmem:[%s2 + $0x180] sm:$0xff]
  %v1427 = vld [vmem:[%s2 + $0x188] sm:$0xff]
  %v1428 = vld [vmem:[%s2 + $0x190] sm:$0xff]
  %v1429 = vld [vmem:[%s2 + $0x198] sm:$0xff]
  %v1430 = vld [vmem:[%s2 + $0x1a0] sm:$0xff]
  %v1431 = vld [vmem:[%s2 + $0x1a8] sm:$0xff]
  %v1432 = vld [vmem:[%s2 + $0x1b0] sm:$0xff]
  %v1433 = vld [vmem:[%s2 + $0x1b8] sm:$0xff]
  %v1434 = vld [vmem:[%s2 + $0x1c0] sm:$0xff]
  %v1435 = vld [vmem:[%s2 + $0x1c8] sm:$0xff]
  %v1436 = vld [vmem:[%s2 + $0x1d0] sm:$0xff]
  %v1437 = vld [vmem:[%s2 + $0x1d8] sm:$0xff]
  %v1438 = vld [vmem:[%s2 + $0x1e0] sm:$0xff]
  %v1439 = vld [vmem:[%s2 + $0x1e8] sm:$0xff]
  %v1440 = vld [vmem:[%s2 + $0x1f0] sm:$0xff]
  %v1441 = vld [vmem:[%s2 + $0x1f8] sm:$0xff]
  %1442 = vmatprep.subr.mxu0 %v1379
  %1443 = vmatpush1.msra.mxu0 %v1378
  %1444 = vmatprep.subr.mxu0 %v1383
  %1445 = vmatpush1.msra.mxu0 %v1382
  %1446 = vmatprep.subr.mxu0 %v1387
  %1447 = vmatpush1.msra.mxu0 %v1386
  %1448 = vmatprep.subr.mxu0 %v1391
  %1449 = vmatpush1.msra.mxu0 %v1390
  %1450 = vmatprep.subr.mxu0 %v1395
  %1451 = vmatpush1.msra.mxu0 %v1394
  %1452 = vmatprep.subr.mxu0 %v1399
  %1453 = vmatpush1.msra.mxu0 %v1398
  %1454 = vmatprep.subr.mxu0 %v1403
  %1455 = vmatpush1.msra.mxu0 %v1402
  %1456 = vmatprep.subr.mxu0 %v1407
  %1457 = vmatpush1.msra.mxu0 %v1406
  %1458 = vmatprep.subr.mxu0 %v1411
  %1459 = vmatpush1.msra.mxu0 %v1410
  %1460 = vmatprep.subr.mxu0 %v1415
  %1461 = vmatpush1.msra.mxu0 %v1414
  %1462 = vmatprep.subr.mxu0 %v1419
  %1463 = vmatpush1.msra.mxu0 %v1418
  %1464 = vmatprep.subr.mxu0 %v1423
  %1465 = vmatpush1.msra.mxu0 %v1422
  %1466 = vmatprep.subr.mxu0 %v1427
  %1467 = vmatpush1.msra.mxu0 %v1426
  %1468 = vmatprep.subr.mxu0 %v1431
  %1469 = vmatpush1.msra.mxu0 %v1430
  %1470 = vmatprep.subr.mxu0 %v1435
  %1471 = vmatpush1.msra.mxu0 %v1434
  %1472 = vmatprep.subr.mxu0 %v1439
  %1473 = vmatpush1.msra.mxu0 %v1438
  %1474 = vmatprep.subr.mxu0 0.0
  %1475 = vmatpush1.msra.mxu0 0.0
  %1476 = vmatprep.subr.mxu0 0.0
  %1477 = vmatpush1.msra.mxu0 0.0
  %1478 = vmatprep.subr.mxu0 0.0
  %1479 = vmatpush1.msra.mxu0 0.0
  %1480 = vmatprep.subr.mxu0 0.0
  %1481 = vmatpush1.msra.mxu0 0.0
  %1482 = vmatprep.subr.mxu0 0.0
  %1483 = vmatpush1.msra.mxu0 0.0
  %1484 = vmatprep.subr.mxu0 0.0
  %1485 = vmatpush1.msra.mxu0 0.0
  %1486 = vmatprep.subr.mxu0 0.0
  %1487 = vmatpush1.msra.mxu0 0.0
  %1488 = vmatprep.subr.mxu0 0.0
  %1489 = vmatpush1.msra.mxu0 0.0
  %1490 = vmatprep.subr.mxu0 0.0
  %1491 = vmatpush1.msra.mxu0 0.0
  %1492 = vmatprep.subr.mxu0 0.0
  %1493 = vmatpush1.msra.mxu0 0.0
  %1494 = vmatprep.subr.mxu0 0.0
  %1495 = vmatpush1.msra.mxu0 0.0
  %1496 = vmatprep.subr.mxu0 0.0
  %1497 = vmatpush1.msra.mxu0 0.0
  %1498 = vmatprep.subr.mxu0 0.0
  %1499 = vmatpush1.msra.mxu0 0.0
  %1500 = vmatprep.subr.mxu0 0.0
  %1501 = vmatpush1.msra.mxu0 0.0
  %1502 = vmatprep.subr.mxu0 0.0
  %1503 = vmatpush1.msra.mxu0 0.0
  %1504 = vmatprep.subr.mxu0 0.0
  %1505 = vmatpush1.msra.mxu0 0.0
  %1506 = vmatprep.mubr.f32.mxu0 0.0
  %1507 = vmatmul.mubr.f32.gmra.mrb[0].mxu0 %v1368
  %v1508 = vpop.f32.mrb[0].mxu0
  %v1509 = vadd.f32 0.0, %v1508
  %v1510 = vpop.f32.mrb[0].mxu0
  %v1511 = vadd.f32 0.0, %v1510
  %1512 = vdwg.mxu0
  %1513 = vmatprep.subr.mxu0 %v1381
  %1514 = vmatpush1.msra.mxu0 %v1380
  %1515 = vmatprep.subr.mxu0 %v1385
  %1516 = vmatpush1.msra.mxu0 %v1384
  %1517 = vmatprep.subr.mxu0 %v1389
  %1518 = vmatpush1.msra.mxu0 %v1388
  %1519 = vmatprep.subr.mxu0 %v1393
  %1520 = vmatpush1.msra.mxu0 %v1392
  %1521 = vmatprep.subr.mxu0 %v1397
  %1522 = vmatpush1.msra.mxu0 %v1396
  %1523 = vmatprep.subr.mxu0 %v1401
  %1524 = vmatpush1.msra.mxu0 %v1400
  %1525 = vmatprep.subr.mxu0 %v1405
  %1526 = vmatpush1.msra.mxu0 %v1404
  %1527 = vmatprep.subr.mxu0 %v1409
  %1528 = vmatpush1.msra.mxu0 %v1408
  %1529 = vmatprep.subr.mxu0 %v1413
  %1530 = vmatpush1.msra.mxu0 %v1412
  %1531 = vmatprep.subr.mxu0 %v1417
  %1532 = vmatpush1.msra.mxu0 %v1416
  %1533 = vmatprep.subr.mxu0 %v1421
  %1534 = vmatpush1.msra.mxu0 %v1420
  %1535 = vmatprep.subr.mxu0 %v1425
  %1536 = vmatpush1.msra.mxu0 %v1424
  %1537 = vmatprep.subr.mxu0 %v1429
  %1538 = vmatpush1.msra.mxu0 %v1428
  %1539 = vmatprep.subr.mxu0 %v1433
  %1540 = vmatpush1.msra.mxu0 %v1432
  %1541 = vmatprep.subr.mxu0 %v1437
  %1542 = vmatpush1.msra.mxu0 %v1436
  %1543 = vmatprep.subr.mxu0 %v1441
  %1544 = vmatpush1.msra.mxu0 %v1440
  %1545 = vmatprep.subr.mxu0 0.0
  %1546 = vmatpush1.msra.mxu0 0.0
  %1547 = vmatprep.subr.mxu0 0.0
  %1548 = vmatpush1.msra.mxu0 0.0
  %1549 = vmatprep.subr.mxu0 0.0
  %1550 = vmatpush1.msra.mxu0 0.0
  %1551 = vmatprep.subr.mxu0 0.0
  %1552 = vmatpush1.msra.mxu0 0.0
  %1553 = vmatprep.subr.mxu0 0.0
  %1554 = vmatpush1.msra.mxu0 0.0
  %1555 = vmatprep.subr.mxu0 0.0
  %1556 = vmatpush1.msra.mxu0 0.0
  %1557 = vmatprep.subr.mxu0 0.0
  %1558 = vmatpush1.msra.mxu0 0.0
  %1559 = vmatprep.subr.mxu0 0.0
  %1560 = vmatpush1.msra.mxu0 0.0
  %1561 = vmatprep.subr.mxu0 0.0
  %1562 = vmatpush1.msra.mxu0 0.0
  %1563 = vmatprep.subr.mxu0 0.0
  %1564 = vmatpush1.msra.mxu0 0.0
  %1565 = vmatprep.subr.mxu0 0.0
  %1566 = vmatpush1.msra.mxu0 0.0
  %1567 = vmatprep.subr.mxu0 0.0
  %1568 = vmatpush1.msra.mxu0 0.0
  %1569 = vmatprep.subr.mxu0 0.0
  %1570 = vmatpush1.msra.mxu0 0.0
  %1571 = vmatprep.subr.mxu0 0.0
  %1572 = vmatpush1.msra.mxu0 0.0
  %1573 = vmatprep.subr.mxu0 0.0
  %1574 = vmatpush1.msra.mxu0 0.0
  %1575 = vmatprep.subr.mxu0 0.0
  %1576 = vmatpush1.msra.mxu0 0.0
  %1577 = vmatprep.mubr.f32.mxu0 0.0
  %1578 = vmatmul.mubr.f32.gmra.mrb[0].mxu0 %v1368
  %v1579 = vpop.f32.mrb[0].mxu0
  %v1580 = vadd.f32 0.0, %v1579
  %v1581 = vpop.f32.mrb[0].mxu0
  %v1582 = vadd.f32 0.0, %v1581
  %1583 = vdwg.mxu0
  %v1584 = vadd.f32 %v1374, %v1509
  %v1585 = vadd.f32 %v1375, %v1511
  %v1586 = vadd.f32 %v1376, %v1580
  %v1587 = vadd.f32 %v1377, %v1582
  %v1588 = vxor.u32 %v1584, 2147483648
  %v1589 = vmul.f32 %v1588, 1.442695
  %v1590 = vpow.pop %v1589
  %v1591 = vadd.f32 %v1590, 1.0
  %v1592 = vrcp.pop %v1591
  %v1593 = vmul.f32 1.0, %v1592
  %v1594 = vxor.u32 %v1585, 2147483648
  %v1595 = vmul.f32 %v1594, 1.442695
  %v1596 = vpow.pop %v1595
  %v1597 = vadd.f32 %v1596, 1.0
  %v1598 = vrcp.pop %v1597
  %v1599 = vmul.f32 1.0, %v1598
  %v1600 = vtanh.pop %v1586
  %v1601 = vxor.u32 %v1587, 2147483648
  %v1602 = vmul.f32 %v1601, 1.442695
  %v1603 = vpow.pop %v1602
  %v1604 = vadd.f32 %v1603, 1.0
  %v1605 = vrcp.pop %v1604
  %v1606 = vmul.f32 1.0, %v1605
  %v1607 = vmul.f32 %v1599, %v1366
  %v1608 = vmul.f32 %v1593, %v1600
  %v1609 = vadd.f32 %v1607, %v1608
  %v1610 = vtanh.pop %v1609
  %v1611 = vmul.f32 %v1606, %v1610
  %s1612 = scalar_lea.vmem [#allocation2], 32
  %1613 = vst [vmem:[%s1612] sm:$0xff] %v1611
  %s1614 = smul.u32 5, 4
  %s1615 = smul.addr %s1614, 8
  %s1616 = scalar_lea.vmem [#allocation3], %s1615
  %v1617 = vld [vmem:[%s1616] sm:$0xff]
  %v1618 = vld [vmem:[%s1616 + $0x8] sm:$0xff]
  %v1619 = vld [vmem:[%s1616 + $0x10] sm:$0xff]
  %v1620 = vld [vmem:[%s1616 + $0x18] sm:$0xff]
  %v1621 = vld [vmem:[%s2] sm:$0xff]
  %v1622 = vld [vmem:[%s2 + $0x8] sm:$0xff]
  %v1623 = vld [vmem:[%s2 + $0x10] sm:$0xff]
  %v1624 = vld [vmem:[%s2 + $0x18] sm:$0xff]
  %v1625 = vld [vmem:[%s2 + $0x20] sm:$0xff]
  %v1626 = vld [vmem:[%s2 + $0x28] sm:$0xff]
  %v1627 = vld [vmem:[%s2 + $0x30] sm:$0xff]
  %v1628 = vld [vmem:[%s2 + $0x38] sm:$0xff]
  %v1629 = vld [vmem:[%s2 + $0x40] sm:$0xff]
  %v1630 = vld [vmem:[%s2 + $0x48] sm:$0xff]
  %v1631 = vld [vmem:[%s2 + $0x50] sm:$0xff]
  %v1632 = vld [vmem:[%s2 + $0x58] sm:$0xff]
  %v1633 = vld [vmem:[%s2 + $0x60] sm:$0xff]
  %v1634 = vld [vmem:[%s2 + $0x68] sm:$0xff]
  %v1635 = vld [vmem:[%s2 + $0x70] sm:$0xff]
  %v1636 = vld [vmem:[%s2 + $0x78] sm:$0xff]
  %v1637 = vld [vmem:[%s2 + $0x80] sm:$0xff]
  %v1638 = vld [vmem:[%s2 + $0x88] sm:$0xff]
  %v1639 = vld [vmem:[%s2 + $0x90] sm:$0xff]
  %v1640 = vld [vmem:[%s2 + $0x98] sm:$0xff]
  %v1641 = vld [vmem:[%s2 + $0xa0] sm:$0xff]
  %v1642 = vld [vmem:[%s2 + $0xa8] sm:$0xff]
  %v1643 = vld [vmem:[%s2 + $0xb0] sm:$0xff]
  %v1644 = vld [vmem:[%s2 + $0xb8] sm:$0xff]
  %v1645 = vld [vmem:[%s2 + $0xc0] sm:$0xff]
  %v1646 = vld [vmem:[%s2 + $0xc8] sm:$0xff]
  %v1647 = vld [vmem:[%s2 + $0xd0] sm:$0xff]
  %v1648 = vld [vmem:[%s2 + $0xd8] sm:$0xff]
  %v1649 = vld [vmem:[%s2 + $0xe0] sm:$0xff]
  %v1650 = vld [vmem:[%s2 + $0xe8] sm:$0xff]
  %v1651 = vld [vmem:[%s2 + $0xf0] sm:$0xff]
  %v1652 = vld [vmem:[%s2 + $0xf8] sm:$0xff]
  %v1653 = vld [vmem:[%s2 + $0x100] sm:$0xff]
  %v1654 = vld [vmem:[%s2 + $0x108] sm:$0xff]
  %v1655 = vld [vmem:[%s2 + $0x110] sm:$0xff]
  %v1656 = vld [vmem:[%s2 + $0x118] sm:$0xff]
  %v1657 = vld [vmem:[%s2 + $0x120] sm:$0xff]
  %v1658 = vld [vmem:[%s2 + $0x128] sm:$0xff]
  %v1659 = vld [vmem:[%s2 + $0x130] sm:$0xff]
  %v1660 = vld [vmem:[%s2 + $0x138] sm:$0xff]
  %v1661 = vld [vmem:[%s2 + $0x140] sm:$0xff]
  %v1662 = vld [vmem:[%s2 + $0x148] sm:$0xff]
  %v1663 = vld [vmem:[%s2 + $0x150] sm:$0xff]
  %v1664 = vld [vmem:[%s2 + $0x158] sm:$0xff]
  %v1665 = vld [vmem:[%s2 + $0x160] sm:$0xff]
  %v1666 = vld [vmem:[%s2 + $0x168] sm:$0xff]
  %v1667 = vld [vmem:[%s2 + $0x170] sm:$0xff]
  %v1668 = vld [vmem:[%s2 + $0x178] sm:$0xff]
  %v1669 = vld [vmem:[%s2 + $0x180] sm:$0xff]
  %v1670 = vld [vmem:[%s2 + $0x188] sm:$0xff]
  %v1671 = vld [vmem:[%s2 + $0x190] sm:$0xff]
  %v1672 = vld [vmem:[%s2 + $0x198] sm:$0xff]
  %v1673 = vld [vmem:[%s2 + $0x1a0] sm:$0xff]
  %v1674 = vld [vmem:[%s2 + $0x1a8] sm:$0xff]
  %v1675 = vld [vmem:[%s2 + $0x1b0] sm:$0xff]
  %v1676 = vld [vmem:[%s2 + $0x1b8] sm:$0xff]
  %v1677 = vld [vmem:[%s2 + $0x1c0] sm:$0xff]
  %v1678 = vld [vmem:[%s2 + $0x1c8] sm:$0xff]
  %v1679 = vld [vmem:[%s2 + $0x1d0] sm:$0xff]
  %v1680 = vld [vmem:[%s2 + $0x1d8] sm:$0xff]
  %v1681 = vld [vmem:[%s2 + $0x1e0] sm:$0xff]
  %v1682 = vld [vmem:[%s2 + $0x1e8] sm:$0xff]
  %v1683 = vld [vmem:[%s2 + $0x1f0] sm:$0xff]
  %v1684 = vld [vmem:[%s2 + $0x1f8] sm:$0xff]
  %1685 = vmatprep.subr.mxu0 %v1622
  %1686 = vmatpush1.msra.mxu0 %v1621
  %1687 = vmatprep.subr.mxu0 %v1626
  %1688 = vmatpush1.msra.mxu0 %v1625
  %1689 = vmatprep.subr.mxu0 %v1630
  %1690 = vmatpush1.msra.mxu0 %v1629
  %1691 = vmatprep.subr.mxu0 %v1634
  %1692 = vmatpush1.msra.mxu0 %v1633
  %1693 = vmatprep.subr.mxu0 %v1638
  %1694 = vmatpush1.msra.mxu0 %v1637
  %1695 = vmatprep.subr.mxu0 %v1642
  %1696 = vmatpush1.msra.mxu0 %v1641
  %1697 = vmatprep.subr.mxu0 %v1646
  %1698 = vmatpush1.msra.mxu0 %v1645
  %1699 = vmatprep.subr.mxu0 %v1650
  %1700 = vmatpush1.msra.mxu0 %v1649
  %1701 = vmatprep.subr.mxu0 %v1654
  %1702 = vmatpush1.msra.mxu0 %v1653
  %1703 = vmatprep.subr.mxu0 %v1658
  %1704 = vmatpush1.msra.mxu0 %v1657
  %1705 = vmatprep.subr.mxu0 %v1662
  %1706 = vmatpush1.msra.mxu0 %v1661
  %1707 = vmatprep.subr.mxu0 %v1666
  %1708 = vmatpush1.msra.mxu0 %v1665
  %1709 = vmatprep.subr.mxu0 %v1670
  %1710 = vmatpush1.msra.mxu0 %v1669
  %1711 = vmatprep.subr.mxu0 %v1674
  %1712 = vmatpush1.msra.mxu0 %v1673
  %1713 = vmatprep.subr.mxu0 %v1678
  %1714 = vmatpush1.msra.mxu0 %v1677
  %1715 = vmatprep.subr.mxu0 %v1682
  %1716 = vmatpush1.msra.mxu0 %v1681
  %1717 = vmatprep.subr.mxu0 0.0
  %1718 = vmatpush1.msra.mxu0 0.0
  %1719 = vmatprep.subr.mxu0 0.0
  %1720 = vmatpush1.msra.mxu0 0.0
  %1721 = vmatprep.subr.mxu0 0.0
  %1722 = vmatpush1.msra.mxu0 0.0
  %1723 = vmatprep.subr.mxu0 0.0
  %1724 = vmatpush1.msra.mxu0 0.0
  %1725 = vmatprep.subr.mxu0 0.0
  %1726 = vmatpush1.msra.mxu0 0.0
  %1727 = vmatprep.subr.mxu0 0.0
  %1728 = vmatpush1.msra.mxu0 0.0
  %1729 = vmatprep.subr.mxu0 0.0
  %1730 = vmatpush1.msra.mxu0 0.0
  %1731 = vmatprep.subr.mxu0 0.0
  %1732 = vmatpush1.msra.mxu0 0.0
  %1733 = vmatprep.subr.mxu0 0.0
  %1734 = vmatpush1.msra.mxu0 0.0
  %1735 = vmatprep.subr.mxu0 0.0
  %1736 = vmatpush1.msra.mxu0 0.0
  %1737 = vmatprep.subr.mxu0 0.0
  %1738 = vmatpush1.msra.mxu0 0.0
  %1739 = vmatprep.subr.mxu0 0.0
  %1740 = vmatpush1.msra.mxu0 0.0
  %1741 = vmatprep.subr.mxu0 0.0
  %1742 = vmatpush1.msra.mxu0 0.0
  %1743 = vmatprep.subr.mxu0 0.0
  %1744 = vmatpush1.msra.mxu0 0.0
  %1745 = vmatprep.subr.mxu0 0.0
  %1746 = vmatpush1.msra.mxu0 0.0
  %1747 = vmatprep.subr.mxu0 0.0
  %1748 = vmatpush1.msra.mxu0 0.0
  %1749 = vmatprep.mubr.f32.mxu0 0.0
  %1750 = vmatmul.mubr.f32.gmra.mrb[0].mxu0 %v1611
  %v1751 = vpop.f32.mrb[0].mxu0
  %v1752 = vadd.f32 0.0, %v1751
  %v1753 = vpop.f32.mrb[0].mxu0
  %v1754 = vadd.f32 0.0, %v1753
  %1755 = vdwg.mxu0
  %1756 = vmatprep.subr.mxu0 %v1624
  %1757 = vmatpush1.msra.mxu0 %v1623
  %1758 = vmatprep.subr.mxu0 %v1628
  %1759 = vmatpush1.msra.mxu0 %v1627
  %1760 = vmatprep.subr.mxu0 %v1632
  %1761 = vmatpush1.msra.mxu0 %v1631
  %1762 = vmatprep.subr.mxu0 %v1636
  %1763 = vmatpush1.msra.mxu0 %v1635
  %1764 = vmatprep.subr.mxu0 %v1640
  %1765 = vmatpush1.msra.mxu0 %v1639
  %1766 = vmatprep.subr.mxu0 %v1644
  %1767 = vmatpush1.msra.mxu0 %v1643
  %1768 = vmatprep.subr.mxu0 %v1648
  %1769 = vmatpush1.msra.mxu0 %v1647
  %1770 = vmatprep.subr.mxu0 %v1652
  %1771 = vmatpush1.msra.mxu0 %v1651
  %1772 = vmatprep.subr.mxu0 %v1656
  %1773 = vmatpush1.msra.mxu0 %v1655
  %1774 = vmatprep.subr.mxu0 %v1660
  %1775 = vmatpush1.msra.mxu0 %v1659
  %1776 = vmatprep.subr.mxu0 %v1664
  %1777 = vmatpush1.msra.mxu0 %v1663
  %1778 = vmatprep.subr.mxu0 %v1668
  %1779 = vmatpush1.msra.mxu0 %v1667
  %1780 = vmatprep.subr.mxu0 %v1672
  %1781 = vmatpush1.msra.mxu0 %v1671
  %1782 = vmatprep.subr.mxu0 %v1676
  %1783 = vmatpush1.msra.mxu0 %v1675
  %1784 = vmatprep.subr.mxu0 %v1680
  %1785 = vmatpush1.msra.mxu0 %v1679
  %1786 = vmatprep.subr.mxu0 %v1684
  %1787 = vmatpush1.msra.mxu0 %v1683
  %1788 = vmatprep.subr.mxu0 0.0
  %1789 = vmatpush1.msra.mxu0 0.0
  %1790 = vmatprep.subr.mxu0 0.0
  %1791 = vmatpush1.msra.mxu0 0.0
  %1792 = vmatprep.subr.mxu0 0.0
  %1793 = vmatpush1.msra.mxu0 0.0
  %1794 = vmatprep.subr.mxu0 0.0
  %1795 = vmatpush1.msra.mxu0 0.0
  %1796 = vmatprep.subr.mxu0 0.0
  %1797 = vmatpush1.msra.mxu0 0.0
  %1798 = vmatprep.subr.mxu0 0.0
  %1799 = vmatpush1.msra.mxu0 0.0
  %1800 = vmatprep.subr.mxu0 0.0
  %1801 = vmatpush1.msra.mxu0 0.0
  %1802 = vmatprep.subr.mxu0 0.0
  %1803 = vmatpush1.msra.mxu0 0.0
  %1804 = vmatprep.subr.mxu0 0.0
  %1805 = vmatpush1.msra.mxu0 0.0
  %1806 = vmatprep.subr.mxu0 0.0
  %1807 = vmatpush1.msra.mxu0 0.0
  %1808 = vmatprep.subr.mxu0 0.0
  %1809 = vmatpush1.msra.mxu0 0.0
  %1810 = vmatprep.subr.mxu0 0.0
  %1811 = vmatpush1.msra.mxu0 0.0
  %1812 = vmatprep.subr.mxu0 0.0
  %1813 = vmatpush1.msra.mxu0 0.0
  %1814 = vmatprep.subr.mxu0 0.0
  %1815 = vmatpush1.msra.mxu0 0.0
  %1816 = vmatprep.subr.mxu0 0.0
  %1817 = vmatpush1.msra.mxu0 0.0
  %1818 = vmatprep.subr.mxu0 0.0
  %1819 = vmatpush1.msra.mxu0 0.0
  %1820 = vmatprep.mubr.f32.mxu0 0.0
  %1821 = vmatmul.mubr.f32.gmra.mrb[0].mxu0 %v1611
  %v1822 = vpop.f32.mrb[0].mxu0
  %v1823 = vadd.f32 0.0, %v1822
  %v1824 = vpop.f32.mrb[0].mxu0
  %v1825 = vadd.f32 0.0, %v1824
  %1826 = vdwg.mxu0
  %v1827 = vadd.f32 %v1617, %v1752
  %v1828 = vadd.f32 %v1618, %v1754
  %v1829 = vadd.f32 %v1619, %v1823
  %v1830 = vadd.f32 %v1620, %v1825
  %v1831 = vxor.u32 %v1827, 2147483648
  %v1832 = vmul.f32 %v1831, 1.442695
  %v1833 = vpow.pop %v1832
  %v1834 = vadd.f32 %v1833, 1.0
  %v1835 = vrcp.pop %v1834
  %v1836 = vmul.f32 1.0, %v1835
  %v1837 = vxor.u32 %v1828, 2147483648
  %v1838 = vmul.f32 %v1837, 1.442695
  %v1839 = vpow.pop %v1838
  %v1840 = vadd.f32 %v1839, 1.0
  %v1841 = vrcp.pop %v1840
  %v1842 = vmul.f32 1.0, %v1841
  %v1843 = vtanh.pop %v1829
  %v1844 = vxor.u32 %v1830, 2147483648
  %v1845 = vmul.f32 %v1844, 1.442695
  %v1846 = vpow.pop %v1845
  %v1847 = vadd.f32 %v1846, 1.0
  %v1848 = vrcp.pop %v1847
  %v1849 = vmul.f32 1.0, %v1848
  %v1850 = vmul.f32 %v1842, %v1609
  %v1851 = vmul.f32 %v1836, %v1843
  %v1852 = vadd.f32 %v1850, %v1851
  %v1853 = vtanh.pop %v1852
  %v1854 = vmul.f32 %v1849, %v1853
  %s1855 = scalar_lea.vmem [#allocation2], 40
  %1856 = vst [vmem:[%s1855] sm:$0xff] %v1854
  %s1857 = smul.u32 6, 4
  %s1858 = smul.addr %s1857, 8
  %s1859 = scalar_lea.vmem [#allocation3], %s1858
  %v1860 = vld [vmem:[%s1859] sm:$0xff]
  %v1861 = vld [vmem:[%s1859 + $0x8] sm:$0xff]
  %v1862 = vld [vmem:[%s1859 + $0x10] sm:$0xff]
  %v1863 = vld [vmem:[%s1859 + $0x18] sm:$0xff]
  %v1864 = vld [vmem:[%s2] sm:$0xff]
  %v1865 = vld [vmem:[%s2 + $0x8] sm:$0xff]
  %v1866 = vld [vmem:[%s2 + $0x10] sm:$0xff]
  %v1867 = vld [vmem:[%s2 + $0x18] sm:$0xff]
  %v1868 = vld [vmem:[%s2 + $0x20] sm:$0xff]
  %v1869 = vld [vmem:[%s2 + $0x28] sm:$0xff]
  %v1870 = vld [vmem:[%s2 + $0x30] sm:$0xff]
  %v1871 = vld [vmem:[%s2 + $0x38] sm:$0xff]
  %v1872 = vld [vmem:[%s2 + $0x40] sm:$0xff]
  %v1873 = vld [vmem:[%s2 + $0x48] sm:$0xff]
  %v1874 = vld [vmem:[%s2 + $0x50] sm:$0xff]
  %v1875 = vld [vmem:[%s2 + $0x58] sm:$0xff]
  %v1876 = vld [vmem:[%s2 + $0x60] sm:$0xff]
  %v1877 = vld [vmem:[%s2 + $0x68] sm:$0xff]
  %v1878 = vld [vmem:[%s2 + $0x70] sm:$0xff]
  %v1879 = vld [vmem:[%s2 + $0x78] sm:$0xff]
  %v1880 = vld [vmem:[%s2 + $0x80] sm:$0xff]
  %v1881 = vld [vmem:[%s2 + $0x88] sm:$0xff]
  %v1882 = vld [vmem:[%s2 + $0x90] sm:$0xff]
  %v1883 = vld [vmem:[%s2 + $0x98] sm:$0xff]
  %v1884 = vld [vmem:[%s2 + $0xa0] sm:$0xff]
  %v1885 = vld [vmem:[%s2 + $0xa8] sm:$0xff]
  %v1886 = vld [vmem:[%s2 + $0xb0] sm:$0xff]
  %v1887 = vld [vmem:[%s2 + $0xb8] sm:$0xff]
  %v1888 = vld [vmem:[%s2 + $0xc0] sm:$0xff]
  %v1889 = vld [vmem:[%s2 + $0xc8] sm:$0xff]
  %v1890 = vld [vmem:[%s2 + $0xd0] sm:$0xff]
  %v1891 = vld [vmem:[%s2 + $0xd8] sm:$0xff]
  %v1892 = vld [vmem:[%s2 + $0xe0] sm:$0xff]
  %v1893 = vld [vmem:[%s2 + $0xe8] sm:$0xff]
  %v1894 = vld [vmem:[%s2 + $0xf0] sm:$0xff]
  %v1895 = vld [vmem:[%s2 + $0xf8] sm:$0xff]
  %v1896 = vld [vmem:[%s2 + $0x100] sm:$0xff]
  %v1897 = vld [vmem:[%s2 + $0x108] sm:$0xff]
  %v1898 = vld [vmem:[%s2 + $0x110] sm:$0xff]
  %v1899 = vld [vmem:[%s2 + $0x118] sm:$0xff]
  %v1900 = vld [vmem:[%s2 + $0x120] sm:$0xff]
  %v1901 = vld [vmem:[%s2 + $0x128] sm:$0xff]
  %v1902 = vld [vmem:[%s2 + $0x130] sm:$0xff]
  %v1903 = vld [vmem:[%s2 + $0x138] sm:$0xff]
  %v1904 = vld [vmem:[%s2 + $0x140] sm:$0xff]
  %v1905 = vld [vmem:[%s2 + $0x148] sm:$0xff]
  %v1906 = vld [vmem:[%s2 + $0x150] sm:$0xff]
  %v1907 = vld [vmem:[%s2 + $0x158] sm:$0xff]
  %v1908 = vld [vmem:[%s2 + $0x160] sm:$0xff]
  %v1909 = vld [vmem:[%s2 + $0x168] sm:$0xff]
  %v1910 = vld [vmem:[%s2 + $0x170] sm:$0xff]
  %v1911 = vld [vmem:[%s2 + $0x178] sm:$0xff]
  %v1912 = vld [vmem:[%s2 + $0x180] sm:$0xff]
  %v1913 = vld [vmem:[%s2 + $0x188] sm:$0xff]
  %v1914 = vld [vmem:[%s2 + $0x190] sm:$0xff]
  %v1915 = vld [vmem:[%s2 + $0x198] sm:$0xff]
  %v1916 = vld [vmem:[%s2 + $0x1a0] sm:$0xff]
  %v1917 = vld [vmem:[%s2 + $0x1a8] sm:$0xff]
  %v1918 = vld [vmem:[%s2 + $0x1b0] sm:$0xff]
  %v1919 = vld [vmem:[%s2 + $0x1b8] sm:$0xff]
  %v1920 = vld [vmem:[%s2 + $0x1c0] sm:$0xff]
  %v1921 = vld [vmem:[%s2 + $0x1c8] sm:$0xff]
  %v1922 = vld [vmem:[%s2 + $0x1d0] sm:$0xff]
  %v1923 = vld [vmem:[%s2 + $0x1d8] sm:$0xff]
  %v1924 = vld [vmem:[%s2 + $0x1e0] sm:$0xff]
  %v1925 = vld [vmem:[%s2 + $0x1e8] sm:$0xff]
  %v1926 = vld [vmem:[%s2 + $0x1f0] sm:$0xff]
  %v1927 = vld [vmem:[%s2 + $0x1f8] sm:$0xff]
  %1928 = vmatprep.subr.mxu0 %v1865
  %1929 = vmatpush1.msra.mxu0 %v1864
  %1930 = vmatprep.subr.mxu0 %v1869
  %1931 = vmatpush1.msra.mxu0 %v1868
  %1932 = vmatprep.subr.mxu0 %v1873
  %1933 = vmatpush1.msra.mxu0 %v1872
  %1934 = vmatprep.subr.mxu0 %v1877
  %1935 = vmatpush1.msra.mxu0 %v1876
  %1936 = vmatprep.subr.mxu0 %v1881
  %1937 = vmatpush1.msra.mxu0 %v1880
  %1938 = vmatprep.subr.mxu0 %v1885
  %1939 = vmatpush1.msra.mxu0 %v1884
  %1940 = vmatprep.subr.mxu0 %v1889
  %1941 = vmatpush1.msra.mxu0 %v1888
  %1942 = vmatprep.subr.mxu0 %v1893
  %1943 = vmatpush1.msra.mxu0 %v1892
  %1944 = vmatprep.subr.mxu0 %v1897
  %1945 = vmatpush1.msra.mxu0 %v1896
  %1946 = vmatprep.subr.mxu0 %v1901
  %1947 = vmatpush1.msra.mxu0 %v1900
  %1948 = vmatprep.subr.mxu0 %v1905
  %1949 = vmatpush1.msra.mxu0 %v1904
  %1950 = vmatprep.subr.mxu0 %v1909
  %1951 = vmatpush1.msra.mxu0 %v1908
  %1952 = vmatprep.subr.mxu0 %v1913
  %1953 = vmatpush1.msra.mxu0 %v1912
  %1954 = vmatprep.subr.mxu0 %v1917
  %1955 = vmatpush1.msra.mxu0 %v1916
  %1956 = vmatprep.subr.mxu0 %v1921
  %1957 = vmatpush1.msra.mxu0 %v1920
  %1958 = vmatprep.subr.mxu0 %v1925
  %1959 = vmatpush1.msra.mxu0 %v1924
  %1960 = vmatprep.subr.mxu0 0.0
  %1961 = vmatpush1.msra.mxu0 0.0
  %1962 = vmatprep.subr.mxu0 0.0
  %1963 = vmatpush1.msra.mxu0 0.0
  %1964 = vmatprep.subr.mxu0 0.0
  %1965 = vmatpush1.msra.mxu0 0.0
  %1966 = vmatprep.subr.mxu0 0.0
  %1967 = vmatpush1.msra.mxu0 0.0
  %1968 = vmatprep.subr.mxu0 0.0
  %1969 = vmatpush1.msra.mxu0 0.0
  %1970 = vmatprep.subr.mxu0 0.0
  %1971 = vmatpush1.msra.mxu0 0.0
  %1972 = vmatprep.subr.mxu0 0.0
  %1973 = vmatpush1.msra.mxu0 0.0
  %1974 = vmatprep.subr.mxu0 0.0
  %1975 = vmatpush1.msra.mxu0 0.0
  %1976 = vmatprep.subr.mxu0 0.0
  %1977 = vmatpush1.msra.mxu0 0.0
  %1978 = vmatprep.subr.mxu0 0.0
  %1979 = vmatpush1.msra.mxu0 0.0
  %1980 = vmatprep.subr.mxu0 0.0
  %1981 = vmatpush1.msra.mxu0 0.0
  %1982 = vmatprep.subr.mxu0 0.0
  %1983 = vmatpush1.msra.mxu0 0.0
  %1984 = vmatprep.subr.mxu0 0.0
  %1985 = vmatpush1.msra.mxu0 0.0
  %1986 = vmatprep.subr.mxu0 0.0
  %1987 = vmatpush1.msra.mxu0 0.0
  %1988 = vmatprep.subr.mxu0 0.0
  %1989 = vmatpush1.msra.mxu0 0.0
  %1990 = vmatprep.subr.mxu0 0.0
  %1991 = vmatpush1.msra.mxu0 0.0
  %1992 = vmatprep.mubr.f32.mxu0 0.0
  %1993 = vmatmul.mubr.f32.gmra.mrb[0].mxu0 %v1854
  %v1994 = vpop.f32.mrb[0].mxu0
  %v1995 = vadd.f32 0.0, %v1994
  %v1996 = vpop.f32.mrb[0].mxu0
  %v1997 = vadd.f32 0.0, %v1996
  %1998 = vdwg.mxu0
  %1999 = vmatprep.subr.mxu0 %v1867
  %2000 = vmatpush1.msra.mxu0 %v1866
  %2001 = vmatprep.subr.mxu0 %v1871
  %2002 = vmatpush1.msra.mxu0 %v1870
  %2003 = vmatprep.subr.mxu0 %v1875
  %2004 = vmatpush1.msra.mxu0 %v1874
  %2005 = vmatprep.subr.mxu0 %v1879
  %2006 = vmatpush1.msra.mxu0 %v1878
  %2007 = vmatprep.subr.mxu0 %v1883
  %2008 = vmatpush1.msra.mxu0 %v1882
  %2009 = vmatprep.subr.mxu0 %v1887
  %2010 = vmatpush1.msra.mxu0 %v1886
  %2011 = vmatprep.subr.mxu0 %v1891
  %2012 = vmatpush1.msra.mxu0 %v1890
  %2013 = vmatprep.subr.mxu0 %v1895
  %2014 = vmatpush1.msra.mxu0 %v1894
  %2015 = vmatprep.subr.mxu0 %v1899
  %2016 = vmatpush1.msra.mxu0 %v1898
  %2017 = vmatprep.subr.mxu0 %v1903
  %2018 = vmatpush1.msra.mxu0 %v1902
  %2019 = vmatprep.subr.mxu0 %v1907
  %2020 = vmatpush1.msra.mxu0 %v1906
  %2021 = vmatprep.subr.mxu0 %v1911
  %2022 = vmatpush1.msra.mxu0 %v1910
  %2023 = vmatprep.subr.mxu0 %v1915
  %2024 = vmatpush1.msra.mxu0 %v1914
  %2025 = vmatprep.subr.mxu0 %v1919
  %2026 = vmatpush1.msra.mxu0 %v1918
  %2027 = vmatprep.subr.mxu0 %v1923
  %2028 = vmatpush1.msra.mxu0 %v1922
  %2029 = vmatprep.subr.mxu0 %v1927
  %2030 = vmatpush1.msra.mxu0 %v1926
  %2031 = vmatprep.subr.mxu0 0.0
  %2032 = vmatpush1.msra.mxu0 0.0
  %2033 = vmatprep.subr.mxu0 0.0
  %2034 = vmatpush1.msra.mxu0 0.0
  %2035 = vmatprep.subr.mxu0 0.0
  %2036 = vmatpush1.msra.mxu0 0.0
  %2037 = vmatprep.subr.mxu0 0.0
  %2038 = vmatpush1.msra.mxu0 0.0
  %2039 = vmatprep.subr.mxu0 0.0
  %2040 = vmatpush1.msra.mxu0 0.0
  %2041 = vmatprep.subr.mxu0 0.0
  %2042 = vmatpush1.msra.mxu0 0.0
  %2043 = vmatprep.subr.mxu0 0.0
  %2044 = vmatpush1.msra.mxu0 0.0
  %2045 = vmatprep.subr.mxu0 0.0
  %2046 = vmatpush1.msra.mxu0 0.0
  %2047 = vmatprep.subr.mxu0 0.0
  %2048 = vmatpush1.msra.mxu0 0.0
  %2049 = vmatprep.subr.mxu0 0.0
  %2050 = vmatpush1.msra.mxu0 0.0
  %2051 = vmatprep.subr.mxu0 0.0
  %2052 = vmatpush1.msra.mxu0 0.0
  %2053 = vmatprep.subr.mxu0 0.0
  %2054 = vmatpush1.msra.mxu0 0.0
  %2055 = vmatprep.subr.mxu0 0.0
  %2056 = vmatpush1.msra.mxu0 0.0
  %2057 = vmatprep.subr.mxu0 0.0
  %2058 = vmatpush1.msra.mxu0 0.0
  %2059 = vmatprep.subr.mxu0 0.0
  %2060 = vmatpush1.msra.mxu0 0.0
  %2061 = vmatprep.subr.mxu0 0.0
  %2062 = vmatpush1.msra.mxu0 0.0
  %2063 = vmatprep.mubr.f32.mxu0 0.0
  %2064 = vmatmul.mubr.f32.gmra.mrb[0].mxu0 %v1854
  %v2065 = vpop.f32.mrb[0].mxu0
  %v2066 = vadd.f32 0.0, %v2065
  %v2067 = vpop.f32.mrb[0].mxu0
  %v2068 = vadd.f32 0.0, %v2067
  %2069 = vdwg.mxu0
  %v2070 = vadd.f32 %v1860, %v1995
  %v2071 = vadd.f32 %v1861, %v1997
  %v2072 = vadd.f32 %v1862, %v2066
  %v2073 = vadd.f32 %v1863, %v2068
  %v2074 = vxor.u32 %v2070, 2147483648
  %v2075 = vmul.f32 %v2074, 1.442695
  %v2076 = vpow.pop %v2075
  %v2077 = vadd.f32 %v2076, 1.0
  %v2078 = vrcp.pop %v2077
  %v2079 = vmul.f32 1.0, %v2078
  %v2080 = vxor.u32 %v2071, 2147483648
  %v2081 = vmul.f32 %v2080, 1.442695
  %v2082 = vpow.pop %v2081
  %v2083 = vadd.f32 %v2082, 1.0
  %v2084 = vrcp.pop %v2083
  %v2085 = vmul.f32 1.0, %v2084
  %v2086 = vtanh.pop %v2072
  %v2087 = vxor.u32 %v2073, 2147483648
  %v2088 = vmul.f32 %v2087, 1.442695
  %v2089 = vpow.pop %v2088
  %v2090 = vadd.f32 %v2089, 1.0
  %v2091 = vrcp.pop %v2090
  %v2092 = vmul.f32 1.0, %v2091
  %v2093 = vmul.f32 %v2085, %v1852
  %v2094 = vmul.f32 %v2079, %v2086
  %v2095 = vadd.f32 %v2093, %v2094
  %v2096 = vtanh.pop %v2095
  %v2097 = vmul.f32 %v2092, %v2096
  %s2098 = scalar_lea.vmem [#allocation2], 48
  %2099 = vst [vmem:[%s2098] sm:$0xff] %v2097
  %s2100 = smul.u32 7, 4
  %s2101 = smul.addr %s2100, 8
  %s2102 = scalar_lea.vmem [#allocation3], %s2101
  %v2103 = vld [vmem:[%s2102] sm:$0xff]
  %v2104 = vld [vmem:[%s2102 + $0x8] sm:$0xff]
  %v2105 = vld [vmem:[%s2102 + $0x10] sm:$0xff]
  %v2106 = vld [vmem:[%s2102 + $0x18] sm:$0xff]
  %v2107 = vld [vmem:[%s2] sm:$0xff]
  %v2108 = vld [vmem:[%s2 + $0x8] sm:$0xff]
  %v2109 = vld [vmem:[%s2 + $0x10] sm:$0xff]
  %v2110 = vld [vmem:[%s2 + $0x18] sm:$0xff]
  %v2111 = vld [vmem:[%s2 + $0x20] sm:$0xff]
  %v2112 = vld [vmem:[%s2 + $0x28] sm:$0xff]
  %v2113 = vld [vmem:[%s2 + $0x30] sm:$0xff]
  %v2114 = vld [vmem:[%s2 + $0x38] sm:$0xff]
  %v2115 = vld [vmem:[%s2 + $0x40] sm:$0xff]
  %v2116 = vld [vmem:[%s2 + $0x48] sm:$0xff]
  %v2117 = vld [vmem:[%s2 + $0x50] sm:$0xff]
  %v2118 = vld [vmem:[%s2 + $0x58] sm:$0xff]
  %v2119 = vld [vmem:[%s2 + $0x60] sm:$0xff]
  %v2120 = vld [vmem:[%s2 + $0x68] sm:$0xff]
  %v2121 = vld [vmem:[%s2 + $0x70] sm:$0xff]
  %v2122 = vld [vmem:[%s2 + $0x78] sm:$0xff]
  %v2123 = vld [vmem:[%s2 + $0x80] sm:$0xff]
  %v2124 = vld [vmem:[%s2 + $0x88] sm:$0xff]
  %v2125 = vld [vmem:[%s2 + $0x90] sm:$0xff]
  %v2126 = vld [vmem:[%s2 + $0x98] sm:$0xff]
  %v2127 = vld [vmem:[%s2 + $0xa0] sm:$0xff]
  %v2128 = vld [vmem:[%s2 + $0xa8] sm:$0xff]
  %v2129 = vld [vmem:[%s2 + $0xb0] sm:$0xff]
  %v2130 = vld [vmem:[%s2 + $0xb8] sm:$0xff]
  %v2131 = vld [vmem:[%s2 + $0xc0] sm:$0xff]
  %v2132 = vld [vmem:[%s2 + $0xc8] sm:$0xff]
  %v2133 = vld [vmem:[%s2 + $0xd0] sm:$0xff]
  %v2134 = vld [vmem:[%s2 + $0xd8] sm:$0xff]
  %v2135 = vld [vmem:[%s2 + $0xe0] sm:$0xff]
  %v2136 = vld [vmem:[%s2 + $0xe8] sm:$0xff]
  %v2137 = vld [vmem:[%s2 + $0xf0] sm:$0xff]
  %v2138 = vld [vmem:[%s2 + $0xf8] sm:$0xff]
  %v2139 = vld [vmem:[%s2 + $0x100] sm:$0xff]
  %v2140 = vld [vmem:[%s2 + $0x108] sm:$0xff]
  %v2141 = vld [vmem:[%s2 + $0x110] sm:$0xff]
  %v2142 = vld [vmem:[%s2 + $0x118] sm:$0xff]
  %v2143 = vld [vmem:[%s2 + $0x120] sm:$0xff]
  %v2144 = vld [vmem:[%s2 + $0x128] sm:$0xff]
  %v2145 = vld [vmem:[%s2 + $0x130] sm:$0xff]
  %v2146 = vld [vmem:[%s2 + $0x138] sm:$0xff]
  %v2147 = vld [vmem:[%s2 + $0x140] sm:$0xff]
  %v2148 = vld [vmem:[%s2 + $0x148] sm:$0xff]
  %v2149 = vld [vmem:[%s2 + $0x150] sm:$0xff]
  %v2150 = vld [vmem:[%s2 + $0x158] sm:$0xff]
  %v2151 = vld [vmem:[%s2 + $0x160] sm:$0xff]
  %v2152 = vld [vmem:[%s2 + $0x168] sm:$0xff]
  %v2153 = vld [vmem:[%s2 + $0x170] sm:$0xff]
  %v2154 = vld [vmem:[%s2 + $0x178] sm:$0xff]
  %v2155 = vld [vmem:[%s2 + $0x180] sm:$0xff]
  %v2156 = vld [vmem:[%s2 + $0x188] sm:$0xff]
  %v2157 = vld [vmem:[%s2 + $0x190] sm:$0xff]
  %v2158 = vld [vmem:[%s2 + $0x198] sm:$0xff]
  %v2159 = vld [vmem:[%s2 + $0x1a0] sm:$0xff]
  %v2160 = vld [vmem:[%s2 + $0x1a8] sm:$0xff]
  %v2161 = vld [vmem:[%s2 + $0x1b0] sm:$0xff]
  %v2162 = vld [vmem:[%s2 + $0x1b8] sm:$0xff]
  %v2163 = vld [vmem:[%s2 + $0x1c0] sm:$0xff]
  %v2164 = vld [vmem:[%s2 + $0x1c8] sm:$0xff]
  %v2165 = vld [vmem:[%s2 + $0x1d0] sm:$0xff]
  %v2166 = vld [vmem:[%s2 + $0x1d8] sm:$0xff]
  %v2167 = vld [vmem:[%s2 + $0x1e0] sm:$0xff]
  %v2168 = vld [vmem:[%s2 + $0x1e8] sm:$0xff]
  %v2169 = vld [vmem:[%s2 + $0x1f0] sm:$0xff]
  %v2170 = vld [vmem:[%s2 + $0x1f8] sm:$0xff]
  %2171 = vmatprep.subr.mxu0 %v2108
  %2172 = vmatpush1.msra.mxu0 %v2107
  %2173 = vmatprep.subr.mxu0 %v2112
  %2174 = vmatpush1.msra.mxu0 %v2111
  %2175 = vmatprep.subr.mxu0 %v2116
  %2176 = vmatpush1.msra.mxu0 %v2115
  %2177 = vmatprep.subr.mxu0 %v2120
  %2178 = vmatpush1.msra.mxu0 %v2119
  %2179 = vmatprep.subr.mxu0 %v2124
  %2180 = vmatpush1.msra.mxu0 %v2123
  %2181 = vmatprep.subr.mxu0 %v2128
  %2182 = vmatpush1.msra.mxu0 %v2127
  %2183 = vmatprep.subr.mxu0 %v2132
  %2184 = vmatpush1.msra.mxu0 %v2131
  %2185 = vmatprep.subr.mxu0 %v2136
  %2186 = vmatpush1.msra.mxu0 %v2135
  %2187 = vmatprep.subr.mxu0 %v2140
  %2188 = vmatpush1.msra.mxu0 %v2139
  %2189 = vmatprep.subr.mxu0 %v2144
  %2190 = vmatpush1.msra.mxu0 %v2143
  %2191 = vmatprep.subr.mxu0 %v2148
  %2192 = vmatpush1.msra.mxu0 %v2147
  %2193 = vmatprep.subr.mxu0 %v2152
  %2194 = vmatpush1.msra.mxu0 %v2151
  %2195 = vmatprep.subr.mxu0 %v2156
  %2196 = vmatpush1.msra.mxu0 %v2155
  %2197 = vmatprep.subr.mxu0 %v2160
  %2198 = vmatpush1.msra.mxu0 %v2159
  %2199 = vmatprep.subr.mxu0 %v2164
  %2200 = vmatpush1.msra.mxu0 %v2163
  %2201 = vmatprep.subr.mxu0 %v2168
  %2202 = vmatpush1.msra.mxu0 %v2167
  %2203 = vmatprep.subr.mxu0 0.0
  %2204 = vmatpush1.msra.mxu0 0.0
  %2205 = vmatprep.subr.mxu0 0.0
  %2206 = vmatpush1.msra.mxu0 0.0
  %2207 = vmatprep.subr.mxu0 0.0
  %2208 = vmatpush1.msra.mxu0 0.0
  %2209 = vmatprep.subr.mxu0 0.0
  %2210 = vmatpush1.msra.mxu0 0.0
  %2211 = vmatprep.subr.mxu0 0.0
  %2212 = vmatpush1.msra.mxu0 0.0
  %2213 = vmatprep.subr.mxu0 0.0
  %2214 = vmatpush1.msra.mxu0 0.0
  %2215 = vmatprep.subr.mxu0 0.0
  %2216 = vmatpush1.msra.mxu0 0.0
  %2217 = vmatprep.subr.mxu0 0.0
  %2218 = vmatpush1.msra.mxu0 0.0
  %2219 = vmatprep.subr.mxu0 0.0
  %2220 = vmatpush1.msra.mxu0 0.0
  %2221 = vmatprep.subr.mxu0 0.0
  %2222 = vmatpush1.msra.mxu0 0.0
  %2223 = vmatprep.subr.mxu0 0.0
  %2224 = vmatpush1.msra.mxu0 0.0
  %2225 = vmatprep.subr.mxu0 0.0
  %2226 = vmatpush1.msra.mxu0 0.0
  %2227 = vmatprep.subr.mxu0 0.0
  %2228 = vmatpush1.msra.mxu0 0.0
  %2229 = vmatprep.subr.mxu0 0.0
  %2230 = vmatpush1.msra.mxu0 0.0
  %2231 = vmatprep.subr.mxu0 0.0
  %2232 = vmatpush1.msra.mxu0 0.0
  %2233 = vmatprep.subr.mxu0 0.0
  %2234 = vmatpush1.msra.mxu0 0.0
  %2235 = vmatprep.mubr.f32.mxu0 0.0
  %2236 = vmatmul.mubr.f32.gmra.mrb[0].mxu0 %v2097
  %v2237 = vpop.f32.mrb[0].mxu0
  %v2238 = vadd.f32 0.0, %v2237
  %v2239 = vpop.f32.mrb[0].mxu0
  %v2240 = vadd.f32 0.0, %v2239
  %2241 = vdwg.mxu0
  %2242 = vmatprep.subr.mxu0 %v2110
  %2243 = vmatpush1.msra.mxu0 %v2109
  %2244 = vmatprep.subr.mxu0 %v2114
  %2245 = vmatpush1.msra.mxu0 %v2113
  %2246 = vmatprep.subr.mxu0 %v2118
  %2247 = vmatpush1.msra.mxu0 %v2117
  %2248 = vmatprep.subr.mxu0 %v2122
  %2249 = vmatpush1.msra.mxu0 %v2121
  %2250 = vmatprep.subr.mxu0 %v2126
  %2251 = vmatpush1.msra.mxu0 %v2125
  %2252 = vmatprep.subr.mxu0 %v2130
  %2253 = vmatpush1.msra.mxu0 %v2129
  %2254 = vmatprep.subr.mxu0 %v2134
  %2255 = vmatpush1.msra.mxu0 %v2133
  %2256 = vmatprep.subr.mxu0 %v2138
  %2257 = vmatpush1.msra.mxu0 %v2137
  %2258 = vmatprep.subr.mxu0 %v2142
  %2259 = vmatpush1.msra.mxu0 %v2141
  %2260 = vmatprep.subr.mxu0 %v2146
  %2261 = vmatpush1.msra.mxu0 %v2145
  %2262 = vmatprep.subr.mxu0 %v2150
  %2263 = vmatpush1.msra.mxu0 %v2149
  %2264 = vmatprep.subr.mxu0 %v2154
  %2265 = vmatpush1.msra.mxu0 %v2153
  %2266 = vmatprep.subr.mxu0 %v2158
  %2267 = vmatpush1.msra.mxu0 %v2157
  %2268 = vmatprep.subr.mxu0 %v2162
  %2269 = vmatpush1.msra.mxu0 %v2161
  %2270 = vmatprep.subr.mxu0 %v2166
  %2271 = vmatpush1.msra.mxu0 %v2165
  %2272 = vmatprep.subr.mxu0 %v2170
  %2273 = vmatpush1.msra.mxu0 %v2169
  %2274 = vmatprep.subr.mxu0 0.0
  %2275 = vmatpush1.msra.mxu0 0.0
  %2276 = vmatprep.subr.mxu0 0.0
  %2277 = vmatpush1.msra.mxu0 0.0
  %2278 = vmatprep.subr.mxu0 0.0
  %2279 = vmatpush1.msra.mxu0 0.0
  %2280 = vmatprep.subr.mxu0 0.0
  %2281 = vmatpush1.msra.mxu0 0.0
  %2282 = vmatprep.subr.mxu0 0.0
  %2283 = vmatpush1.msra.mxu0 0.0
  %2284 = vmatprep.subr.mxu0 0.0
  %2285 = vmatpush1.msra.mxu0 0.0
  %2286 = vmatprep.subr.mxu0 0.0
  %2287 = vmatpush1.msra.mxu0 0.0
  %2288 = vmatprep.subr.mxu0 0.0
  %2289 = vmatpush1.msra.mxu0 0.0
  %2290 = vmatprep.subr.mxu0 0.0
  %2291 = vmatpush1.msra.mxu0 0.0
  %2292 = vmatprep.subr.mxu0 0.0
  %2293 = vmatpush1.msra.mxu0 0.0
  %2294 = vmatprep.subr.mxu0 0.0
  %2295 = vmatpush1.msra.mxu0 0.0
  %2296 = vmatprep.subr.mxu0 0.0
  %2297 = vmatpush1.msra.mxu0 0.0
  %2298 = vmatprep.subr.mxu0 0.0
  %2299 = vmatpush1.msra.mxu0 0.0
  %2300 = vmatprep.subr.mxu0 0.0
  %2301 = vmatpush1.msra.mxu0 0.0
  %2302 = vmatprep.subr.mxu0 0.0
  %2303 = vmatpush1.msra.mxu0 0.0
  %2304 = vmatprep.subr.mxu0 0.0
  %2305 = vmatpush1.msra.mxu0 0.0
  %2306 = vmatprep.mubr.f32.mxu0 0.0
  %2307 = vmatmul.mubr.f32.gmra.mrb[0].mxu0 %v2097
  %v2308 = vpop.f32.mrb[0].mxu0
  %v2309 = vadd.f32 0.0, %v2308
  %v2310 = vpop.f32.mrb[0].mxu0
  %v2311 = vadd.f32 0.0, %v2310
  %2312 = vdwg.mxu0
  %v2313 = vadd.f32 %v2103, %v2238
  %v2314 = vadd.f32 %v2104, %v2240
  %v2315 = vadd.f32 %v2105, %v2309
  %v2316 = vadd.f32 %v2106, %v2311
  %v2317 = vxor.u32 %v2313, 2147483648
  %v2318 = vmul.f32 %v2317, 1.442695
  %v2319 = vpow.pop %v2318
  %v2320 = vadd.f32 %v2319, 1.0
  %v2321 = vrcp.pop %v2320
  %v2322 = vmul.f32 1.0, %v2321
  %v2323 = vxor.u32 %v2314, 2147483648
  %v2324 = vmul.f32 %v2323, 1.442695
  %v2325 = vpow.pop %v2324
  %v2326 = vadd.f32 %v2325, 1.0
  %v2327 = vrcp.pop %v2326
  %v2328 = vmul.f32 1.0, %v2327
  %v2329 = vtanh.pop %v2315
  %v2330 = vxor.u32 %v2316, 2147483648
  %v2331 = vmul.f32 %v2330, 1.442695
  %v2332 = vpow.pop %v2331
  %v2333 = vadd.f32 %v2332, 1.0
  %v2334 = vrcp.pop %v2333
  %v2335 = vmul.f32 1.0, %v2334
  %v2336 = vmul.f32 %v2328, %v2095
  %v2337 = vmul.f32 %v2322, %v2329
  %v2338 = vadd.f32 %v2336, %v2337
  %v2339 = vtanh.pop %v2338
  %v2340 = vmul.f32 %v2335, %v2339
  %s2341 = scalar_lea.vmem [#allocation2], 56
  %2342 = vst [vmem:[%s2341] sm:$0xff] %v2340
  loop: start=0, step=1, limit=8
  $region58: #{alibaba_encoder_decoder_forward.1} parent=0 // loop_pre_header
    _
  $region59: #{alibaba_encoder_decoder_forward.1} parent=0 // loop_header
    %s2344 = sphi 0, %s2348
    %p2345 = scmp.ge.s32.totalorder %s2344, 8
    %v2349 = vphi %v2340, %v4613
    %v2350 = vphi %v2338, %v4611
  $region60: #{alibaba_encoder_decoder_forward.1} parent=0 // loop_header_branch
    %2347 = sbr.rel (%p2345) target = $region64
  $region61: #{alibaba_encoder_decoder_forward.1} parent=0 // loop_body
    %v2351 = vld [vmem:[#allocation2] sm:$0xff]
    %v2352 = vld [vmem:[#allocation2 + $0x8] sm:$0xff]
    %v2353 = vld [vmem:[#allocation2 + $0x10] sm:$0xff]
    %v2354 = vld [vmem:[#allocation2 + $0x18] sm:$0xff]
    %v2355 = vld [vmem:[#allocation2 + $0x20] sm:$0xff]
    %v2356 = vld [vmem:[#allocation2 + $0x28] sm:$0xff]
    %v2357 = vld [vmem:[#allocation2 + $0x30] sm:$0xff]
    %v2358 = vld [vmem:[#allocation2 + $0x38] sm:$0xff]
    %v2359 = vld [vmem:[%s4] sm:$0xff]
    %v2360 = vld [vmem:[%s4 + $0x8] sm:$0xff]
    %v2361 = vld [vmem:[%s4 + $0x10] sm:$0xff]
    %v2362 = vld [vmem:[%s4 + $0x18] sm:$0xff]
    %v2363 = vld [vmem:[%s4 + $0x20] sm:$0xff]
    %v2364 = vld [vmem:[%s4 + $0x28] sm:$0xff]
    %v2365 = vld [vmem:[%s4 + $0x30] sm:$0xff]
    %v2366 = vld [vmem:[%s4 + $0x38] sm:$0xff]
    %v2367 = vld [vmem:[%s4 + $0x40] sm:$0xff]
    %v2368 = vld [vmem:[%s4 + $0x48] sm:$0xff]
    %v2369 = vld [vmem:[%s4 + $0x50] sm:$0xff]
    %v2370 = vld [vmem:[%s4 + $0x58] sm:$0xff]
    %v2371 = vld [vmem:[%s4 + $0x60] sm:$0xff]
    %v2372 = vld [vmem:[%s4 + $0x68] sm:$0xff]
    %v2373 = vld [vmem:[%s4 + $0x70] sm:$0xff]
    %v2374 = vld [vmem:[%s4 + $0x78] sm:$0xff]
    %v2375 = vld [vmem:[%s4 + $0x80] sm:$0xff]
    %v2376 = vld [vmem:[%s4 + $0x88] sm:$0xff]
    %v2377 = vld [vmem:[%s4 + $0x90] sm:$0xff]
    %v2378 = vld [vmem:[%s4 + $0x98] sm:$0xff]
    %v2379 = vld [vmem:[%s4 + $0xa0] sm:$0xff]
    %v2380 = vld [vmem:[%s4 + $0xa8] sm:$0xff]
    %v2381 = vld [vmem:[%s4 + $0xb0] sm:$0xff]
    %v2382 = vld [vmem:[%s4 + $0xb8] sm:$0xff]
    %v2383 = vld [vmem:[%s4 + $0xc0] sm:$0xff]
    %v2384 = vld [vmem:[%s4 + $0xc8] sm:$0xff]
    %v2385 = vld [vmem:[%s4 + $0xd0] sm:$0xff]
    %v2386 = vld [vmem:[%s4 + $0xd8] sm:$0xff]
    %v2387 = vld [vmem:[%s4 + $0xe0] sm:$0xff]
    %v2388 = vld [vmem:[%s4 + $0xe8] sm:$0xff]
    %v2389 = vld [vmem:[%s4 + $0xf0] sm:$0xff]
    %v2390 = vld [vmem:[%s4 + $0xf8] sm:$0xff]
    %v2391 = vld [vmem:[%s4 + $0x100] sm:$0xff]
    %v2392 = vld [vmem:[%s4 + $0x108] sm:$0xff]
    %v2393 = vld [vmem:[%s4 + $0x110] sm:$0xff]
    %v2394 = vld [vmem:[%s4 + $0x118] sm:$0xff]
    %v2395 = vld [vmem:[%s4 + $0x120] sm:$0xff]
    %v2396 = vld [vmem:[%s4 + $0x128] sm:$0xff]
    %v2397 = vld [vmem:[%s4 + $0x130] sm:$0xff]
    %v2398 = vld [vmem:[%s4 + $0x138] sm:$0xff]
    %v2399 = vld [vmem:[%s4 + $0x140] sm:$0xff]
    %v2400 = vld [vmem:[%s4 + $0x148] sm:$0xff]
    %v2401 = vld [vmem:[%s4 + $0x150] sm:$0xff]
    %v2402 = vld [vmem:[%s4 + $0x158] sm:$0xff]
    %v2403 = vld [vmem:[%s4 + $0x160] sm:$0xff]
    %v2404 = vld [vmem:[%s4 + $0x168] sm:$0xff]
    %v2405 = vld [vmem:[%s4 + $0x170] sm:$0xff]
    %v2406 = vld [vmem:[%s4 + $0x178] sm:$0xff]
    %v2407 = vld [vmem:[%s4 + $0x180] sm:$0xff]
    %v2408 = vld [vmem:[%s4 + $0x188] sm:$0xff]
    %v2409 = vld [vmem:[%s4 + $0x190] sm:$0xff]
    %v2410 = vld [vmem:[%s4 + $0x198] sm:$0xff]
    %v2411 = vld [vmem:[%s4 + $0x1a0] sm:$0xff]
    %v2412 = vld [vmem:[%s4 + $0x1a8] sm:$0xff]
    %v2413 = vld [vmem:[%s4 + $0x1b0] sm:$0xff]
    %v2414 = vld [vmem:[%s4 + $0x1b8] sm:$0xff]
    %v2415 = vld [vmem:[%s4 + $0x1c0] sm:$0xff]
    %v2416 = vld [vmem:[%s4 + $0x1c8] sm:$0xff]
    %v2417 = vld [vmem:[%s4 + $0x1d0] sm:$0xff]
    %v2418 = vld [vmem:[%s4 + $0x1d8] sm:$0xff]
    %v2419 = vld [vmem:[%s4 + $0x1e0] sm:$0xff]
    %v2420 = vld [vmem:[%s4 + $0x1e8] sm:$0xff]
    %v2421 = vld [vmem:[%s4 + $0x1f0] sm:$0xff]
    %v2422 = vld [vmem:[%s4 + $0x1f8] sm:$0xff]
    %v2423 = vld [vmem:[%s6] sm:$0xf]
    %v2425 = vlaneseq
    %v2426 = vshrl.u32 %v2425, 7
    %v2427 = vsub.s32 0, %v2426
    %v2428 = vrot.slane %v2423, %v2427
    %v2429 = vlaneseq
    %v2430 = vshrl.u32 %v2429, 7
    %v2431 = vsub.s32 1, %v2430
    %v2432 = vrot.slane %v2423, %v2431
    %v2433 = vlaneseq
    %v2434 = vshrl.u32 %v2433, 7
    %v2435 = vsub.s32 2, %v2434
    %v2436 = vrot.slane %v2423, %v2435
    %v2437 = vlaneseq
    %v2438 = vshrl.u32 %v2437, 7
    %v2439 = vsub.s32 3, %v2438
    %v2440 = vrot.slane %v2423, %v2439
    %2445 = vmatprep.subr.mxu0 %v2360
    %2446 = vmatpush1.msra.mxu0 %v2359
    %2447 = vmatprep.subr.mxu0 %v2364
    %2448 = vmatpush1.msra.mxu0 %v2363
    %2449 = vmatprep.subr.mxu0 %v2368
    %2450 = vmatpush1.msra.mxu0 %v2367
    %2451 = vmatprep.subr.mxu0 %v2372
    %2452 = vmatpush1.msra.mxu0 %v2371
    %2453 = vmatprep.subr.mxu0 %v2376
    %2454 = vmatpush1.msra.mxu0 %v2375
    %2455 = vmatprep.subr.mxu0 %v2380
    %2456 = vmatpush1.msra.mxu0 %v2379
    %2457 = vmatprep.subr.mxu0 %v2384
    %2458 = vmatpush1.msra.mxu0 %v2383
    %2459 = vmatprep.subr.mxu0 %v2388
    %2460 = vmatpush1.msra.mxu0 %v2387
    %2461 = vmatprep.subr.mxu0 %v2392
    %2462 = vmatpush1.msra.mxu0 %v2391
    %2463 = vmatprep.subr.mxu0 %v2396
    %2464 = vmatpush1.msra.mxu0 %v2395
    %2465 = vmatprep.subr.mxu0 %v2400
    %2466 = vmatpush1.msra.mxu0 %v2399
    %2467 = vmatprep.subr.mxu0 %v2404
    %2468 = vmatpush1.msra.mxu0 %v2403
    %2469 = vmatprep.subr.mxu0 %v2408
    %2470 = vmatpush1.msra.mxu0 %v2407
    %2471 = vmatprep.subr.mxu0 %v2412
    %2472 = vmatpush1.msra.mxu0 %v2411
    %2473 = vmatprep.subr.mxu0 %v2416
    %2474 = vmatpush1.msra.mxu0 %v2415
    %2475 = vmatprep.subr.mxu0 %v2420
    %2476 = vmatpush1.msra.mxu0 %v2419
    %2477 = vmatprep.subr.mxu0 0.0
    %2478 = vmatpush1.msra.mxu0 0.0
    %2479 = vmatprep.subr.mxu0 0.0
    %2480 = vmatpush1.msra.mxu0 0.0
    %2481 = vmatprep.subr.mxu0 0.0
    %2482 = vmatpush1.msra.mxu0 0.0
    %2483 = vmatprep.subr.mxu0 0.0
    %2484 = vmatpush1.msra.mxu0 0.0
    %2485 = vmatprep.subr.mxu0 0.0
    %2486 = vmatpush1.msra.mxu0 0.0
    %2487 = vmatprep.subr.mxu0 0.0
    %2488 = vmatpush1.msra.mxu0 0.0
    %2489 = vmatprep.subr.mxu0 0.0
    %2490 = vmatpush1.msra.mxu0 0.0
    %2491 = vmatprep.subr.mxu0 0.0
    %2492 = vmatpush1.msra.mxu0 0.0
    %2493 = vmatprep.subr.mxu0 0.0
    %2494 = vmatpush1.msra.mxu0 0.0
    %2495 = vmatprep.subr.mxu0 0.0
    %2496 = vmatpush1.msra.mxu0 0.0
    %2497 = vmatprep.subr.mxu0 0.0
    %2498 = vmatpush1.msra.mxu0 0.0
    %2499 = vmatprep.subr.mxu0 0.0
    %2500 = vmatpush1.msra.mxu0 0.0
    %2501 = vmatprep.subr.mxu0 0.0
    %2502 = vmatpush1.msra.mxu0 0.0
    %2503 = vmatprep.subr.mxu0 0.0
    %2504 = vmatpush1.msra.mxu0 0.0
    %2505 = vmatprep.subr.mxu0 0.0
    %2506 = vmatpush1.msra.mxu0 0.0
    %2507 = vmatprep.subr.mxu0 0.0
    %2508 = vmatpush1.msra.mxu0 0.0
    %2509 = vmatprep.mubr.f32.mxu0 0.0
    %2510 = vmatmul.mubr.f32.gmra.mrb[0].mxu0 %v2351
    %v2511 = vpop.f32.mrb[0].mxu0
    %v2512 = vadd.f32 %v2428, %v2511
    %v2513 = vpop.f32.mrb[0].mxu0
    %v2514 = vadd.f32 %v2432, %v2513
    %2515 = vmatprep.mubr.f32.mxu0 0.0
    %2516 = vmatmul.mubr.f32.gmra.mrb[0].mxu0 %v2352
    %v2517 = vpop.f32.mrb[0].mxu0
    %v2518 = vadd.f32 %v2428, %v2517
    %v2519 = vpop.f32.mrb[0].mxu0
    %v2520 = vadd.f32 %v2432, %v2519
    %2521 = vmatprep.mubr.f32.mxu0 0.0
    %2522 = vmatmul.mubr.f32.gmra.mrb[0].mxu0 %v2353
    %v2523 = vpop.f32.mrb[0].mxu0
    %v2524 = vadd.f32 %v2428, %v2523
    %v2525 = vpop.f32.mrb[0].mxu0
    %v2526 = vadd.f32 %v2432, %v2525
    %2527 = vmatprep.mubr.f32.mxu0 0.0
    %2528 = vmatmul.mubr.f32.gmra.mrb[0].mxu0 %v2354
    %v2529 = vpop.f32.mrb[0].mxu0
    %v2530 = vadd.f32 %v2428, %v2529
    %v2531 = vpop.f32.mrb[0].mxu0
    %v2532 = vadd.f32 %v2432, %v2531
    %2533 = vmatprep.mubr.f32.mxu0 0.0
    %2534 = vmatmul.mubr.f32.gmra.mrb[0].mxu0 %v2355
    %v2535 = vpop.f32.mrb[0].mxu0
    %v2536 = vadd.f32 %v2428, %v2535
    %v2537 = vpop.f32.mrb[0].mxu0
    %v2538 = vadd.f32 %v2432, %v2537
    %2539 = vmatprep.mubr.f32.mxu0 0.0
    %2540 = vmatmul.mubr.f32.gmra.mrb[0].mxu0 %v2356
    %v2541 = vpop.f32.mrb[0].mxu0
    %v2542 = vadd.f32 %v2428, %v2541
    %v2543 = vpop.f32.mrb[0].mxu0
    %v2544 = vadd.f32 %v2432, %v2543
    %2545 = vmatprep.mubr.f32.mxu0 0.0
    %2546 = vmatmul.mubr.f32.gmra.mrb[0].mxu0 %v2357
    %v2547 = vpop.f32.mrb[0].mxu0
    %v2548 = vadd.f32 %v2428, %v2547
    %v2549 = vpop.f32.mrb[0].mxu0
    %v2550 = vadd.f32 %v2432, %v2549
    %2551 = vmatprep.mubr.f32.mxu0 0.0
    %2552 = vmatmul.mubr.f32.gmra.mrb[0].mxu0 %v2358
    %v2553 = vpop.f32.mrb[0].mxu0
    %v2554 = vadd.f32 %v2428, %v2553
    %v2555 = vpop.f32.mrb[0].mxu0
    %v2556 = vadd.f32 %v2432, %v2555
    %2557 = vdwg.mxu0
    %2558 = vmatprep.subr.mxu0 %v2362
    %2559 = vmatpush1.msra.mxu0 %v2361
    %2560 = vmatprep.subr.mxu0 %v2366
    %2561 = vmatpush1.msra.mxu0 %v2365
    %2562 = vmatprep.subr.mxu0 %v2370
    %2563 = vmatpush1.msra.mxu0 %v2369
    %2564 = vmatprep.subr.mxu0 %v2374
    %2565 = vmatpush1.msra.mxu0 %v2373
    %2566 = vmatprep.subr.mxu0 %v2378
    %2567 = vmatpush1.msra.mxu0 %v2377
    %2568 = vmatprep.subr.mxu0 %v2382
    %2569 = vmatpush1.msra.mxu0 %v2381
    %2570 = vmatprep.subr.mxu0 %v2386
    %2571 = vmatpush1.msra.mxu0 %v2385
    %2572 = vmatprep.subr.mxu0 %v2390
    %2573 = vmatpush1.msra.mxu0 %v2389
    %2574 = vmatprep.subr.mxu0 %v2394
    %2575 = vmatpush1.msra.mxu0 %v2393
    %2576 = vmatprep.subr.mxu0 %v2398
    %2577 = vmatpush1.msra.mxu0 %v2397
    %2578 = vmatprep.subr.mxu0 %v2402
    %2579 = vmatpush1.msra.mxu0 %v2401
    %2580 = vmatprep.subr.mxu0 %v2406
    %2581 = vmatpush1.msra.mxu0 %v2405
    %2582 = vmatprep.subr.mxu0 %v2410
    %2583 = vmatpush1.msra.mxu0 %v2409
    %2584 = vmatprep.subr.mxu0 %v2414
    %2585 = vmatpush1.msra.mxu0 %v2413
    %2586 = vmatprep.subr.mxu0 %v2418
    %2587 = vmatpush1.msra.mxu0 %v2417
    %2588 = vmatprep.subr.mxu0 %v2422
    %2589 = vmatpush1.msra.mxu0 %v2421
    %2590 = vmatprep.subr.mxu0 0.0
    %2591 = vmatpush1.msra.mxu0 0.0
    %2592 = vmatprep.subr.mxu0 0.0
    %2593 = vmatpush1.msra.mxu0 0.0
    %2594 = vmatprep.subr.mxu0 0.0
    %2595 = vmatpush1.msra.mxu0 0.0
    %2596 = vmatprep.subr.mxu0 0.0
    %2597 = vmatpush1.msra.mxu0 0.0
    %2598 = vmatprep.subr.mxu0 0.0
    %2599 = vmatpush1.msra.mxu0 0.0
    %2600 = vmatprep.subr.mxu0 0.0
    %2601 = vmatpush1.msra.mxu0 0.0
    %2602 = vmatprep.subr.mxu0 0.0
    %2603 = vmatpush1.msra.mxu0 0.0
    %2604 = vmatprep.subr.mxu0 0.0
    %2605 = vmatpush1.msra.mxu0 0.0
    %2606 = vmatprep.subr.mxu0 0.0
    %2607 = vmatpush1.msra.mxu0 0.0
    %2608 = vmatprep.subr.mxu0 0.0
    %2609 = vmatpush1.msra.mxu0 0.0
    %2610 = vmatprep.subr.mxu0 0.0
    %2611 = vmatpush1.msra.mxu0 0.0
    %2612 = vmatprep.subr.mxu0 0.0
    %2613 = vmatpush1.msra.mxu0 0.0
    %2614 = vmatprep.subr.mxu0 0.0
    %2615 = vmatpush1.msra.mxu0 0.0
    %2616 = vmatprep.subr.mxu0 0.0
    %2617 = vmatpush1.msra.mxu0 0.0
    %2618 = vmatprep.subr.mxu0 0.0
    %2619 = vmatpush1.msra.mxu0 0.0
    %2620 = vmatprep.subr.mxu0 0.0
    %2621 = vmatpush1.msra.mxu0 0.0
    %2622 = vmatprep.mubr.f32.mxu0 0.0
    %2623 = vmatmul.mubr.f32.gmra.mrb[0].mxu0 %v2351
    %v2624 = vpop.f32.mrb[0].mxu0
    %v2625 = vadd.f32 %v2436, %v2624
    %v2626 = vpop.f32.mrb[0].mxu0
    %v2627 = vadd.f32 %v2440, %v2626
    %2628 = vmatprep.mubr.f32.mxu0 0.0
    %2629 = vmatmul.mubr.f32.gmra.mrb[0].mxu0 %v2352
    %v2630 = vpop.f32.mrb[0].mxu0
    %v2631 = vadd.f32 %v2436, %v2630
    %v2632 = vpop.f32.mrb[0].mxu0
    %v2633 = vadd.f32 %v2440, %v2632
    %2634 = vmatprep.mubr.f32.mxu0 0.0
    %2635 = vmatmul.mubr.f32.gmra.mrb[0].mxu0 %v2353
    %v2636 = vpop.f32.mrb[0].mxu0
    %v2637 = vadd.f32 %v2436, %v2636
    %v2638 = vpop.f32.mrb[0].mxu0
    %v2639 = vadd.f32 %v2440, %v2638
    %2640 = vmatprep.mubr.f32.mxu0 0.0
    %2641 = vmatmul.mubr.f32.gmra.mrb[0].mxu0 %v2354
    %v2642 = vpop.f32.mrb[0].mxu0
    %v2643 = vadd.f32 %v2436, %v2642
    %v2644 = vpop.f32.mrb[0].mxu0
    %v2645 = vadd.f32 %v2440, %v2644
    %2646 = vmatprep.mubr.f32.mxu0 0.0
    %2647 = vmatmul.mubr.f32.gmra.mrb[0].mxu0 %v2355
    %v2648 = vpop.f32.mrb[0].mxu0
    %v2649 = vadd.f32 %v2436, %v2648
    %v2650 = vpop.f32.mrb[0].mxu0
    %v2651 = vadd.f32 %v2440, %v2650
    %2652 = vmatprep.mubr.f32.mxu0 0.0
    %2653 = vmatmul.mubr.f32.gmra.mrb[0].mxu0 %v2356
    %v2654 = vpop.f32.mrb[0].mxu0
    %v2655 = vadd.f32 %v2436, %v2654
    %v2656 = vpop.f32.mrb[0].mxu0
    %v2657 = vadd.f32 %v2440, %v2656
    %2658 = vmatprep.mubr.f32.mxu0 0.0
    %2659 = vmatmul.mubr.f32.gmra.mrb[0].mxu0 %v2357
    %v2660 = vpop.f32.mrb[0].mxu0
    %v2661 = vadd.f32 %v2436, %v2660
    %v2662 = vpop.f32.mrb[0].mxu0
    %v2663 = vadd.f32 %v2440, %v2662
    %2664 = vmatprep.mubr.f32.mxu0 0.0
    %2665 = vmatmul.mubr.f32.gmra.mrb[0].mxu0 %v2358
    %v2666 = vpop.f32.mrb[0].mxu0
    %v2667 = vadd.f32 %v2436, %v2666
    %v2668 = vpop.f32.mrb[0].mxu0
    %v2669 = vadd.f32 %v2440, %v2668
    %2670 = vdwg.mxu0
    %2671 = vst [vmem:[#allocation3] sm:$0xff] %v2512
    %2672 = vst [vmem:[#allocation3 + $0x8] sm:$0xff] %v2514
    %2673 = vst [vmem:[#allocation3 + $0x10] sm:$0xff] %v2625
    %2674 = vst [vmem:[#allocation3 + $0x18] sm:$0xff] %v2627
    %2675 = vst [vmem:[#allocation3 + $0x20] sm:$0xff] %v2518
    %2676 = vst [vmem:[#allocation3 + $0x28] sm:$0xff] %v2520
    %2677 = vst [vmem:[#allocation3 + $0x30] sm:$0xff] %v2631
    %2678 = vst [vmem:[#allocation3 + $0x38] sm:$0xff] %v2633
    %2679 = vst [vmem:[#allocation3 + $0x40] sm:$0xff] %v2524
    %2680 = vst [vmem:[#allocation3 + $0x48] sm:$0xff] %v2526
    %2681 = vst [vmem:[#allocation3 + $0x50] sm:$0xff] %v2637
    %2682 = vst [vmem:[#allocation3 + $0x58] sm:$0xff] %v2639
    %2683 = vst [vmem:[#allocation3 + $0x60] sm:$0xff] %v2530
    %2684 = vst [vmem:[#allocation3 + $0x68] sm:$0xff] %v2532
    %2685 = vst [vmem:[#allocation3 + $0x70] sm:$0xff] %v2643
    %2686 = vst [vmem:[#allocation3 + $0x78] sm:$0xff] %v2645
    %2687 = vst [vmem:[#allocation3 + $0x80] sm:$0xff] %v2536
    %2688 = vst [vmem:[#allocation3 + $0x88] sm:$0xff] %v2538
    %2689 = vst [vmem:[#allocation3 + $0x90] sm:$0xff] %v2649
    %2690 = vst [vmem:[#allocation3 + $0x98] sm:$0xff] %v2651
    %2691 = vst [vmem:[#allocation3 + $0xa0] sm:$0xff] %v2542
    %2692 = vst [vmem:[#allocation3 + $0xa8] sm:$0xff] %v2544
    %2693 = vst [vmem:[#allocation3 + $0xb0] sm:$0xff] %v2655
    %2694 = vst [vmem:[#allocation3 + $0xb8] sm:$0xff] %v2657
    %2695 = vst [vmem:[#allocation3 + $0xc0] sm:$0xff] %v2548
    %2696 = vst [vmem:[#allocation3 + $0xc8] sm:$0xff] %v2550
    %2697 = vst [vmem:[#allocation3 + $0xd0] sm:$0xff] %v2661
    %2698 = vst [vmem:[#allocation3 + $0xd8] sm:$0xff] %v2663
    %2699 = vst [vmem:[#allocation3 + $0xe0] sm:$0xff] %v2554
    %2700 = vst [vmem:[#allocation3 + $0xe8] sm:$0xff] %v2556
    %2701 = vst [vmem:[#allocation3 + $0xf0] sm:$0xff] %v2667
    %2702 = vst [vmem:[#allocation3 + $0xf8] sm:$0xff] %v2669
    %v2703 = vld [vmem:[%s402] sm:$0xff]
    %v2704 = vld [vmem:[%s402 + $0x8] sm:$0xff]
    %v2705 = vld [vmem:[%s402 + $0x10] sm:$0xff]
    %v2706 = vld [vmem:[%s402 + $0x18] sm:$0xff]
    %v2707 = vld [vmem:[%s5] sm:$0xff]
    %v2708 = vld [vmem:[%s5 + $0x8] sm:$0xff]
    %v2709 = vld [vmem:[%s5 + $0x10] sm:$0xff]
    %v2710 = vld [vmem:[%s5 + $0x18] sm:$0xff]
    %v2711 = vld [vmem:[%s5 + $0x20] sm:$0xff]
    %v2712 = vld [vmem:[%s5 + $0x28] sm:$0xff]
    %v2713 = vld [vmem:[%s5 + $0x30] sm:$0xff]
    %v2714 = vld [vmem:[%s5 + $0x38] sm:$0xff]
    %v2715 = vld [vmem:[%s5 + $0x40] sm:$0xff]
    %v2716 = vld [vmem:[%s5 + $0x48] sm:$0xff]
    %v2717 = vld [vmem:[%s5 + $0x50] sm:$0xff]
    %v2718 = vld [vmem:[%s5 + $0x58] sm:$0xff]
    %v2719 = vld [vmem:[%s5 + $0x60] sm:$0xff]
    %v2720 = vld [vmem:[%s5 + $0x68] sm:$0xff]
    %v2721 = vld [vmem:[%s5 + $0x70] sm:$0xff]
    %v2722 = vld [vmem:[%s5 + $0x78] sm:$0xff]
    %v2723 = vld [vmem:[%s5 + $0x80] sm:$0xff]
    %v2724 = vld [vmem:[%s5 + $0x88] sm:$0xff]
    %v2725 = vld [vmem:[%s5 + $0x90] sm:$0xff]
    %v2726 = vld [vmem:[%s5 + $0x98] sm:$0xff]
    %v2727 = vld [vmem:[%s5 + $0xa0] sm:$0xff]
    %v2728 = vld [vmem:[%s5 + $0xa8] sm:$0xff]
    %v2729 = vld [vmem:[%s5 + $0xb0] sm:$0xff]
    %v2730 = vld [vmem:[%s5 + $0xb8] sm:$0xff]
    %v2731 = vld [vmem:[%s5 + $0xc0] sm:$0xff]
    %v2732 = vld [vmem:[%s5 + $0xc8] sm:$0xff]
    %v2733 = vld [vmem:[%s5 + $0xd0] sm:$0xff]
    %v2734 = vld [vmem:[%s5 + $0xd8] sm:$0xff]
    %v2735 = vld [vmem:[%s5 + $0xe0] sm:$0xff]
    %v2736 = vld [vmem:[%s5 + $0xe8] sm:$0xff]
    %v2737 = vld [vmem:[%s5 + $0xf0] sm:$0xff]
    %v2738 = vld [vmem:[%s5 + $0xf8] sm:$0xff]
    %v2739 = vld [vmem:[%s5 + $0x100] sm:$0xff]
    %v2740 = vld [vmem:[%s5 + $0x108] sm:$0xff]
    %v2741 = vld [vmem:[%s5 + $0x110] sm:$0xff]
    %v2742 = vld [vmem:[%s5 + $0x118] sm:$0xff]
    %v2743 = vld [vmem:[%s5 + $0x120] sm:$0xff]
    %v2744 = vld [vmem:[%s5 + $0x128] sm:$0xff]
    %v2745 = vld [vmem:[%s5 + $0x130] sm:$0xff]
    %v2746 = vld [vmem:[%s5 + $0x138] sm:$0xff]
    %v2747 = vld [vmem:[%s5 + $0x140] sm:$0xff]
    %v2748 = vld [vmem:[%s5 + $0x148] sm:$0xff]
    %v2749 = vld [vmem:[%s5 + $0x150] sm:$0xff]
    %v2750 = vld [vmem:[%s5 + $0x158] sm:$0xff]
    %v2751 = vld [vmem:[%s5 + $0x160] sm:$0xff]
    %v2752 = vld [vmem:[%s5 + $0x168] sm:$0xff]
    %v2753 = vld [vmem:[%s5 + $0x170] sm:$0xff]
    %v2754 = vld [vmem:[%s5 + $0x178] sm:$0xff]
    %v2755 = vld [vmem:[%s5 + $0x180] sm:$0xff]
    %v2756 = vld [vmem:[%s5 + $0x188] sm:$0xff]
    %v2757 = vld [vmem:[%s5 + $0x190] sm:$0xff]
    %v2758 = vld [vmem:[%s5 + $0x198] sm:$0xff]
    %v2759 = vld [vmem:[%s5 + $0x1a0] sm:$0xff]
    %v2760 = vld [vmem:[%s5 + $0x1a8] sm:$0xff]
    %v2761 = vld [vmem:[%s5 + $0x1b0] sm:$0xff]
    %v2762 = vld [vmem:[%s5 + $0x1b8] sm:$0xff]
    %v2763 = vld [vmem:[%s5 + $0x1c0] sm:$0xff]
    %v2764 = vld [vmem:[%s5 + $0x1c8] sm:$0xff]
    %v2765 = vld [vmem:[%s5 + $0x1d0] sm:$0xff]
    %v2766 = vld [vmem:[%s5 + $0x1d8] sm:$0xff]
    %v2767 = vld [vmem:[%s5 + $0x1e0] sm:$0xff]
    %v2768 = vld [vmem:[%s5 + $0x1e8] sm:$0xff]
    %v2769 = vld [vmem:[%s5 + $0x1f0] sm:$0xff]
    %v2770 = vld [vmem:[%s5 + $0x1f8] sm:$0xff]
    %2771 = vmatprep.subr.mxu0 %v2708
    %2772 = vmatpush1.msra.mxu0 %v2707
    %2773 = vmatprep.subr.mxu0 %v2712
    %2774 = vmatpush1.msra.mxu0 %v2711
    %2775 = vmatprep.subr.mxu0 %v2716
    %2776 = vmatpush1.msra.mxu0 %v2715
    %2777 = vmatprep.subr.mxu0 %v2720
    %2778 = vmatpush1.msra.mxu0 %v2719
    %2779 = vmatprep.subr.mxu0 %v2724
    %2780 = vmatpush1.msra.mxu0 %v2723
    %2781 = vmatprep.subr.mxu0 %v2728
    %2782 = vmatpush1.msra.mxu0 %v2727
    %2783 = vmatprep.subr.mxu0 %v2732
    %2784 = vmatpush1.msra.mxu0 %v2731
    %2785 = vmatprep.subr.mxu0 %v2736
    %2786 = vmatpush1.msra.mxu0 %v2735
    %2787 = vmatprep.subr.mxu0 %v2740
    %2788 = vmatpush1.msra.mxu0 %v2739
    %2789 = vmatprep.subr.mxu0 %v2744
    %2790 = vmatpush1.msra.mxu0 %v2743
    %2791 = vmatprep.subr.mxu0 %v2748
    %2792 = vmatpush1.msra.mxu0 %v2747
    %2793 = vmatprep.subr.mxu0 %v2752
    %2794 = vmatpush1.msra.mxu0 %v2751
    %2795 = vmatprep.subr.mxu0 %v2756
    %2796 = vmatpush1.msra.mxu0 %v2755
    %2797 = vmatprep.subr.mxu0 %v2760
    %2798 = vmatpush1.msra.mxu0 %v2759
    %2799 = vmatprep.subr.mxu0 %v2764
    %2800 = vmatpush1.msra.mxu0 %v2763
    %2801 = vmatprep.subr.mxu0 %v2768
    %2802 = vmatpush1.msra.mxu0 %v2767
    %2803 = vmatprep.subr.mxu0 0.0
    %2804 = vmatpush1.msra.mxu0 0.0
    %2805 = vmatprep.subr.mxu0 0.0
    %2806 = vmatpush1.msra.mxu0 0.0
    %2807 = vmatprep.subr.mxu0 0.0
    %2808 = vmatpush1.msra.mxu0 0.0
    %2809 = vmatprep.subr.mxu0 0.0
    %2810 = vmatpush1.msra.mxu0 0.0
    %2811 = vmatprep.subr.mxu0 0.0
    %2812 = vmatpush1.msra.mxu0 0.0
    %2813 = vmatprep.subr.mxu0 0.0
    %2814 = vmatpush1.msra.mxu0 0.0
    %2815 = vmatprep.subr.mxu0 0.0
    %2816 = vmatpush1.msra.mxu0 0.0
    %2817 = vmatprep.subr.mxu0 0.0
    %2818 = vmatpush1.msra.mxu0 0.0
    %2819 = vmatprep.subr.mxu0 0.0
    %2820 = vmatpush1.msra.mxu0 0.0
    %2821 = vmatprep.subr.mxu0 0.0
    %2822 = vmatpush1.msra.mxu0 0.0
    %2823 = vmatprep.subr.mxu0 0.0
    %2824 = vmatpush1.msra.mxu0 0.0
    %2825 = vmatprep.subr.mxu0 0.0
    %2826 = vmatpush1.msra.mxu0 0.0
    %2827 = vmatprep.subr.mxu0 0.0
    %2828 = vmatpush1.msra.mxu0 0.0
    %2829 = vmatprep.subr.mxu0 0.0
    %2830 = vmatpush1.msra.mxu0 0.0
    %2831 = vmatprep.subr.mxu0 0.0
    %2832 = vmatpush1.msra.mxu0 0.0
    %2833 = vmatprep.subr.mxu0 0.0
    %2834 = vmatpush1.msra.mxu0 0.0
    %2835 = vmatprep.mubr.f32.mxu0 0.0
    %2836 = vmatmul.mubr.f32.gmra.mrb[0].mxu0 %v2349
    %v2837 = vpop.f32.mrb[0].mxu0
    %v2838 = vadd.f32 0.0, %v2837
    %v2839 = vpop.f32.mrb[0].mxu0
    %v2840 = vadd.f32 0.0, %v2839
    %2841 = vdwg.mxu0
    %2842 = vmatprep.subr.mxu0 %v2710
    %2843 = vmatpush1.msra.mxu0 %v2709
    %2844 = vmatprep.subr.mxu0 %v2714
    %2845 = vmatpush1.msra.mxu0 %v2713
    %2846 = vmatprep.subr.mxu0 %v2718
    %2847 = vmatpush1.msra.mxu0 %v2717
    %2848 = vmatprep.subr.mxu0 %v2722
    %2849 = vmatpush1.msra.mxu0 %v2721
    %2850 = vmatprep.subr.mxu0 %v2726
    %2851 = vmatpush1.msra.mxu0 %v2725
    %2852 = vmatprep.subr.mxu0 %v2730
    %2853 = vmatpush1.msra.mxu0 %v2729
    %2854 = vmatprep.subr.mxu0 %v2734
    %2855 = vmatpush1.msra.mxu0 %v2733
    %2856 = vmatprep.subr.mxu0 %v2738
    %2857 = vmatpush1.msra.mxu0 %v2737
    %2858 = vmatprep.subr.mxu0 %v2742
    %2859 = vmatpush1.msra.mxu0 %v2741
    %2860 = vmatprep.subr.mxu0 %v2746
    %2861 = vmatpush1.msra.mxu0 %v2745
    %2862 = vmatprep.subr.mxu0 %v2750
    %2863 = vmatpush1.msra.mxu0 %v2749
    %2864 = vmatprep.subr.mxu0 %v2754
    %2865 = vmatpush1.msra.mxu0 %v2753
    %2866 = vmatprep.subr.mxu0 %v2758
    %2867 = vmatpush1.msra.mxu0 %v2757
    %2868 = vmatprep.subr.mxu0 %v2762
    %2869 = vmatpush1.msra.mxu0 %v2761
    %2870 = vmatprep.subr.mxu0 %v2766
    %2871 = vmatpush1.msra.mxu0 %v2765
    %2872 = vmatprep.subr.mxu0 %v2770
    %2873 = vmatpush1.msra.mxu0 %v2769
    %2874 = vmatprep.subr.mxu0 0.0
    %2875 = vmatpush1.msra.mxu0 0.0
    %2876 = vmatprep.subr.mxu0 0.0
    %2877 = vmatpush1.msra.mxu0 0.0
    %2878 = vmatprep.subr.mxu0 0.0
    %2879 = vmatpush1.msra.mxu0 0.0
    %2880 = vmatprep.subr.mxu0 0.0
    %2881 = vmatpush1.msra.mxu0 0.0
    %2882 = vmatprep.subr.mxu0 0.0
    %2883 = vmatpush1.msra.mxu0 0.0
    %2884 = vmatprep.subr.mxu0 0.0
    %2885 = vmatpush1.msra.mxu0 0.0
    %2886 = vmatprep.subr.mxu0 0.0
    %2887 = vmatpush1.msra.mxu0 0.0
    %2888 = vmatprep.subr.mxu0 0.0
    %2889 = vmatpush1.msra.mxu0 0.0
    %2890 = vmatprep.subr.mxu0 0.0
    %2891 = vmatpush1.msra.mxu0 0.0
    %2892 = vmatprep.subr.mxu0 0.0
    %2893 = vmatpush1.msra.mxu0 0.0
    %2894 = vmatprep.subr.mxu0 0.0
    %2895 = vmatpush1.msra.mxu0 0.0
    %2896 = vmatprep.subr.mxu0 0.0
    %2897 = vmatpush1.msra.mxu0 0.0
    %2898 = vmatprep.subr.mxu0 0.0
    %2899 = vmatpush1.msra.mxu0 0.0
    %2900 = vmatprep.subr.mxu0 0.0
    %2901 = vmatpush1.msra.mxu0 0.0
    %2902 = vmatprep.subr.mxu0 0.0
    %2903 = vmatpush1.msra.mxu0 0.0
    %2904 = vmatprep.subr.mxu0 0.0
    %2905 = vmatpush1.msra.mxu0 0.0
    %2906 = vmatprep.mubr.f32.mxu0 0.0
    %2907 = vmatmul.mubr.f32.gmra.mrb[0].mxu0 %v2349
    %v2908 = vpop.f32.mrb[0].mxu0
    %v2909 = vadd.f32 0.0, %v2908
    %v2910 = vpop.f32.mrb[0].mxu0
    %v2911 = vadd.f32 0.0, %v2910
    %2912 = vdwg.mxu0
    %v2913 = vadd.f32 %v2703, %v2838
    %v2914 = vadd.f32 %v2704, %v2840
    %v2915 = vadd.f32 %v2705, %v2909
    %v2916 = vadd.f32 %v2706, %v2911
    %v2917 = vxor.u32 %v2913, 2147483648
    %v2918 = vmul.f32 %v2917, 1.442695
    %v2919 = vpow.pop %v2918
    %v2920 = vadd.f32 %v2919, 1.0
    %v2921 = vrcp.pop %v2920
    %v2922 = vmul.f32 1.0, %v2921
    %v2923 = vxor.u32 %v2914, 2147483648
    %v2924 = vmul.f32 %v2923, 1.442695
    %v2925 = vpow.pop %v2924
    %v2926 = vadd.f32 %v2925, 1.0
    %v2927 = vrcp.pop %v2926
    %v2928 = vmul.f32 1.0, %v2927
    %v2929 = vtanh.pop %v2915
    %v2930 = vxor.u32 %v2916, 2147483648
    %v2931 = vmul.f32 %v2930, 1.442695
    %v2932 = vpow.pop %v2931
    %v2933 = vadd.f32 %v2932, 1.0
    %v2934 = vrcp.pop %v2933
    %v2935 = vmul.f32 1.0, %v2934
    %v2936 = vmul.f32 %v2928, %v2350
    %v2937 = vmul.f32 %v2922, %v2929
    %v2938 = vadd.f32 %v2936, %v2937
    %v2939 = vtanh.pop %v2938
    %v2940 = vmul.f32 %v2935, %v2939
    %2941 = vst [vmem:[#allocation2] sm:$0xff] %v2940
    %v2942 = vld [vmem:[%s644] sm:$0xff]
    %v2943 = vld [vmem:[%s644 + $0x8] sm:$0xff]
    %v2944 = vld [vmem:[%s644 + $0x10] sm:$0xff]
    %v2945 = vld [vmem:[%s644 + $0x18] sm:$0xff]
    %v2946 = vld [vmem:[%s5] sm:$0xff]
    %v2947 = vld [vmem:[%s5 + $0x8] sm:$0xff]
    %v2948 = vld [vmem:[%s5 + $0x10] sm:$0xff]
    %v2949 = vld [vmem:[%s5 + $0x18] sm:$0xff]
    %v2950 = vld [vmem:[%s5 + $0x20] sm:$0xff]
    %v2951 = vld [vmem:[%s5 + $0x28] sm:$0xff]
    %v2952 = vld [vmem:[%s5 + $0x30] sm:$0xff]
    %v2953 = vld [vmem:[%s5 + $0x38] sm:$0xff]
    %v2954 = vld [vmem:[%s5 + $0x40] sm:$0xff]
    %v2955 = vld [vmem:[%s5 + $0x48] sm:$0xff]
    %v2956 = vld [vmem:[%s5 + $0x50] sm:$0xff]
    %v2957 = vld [vmem:[%s5 + $0x58] sm:$0xff]
    %v2958 = vld [vmem:[%s5 + $0x60] sm:$0xff]
    %v2959 = vld [vmem:[%s5 + $0x68] sm:$0xff]
    %v2960 = vld [vmem:[%s5 + $0x70] sm:$0xff]
    %v2961 = vld [vmem:[%s5 + $0x78] sm:$0xff]
    %v2962 = vld [vmem:[%s5 + $0x80] sm:$0xff]
    %v2963 = vld [vmem:[%s5 + $0x88] sm:$0xff]
    %v2964 = vld [vmem:[%s5 + $0x90] sm:$0xff]
    %v2965 = vld [vmem:[%s5 + $0x98] sm:$0xff]
    %v2966 = vld [vmem:[%s5 + $0xa0] sm:$0xff]
    %v2967 = vld [vmem:[%s5 + $0xa8] sm:$0xff]
    %v2968 = vld [vmem:[%s5 + $0xb0] sm:$0xff]
    %v2969 = vld [vmem:[%s5 + $0xb8] sm:$0xff]
    %v2970 = vld [vmem:[%s5 + $0xc0] sm:$0xff]
    %v2971 = vld [vmem:[%s5 + $0xc8] sm:$0xff]
    %v2972 = vld [vmem:[%s5 + $0xd0] sm:$0xff]
    %v2973 = vld [vmem:[%s5 + $0xd8] sm:$0xff]
    %v2974 = vld [vmem:[%s5 + $0xe0] sm:$0xff]
    %v2975 = vld [vmem:[%s5 + $0xe8] sm:$0xff]
    %v2976 = vld [vmem:[%s5 + $0xf0] sm:$0xff]
    %v2977 = vld [vmem:[%s5 + $0xf8] sm:$0xff]
    %v2978 = vld [vmem:[%s5 + $0x100] sm:$0xff]
    %v2979 = vld [vmem:[%s5 + $0x108] sm:$0xff]
    %v2980 = vld [vmem:[%s5 + $0x110] sm:$0xff]
    %v2981 = vld [vmem:[%s5 + $0x118] sm:$0xff]
    %v2982 = vld [vmem:[%s5 + $0x120] sm:$0xff]
    %v2983 = vld [vmem:[%s5 + $0x128] sm:$0xff]
    %v2984 = vld [vmem:[%s5 + $0x130] sm:$0xff]
    %v2985 = vld [vmem:[%s5 + $0x138] sm:$0xff]
    %v2986 = vld [vmem:[%s5 + $0x140] sm:$0xff]
    %v2987 = vld [vmem:[%s5 + $0x148] sm:$0xff]
    %v2988 = vld [vmem:[%s5 + $0x150] sm:$0xff]
    %v2989 = vld [vmem:[%s5 + $0x158] sm:$0xff]
    %v2990 = vld [vmem:[%s5 + $0x160] sm:$0xff]
    %v2991 = vld [vmem:[%s5 + $0x168] sm:$0xff]
    %v2992 = vld [vmem:[%s5 + $0x170] sm:$0xff]
    %v2993 = vld [vmem:[%s5 + $0x178] sm:$0xff]
    %v2994 = vld [vmem:[%s5 + $0x180] sm:$0xff]
    %v2995 = vld [vmem:[%s5 + $0x188] sm:$0xff]
    %v2996 = vld [vmem:[%s5 + $0x190] sm:$0xff]
    %v2997 = vld [vmem:[%s5 + $0x198] sm:$0xff]
    %v2998 = vld [vmem:[%s5 + $0x1a0] sm:$0xff]
    %v2999 = vld [vmem:[%s5 + $0x1a8] sm:$0xff]
    %v3000 = vld [vmem:[%s5 + $0x1b0] sm:$0xff]
    %v3001 = vld [vmem:[%s5 + $0x1b8] sm:$0xff]
    %v3002 = vld [vmem:[%s5 + $0x1c0] sm:$0xff]
    %v3003 = vld [vmem:[%s5 + $0x1c8] sm:$0xff]
    %v3004 = vld [vmem:[%s5 + $0x1d0] sm:$0xff]
    %v3005 = vld [vmem:[%s5 + $0x1d8] sm:$0xff]
    %v3006 = vld [vmem:[%s5 + $0x1e0] sm:$0xff]
    %v3007 = vld [vmem:[%s5 + $0x1e8] sm:$0xff]
    %v3008 = vld [vmem:[%s5 + $0x1f0] sm:$0xff]
    %v3009 = vld [vmem:[%s5 + $0x1f8] sm:$0xff]
    %3010 = vmatprep.subr.mxu0 %v2947
    %3011 = vmatpush1.msra.mxu0 %v2946
    %3012 = vmatprep.subr.mxu0 %v2951
    %3013 = vmatpush1.msra.mxu0 %v2950
    %3014 = vmatprep.subr.mxu0 %v2955
    %3015 = vmatpush1.msra.mxu0 %v2954
    %3016 = vmatprep.subr.mxu0 %v2959
    %3017 = vmatpush1.msra.mxu0 %v2958
    %3018 = vmatprep.subr.mxu0 %v2963
    %3019 = vmatpush1.msra.mxu0 %v2962
    %3020 = vmatprep.subr.mxu0 %v2967
    %3021 = vmatpush1.msra.mxu0 %v2966
    %3022 = vmatprep.subr.mxu0 %v2971
    %3023 = vmatpush1.msra.mxu0 %v2970
    %3024 = vmatprep.subr.mxu0 %v2975
    %3025 = vmatpush1.msra.mxu0 %v2974
    %3026 = vmatprep.subr.mxu0 %v2979
    %3027 = vmatpush1.msra.mxu0 %v2978
    %3028 = vmatprep.subr.mxu0 %v2983
    %3029 = vmatpush1.msra.mxu0 %v2982
    %3030 = vmatprep.subr.mxu0 %v2987
    %3031 = vmatpush1.msra.mxu0 %v2986
    %3032 = vmatprep.subr.mxu0 %v2991
    %3033 = vmatpush1.msra.mxu0 %v2990
    %3034 = vmatprep.subr.mxu0 %v2995
    %3035 = vmatpush1.msra.mxu0 %v2994
    %3036 = vmatprep.subr.mxu0 %v2999
    %3037 = vmatpush1.msra.mxu0 %v2998
    %3038 = vmatprep.subr.mxu0 %v3003
    %3039 = vmatpush1.msra.mxu0 %v3002
    %3040 = vmatprep.subr.mxu0 %v3007
    %3041 = vmatpush1.msra.mxu0 %v3006
    %3042 = vmatprep.subr.mxu0 0.0
    %3043 = vmatpush1.msra.mxu0 0.0
    %3044 = vmatprep.subr.mxu0 0.0
    %3045 = vmatpush1.msra.mxu0 0.0
    %3046 = vmatprep.subr.mxu0 0.0
    %3047 = vmatpush1.msra.mxu0 0.0
    %3048 = vmatprep.subr.mxu0 0.0
    %3049 = vmatpush1.msra.mxu0 0.0
    %3050 = vmatprep.subr.mxu0 0.0
    %3051 = vmatpush1.msra.mxu0 0.0
    %3052 = vmatprep.subr.mxu0 0.0
    %3053 = vmatpush1.msra.mxu0 0.0
    %3054 = vmatprep.subr.mxu0 0.0
    %3055 = vmatpush1.msra.mxu0 0.0
    %3056 = vmatprep.subr.mxu0 0.0
    %3057 = vmatpush1.msra.mxu0 0.0
    %3058 = vmatprep.subr.mxu0 0.0
    %3059 = vmatpush1.msra.mxu0 0.0
    %3060 = vmatprep.subr.mxu0 0.0
    %3061 = vmatpush1.msra.mxu0 0.0
    %3062 = vmatprep.subr.mxu0 0.0
    %3063 = vmatpush1.msra.mxu0 0.0
    %3064 = vmatprep.subr.mxu0 0.0
    %3065 = vmatpush1.msra.mxu0 0.0
    %3066 = vmatprep.subr.mxu0 0.0
    %3067 = vmatpush1.msra.mxu0 0.0
    %3068 = vmatprep.subr.mxu0 0.0
    %3069 = vmatpush1.msra.mxu0 0.0
    %3070 = vmatprep.subr.mxu0 0.0
    %3071 = vmatpush1.msra.mxu0 0.0
    %3072 = vmatprep.subr.mxu0 0.0
    %3073 = vmatpush1.msra.mxu0 0.0
    %3074 = vmatprep.mubr.f32.mxu0 0.0
    %3075 = vmatmul.mubr.f32.gmra.mrb[0].mxu0 %v2940
    %v3076 = vpop.f32.mrb[0].mxu0
    %v3077 = vadd.f32 0.0, %v3076
    %v3078 = vpop.f32.mrb[0].mxu0
    %v3079 = vadd.f32 0.0, %v3078
    %3080 = vdwg.mxu0
    %3081 = vmatprep.subr.mxu0 %v2949
    %3082 = vmatpush1.msra.mxu0 %v2948
    %3083 = vmatprep.subr.mxu0 %v2953
    %3084 = vmatpush1.msra.mxu0 %v2952
    %3085 = vmatprep.subr.mxu0 %v2957
    %3086 = vmatpush1.msra.mxu0 %v2956
    %3087 = vmatprep.subr.mxu0 %v2961
    %3088 = vmatpush1.msra.mxu0 %v2960
    %3089 = vmatprep.subr.mxu0 %v2965
    %3090 = vmatpush1.msra.mxu0 %v2964
    %3091 = vmatprep.subr.mxu0 %v2969
    %3092 = vmatpush1.msra.mxu0 %v2968
    %3093 = vmatprep.subr.mxu0 %v2973
    %3094 = vmatpush1.msra.mxu0 %v2972
    %3095 = vmatprep.subr.mxu0 %v2977
    %3096 = vmatpush1.msra.mxu0 %v2976
    %3097 = vmatprep.subr.mxu0 %v2981
    %3098 = vmatpush1.msra.mxu0 %v2980
    %3099 = vmatprep.subr.mxu0 %v2985
    %3100 = vmatpush1.msra.mxu0 %v2984
    %3101 = vmatprep.subr.mxu0 %v2989
    %3102 = vmatpush1.msra.mxu0 %v2988
    %3103 = vmatprep.subr.mxu0 %v2993
    %3104 = vmatpush1.msra.mxu0 %v2992
    %3105 = vmatprep.subr.mxu0 %v2997
    %3106 = vmatpush1.msra.mxu0 %v2996
    %3107 = vmatprep.subr.mxu0 %v3001
    %3108 = vmatpush1.msra.mxu0 %v3000
    %3109 = vmatprep.subr.mxu0 %v3005
    %3110 = vmatpush1.msra.mxu0 %v3004
    %3111 = vmatprep.subr.mxu0 %v3009
    %3112 = vmatpush1.msra.mxu0 %v3008
    %3113 = vmatprep.subr.mxu0 0.0
    %3114 = vmatpush1.msra.mxu0 0.0
    %3115 = vmatprep.subr.mxu0 0.0
    %3116 = vmatpush1.msra.mxu0 0.0
    %3117 = vmatprep.subr.mxu0 0.0
    %3118 = vmatpush1.msra.mxu0 0.0
    %3119 = vmatprep.subr.mxu0 0.0
    %3120 = vmatpush1.msra.mxu0 0.0
    %3121 = vmatprep.subr.mxu0 0.0
    %3122 = vmatpush1.msra.mxu0 0.0
    %3123 = vmatprep.subr.mxu0 0.0
    %3124 = vmatpush1.msra.mxu0 0.0
    %3125 = vmatprep.subr.mxu0 0.0
    %3126 = vmatpush1.msra.mxu0 0.0
    %3127 = vmatprep.subr.mxu0 0.0
    %3128 = vmatpush1.msra.mxu0 0.0
    %3129 = vmatprep.subr.mxu0 0.0
    %3130 = vmatpush1.msra.mxu0 0.0
    %3131 = vmatprep.subr.mxu0 0.0
    %3132 = vmatpush1.msra.mxu0 0.0
    %3133 = vmatprep.subr.mxu0 0.0
    %3134 = vmatpush1.msra.mxu0 0.0
    %3135 = vmatprep.subr.mxu0 0.0
    %3136 = vmatpush1.msra.mxu0 0.0
    %3137 = vmatprep.subr.mxu0 0.0
    %3138 = vmatpush1.msra.mxu0 0.0
    %3139 = vmatprep.subr.mxu0 0.0
    %3140 = vmatpush1.msra.mxu0 0.0
    %3141 = vmatprep.subr.mxu0 0.0
    %3142 = vmatpush1.msra.mxu0 0.0
    %3143 = vmatprep.subr.mxu0 0.0
    %3144 = vmatpush1.msra.mxu0 0.0
    %3145 = vmatprep.mubr.f32.mxu0 0.0
    %3146 = vmatmul.mubr.f32.gmra.mrb[0].mxu0 %v2940
    %v3147 = vpop.f32.mrb[0].mxu0
    %v3148 = vadd.f32 0.0, %v3147
    %v3149 = vpop.f32.mrb[0].mxu0
    %v3150 = vadd.f32 0.0, %v3149
    %3151 = vdwg.mxu0
    %v3152 = vadd.f32 %v2942, %v3077
    %v3153 = vadd.f32 %v2943, %v3079
    %v3154 = vadd.f32 %v2944, %v3148
    %v3155 = vadd.f32 %v2945, %v3150
    %v3156 = vxor.u32 %v3152, 2147483648
    %v3157 = vmul.f32 %v3156, 1.442695
    %v3158 = vpow.pop %v3157
    %v3159 = vadd.f32 %v3158, 1.0
    %v3160 = vrcp.pop %v3159
    %v3161 = vmul.f32 1.0, %v3160
    %v3162 = vxor.u32 %v3153, 2147483648
    %v3163 = vmul.f32 %v3162, 1.442695
    %v3164 = vpow.pop %v3163
    %v3165 = vadd.f32 %v3164, 1.0
    %v3166 = vrcp.pop %v3165
    %v3167 = vmul.f32 1.0, %v3166
    %v3168 = vtanh.pop %v3154
    %v3169 = vxor.u32 %v3155, 2147483648
    %v3170 = vmul.f32 %v3169, 1.442695
    %v3171 = vpow.pop %v3170
    %v3172 = vadd.f32 %v3171, 1.0
    %v3173 = vrcp.pop %v3172
    %v3174 = vmul.f32 1.0, %v3173
    %v3175 = vmul.f32 %v3167, %v2938
    %v3176 = vmul.f32 %v3161, %v3168
    %v3177 = vadd.f32 %v3175, %v3176
    %v3178 = vtanh.pop %v3177
    %v3179 = vmul.f32 %v3174, %v3178
    %3180 = vst [vmem:[%s883] sm:$0xff] %v3179
    %v3181 = vld [vmem:[%s887] sm:$0xff]
    %v3182 = vld [vmem:[%s887 + $0x8] sm:$0xff]
    %v3183 = vld [vmem:[%s887 + $0x10] sm:$0xff]
    %v3184 = vld [vmem:[%s887 + $0x18] sm:$0xff]
    %v3185 = vld [vmem:[%s5] sm:$0xff]
    %v3186 = vld [vmem:[%s5 + $0x8] sm:$0xff]
    %v3187 = vld [vmem:[%s5 + $0x10] sm:$0xff]
    %v3188 = vld [vmem:[%s5 + $0x18] sm:$0xff]
    %v3189 = vld [vmem:[%s5 + $0x20] sm:$0xff]
    %v3190 = vld [vmem:[%s5 + $0x28] sm:$0xff]
    %v3191 = vld [vmem:[%s5 + $0x30] sm:$0xff]
    %v3192 = vld [vmem:[%s5 + $0x38] sm:$0xff]
    %v3193 = vld [vmem:[%s5 + $0x40] sm:$0xff]
    %v3194 = vld [vmem:[%s5 + $0x48] sm:$0xff]
    %v3195 = vld [vmem:[%s5 + $0x50] sm:$0xff]
    %v3196 = vld [vmem:[%s5 + $0x58] sm:$0xff]
    %v3197 = vld [vmem:[%s5 + $0x60] sm:$0xff]
    %v3198 = vld [vmem:[%s5 + $0x68] sm:$0xff]
    %v3199 = vld [vmem:[%s5 + $0x70] sm:$0xff]
    %v3200 = vld [vmem:[%s5 + $0x78] sm:$0xff]
    %v3201 = vld [vmem:[%s5 + $0x80] sm:$0xff]
    %v3202 = vld [vmem:[%s5 + $0x88] sm:$0xff]
    %v3203 = vld [vmem:[%s5 + $0x90] sm:$0xff]
    %v3204 = vld [vmem:[%s5 + $0x98] sm:$0xff]
    %v3205 = vld [vmem:[%s5 + $0xa0] sm:$0xff]
    %v3206 = vld [vmem:[%s5 + $0xa8] sm:$0xff]
    %v3207 = vld [vmem:[%s5 + $0xb0] sm:$0xff]
    %v3208 = vld [vmem:[%s5 + $0xb8] sm:$0xff]
    %v3209 = vld [vmem:[%s5 + $0xc0] sm:$0xff]
    %v3210 = vld [vmem:[%s5 + $0xc8] sm:$0xff]
    %v3211 = vld [vmem:[%s5 + $0xd0] sm:$0xff]
    %v3212 = vld [vmem:[%s5 + $0xd8] sm:$0xff]
    %v3213 = vld [vmem:[%s5 + $0xe0] sm:$0xff]
    %v3214 = vld [vmem:[%s5 + $0xe8] sm:$0xff]
    %v3215 = vld [vmem:[%s5 + $0xf0] sm:$0xff]
    %v3216 = vld [vmem:[%s5 + $0xf8] sm:$0xff]
    %v3217 = vld [vmem:[%s5 + $0x100] sm:$0xff]
    %v3218 = vld [vmem:[%s5 + $0x108] sm:$0xff]
    %v3219 = vld [vmem:[%s5 + $0x110] sm:$0xff]
    %v3220 = vld [vmem:[%s5 + $0x118] sm:$0xff]
    %v3221 = vld [vmem:[%s5 + $0x120] sm:$0xff]
    %v3222 = vld [vmem:[%s5 + $0x128] sm:$0xff]
    %v3223 = vld [vmem:[%s5 + $0x130] sm:$0xff]
    %v3224 = vld [vmem:[%s5 + $0x138] sm:$0xff]
    %v3225 = vld [vmem:[%s5 + $0x140] sm:$0xff]
    %v3226 = vld [vmem:[%s5 + $0x148] sm:$0xff]
    %v3227 = vld [vmem:[%s5 + $0x150] sm:$0xff]
    %v3228 = vld [vmem:[%s5 + $0x158] sm:$0xff]
    %v3229 = vld [vmem:[%s5 + $0x160] sm:$0xff]
    %v3230 = vld [vmem:[%s5 + $0x168] sm:$0xff]
    %v3231 = vld [vmem:[%s5 + $0x170] sm:$0xff]
    %v3232 = vld [vmem:[%s5 + $0x178] sm:$0xff]
    %v3233 = vld [vmem:[%s5 + $0x180] sm:$0xff]
    %v3234 = vld [vmem:[%s5 + $0x188] sm:$0xff]
    %v3235 = vld [vmem:[%s5 + $0x190] sm:$0xff]
    %v3236 = vld [vmem:[%s5 + $0x198] sm:$0xff]
    %v3237 = vld [vmem:[%s5 + $0x1a0] sm:$0xff]
    %v3238 = vld [vmem:[%s5 + $0x1a8] sm:$0xff]
    %v3239 = vld [vmem:[%s5 + $0x1b0] sm:$0xff]
    %v3240 = vld [vmem:[%s5 + $0x1b8] sm:$0xff]
    %v3241 = vld [vmem:[%s5 + $0x1c0] sm:$0xff]
    %v3242 = vld [vmem:[%s5 + $0x1c8] sm:$0xff]
    %v3243 = vld [vmem:[%s5 + $0x1d0] sm:$0xff]
    %v3244 = vld [vmem:[%s5 + $0x1d8] sm:$0xff]
    %v3245 = vld [vmem:[%s5 + $0x1e0] sm:$0xff]
    %v3246 = vld [vmem:[%s5 + $0x1e8] sm:$0xff]
    %v3247 = vld [vmem:[%s5 + $0x1f0] sm:$0xff]
    %v3248 = vld [vmem:[%s5 + $0x1f8] sm:$0xff]
    %3249 = vmatprep.subr.mxu0 %v3186
    %3250 = vmatpush1.msra.mxu0 %v3185
    %3251 = vmatprep.subr.mxu0 %v3190
    %3252 = vmatpush1.msra.mxu0 %v3189
    %3253 = vmatprep.subr.mxu0 %v3194
    %3254 = vmatpush1.msra.mxu0 %v3193
    %3255 = vmatprep.subr.mxu0 %v3198
    %3256 = vmatpush1.msra.mxu0 %v3197
    %3257 = vmatprep.subr.mxu0 %v3202
    %3258 = vmatpush1.msra.mxu0 %v3201
    %3259 = vmatprep.subr.mxu0 %v3206
    %3260 = vmatpush1.msra.mxu0 %v3205
    %3261 = vmatprep.subr.mxu0 %v3210
    %3262 = vmatpush1.msra.mxu0 %v3209
    %3263 = vmatprep.subr.mxu0 %v3214
    %3264 = vmatpush1.msra.mxu0 %v3213
    %3265 = vmatprep.subr.mxu0 %v3218
    %3266 = vmatpush1.msra.mxu0 %v3217
    %3267 = vmatprep.subr.mxu0 %v3222
    %3268 = vmatpush1.msra.mxu0 %v3221
    %3269 = vmatprep.subr.mxu0 %v3226
    %3270 = vmatpush1.msra.mxu0 %v3225
    %3271 = vmatprep.subr.mxu0 %v3230
    %3272 = vmatpush1.msra.mxu0 %v3229
    %3273 = vmatprep.subr.mxu0 %v3234
    %3274 = vmatpush1.msra.mxu0 %v3233
    %3275 = vmatprep.subr.mxu0 %v3238
    %3276 = vmatpush1.msra.mxu0 %v3237
    %3277 = vmatprep.subr.mxu0 %v3242
    %3278 = vmatpush1.msra.mxu0 %v3241
    %3279 = vmatprep.subr.mxu0 %v3246
    %3280 = vmatpush1.msra.mxu0 %v3245
    %3281 = vmatprep.subr.mxu0 0.0
    %3282 = vmatpush1.msra.mxu0 0.0
    %3283 = vmatprep.subr.mxu0 0.0
    %3284 = vmatpush1.msra.mxu0 0.0
    %3285 = vmatprep.subr.mxu0 0.0
    %3286 = vmatpush1.msra.mxu0 0.0
    %3287 = vmatprep.subr.mxu0 0.0
    %3288 = vmatpush1.msra.mxu0 0.0
    %3289 = vmatprep.subr.mxu0 0.0
    %3290 = vmatpush1.msra.mxu0 0.0
    %3291 = vmatprep.subr.mxu0 0.0
    %3292 = vmatpush1.msra.mxu0 0.0
    %3293 = vmatprep.subr.mxu0 0.0
    %3294 = vmatpush1.msra.mxu0 0.0
    %3295 = vmatprep.subr.mxu0 0.0
    %3296 = vmatpush1.msra.mxu0 0.0
    %3297 = vmatprep.subr.mxu0 0.0
    %3298 = vmatpush1.msra.mxu0 0.0
    %3299 = vmatprep.subr.mxu0 0.0
    %3300 = vmatpush1.msra.mxu0 0.0
    %3301 = vmatprep.subr.mxu0 0.0
    %3302 = vmatpush1.msra.mxu0 0.0
    %3303 = vmatprep.subr.mxu0 0.0
    %3304 = vmatpush1.msra.mxu0 0.0
    %3305 = vmatprep.subr.mxu0 0.0
    %3306 = vmatpush1.msra.mxu0 0.0
    %3307 = vmatprep.subr.mxu0 0.0
    %3308 = vmatpush1.msra.mxu0 0.0
    %3309 = vmatprep.subr.mxu0 0.0
    %3310 = vmatpush1.msra.mxu0 0.0
    %3311 = vmatprep.subr.mxu0 0.0
    %3312 = vmatpush1.msra.mxu0 0.0
    %3313 = vmatprep.mubr.f32.mxu0 0.0
    %3314 = vmatmul.mubr.f32.gmra.mrb[0].mxu0 %v3179
    %v3315 = vpop.f32.mrb[0].mxu0
    %v3316 = vadd.f32 0.0, %v3315
    %v3317 = vpop.f32.mrb[0].mxu0
    %v3318 = vadd.f32 0.0, %v3317
    %3319 = vdwg.mxu0
    %3320 = vmatprep.subr.mxu0 %v3188
    %3321 = vmatpush1.msra.mxu0 %v3187
    %3322 = vmatprep.subr.mxu0 %v3192
    %3323 = vmatpush1.msra.mxu0 %v3191
    %3324 = vmatprep.subr.mxu0 %v3196
    %3325 = vmatpush1.msra.mxu0 %v3195
    %3326 = vmatprep.subr.mxu0 %v3200
    %3327 = vmatpush1.msra.mxu0 %v3199
    %3328 = vmatprep.subr.mxu0 %v3204
    %3329 = vmatpush1.msra.mxu0 %v3203
    %3330 = vmatprep.subr.mxu0 %v3208
    %3331 = vmatpush1.msra.mxu0 %v3207
    %3332 = vmatprep.subr.mxu0 %v3212
    %3333 = vmatpush1.msra.mxu0 %v3211
    %3334 = vmatprep.subr.mxu0 %v3216
    %3335 = vmatpush1.msra.mxu0 %v3215
    %3336 = vmatprep.subr.mxu0 %v3220
    %3337 = vmatpush1.msra.mxu0 %v3219
    %3338 = vmatprep.subr.mxu0 %v3224
    %3339 = vmatpush1.msra.mxu0 %v3223
    %3340 = vmatprep.subr.mxu0 %v3228
    %3341 = vmatpush1.msra.mxu0 %v3227
    %3342 = vmatprep.subr.mxu0 %v3232
    %3343 = vmatpush1.msra.mxu0 %v3231
    %3344 = vmatprep.subr.mxu0 %v3236
    %3345 = vmatpush1.msra.mxu0 %v3235
    %3346 = vmatprep.subr.mxu0 %v3240
    %3347 = vmatpush1.msra.mxu0 %v3239
    %3348 = vmatprep.subr.mxu0 %v3244
    %3349 = vmatpush1.msra.mxu0 %v3243
    %3350 = vmatprep.subr.mxu0 %v3248
    %3351 = vmatpush1.msra.mxu0 %v3247
    %3352 = vmatprep.subr.mxu0 0.0
    %3353 = vmatpush1.msra.mxu0 0.0
    %3354 = vmatprep.subr.mxu0 0.0
    %3355 = vmatpush1.msra.mxu0 0.0
    %3356 = vmatprep.subr.mxu0 0.0
    %3357 = vmatpush1.msra.mxu0 0.0
    %3358 = vmatprep.subr.mxu0 0.0
    %3359 = vmatpush1.msra.mxu0 0.0
    %3360 = vmatprep.subr.mxu0 0.0
    %3361 = vmatpush1.msra.mxu0 0.0
    %3362 = vmatprep.subr.mxu0 0.0
    %3363 = vmatpush1.msra.mxu0 0.0
    %3364 = vmatprep.subr.mxu0 0.0
    %3365 = vmatpush1.msra.mxu0 0.0
    %3366 = vmatprep.subr.mxu0 0.0
    %3367 = vmatpush1.msra.mxu0 0.0
    %3368 = vmatprep.subr.mxu0 0.0
    %3369 = vmatpush1.msra.mxu0 0.0
    %3370 = vmatprep.subr.mxu0 0.0
    %3371 = vmatpush1.msra.mxu0 0.0
    %3372 = vmatprep.subr.mxu0 0.0
    %3373 = vmatpush1.msra.mxu0 0.0
    %3374 = vmatprep.subr.mxu0 0.0
    %3375 = vmatpush1.msra.mxu0 0.0
    %3376 = vmatprep.subr.mxu0 0.0
    %3377 = vmatpush1.msra.mxu0 0.0
    %3378 = vmatprep.subr.mxu0 0.0
    %3379 = vmatpush1.msra.mxu0 0.0
    %3380 = vmatprep.subr.mxu0 0.0
    %3381 = vmatpush1.msra.mxu0 0.0
    %3382 = vmatprep.subr.mxu0 0.0
    %3383 = vmatpush1.msra.mxu0 0.0
    %3384 = vmatprep.mubr.f32.mxu0 0.0
    %3385 = vmatmul.mubr.f32.gmra.mrb[0].mxu0 %v3179
    %v3386 = vpop.f32.mrb[0].mxu0
    %v3387 = vadd.f32 0.0, %v3386
    %v3388 = vpop.f32.mrb[0].mxu0
    %v3389 = vadd.f32 0.0, %v3388
    %3390 = vdwg.mxu0
    %v3391 = vadd.f32 %v3181, %v3316
    %v3392 = vadd.f32 %v3182, %v3318
    %v3393 = vadd.f32 %v3183, %v3387
    %v3394 = vadd.f32 %v3184, %v3389
    %v3395 = vxor.u32 %v3391, 2147483648
    %v3396 = vmul.f32 %v3395, 1.442695
    %v3397 = vpow.pop %v3396
    %v3398 = vadd.f32 %v3397, 1.0
    %v3399 = vrcp.pop %v3398
    %v3400 = vmul.f32 1.0, %v3399
    %v3401 = vxor.u32 %v3392, 2147483648
    %v3402 = vmul.f32 %v3401, 1.442695
    %v3403 = vpow.pop %v3402
    %v3404 = vadd.f32 %v3403, 1.0
    %v3405 = vrcp.pop %v3404
    %v3406 = vmul.f32 1.0, %v3405
    %v3407 = vtanh.pop %v3393
    %v3408 = vxor.u32 %v3394, 2147483648
    %v3409 = vmul.f32 %v3408, 1.442695
    %v3410 = vpow.pop %v3409
    %v3411 = vadd.f32 %v3410, 1.0
    %v3412 = vrcp.pop %v3411
    %v3413 = vmul.f32 1.0, %v3412
    %v3414 = vmul.f32 %v3406, %v3177
    %v3415 = vmul.f32 %v3400, %v3407
    %v3416 = vadd.f32 %v3414, %v3415
    %v3417 = vtanh.pop %v3416
    %v3418 = vmul.f32 %v3413, %v3417
    %3419 = vst [vmem:[%s1126] sm:$0xff] %v3418
    %v3420 = vld [vmem:[%s1130] sm:$0xff]
    %v3421 = vld [vmem:[%s1130 + $0x8] sm:$0xff]
    %v3422 = vld [vmem:[%s1130 + $0x10] sm:$0xff]
    %v3423 = vld [vmem:[%s1130 + $0x18] sm:$0xff]
    %v3424 = vld [vmem:[%s5] sm:$0xff]
    %v3425 = vld [vmem:[%s5 + $0x8] sm:$0xff]
    %v3426 = vld [vmem:[%s5 + $0x10] sm:$0xff]
    %v3427 = vld [vmem:[%s5 + $0x18] sm:$0xff]
    %v3428 = vld [vmem:[%s5 + $0x20] sm:$0xff]
    %v3429 = vld [vmem:[%s5 + $0x28] sm:$0xff]
    %v3430 = vld [vmem:[%s5 + $0x30] sm:$0xff]
    %v3431 = vld [vmem:[%s5 + $0x38] sm:$0xff]
    %v3432 = vld [vmem:[%s5 + $0x40] sm:$0xff]
    %v3433 = vld [vmem:[%s5 + $0x48] sm:$0xff]
    %v3434 = vld [vmem:[%s5 + $0x50] sm:$0xff]
    %v3435 = vld [vmem:[%s5 + $0x58] sm:$0xff]
    %v3436 = vld [vmem:[%s5 + $0x60] sm:$0xff]
    %v3437 = vld [vmem:[%s5 + $0x68] sm:$0xff]
    %v3438 = vld [vmem:[%s5 + $0x70] sm:$0xff]
    %v3439 = vld [vmem:[%s5 + $0x78] sm:$0xff]
    %v3440 = vld [vmem:[%s5 + $0x80] sm:$0xff]
    %v3441 = vld [vmem:[%s5 + $0x88] sm:$0xff]
    %v3442 = vld [vmem:[%s5 + $0x90] sm:$0xff]
    %v3443 = vld [vmem:[%s5 + $0x98] sm:$0xff]
    %v3444 = vld [vmem:[%s5 + $0xa0] sm:$0xff]
    %v3445 = vld [vmem:[%s5 + $0xa8] sm:$0xff]
    %v3446 = vld [vmem:[%s5 + $0xb0] sm:$0xff]
    %v3447 = vld [vmem:[%s5 + $0xb8] sm:$0xff]
    %v3448 = vld [vmem:[%s5 + $0xc0] sm:$0xff]
    %v3449 = vld [vmem:[%s5 + $0xc8] sm:$0xff]
    %v3450 = vld [vmem:[%s5 + $0xd0] sm:$0xff]
    %v3451 = vld [vmem:[%s5 + $0xd8] sm:$0xff]
    %v3452 = vld [vmem:[%s5 + $0xe0] sm:$0xff]
    %v3453 = vld [vmem:[%s5 + $0xe8] sm:$0xff]
    %v3454 = vld [vmem:[%s5 + $0xf0] sm:$0xff]
    %v3455 = vld [vmem:[%s5 + $0xf8] sm:$0xff]
    %v3456 = vld [vmem:[%s5 + $0x100] sm:$0xff]
    %v3457 = vld [vmem:[%s5 + $0x108] sm:$0xff]
    %v3458 = vld [vmem:[%s5 + $0x110] sm:$0xff]
    %v3459 = vld [vmem:[%s5 + $0x118] sm:$0xff]
    %v3460 = vld [vmem:[%s5 + $0x120] sm:$0xff]
    %v3461 = vld [vmem:[%s5 + $0x128] sm:$0xff]
    %v3462 = vld [vmem:[%s5 + $0x130] sm:$0xff]
    %v3463 = vld [vmem:[%s5 + $0x138] sm:$0xff]
    %v3464 = vld [vmem:[%s5 + $0x140] sm:$0xff]
    %v3465 = vld [vmem:[%s5 + $0x148] sm:$0xff]
    %v3466 = vld [vmem:[%s5 + $0x150] sm:$0xff]
    %v3467 = vld [vmem:[%s5 + $0x158] sm:$0xff]
    %v3468 = vld [vmem:[%s5 + $0x160] sm:$0xff]
    %v3469 = vld [vmem:[%s5 + $0x168] sm:$0xff]
    %v3470 = vld [vmem:[%s5 + $0x170] sm:$0xff]
    %v3471 = vld [vmem:[%s5 + $0x178] sm:$0xff]
    %v3472 = vld [vmem:[%s5 + $0x180] sm:$0xff]
    %v3473 = vld [vmem:[%s5 + $0x188] sm:$0xff]
    %v3474 = vld [vmem:[%s5 + $0x190] sm:$0xff]
    %v3475 = vld [vmem:[%s5 + $0x198] sm:$0xff]
    %v3476 = vld [vmem:[%s5 + $0x1a0] sm:$0xff]
    %v3477 = vld [vmem:[%s5 + $0x1a8] sm:$0xff]
    %v3478 = vld [vmem:[%s5 + $0x1b0] sm:$0xff]
    %v3479 = vld [vmem:[%s5 + $0x1b8] sm:$0xff]
    %v3480 = vld [vmem:[%s5 + $0x1c0] sm:$0xff]
    %v3481 = vld [vmem:[%s5 + $0x1c8] sm:$0xff]
    %v3482 = vld [vmem:[%s5 + $0x1d0] sm:$0xff]
    %v3483 = vld [vmem:[%s5 + $0x1d8] sm:$0xff]
    %v3484 = vld [vmem:[%s5 + $0x1e0] sm:$0xff]
    %v3485 = vld [vmem:[%s5 + $0x1e8] sm:$0xff]
    %v3486 = vld [vmem:[%s5 + $0x1f0] sm:$0xff]
    %v3487 = vld [vmem:[%s5 + $0x1f8] sm:$0xff]
    %3488 = vmatprep.subr.mxu0 %v3425
    %3489 = vmatpush1.msra.mxu0 %v3424
    %3490 = vmatprep.subr.mxu0 %v3429
    %3491 = vmatpush1.msra.mxu0 %v3428
    %3492 = vmatprep.subr.mxu0 %v3433
    %3493 = vmatpush1.msra.mxu0 %v3432
    %3494 = vmatprep.subr.mxu0 %v3437
    %3495 = vmatpush1.msra.mxu0 %v3436
    %3496 = vmatprep.subr.mxu0 %v3441
    %3497 = vmatpush1.msra.mxu0 %v3440
    %3498 = vmatprep.subr.mxu0 %v3445
    %3499 = vmatpush1.msra.mxu0 %v3444
    %3500 = vmatprep.subr.mxu0 %v3449
    %3501 = vmatpush1.msra.mxu0 %v3448
    %3502 = vmatprep.subr.mxu0 %v3453
    %3503 = vmatpush1.msra.mxu0 %v3452
    %3504 = vmatprep.subr.mxu0 %v3457
    %3505 = vmatpush1.msra.mxu0 %v3456
    %3506 = vmatprep.subr.mxu0 %v3461
    %3507 = vmatpush1.msra.mxu0 %v3460
    %3508 = vmatprep.subr.mxu0 %v3465
    %3509 = vmatpush1.msra.mxu0 %v3464
    %3510 = vmatprep.subr.mxu0 %v3469
    %3511 = vmatpush1.msra.mxu0 %v3468
    %3512 = vmatprep.subr.mxu0 %v3473
    %3513 = vmatpush1.msra.mxu0 %v3472
    %3514 = vmatprep.subr.mxu0 %v3477
    %3515 = vmatpush1.msra.mxu0 %v3476
    %3516 = vmatprep.subr.mxu0 %v3481
    %3517 = vmatpush1.msra.mxu0 %v3480
    %3518 = vmatprep.subr.mxu0 %v3485
    %3519 = vmatpush1.msra.mxu0 %v3484
    %3520 = vmatprep.subr.mxu0 0.0
    %3521 = vmatpush1.msra.mxu0 0.0
    %3522 = vmatprep.subr.mxu0 0.0
    %3523 = vmatpush1.msra.mxu0 0.0
    %3524 = vmatprep.subr.mxu0 0.0
    %3525 = vmatpush1.msra.mxu0 0.0
    %3526 = vmatprep.subr.mxu0 0.0
    %3527 = vmatpush1.msra.mxu0 0.0
    %3528 = vmatprep.subr.mxu0 0.0
    %3529 = vmatpush1.msra.mxu0 0.0
    %3530 = vmatprep.subr.mxu0 0.0
    %3531 = vmatpush1.msra.mxu0 0.0
    %3532 = vmatprep.subr.mxu0 0.0
    %3533 = vmatpush1.msra.mxu0 0.0
    %3534 = vmatprep.subr.mxu0 0.0
    %3535 = vmatpush1.msra.mxu0 0.0
    %3536 = vmatprep.subr.mxu0 0.0
    %3537 = vmatpush1.msra.mxu0 0.0
    %3538 = vmatprep.subr.mxu0 0.0
    %3539 = vmatpush1.msra.mxu0 0.0
    %3540 = vmatprep.subr.mxu0 0.0
    %3541 = vmatpush1.msra.mxu0 0.0
    %3542 = vmatprep.subr.mxu0 0.0
    %3543 = vmatpush1.msra.mxu0 0.0
    %3544 = vmatprep.subr.mxu0 0.0
    %3545 = vmatpush1.msra.mxu0 0.0
    %3546 = vmatprep.subr.mxu0 0.0
    %3547 = vmatpush1.msra.mxu0 0.0
    %3548 = vmatprep.subr.mxu0 0.0
    %3549 = vmatpush1.msra.mxu0 0.0
    %3550 = vmatprep.subr.mxu0 0.0
    %3551 = vmatpush1.msra.mxu0 0.0
    %3552 = vmatprep.mubr.f32.mxu0 0.0
    %3553 = vmatmul.mubr.f32.gmra.mrb[0].mxu0 %v3418
    %v3554 = vpop.f32.mrb[0].mxu0
    %v3555 = vadd.f32 0.0, %v3554
    %v3556 = vpop.f32.mrb[0].mxu0
    %v3557 = vadd.f32 0.0, %v3556
    %3558 = vdwg.mxu0
    %3559 = vmatprep.subr.mxu0 %v3427
    %3560 = vmatpush1.msra.mxu0 %v3426
    %3561 = vmatprep.subr.mxu0 %v3431
    %3562 = vmatpush1.msra.mxu0 %v3430
    %3563 = vmatprep.subr.mxu0 %v3435
    %3564 = vmatpush1.msra.mxu0 %v3434
    %3565 = vmatprep.subr.mxu0 %v3439
    %3566 = vmatpush1.msra.mxu0 %v3438
    %3567 = vmatprep.subr.mxu0 %v3443
    %3568 = vmatpush1.msra.mxu0 %v3442
    %3569 = vmatprep.subr.mxu0 %v3447
    %3570 = vmatpush1.msra.mxu0 %v3446
    %3571 = vmatprep.subr.mxu0 %v3451
    %3572 = vmatpush1.msra.mxu0 %v3450
    %3573 = vmatprep.subr.mxu0 %v3455
    %3574 = vmatpush1.msra.mxu0 %v3454
    %3575 = vmatprep.subr.mxu0 %v3459
    %3576 = vmatpush1.msra.mxu0 %v3458
    %3577 = vmatprep.subr.mxu0 %v3463
    %3578 = vmatpush1.msra.mxu0 %v3462
    %3579 = vmatprep.subr.mxu0 %v3467
    %3580 = vmatpush1.msra.mxu0 %v3466
    %3581 = vmatprep.subr.mxu0 %v3471
    %3582 = vmatpush1.msra.mxu0 %v3470
    %3583 = vmatprep.subr.mxu0 %v3475
    %3584 = vmatpush1.msra.mxu0 %v3474
    %3585 = vmatprep.subr.mxu0 %v3479
    %3586 = vmatpush1.msra.mxu0 %v3478
    %3587 = vmatprep.subr.mxu0 %v3483
    %3588 = vmatpush1.msra.mxu0 %v3482
    %3589 = vmatprep.subr.mxu0 %v3487
    %3590 = vmatpush1.msra.mxu0 %v3486
    %3591 = vmatprep.subr.mxu0 0.0
    %3592 = vmatpush1.msra.mxu0 0.0
    %3593 = vmatprep.subr.mxu0 0.0
    %3594 = vmatpush1.msra.mxu0 0.0
    %3595 = vmatprep.subr.mxu0 0.0
    %3596 = vmatpush1.msra.mxu0 0.0
    %3597 = vmatprep.subr.mxu0 0.0
    %3598 = vmatpush1.msra.mxu0 0.0
    %3599 = vmatprep.subr.mxu0 0.0
    %3600 = vmatpush1.msra.mxu0 0.0
    %3601 = vmatprep.subr.mxu0 0.0
    %3602 = vmatpush1.msra.mxu0 0.0
    %3603 = vmatprep.subr.mxu0 0.0
    %3604 = vmatpush1.msra.mxu0 0.0
    %3605 = vmatprep.subr.mxu0 0.0
    %3606 = vmatpush1.msra.mxu0 0.0
    %3607 = vmatprep.subr.mxu0 0.0
    %3608 = vmatpush1.msra.mxu0 0.0
    %3609 = vmatprep.subr.mxu0 0.0
    %3610 = vmatpush1.msra.mxu0 0.0
    %3611 = vmatprep.subr.mxu0 0.0
    %3612 = vmatpush1.msra.mxu0 0.0
    %3613 = vmatprep.subr.mxu0 0.0
    %3614 = vmatpush1.msra.mxu0 0.0
    %3615 = vmatprep.subr.mxu0 0.0
    %3616 = vmatpush1.msra.mxu0 0.0
    %3617 = vmatprep.subr.mxu0 0.0
    %3618 = vmatpush1.msra.mxu0 0.0
    %3619 = vmatprep.subr.mxu0 0.0
    %3620 = vmatpush1.msra.mxu0 0.0
    %3621 = vmatprep.subr.mxu0 0.0
    %3622 = vmatpush1.msra.mxu0 0.0
    %3623 = vmatprep.mubr.f32.mxu0 0.0
    %3624 = vmatmul.mubr.f32.gmra.mrb[0].mxu0 %v3418
    %v3625 = vpop.f32.mrb[0].mxu0
    %v3626 = vadd.f32 0.0, %v3625
    %v3627 = vpop.f32.mrb[0].mxu0
    %v3628 = vadd.f32 0.0, %v3627
    %3629 = vdwg.mxu0
    %v3630 = vadd.f32 %v3420, %v3555
    %v3631 = vadd.f32 %v3421, %v3557
    %v3632 = vadd.f32 %v3422, %v3626
    %v3633 = vadd.f32 %v3423, %v3628
    %v3634 = vxor.u32 %v3630, 2147483648
    %v3635 = vmul.f32 %v3634, 1.442695
    %v3636 = vpow.pop %v3635
    %v3637 = vadd.f32 %v3636, 1.0
    %v3638 = vrcp.pop %v3637
    %v3639 = vmul.f32 1.0, %v3638
    %v3640 = vxor.u32 %v3631, 2147483648
    %v3641 = vmul.f32 %v3640, 1.442695
    %v3642 = vpow.pop %v3641
    %v3643 = vadd.f32 %v3642, 1.0
    %v3644 = vrcp.pop %v3643
    %v3645 = vmul.f32 1.0, %v3644
    %v3646 = vtanh.pop %v3632
    %v3647 = vxor.u32 %v3633, 2147483648
    %v3648 = vmul.f32 %v3647, 1.442695
    %v3649 = vpow.pop %v3648
    %v3650 = vadd.f32 %v3649, 1.0
    %v3651 = vrcp.pop %v3650
    %v3652 = vmul.f32 1.0, %v3651
    %v3653 = vmul.f32 %v3645, %v3416
    %v3654 = vmul.f32 %v3639, %v3646
    %v3655 = vadd.f32 %v3653, %v3654
    %v3656 = vtanh.pop %v3655
    %v3657 = vmul.f32 %v3652, %v3656
    %3658 = vst [vmem:[%s1369] sm:$0xff] %v3657
    %v3659 = vld [vmem:[%s1373] sm:$0xff]
    %v3660 = vld [vmem:[%s1373 + $0x8] sm:$0xff]
    %v3661 = vld [vmem:[%s1373 + $0x10] sm:$0xff]
    %v3662 = vld [vmem:[%s1373 + $0x18] sm:$0xff]
    %v3663 = vld [vmem:[%s5] sm:$0xff]
    %v3664 = vld [vmem:[%s5 + $0x8] sm:$0xff]
    %v3665 = vld [vmem:[%s5 + $0x10] sm:$0xff]
    %v3666 = vld [vmem:[%s5 + $0x18] sm:$0xff]
    %v3667 = vld [vmem:[%s5 + $0x20] sm:$0xff]
    %v3668 = vld [vmem:[%s5 + $0x28] sm:$0xff]
    %v3669 = vld [vmem:[%s5 + $0x30] sm:$0xff]
    %v3670 = vld [vmem:[%s5 + $0x38] sm:$0xff]
    %v3671 = vld [vmem:[%s5 + $0x40] sm:$0xff]
    %v3672 = vld [vmem:[%s5 + $0x48] sm:$0xff]
    %v3673 = vld [vmem:[%s5 + $0x50] sm:$0xff]
    %v3674 = vld [vmem:[%s5 + $0x58] sm:$0xff]
    %v3675 = vld [vmem:[%s5 + $0x60] sm:$0xff]
    %v3676 = vld [vmem:[%s5 + $0x68] sm:$0xff]
    %v3677 = vld [vmem:[%s5 + $0x70] sm:$0xff]
    %v3678 = vld [vmem:[%s5 + $0x78] sm:$0xff]
    %v3679 = vld [vmem:[%s5 + $0x80] sm:$0xff]
    %v3680 = vld [vmem:[%s5 + $0x88] sm:$0xff]
    %v3681 = vld [vmem:[%s5 + $0x90] sm:$0xff]
    %v3682 = vld [vmem:[%s5 + $0x98] sm:$0xff]
    %v3683 = vld [vmem:[%s5 + $0xa0] sm:$0xff]
    %v3684 = vld [vmem:[%s5 + $0xa8] sm:$0xff]
    %v3685 = vld [vmem:[%s5 + $0xb0] sm:$0xff]
    %v3686 = vld [vmem:[%s5 + $0xb8] sm:$0xff]
    %v3687 = vld [vmem:[%s5 + $0xc0] sm:$0xff]
    %v3688 = vld [vmem:[%s5 + $0xc8] sm:$0xff]
    %v3689 = vld [vmem:[%s5 + $0xd0] sm:$0xff]
    %v3690 = vld [vmem:[%s5 + $0xd8] sm:$0xff]
    %v3691 = vld [vmem:[%s5 + $0xe0] sm:$0xff]
    %v3692 = vld [vmem:[%s5 + $0xe8] sm:$0xff]
    %v3693 = vld [vmem:[%s5 + $0xf0] sm:$0xff]
    %v3694 = vld [vmem:[%s5 + $0xf8] sm:$0xff]
    %v3695 = vld [vmem:[%s5 + $0x100] sm:$0xff]
    %v3696 = vld [vmem:[%s5 + $0x108] sm:$0xff]
    %v3697 = vld [vmem:[%s5 + $0x110] sm:$0xff]
    %v3698 = vld [vmem:[%s5 + $0x118] sm:$0xff]
    %v3699 = vld [vmem:[%s5 + $0x120] sm:$0xff]
    %v3700 = vld [vmem:[%s5 + $0x128] sm:$0xff]
    %v3701 = vld [vmem:[%s5 + $0x130] sm:$0xff]
    %v3702 = vld [vmem:[%s5 + $0x138] sm:$0xff]
    %v3703 = vld [vmem:[%s5 + $0x140] sm:$0xff]
    %v3704 = vld [vmem:[%s5 + $0x148] sm:$0xff]
    %v3705 = vld [vmem:[%s5 + $0x150] sm:$0xff]
    %v3706 = vld [vmem:[%s5 + $0x158] sm:$0xff]
    %v3707 = vld [vmem:[%s5 + $0x160] sm:$0xff]
    %v3708 = vld [vmem:[%s5 + $0x168] sm:$0xff]
    %v3709 = vld [vmem:[%s5 + $0x170] sm:$0xff]
    %v3710 = vld [vmem:[%s5 + $0x178] sm:$0xff]
    %v3711 = vld [vmem:[%s5 + $0x180] sm:$0xff]
    %v3712 = vld [vmem:[%s5 + $0x188] sm:$0xff]
    %v3713 = vld [vmem:[%s5 + $0x190] sm:$0xff]
    %v3714 = vld [vmem:[%s5 + $0x198] sm:$0xff]
    %v3715 = vld [vmem:[%s5 + $0x1a0] sm:$0xff]
    %v3716 = vld [vmem:[%s5 + $0x1a8] sm:$0xff]
    %v3717 = vld [vmem:[%s5 + $0x1b0] sm:$0xff]
    %v3718 = vld [vmem:[%s5 + $0x1b8] sm:$0xff]
    %v3719 = vld [vmem:[%s5 + $0x1c0] sm:$0xff]
    %v3720 = vld [vmem:[%s5 + $0x1c8] sm:$0xff]
    %v3721 = vld [vmem:[%s5 + $0x1d0] sm:$0xff]
    %v3722 = vld [vmem:[%s5 + $0x1d8] sm:$0xff]
    %v3723 = vld [vmem:[%s5 + $0x1e0] sm:$0xff]
    %v3724 = vld [vmem:[%s5 + $0x1e8] sm:$0xff]
    %v3725 = vld [vmem:[%s5 + $0x1f0] sm:$0xff]
    %v3726 = vld [vmem:[%s5 + $0x1f8] sm:$0xff]
    %3727 = vmatprep.subr.mxu0 %v3664
    %3728 = vmatpush1.msra.mxu0 %v3663
    %3729 = vmatprep.subr.mxu0 %v3668
    %3730 = vmatpush1.msra.mxu0 %v3667
    %3731 = vmatprep.subr.mxu0 %v3672
    %3732 = vmatpush1.msra.mxu0 %v3671
    %3733 = vmatprep.subr.mxu0 %v3676
    %3734 = vmatpush1.msra.mxu0 %v3675
    %3735 = vmatprep.subr.mxu0 %v3680
    %3736 = vmatpush1.msra.mxu0 %v3679
    %3737 = vmatprep.subr.mxu0 %v3684
    %3738 = vmatpush1.msra.mxu0 %v3683
    %3739 = vmatprep.subr.mxu0 %v3688
    %3740 = vmatpush1.msra.mxu0 %v3687
    %3741 = vmatprep.subr.mxu0 %v3692
    %3742 = vmatpush1.msra.mxu0 %v3691
    %3743 = vmatprep.subr.mxu0 %v3696
    %3744 = vmatpush1.msra.mxu0 %v3695
    %3745 = vmatprep.subr.mxu0 %v3700
    %3746 = vmatpush1.msra.mxu0 %v3699
    %3747 = vmatprep.subr.mxu0 %v3704
    %3748 = vmatpush1.msra.mxu0 %v3703
    %3749 = vmatprep.subr.mxu0 %v3708
    %3750 = vmatpush1.msra.mxu0 %v3707
    %3751 = vmatprep.subr.mxu0 %v3712
    %3752 = vmatpush1.msra.mxu0 %v3711
    %3753 = vmatprep.subr.mxu0 %v3716
    %3754 = vmatpush1.msra.mxu0 %v3715
    %3755 = vmatprep.subr.mxu0 %v3720
    %3756 = vmatpush1.msra.mxu0 %v3719
    %3757 = vmatprep.subr.mxu0 %v3724
    %3758 = vmatpush1.msra.mxu0 %v3723
    %3759 = vmatprep.subr.mxu0 0.0
    %3760 = vmatpush1.msra.mxu0 0.0
    %3761 = vmatprep.subr.mxu0 0.0
    %3762 = vmatpush1.msra.mxu0 0.0
    %3763 = vmatprep.subr.mxu0 0.0
    %3764 = vmatpush1.msra.mxu0 0.0
    %3765 = vmatprep.subr.mxu0 0.0
    %3766 = vmatpush1.msra.mxu0 0.0
    %3767 = vmatprep.subr.mxu0 0.0
    %3768 = vmatpush1.msra.mxu0 0.0
    %3769 = vmatprep.subr.mxu0 0.0
    %3770 = vmatpush1.msra.mxu0 0.0
    %3771 = vmatprep.subr.mxu0 0.0
    %3772 = vmatpush1.msra.mxu0 0.0
    %3773 = vmatprep.subr.mxu0 0.0
    %3774 = vmatpush1.msra.mxu0 0.0
    %3775 = vmatprep.subr.mxu0 0.0
    %3776 = vmatpush1.msra.mxu0 0.0
    %3777 = vmatprep.subr.mxu0 0.0
    %3778 = vmatpush1.msra.mxu0 0.0
    %3779 = vmatprep.subr.mxu0 0.0
    %3780 = vmatpush1.msra.mxu0 0.0
    %3781 = vmatprep.subr.mxu0 0.0
    %3782 = vmatpush1.msra.mxu0 0.0
    %3783 = vmatprep.subr.mxu0 0.0
    %3784 = vmatpush1.msra.mxu0 0.0
    %3785 = vmatprep.subr.mxu0 0.0
    %3786 = vmatpush1.msra.mxu0 0.0
    %3787 = vmatprep.subr.mxu0 0.0
    %3788 = vmatpush1.msra.mxu0 0.0
    %3789 = vmatprep.subr.mxu0 0.0
    %3790 = vmatpush1.msra.mxu0 0.0
    %3791 = vmatprep.mubr.f32.mxu0 0.0
    %3792 = vmatmul.mubr.f32.gmra.mrb[0].mxu0 %v3657
    %v3793 = vpop.f32.mrb[0].mxu0
    %v3794 = vadd.f32 0.0, %v3793
    %v3795 = vpop.f32.mrb[0].mxu0
    %v3796 = vadd.f32 0.0, %v3795
    %3797 = vdwg.mxu0
    %3798 = vmatprep.subr.mxu0 %v3666
    %3799 = vmatpush1.msra.mxu0 %v3665
    %3800 = vmatprep.subr.mxu0 %v3670
    %3801 = vmatpush1.msra.mxu0 %v3669
    %3802 = vmatprep.subr.mxu0 %v3674
    %3803 = vmatpush1.msra.mxu0 %v3673
    %3804 = vmatprep.subr.mxu0 %v3678
    %3805 = vmatpush1.msra.mxu0 %v3677
    %3806 = vmatprep.subr.mxu0 %v3682
    %3807 = vmatpush1.msra.mxu0 %v3681
    %3808 = vmatprep.subr.mxu0 %v3686
    %3809 = vmatpush1.msra.mxu0 %v3685
    %3810 = vmatprep.subr.mxu0 %v3690
    %3811 = vmatpush1.msra.mxu0 %v3689
    %3812 = vmatprep.subr.mxu0 %v3694
    %3813 = vmatpush1.msra.mxu0 %v3693
    %3814 = vmatprep.subr.mxu0 %v3698
    %3815 = vmatpush1.msra.mxu0 %v3697
    %3816 = vmatprep.subr.mxu0 %v3702
    %3817 = vmatpush1.msra.mxu0 %v3701
    %3818 = vmatprep.subr.mxu0 %v3706
    %3819 = vmatpush1.msra.mxu0 %v3705
    %3820 = vmatprep.subr.mxu0 %v3710
    %3821 = vmatpush1.msra.mxu0 %v3709
    %3822 = vmatprep.subr.mxu0 %v3714
    %3823 = vmatpush1.msra.mxu0 %v3713
    %3824 = vmatprep.subr.mxu0 %v3718
    %3825 = vmatpush1.msra.mxu0 %v3717
    %3826 = vmatprep.subr.mxu0 %v3722
    %3827 = vmatpush1.msra.mxu0 %v3721
    %3828 = vmatprep.subr.mxu0 %v3726
    %3829 = vmatpush1.msra.mxu0 %v3725
    %3830 = vmatprep.subr.mxu0 0.0
    %3831 = vmatpush1.msra.mxu0 0.0
    %3832 = vmatprep.subr.mxu0 0.0
    %3833 = vmatpush1.msra.mxu0 0.0
    %3834 = vmatprep.subr.mxu0 0.0
    %3835 = vmatpush1.msra.mxu0 0.0
    %3836 = vmatprep.subr.mxu0 0.0
    %3837 = vmatpush1.msra.mxu0 0.0
    %3838 = vmatprep.subr.mxu0 0.0
    %3839 = vmatpush1.msra.mxu0 0.0
    %3840 = vmatprep.subr.mxu0 0.0
    %3841 = vmatpush1.msra.mxu0 0.0
    %3842 = vmatprep.subr.mxu0 0.0
    %3843 = vmatpush1.msra.mxu0 0.0
    %3844 = vmatprep.subr.mxu0 0.0
    %3845 = vmatpush1.msra.mxu0 0.0
    %3846 = vmatprep.subr.mxu0 0.0
    %3847 = vmatpush1.msra.mxu0 0.0
    %3848 = vmatprep.subr.mxu0 0.0
    %3849 = vmatpush1.msra.mxu0 0.0
    %3850 = vmatprep.subr.mxu0 0.0
    %3851 = vmatpush1.msra.mxu0 0.0
    %3852 = vmatprep.subr.mxu0 0.0
    %3853 = vmatpush1.msra.mxu0 0.0
    %3854 = vmatprep.subr.mxu0 0.0
    %3855 = vmatpush1.msra.mxu0 0.0
    %3856 = vmatprep.subr.mxu0 0.0
    %3857 = vmatpush1.msra.mxu0 0.0
    %3858 = vmatprep.subr.mxu0 0.0
    %3859 = vmatpush1.msra.mxu0 0.0
    %3860 = vmatprep.subr.mxu0 0.0
    %3861 = vmatpush1.msra.mxu0 0.0
    %3862 = vmatprep.mubr.f32.mxu0 0.0
    %3863 = vmatmul.mubr.f32.gmra.mrb[0].mxu0 %v3657
    %v3864 = vpop.f32.mrb[0].mxu0
    %v3865 = vadd.f32 0.0, %v3864
    %v3866 = vpop.f32.mrb[0].mxu0
    %v3867 = vadd.f32 0.0, %v3866
    %3868 = vdwg.mxu0
    %v3869 = vadd.f32 %v3659, %v3794
    %v3870 = vadd.f32 %v3660, %v3796
    %v3871 = vadd.f32 %v3661, %v3865
    %v3872 = vadd.f32 %v3662, %v3867
    %v3873 = vxor.u32 %v3869, 2147483648
    %v3874 = vmul.f32 %v3873, 1.442695
    %v3875 = vpow.pop %v3874
    %v3876 = vadd.f32 %v3875, 1.0
    %v3877 = vrcp.pop %v3876
    %v3878 = vmul.f32 1.0, %v3877
    %v3879 = vxor.u32 %v3870, 2147483648
    %v3880 = vmul.f32 %v3879, 1.442695
    %v3881 = vpow.pop %v3880
    %v3882 = vadd.f32 %v3881, 1.0
    %v3883 = vrcp.pop %v3882
    %v3884 = vmul.f32 1.0, %v3883
    %v3885 = vtanh.pop %v3871
    %v3886 = vxor.u32 %v3872, 2147483648
    %v3887 = vmul.f32 %v3886, 1.442695
    %v3888 = vpow.pop %v3887
    %v3889 = vadd.f32 %v3888, 1.0
    %v3890 = vrcp.pop %v3889
    %v3891 = vmul.f32 1.0, %v3890
    %v3892 = vmul.f32 %v3884, %v3655
    %v3893 = vmul.f32 %v3878, %v3885
    %v3894 = vadd.f32 %v3892, %v3893
    %v3895 = vtanh.pop %v3894
    %v3896 = vmul.f32 %v3891, %v3895
    %3897 = vst [vmem:[%s1612] sm:$0xff] %v3896
    %v3898 = vld [vmem:[%s1616] sm:$0xff]
    %v3899 = vld [vmem:[%s1616 + $0x8] sm:$0xff]
    %v3900 = vld [vmem:[%s1616 + $0x10] sm:$0xff]
    %v3901 = vld [vmem:[%s1616 + $0x18] sm:$0xff]
    %v3902 = vld [vmem:[%s5] sm:$0xff]
    %v3903 = vld [vmem:[%s5 + $0x8] sm:$0xff]
    %v3904 = vld [vmem:[%s5 + $0x10] sm:$0xff]
    %v3905 = vld [vmem:[%s5 + $0x18] sm:$0xff]
    %v3906 = vld [vmem:[%s5 + $0x20] sm:$0xff]
    %v3907 = vld [vmem:[%s5 + $0x28] sm:$0xff]
    %v3908 = vld [vmem:[%s5 + $0x30] sm:$0xff]
    %v3909 = vld [vmem:[%s5 + $0x38] sm:$0xff]
    %v3910 = vld [vmem:[%s5 + $0x40] sm:$0xff]
    %v3911 = vld [vmem:[%s5 + $0x48] sm:$0xff]
    %v3912 = vld [vmem:[%s5 + $0x50] sm:$0xff]
    %v3913 = vld [vmem:[%s5 + $0x58] sm:$0xff]
    %v3914 = vld [vmem:[%s5 + $0x60] sm:$0xff]
    %v3915 = vld [vmem:[%s5 + $0x68] sm:$0xff]
    %v3916 = vld [vmem:[%s5 + $0x70] sm:$0xff]
    %v3917 = vld [vmem:[%s5 + $0x78] sm:$0xff]
    %v3918 = vld [vmem:[%s5 + $0x80] sm:$0xff]
    %v3919 = vld [vmem:[%s5 + $0x88] sm:$0xff]
    %v3920 = vld [vmem:[%s5 + $0x90] sm:$0xff]
    %v3921 = vld [vmem:[%s5 + $0x98] sm:$0xff]
    %v3922 = vld [vmem:[%s5 + $0xa0] sm:$0xff]
    %v3923 = vld [vmem:[%s5 + $0xa8] sm:$0xff]
    %v3924 = vld [vmem:[%s5 + $0xb0] sm:$0xff]
    %v3925 = vld [vmem:[%s5 + $0xb8] sm:$0xff]
    %v3926 = vld [vmem:[%s5 + $0xc0] sm:$0xff]
    %v3927 = vld [vmem:[%s5 + $0xc8] sm:$0xff]
    %v3928 = vld [vmem:[%s5 + $0xd0] sm:$0xff]
    %v3929 = vld [vmem:[%s5 + $0xd8] sm:$0xff]
    %v3930 = vld [vmem:[%s5 + $0xe0] sm:$0xff]
    %v3931 = vld [vmem:[%s5 + $0xe8] sm:$0xff]
    %v3932 = vld [vmem:[%s5 + $0xf0] sm:$0xff]
    %v3933 = vld [vmem:[%s5 + $0xf8] sm:$0xff]
    %v3934 = vld [vmem:[%s5 + $0x100] sm:$0xff]
    %v3935 = vld [vmem:[%s5 + $0x108] sm:$0xff]
    %v3936 = vld [vmem:[%s5 + $0x110] sm:$0xff]
    %v3937 = vld [vmem:[%s5 + $0x118] sm:$0xff]
    %v3938 = vld [vmem:[%s5 + $0x120] sm:$0xff]
    %v3939 = vld [vmem:[%s5 + $0x128] sm:$0xff]
    %v3940 = vld [vmem:[%s5 + $0x130] sm:$0xff]
    %v3941 = vld [vmem:[%s5 + $0x138] sm:$0xff]
    %v3942 = vld [vmem:[%s5 + $0x140] sm:$0xff]
    %v3943 = vld [vmem:[%s5 + $0x148] sm:$0xff]
    %v3944 = vld [vmem:[%s5 + $0x150] sm:$0xff]
    %v3945 = vld [vmem:[%s5 + $0x158] sm:$0xff]
    %v3946 = vld [vmem:[%s5 + $0x160] sm:$0xff]
    %v3947 = vld [vmem:[%s5 + $0x168] sm:$0xff]
    %v3948 = vld [vmem:[%s5 + $0x170] sm:$0xff]
    %v3949 = vld [vmem:[%s5 + $0x178] sm:$0xff]
    %v3950 = vld [vmem:[%s5 + $0x180] sm:$0xff]
    %v3951 = vld [vmem:[%s5 + $0x188] sm:$0xff]
    %v3952 = vld [vmem:[%s5 + $0x190] sm:$0xff]
    %v3953 = vld [vmem:[%s5 + $0x198] sm:$0xff]
    %v3954 = vld [vmem:[%s5 + $0x1a0] sm:$0xff]
    %v3955 = vld [vmem:[%s5 + $0x1a8] sm:$0xff]
    %v3956 = vld [vmem:[%s5 + $0x1b0] sm:$0xff]
    %v3957 = vld [vmem:[%s5 + $0x1b8] sm:$0xff]
    %v3958 = vld [vmem:[%s5 + $0x1c0] sm:$0xff]
    %v3959 = vld [vmem:[%s5 + $0x1c8] sm:$0xff]
    %v3960 = vld [vmem:[%s5 + $0x1d0] sm:$0xff]
    %v3961 = vld [vmem:[%s5 + $0x1d8] sm:$0xff]
    %v3962 = vld [vmem:[%s5 + $0x1e0] sm:$0xff]
    %v3963 = vld [vmem:[%s5 + $0x1e8] sm:$0xff]
    %v3964 = vld [vmem:[%s5 + $0x1f0] sm:$0xff]
    %v3965 = vld [vmem:[%s5 + $0x1f8] sm:$0xff]
    %3966 = vmatprep.subr.mxu0 %v3903
    %3967 = vmatpush1.msra.mxu0 %v3902
    %3968 = vmatprep.subr.mxu0 %v3907
    %3969 = vmatpush1.msra.mxu0 %v3906
    %3970 = vmatprep.subr.mxu0 %v3911
    %3971 = vmatpush1.msra.mxu0 %v3910
    %3972 = vmatprep.subr.mxu0 %v3915
    %3973 = vmatpush1.msra.mxu0 %v3914
    %3974 = vmatprep.subr.mxu0 %v3919
    %3975 = vmatpush1.msra.mxu0 %v3918
    %3976 = vmatprep.subr.mxu0 %v3923
    %3977 = vmatpush1.msra.mxu0 %v3922
    %3978 = vmatprep.subr.mxu0 %v3927
    %3979 = vmatpush1.msra.mxu0 %v3926
    %3980 = vmatprep.subr.mxu0 %v3931
    %3981 = vmatpush1.msra.mxu0 %v3930
    %3982 = vmatprep.subr.mxu0 %v3935
    %3983 = vmatpush1.msra.mxu0 %v3934
    %3984 = vmatprep.subr.mxu0 %v3939
    %3985 = vmatpush1.msra.mxu0 %v3938
    %3986 = vmatprep.subr.mxu0 %v3943
    %3987 = vmatpush1.msra.mxu0 %v3942
    %3988 = vmatprep.subr.mxu0 %v3947
    %3989 = vmatpush1.msra.mxu0 %v3946
    %3990 = vmatprep.subr.mxu0 %v3951
    %3991 = vmatpush1.msra.mxu0 %v3950
    %3992 = vmatprep.subr.mxu0 %v3955
    %3993 = vmatpush1.msra.mxu0 %v3954
    %3994 = vmatprep.subr.mxu0 %v3959
    %3995 = vmatpush1.msra.mxu0 %v3958
    %3996 = vmatprep.subr.mxu0 %v3963
    %3997 = vmatpush1.msra.mxu0 %v3962
    %3998 = vmatprep.subr.mxu0 0.0
    %3999 = vmatpush1.msra.mxu0 0.0
    %4000 = vmatprep.subr.mxu0 0.0
    %4001 = vmatpush1.msra.mxu0 0.0
    %4002 = vmatprep.subr.mxu0 0.0
    %4003 = vmatpush1.msra.mxu0 0.0
    %4004 = vmatprep.subr.mxu0 0.0
    %4005 = vmatpush1.msra.mxu0 0.0
    %4006 = vmatprep.subr.mxu0 0.0
    %4007 = vmatpush1.msra.mxu0 0.0
    %4008 = vmatprep.subr.mxu0 0.0
    %4009 = vmatpush1.msra.mxu0 0.0
    %4010 = vmatprep.subr.mxu0 0.0
    %4011 = vmatpush1.msra.mxu0 0.0
    %4012 = vmatprep.subr.mxu0 0.0
    %4013 = vmatpush1.msra.mxu0 0.0
    %4014 = vmatprep.subr.mxu0 0.0
    %4015 = vmatpush1.msra.mxu0 0.0
    %4016 = vmatprep.subr.mxu0 0.0
    %4017 = vmatpush1.msra.mxu0 0.0
    %4018 = vmatprep.subr.mxu0 0.0
    %4019 = vmatpush1.msra.mxu0 0.0
    %4020 = vmatprep.subr.mxu0 0.0
    %4021 = vmatpush1.msra.mxu0 0.0
    %4022 = vmatprep.subr.mxu0 0.0
    %4023 = vmatpush1.msra.mxu0 0.0
    %4024 = vmatprep.subr.mxu0 0.0
    %4025 = vmatpush1.msra.mxu0 0.0
    %4026 = vmatprep.subr.mxu0 0.0
    %4027 = vmatpush1.msra.mxu0 0.0
    %4028 = vmatprep.subr.mxu0 0.0
    %4029 = vmatpush1.msra.mxu0 0.0
    %4030 = vmatprep.mubr.f32.mxu0 0.0
    %4031 = vmatmul.mubr.f32.gmra.mrb[0].mxu0 %v3896
    %v4032 = vpop.f32.mrb[0].mxu0
    %v4033 = vadd.f32 0.0, %v4032
    %v4034 = vpop.f32.mrb[0].mxu0
    %v4035 = vadd.f32 0.0, %v4034
    %4036 = vdwg.mxu0
    %4037 = vmatprep.subr.mxu0 %v3905
    %4038 = vmatpush1.msra.mxu0 %v3904
    %4039 = vmatprep.subr.mxu0 %v3909
    %4040 = vmatpush1.msra.mxu0 %v3908
    %4041 = vmatprep.subr.mxu0 %v3913
    %4042 = vmatpush1.msra.mxu0 %v3912
    %4043 = vmatprep.subr.mxu0 %v3917
    %4044 = vmatpush1.msra.mxu0 %v3916
    %4045 = vmatprep.subr.mxu0 %v3921
    %4046 = vmatpush1.msra.mxu0 %v3920
    %4047 = vmatprep.subr.mxu0 %v3925
    %4048 = vmatpush1.msra.mxu0 %v3924
    %4049 = vmatprep.subr.mxu0 %v3929
    %4050 = vmatpush1.msra.mxu0 %v3928
    %4051 = vmatprep.subr.mxu0 %v3933
    %4052 = vmatpush1.msra.mxu0 %v3932
    %4053 = vmatprep.subr.mxu0 %v3937
    %4054 = vmatpush1.msra.mxu0 %v3936
    %4055 = vmatprep.subr.mxu0 %v3941
    %4056 = vmatpush1.msra.mxu0 %v3940
    %4057 = vmatprep.subr.mxu0 %v3945
    %4058 = vmatpush1.msra.mxu0 %v3944
    %4059 = vmatprep.subr.mxu0 %v3949
    %4060 = vmatpush1.msra.mxu0 %v3948
    %4061 = vmatprep.subr.mxu0 %v3953
    %4062 = vmatpush1.msra.mxu0 %v3952
    %4063 = vmatprep.subr.mxu0 %v3957
    %4064 = vmatpush1.msra.mxu0 %v3956
    %4065 = vmatprep.subr.mxu0 %v3961
    %4066 = vmatpush1.msra.mxu0 %v3960
    %4067 = vmatprep.subr.mxu0 %v3965
    %4068 = vmatpush1.msra.mxu0 %v3964
    %4069 = vmatprep.subr.mxu0 0.0
    %4070 = vmatpush1.msra.mxu0 0.0
    %4071 = vmatprep.subr.mxu0 0.0
    %4072 = vmatpush1.msra.mxu0 0.0
    %4073 = vmatprep.subr.mxu0 0.0
    %4074 = vmatpush1.msra.mxu0 0.0
    %4075 = vmatprep.subr.mxu0 0.0
    %4076 = vmatpush1.msra.mxu0 0.0
    %4077 = vmatprep.subr.mxu0 0.0
    %4078 = vmatpush1.msra.mxu0 0.0
    %4079 = vmatprep.subr.mxu0 0.0
    %4080 = vmatpush1.msra.mxu0 0.0
    %4081 = vmatprep.subr.mxu0 0.0
    %4082 = vmatpush1.msra.mxu0 0.0
    %4083 = vmatprep.subr.mxu0 0.0
    %4084 = vmatpush1.msra.mxu0 0.0
    %4085 = vmatprep.subr.mxu0 0.0
    %4086 = vmatpush1.msra.mxu0 0.0
    %4087 = vmatprep.subr.mxu0 0.0
    %4088 = vmatpush1.msra.mxu0 0.0
    %4089 = vmatprep.subr.mxu0 0.0
    %4090 = vmatpush1.msra.mxu0 0.0
    %4091 = vmatprep.subr.mxu0 0.0
    %4092 = vmatpush1.msra.mxu0 0.0
    %4093 = vmatprep.subr.mxu0 0.0
    %4094 = vmatpush1.msra.mxu0 0.0
    %4095 = vmatprep.subr.mxu0 0.0
    %4096 = vmatpush1.msra.mxu0 0.0
    %4097 = vmatprep.subr.mxu0 0.0
    %4098 = vmatpush1.msra.mxu0 0.0
    %4099 = vmatprep.subr.mxu0 0.0
    %4100 = vmatpush1.msra.mxu0 0.0
    %4101 = vmatprep.mubr.f32.mxu0 0.0
    %4102 = vmatmul.mubr.f32.gmra.mrb[0].mxu0 %v3896
    %v4103 = vpop.f32.mrb[0].mxu0
    %v4104 = vadd.f32 0.0, %v4103
    %v4105 = vpop.f32.mrb[0].mxu0
    %v4106 = vadd.f32 0.0, %v4105
    %4107 = vdwg.mxu0
    %v4108 = vadd.f32 %v3898, %v4033
    %v4109 = vadd.f32 %v3899, %v4035
    %v4110 = vadd.f32 %v3900, %v4104
    %v4111 = vadd.f32 %v3901, %v4106
    %v4112 = vxor.u32 %v4108, 2147483648
    %v4113 = vmul.f32 %v4112, 1.442695
    %v4114 = vpow.pop %v4113
    %v4115 = vadd.f32 %v4114, 1.0
    %v4116 = vrcp.pop %v4115
    %v4117 = vmul.f32 1.0, %v4116
    %v4118 = vxor.u32 %v4109, 2147483648
    %v4119 = vmul.f32 %v4118, 1.442695
    %v4120 = vpow.pop %v4119
    %v4121 = vadd.f32 %v4120, 1.0
    %v4122 = vrcp.pop %v4121
    %v4123 = vmul.f32 1.0, %v4122
    %v4124 = vtanh.pop %v4110
    %v4125 = vxor.u32 %v4111, 2147483648
    %v4126 = vmul.f32 %v4125, 1.442695
    %v4127 = vpow.pop %v4126
    %v4128 = vadd.f32 %v4127, 1.0
    %v4129 = vrcp.pop %v4128
    %v4130 = vmul.f32 1.0, %v4129
    %v4131 = vmul.f32 %v4123, %v3894
    %v4132 = vmul.f32 %v4117, %v4124
    %v4133 = vadd.f32 %v4131, %v4132
    %v4134 = vtanh.pop %v4133
    %v4135 = vmul.f32 %v4130, %v4134
    %4136 = vst [vmem:[%s1855] sm:$0xff] %v4135
    %v4137 = vld [vmem:[%s1859] sm:$0xff]
    %v4138 = vld [vmem:[%s1859 + $0x8] sm:$0xff]
    %v4139 = vld [vmem:[%s1859 + $0x10] sm:$0xff]
    %v4140 = vld [vmem:[%s1859 + $0x18] sm:$0xff]
    %v4141 = vld [vmem:[%s5] sm:$0xff]
    %v4142 = vld [vmem:[%s5 + $0x8] sm:$0xff]
    %v4143 = vld [vmem:[%s5 + $0x10] sm:$0xff]
    %v4144 = vld [vmem:[%s5 + $0x18] sm:$0xff]
    %v4145 = vld [vmem:[%s5 + $0x20] sm:$0xff]
    %v4146 = vld [vmem:[%s5 + $0x28] sm:$0xff]
    %v4147 = vld [vmem:[%s5 + $0x30] sm:$0xff]
    %v4148 = vld [vmem:[%s5 + $0x38] sm:$0xff]
    %v4149 = vld [vmem:[%s5 + $0x40] sm:$0xff]
    %v4150 = vld [vmem:[%s5 + $0x48] sm:$0xff]
    %v4151 = vld [vmem:[%s5 + $0x50] sm:$0xff]
    %v4152 = vld [vmem:[%s5 + $0x58] sm:$0xff]
    %v4153 = vld [vmem:[%s5 + $0x60] sm:$0xff]
    %v4154 = vld [vmem:[%s5 + $0x68] sm:$0xff]
    %v4155 = vld [vmem:[%s5 + $0x70] sm:$0xff]
    %v4156 = vld [vmem:[%s5 + $0x78] sm:$0xff]
    %v4157 = vld [vmem:[%s5 + $0x80] sm:$0xff]
    %v4158 = vld [vmem:[%s5 + $0x88] sm:$0xff]
    %v4159 = vld [vmem:[%s5 + $0x90] sm:$0xff]
    %v4160 = vld [vmem:[%s5 + $0x98] sm:$0xff]
    %v4161 = vld [vmem:[%s5 + $0xa0] sm:$0xff]
    %v4162 = vld [vmem:[%s5 + $0xa8] sm:$0xff]
    %v4163 = vld [vmem:[%s5 + $0xb0] sm:$0xff]
    %v4164 = vld [vmem:[%s5 + $0xb8] sm:$0xff]
    %v4165 = vld [vmem:[%s5 + $0xc0] sm:$0xff]
    %v4166 = vld [vmem:[%s5 + $0xc8] sm:$0xff]
    %v4167 = vld [vmem:[%s5 + $0xd0] sm:$0xff]
    %v4168 = vld [vmem:[%s5 + $0xd8] sm:$0xff]
    %v4169 = vld [vmem:[%s5 + $0xe0] sm:$0xff]
    %v4170 = vld [vmem:[%s5 + $0xe8] sm:$0xff]
    %v4171 = vld [vmem:[%s5 + $0xf0] sm:$0xff]
    %v4172 = vld [vmem:[%s5 + $0xf8] sm:$0xff]
    %v4173 = vld [vmem:[%s5 + $0x100] sm:$0xff]
    %v4174 = vld [vmem:[%s5 + $0x108] sm:$0xff]
    %v4175 = vld [vmem:[%s5 + $0x110] sm:$0xff]
    %v4176 = vld [vmem:[%s5 + $0x118] sm:$0xff]
    %v4177 = vld [vmem:[%s5 + $0x120] sm:$0xff]
    %v4178 = vld [vmem:[%s5 + $0x128] sm:$0xff]
    %v4179 = vld [vmem:[%s5 + $0x130] sm:$0xff]
    %v4180 = vld [vmem:[%s5 + $0x138] sm:$0xff]
    %v4181 = vld [vmem:[%s5 + $0x140] sm:$0xff]
    %v4182 = vld [vmem:[%s5 + $0x148] sm:$0xff]
    %v4183 = vld [vmem:[%s5 + $0x150] sm:$0xff]
    %v4184 = vld [vmem:[%s5 + $0x158] sm:$0xff]
    %v4185 = vld [vmem:[%s5 + $0x160] sm:$0xff]
    %v4186 = vld [vmem:[%s5 + $0x168] sm:$0xff]
    %v4187 = vld [vmem:[%s5 + $0x170] sm:$0xff]
    %v4188 = vld [vmem:[%s5 + $0x178] sm:$0xff]
    %v4189 = vld [vmem:[%s5 + $0x180] sm:$0xff]
    %v4190 = vld [vmem:[%s5 + $0x188] sm:$0xff]
    %v4191 = vld [vmem:[%s5 + $0x190] sm:$0xff]
    %v4192 = vld [vmem:[%s5 + $0x198] sm:$0xff]
    %v4193 = vld [vmem:[%s5 + $0x1a0] sm:$0xff]
    %v4194 = vld [vmem:[%s5 + $0x1a8] sm:$0xff]
    %v4195 = vld [vmem:[%s5 + $0x1b0] sm:$0xff]
    %v4196 = vld [vmem:[%s5 + $0x1b8] sm:$0xff]
    %v4197 = vld [vmem:[%s5 + $0x1c0] sm:$0xff]
    %v4198 = vld [vmem:[%s5 + $0x1c8] sm:$0xff]
    %v4199 = vld [vmem:[%s5 + $0x1d0] sm:$0xff]
    %v4200 = vld [vmem:[%s5 + $0x1d8] sm:$0xff]
    %v4201 = vld [vmem:[%s5 + $0x1e0] sm:$0xff]
    %v4202 = vld [vmem:[%s5 + $0x1e8] sm:$0xff]
    %v4203 = vld [vmem:[%s5 + $0x1f0] sm:$0xff]
    %v4204 = vld [vmem:[%s5 + $0x1f8] sm:$0xff]
    %4205 = vmatprep.subr.mxu0 %v4142
    %4206 = vmatpush1.msra.mxu0 %v4141
    %4207 = vmatprep.subr.mxu0 %v4146
    %4208 = vmatpush1.msra.mxu0 %v4145
    %4209 = vmatprep.subr.mxu0 %v4150
    %4210 = vmatpush1.msra.mxu0 %v4149
    %4211 = vmatprep.subr.mxu0 %v4154
    %4212 = vmatpush1.msra.mxu0 %v4153
    %4213 = vmatprep.subr.mxu0 %v4158
    %4214 = vmatpush1.msra.mxu0 %v4157
    %4215 = vmatprep.subr.mxu0 %v4162
    %4216 = vmatpush1.msra.mxu0 %v4161
    %4217 = vmatprep.subr.mxu0 %v4166
    %4218 = vmatpush1.msra.mxu0 %v4165
    %4219 = vmatprep.subr.mxu0 %v4170
    %4220 = vmatpush1.msra.mxu0 %v4169
    %4221 = vmatprep.subr.mxu0 %v4174
    %4222 = vmatpush1.msra.mxu0 %v4173
    %4223 = vmatprep.subr.mxu0 %v4178
    %4224 = vmatpush1.msra.mxu0 %v4177
    %4225 = vmatprep.subr.mxu0 %v4182
    %4226 = vmatpush1.msra.mxu0 %v4181
    %4227 = vmatprep.subr.mxu0 %v4186
    %4228 = vmatpush1.msra.mxu0 %v4185
    %4229 = vmatprep.subr.mxu0 %v4190
    %4230 = vmatpush1.msra.mxu0 %v4189
    %4231 = vmatprep.subr.mxu0 %v4194
    %4232 = vmatpush1.msra.mxu0 %v4193
    %4233 = vmatprep.subr.mxu0 %v4198
    %4234 = vmatpush1.msra.mxu0 %v4197
    %4235 = vmatprep.subr.mxu0 %v4202
    %4236 = vmatpush1.msra.mxu0 %v4201
    %4237 = vmatprep.subr.mxu0 0.0
    %4238 = vmatpush1.msra.mxu0 0.0
    %4239 = vmatprep.subr.mxu0 0.0
    %4240 = vmatpush1.msra.mxu0 0.0
    %4241 = vmatprep.subr.mxu0 0.0
    %4242 = vmatpush1.msra.mxu0 0.0
    %4243 = vmatprep.subr.mxu0 0.0
    %4244 = vmatpush1.msra.mxu0 0.0
    %4245 = vmatprep.subr.mxu0 0.0
    %4246 = vmatpush1.msra.mxu0 0.0
    %4247 = vmatprep.subr.mxu0 0.0
    %4248 = vmatpush1.msra.mxu0 0.0
    %4249 = vmatprep.subr.mxu0 0.0
    %4250 = vmatpush1.msra.mxu0 0.0
    %4251 = vmatprep.subr.mxu0 0.0
    %4252 = vmatpush1.msra.mxu0 0.0
    %4253 = vmatprep.subr.mxu0 0.0
    %4254 = vmatpush1.msra.mxu0 0.0
    %4255 = vmatprep.subr.mxu0 0.0
    %4256 = vmatpush1.msra.mxu0 0.0
    %4257 = vmatprep.subr.mxu0 0.0
    %4258 = vmatpush1.msra.mxu0 0.0
    %4259 = vmatprep.subr.mxu0 0.0
    %4260 = vmatpush1.msra.mxu0 0.0
    %4261 = vmatprep.subr.mxu0 0.0
    %4262 = vmatpush1.msra.mxu0 0.0
    %4263 = vmatprep.subr.mxu0 0.0
    %4264 = vmatpush1.msra.mxu0 0.0
    %4265 = vmatprep.subr.mxu0 0.0
    %4266 = vmatpush1.msra.mxu0 0.0
    %4267 = vmatprep.subr.mxu0 0.0
    %4268 = vmatpush1.msra.mxu0 0.0
    %4269 = vmatprep.mubr.f32.mxu0 0.0
    %4270 = vmatmul.mubr.f32.gmra.mrb[0].mxu0 %v4135
    %v4271 = vpop.f32.mrb[0].mxu0
    %v4272 = vadd.f32 0.0, %v4271
    %v4273 = vpop.f32.mrb[0].mxu0
    %v4274 = vadd.f32 0.0, %v4273
    %4275 = vdwg.mxu0
    %4276 = vmatprep.subr.mxu0 %v4144
    %4277 = vmatpush1.msra.mxu0 %v4143
    %4278 = vmatprep.subr.mxu0 %v4148
    %4279 = vmatpush1.msra.mxu0 %v4147
    %4280 = vmatprep.subr.mxu0 %v4152
    %4281 = vmatpush1.msra.mxu0 %v4151
    %4282 = vmatprep.subr.mxu0 %v4156
    %4283 = vmatpush1.msra.mxu0 %v4155
    %4284 = vmatprep.subr.mxu0 %v4160
    %4285 = vmatpush1.msra.mxu0 %v4159
    %4286 = vmatprep.subr.mxu0 %v4164
    %4287 = vmatpush1.msra.mxu0 %v4163
    %4288 = vmatprep.subr.mxu0 %v4168
    %4289 = vmatpush1.msra.mxu0 %v4167
    %4290 = vmatprep.subr.mxu0 %v4172
    %4291 = vmatpush1.msra.mxu0 %v4171
    %4292 = vmatprep.subr.mxu0 %v4176
    %4293 = vmatpush1.msra.mxu0 %v4175
    %4294 = vmatprep.subr.mxu0 %v4180
    %4295 = vmatpush1.msra.mxu0 %v4179
    %4296 = vmatprep.subr.mxu0 %v4184
    %4297 = vmatpush1.msra.mxu0 %v4183
    %4298 = vmatprep.subr.mxu0 %v4188
    %4299 = vmatpush1.msra.mxu0 %v4187
    %4300 = vmatprep.subr.mxu0 %v4192
    %4301 = vmatpush1.msra.mxu0 %v4191
    %4302 = vmatprep.subr.mxu0 %v4196
    %4303 = vmatpush1.msra.mxu0 %v4195
    %4304 = vmatprep.subr.mxu0 %v4200
    %4305 = vmatpush1.msra.mxu0 %v4199
    %4306 = vmatprep.subr.mxu0 %v4204
    %4307 = vmatpush1.msra.mxu0 %v4203
    %4308 = vmatprep.subr.mxu0 0.0
    %4309 = vmatpush1.msra.mxu0 0.0
    %4310 = vmatprep.subr.mxu0 0.0
    %4311 = vmatpush1.msra.mxu0 0.0
    %4312 = vmatprep.subr.mxu0 0.0
    %4313 = vmatpush1.msra.mxu0 0.0
    %4314 = vmatprep.subr.mxu0 0.0
    %4315 = vmatpush1.msra.mxu0 0.0
    %4316 = vmatprep.subr.mxu0 0.0
    %4317 = vmatpush1.msra.mxu0 0.0
    %4318 = vmatprep.subr.mxu0 0.0
    %4319 = vmatpush1.msra.mxu0 0.0
    %4320 = vmatprep.subr.mxu0 0.0
    %4321 = vmatpush1.msra.mxu0 0.0
    %4322 = vmatprep.subr.mxu0 0.0
    %4323 = vmatpush1.msra.mxu0 0.0
    %4324 = vmatprep.subr.mxu0 0.0
    %4325 = vmatpush1.msra.mxu0 0.0
    %4326 = vmatprep.subr.mxu0 0.0
    %4327 = vmatpush1.msra.mxu0 0.0
    %4328 = vmatprep.subr.mxu0 0.0
    %4329 = vmatpush1.msra.mxu0 0.0
    %4330 = vmatprep.subr.mxu0 0.0
    %4331 = vmatpush1.msra.mxu0 0.0
    %4332 = vmatprep.subr.mxu0 0.0
    %4333 = vmatpush1.msra.mxu0 0.0
    %4334 = vmatprep.subr.mxu0 0.0
    %4335 = vmatpush1.msra.mxu0 0.0
    %4336 = vmatprep.subr.mxu0 0.0
    %4337 = vmatpush1.msra.mxu0 0.0
    %4338 = vmatprep.subr.mxu0 0.0
    %4339 = vmatpush1.msra.mxu0 0.0
    %4340 = vmatprep.mubr.f32.mxu0 0.0
    %4341 = vmatmul.mubr.f32.gmra.mrb[0].mxu0 %v4135
    %v4342 = vpop.f32.mrb[0].mxu0
    %v4343 = vadd.f32 0.0, %v4342
    %v4344 = vpop.f32.mrb[0].mxu0
    %v4345 = vadd.f32 0.0, %v4344
    %4346 = vdwg.mxu0
    %v4347 = vadd.f32 %v4137, %v4272
    %v4348 = vadd.f32 %v4138, %v4274
    %v4349 = vadd.f32 %v4139, %v4343
    %v4350 = vadd.f32 %v4140, %v4345
    %v4351 = vxor.u32 %v4347, 2147483648
    %v4352 = vmul.f32 %v4351, 1.442695
    %v4353 = vpow.pop %v4352
    %v4354 = vadd.f32 %v4353, 1.0
    %v4355 = vrcp.pop %v4354
    %v4356 = vmul.f32 1.0, %v4355
    %v4357 = vxor.u32 %v4348, 2147483648
    %v4358 = vmul.f32 %v4357, 1.442695
    %v4359 = vpow.pop %v4358
    %v4360 = vadd.f32 %v4359, 1.0
    %v4361 = vrcp.pop %v4360
    %v4362 = vmul.f32 1.0, %v4361
    %v4363 = vtanh.pop %v4349
    %v4364 = vxor.u32 %v4350, 2147483648
    %v4365 = vmul.f32 %v4364, 1.442695
    %v4366 = vpow.pop %v4365
    %v4367 = vadd.f32 %v4366, 1.0
    %v4368 = vrcp.pop %v4367
    %v4369 = vmul.f32 1.0, %v4368
    %v4370 = vmul.f32 %v4362, %v4133
    %v4371 = vmul.f32 %v4356, %v4363
    %v4372 = vadd.f32 %v4370, %v4371
    %v4373 = vtanh.pop %v4372
    %v4374 = vmul.f32 %v4369, %v4373
    %4375 = vst [vmem:[%s2098] sm:$0xff] %v4374
    %v4376 = vld [vmem:[%s2102] sm:$0xff]
    %v4377 = vld [vmem:[%s2102 + $0x8] sm:$0xff]
    %v4378 = vld [vmem:[%s2102 + $0x10] sm:$0xff]
    %v4379 = vld [vmem:[%s2102 + $0x18] sm:$0xff]
    %v4380 = vld [vmem:[%s5] sm:$0xff]
    %v4381 = vld [vmem:[%s5 + $0x8] sm:$0xff]
    %v4382 = vld [vmem:[%s5 + $0x10] sm:$0xff]
    %v4383 = vld [vmem:[%s5 + $0x18] sm:$0xff]
    %v4384 = vld [vmem:[%s5 + $0x20] sm:$0xff]
    %v4385 = vld [vmem:[%s5 + $0x28] sm:$0xff]
    %v4386 = vld [vmem:[%s5 + $0x30] sm:$0xff]
    %v4387 = vld [vmem:[%s5 + $0x38] sm:$0xff]
    %v4388 = vld [vmem:[%s5 + $0x40] sm:$0xff]
    %v4389 = vld [vmem:[%s5 + $0x48] sm:$0xff]
    %v4390 = vld [vmem:[%s5 + $0x50] sm:$0xff]
    %v4391 = vld [vmem:[%s5 + $0x58] sm:$0xff]
    %v4392 = vld [vmem:[%s5 + $0x60] sm:$0xff]
    %v4393 = vld [vmem:[%s5 + $0x68] sm:$0xff]
    %v4394 = vld [vmem:[%s5 + $0x70] sm:$0xff]
    %v4395 = vld [vmem:[%s5 + $0x78] sm:$0xff]
    %v4396 = vld [vmem:[%s5 + $0x80] sm:$0xff]
    %v4397 = vld [vmem:[%s5 + $0x88] sm:$0xff]
    %v4398 = vld [vmem:[%s5 + $0x90] sm:$0xff]
    %v4399 = vld [vmem:[%s5 + $0x98] sm:$0xff]
    %v4400 = vld [vmem:[%s5 + $0xa0] sm:$0xff]
    %v4401 = vld [vmem:[%s5 + $0xa8] sm:$0xff]
    %v4402 = vld [vmem:[%s5 + $0xb0] sm:$0xff]
    %v4403 = vld [vmem:[%s5 + $0xb8] sm:$0xff]
    %v4404 = vld [vmem:[%s5 + $0xc0] sm:$0xff]
    %v4405 = vld [vmem:[%s5 + $0xc8] sm:$0xff]
    %v4406 = vld [vmem:[%s5 + $0xd0] sm:$0xff]
    %v4407 = vld [vmem:[%s5 + $0xd8] sm:$0xff]
    %v4408 = vld [vmem:[%s5 + $0xe0] sm:$0xff]
    %v4409 = vld [vmem:[%s5 + $0xe8] sm:$0xff]
    %v4410 = vld [vmem:[%s5 + $0xf0] sm:$0xff]
    %v4411 = vld [vmem:[%s5 + $0xf8] sm:$0xff]
    %v4412 = vld [vmem:[%s5 + $0x100] sm:$0xff]
    %v4413 = vld [vmem:[%s5 + $0x108] sm:$0xff]
    %v4414 = vld [vmem:[%s5 + $0x110] sm:$0xff]
    %v4415 = vld [vmem:[%s5 + $0x118] sm:$0xff]
    %v4416 = vld [vmem:[%s5 + $0x120] sm:$0xff]
    %v4417 = vld [vmem:[%s5 + $0x128] sm:$0xff]
    %v4418 = vld [vmem:[%s5 + $0x130] sm:$0xff]
    %v4419 = vld [vmem:[%s5 + $0x138] sm:$0xff]
    %v4420 = vld [vmem:[%s5 + $0x140] sm:$0xff]
    %v4421 = vld [vmem:[%s5 + $0x148] sm:$0xff]
    %v4422 = vld [vmem:[%s5 + $0x150] sm:$0xff]
    %v4423 = vld [vmem:[%s5 + $0x158] sm:$0xff]
    %v4424 = vld [vmem:[%s5 + $0x160] sm:$0xff]
    %v4425 = vld [vmem:[%s5 + $0x168] sm:$0xff]
    %v4426 = vld [vmem:[%s5 + $0x170] sm:$0xff]
    %v4427 = vld [vmem:[%s5 + $0x178] sm:$0xff]
    %v4428 = vld [vmem:[%s5 + $0x180] sm:$0xff]
    %v4429 = vld [vmem:[%s5 + $0x188] sm:$0xff]
    %v4430 = vld [vmem:[%s5 + $0x190] sm:$0xff]
    %v4431 = vld [vmem:[%s5 + $0x198] sm:$0xff]
    %v4432 = vld [vmem:[%s5 + $0x1a0] sm:$0xff]
    %v4433 = vld [vmem:[%s5 + $0x1a8] sm:$0xff]
    %v4434 = vld [vmem:[%s5 + $0x1b0] sm:$0xff]
    %v4435 = vld [vmem:[%s5 + $0x1b8] sm:$0xff]
    %v4436 = vld [vmem:[%s5 + $0x1c0] sm:$0xff]
    %v4437 = vld [vmem:[%s5 + $0x1c8] sm:$0xff]
    %v4438 = vld [vmem:[%s5 + $0x1d0] sm:$0xff]
    %v4439 = vld [vmem:[%s5 + $0x1d8] sm:$0xff]
    %v4440 = vld [vmem:[%s5 + $0x1e0] sm:$0xff]
    %v4441 = vld [vmem:[%s5 + $0x1e8] sm:$0xff]
    %v4442 = vld [vmem:[%s5 + $0x1f0] sm:$0xff]
    %v4443 = vld [vmem:[%s5 + $0x1f8] sm:$0xff]
    %4444 = vmatprep.subr.mxu0 %v4381
    %4445 = vmatpush1.msra.mxu0 %v4380
    %4446 = vmatprep.subr.mxu0 %v4385
    %4447 = vmatpush1.msra.mxu0 %v4384
    %4448 = vmatprep.subr.mxu0 %v4389
    %4449 = vmatpush1.msra.mxu0 %v4388
    %4450 = vmatprep.subr.mxu0 %v4393
    %4451 = vmatpush1.msra.mxu0 %v4392
    %4452 = vmatprep.subr.mxu0 %v4397
    %4453 = vmatpush1.msra.mxu0 %v4396
    %4454 = vmatprep.subr.mxu0 %v4401
    %4455 = vmatpush1.msra.mxu0 %v4400
    %4456 = vmatprep.subr.mxu0 %v4405
    %4457 = vmatpush1.msra.mxu0 %v4404
    %4458 = vmatprep.subr.mxu0 %v4409
    %4459 = vmatpush1.msra.mxu0 %v4408
    %4460 = vmatprep.subr.mxu0 %v4413
    %4461 = vmatpush1.msra.mxu0 %v4412
    %4462 = vmatprep.subr.mxu0 %v4417
    %4463 = vmatpush1.msra.mxu0 %v4416
    %4464 = vmatprep.subr.mxu0 %v4421
    %4465 = vmatpush1.msra.mxu0 %v4420
    %4466 = vmatprep.subr.mxu0 %v4425
    %4467 = vmatpush1.msra.mxu0 %v4424
    %4468 = vmatprep.subr.mxu0 %v4429
    %4469 = vmatpush1.msra.mxu0 %v4428
    %4470 = vmatprep.subr.mxu0 %v4433
    %4471 = vmatpush1.msra.mxu0 %v4432
    %4472 = vmatprep.subr.mxu0 %v4437
    %4473 = vmatpush1.msra.mxu0 %v4436
    %4474 = vmatprep.subr.mxu0 %v4441
    %4475 = vmatpush1.msra.mxu0 %v4440
    %4476 = vmatprep.subr.mxu0 0.0
    %4477 = vmatpush1.msra.mxu0 0.0
    %4478 = vmatprep.subr.mxu0 0.0
    %4479 = vmatpush1.msra.mxu0 0.0
    %4480 = vmatprep.subr.mxu0 0.0
    %4481 = vmatpush1.msra.mxu0 0.0
    %4482 = vmatprep.subr.mxu0 0.0
    %4483 = vmatpush1.msra.mxu0 0.0
    %4484 = vmatprep.subr.mxu0 0.0
    %4485 = vmatpush1.msra.mxu0 0.0
    %4486 = vmatprep.subr.mxu0 0.0
    %4487 = vmatpush1.msra.mxu0 0.0
    %4488 = vmatprep.subr.mxu0 0.0
    %4489 = vmatpush1.msra.mxu0 0.0
    %4490 = vmatprep.subr.mxu0 0.0
    %4491 = vmatpush1.msra.mxu0 0.0
    %4492 = vmatprep.subr.mxu0 0.0
    %4493 = vmatpush1.msra.mxu0 0.0
    %4494 = vmatprep.subr.mxu0 0.0
    %4495 = vmatpush1.msra.mxu0 0.0
    %4496 = vmatprep.subr.mxu0 0.0
    %4497 = vmatpush1.msra.mxu0 0.0
    %4498 = vmatprep.subr.mxu0 0.0
    %4499 = vmatpush1.msra.mxu0 0.0
    %4500 = vmatprep.subr.mxu0 0.0
    %4501 = vmatpush1.msra.mxu0 0.0
    %4502 = vmatprep.subr.mxu0 0.0
    %4503 = vmatpush1.msra.mxu0 0.0
    %4504 = vmatprep.subr.mxu0 0.0
    %4505 = vmatpush1.msra.mxu0 0.0
    %4506 = vmatprep.subr.mxu0 0.0
    %4507 = vmatpush1.msra.mxu0 0.0
    %4508 = vmatprep.mubr.f32.mxu0 0.0
    %4509 = vmatmul.mubr.f32.gmra.mrb[0].mxu0 %v4374
    %v4510 = vpop.f32.mrb[0].mxu0
    %v4511 = vadd.f32 0.0, %v4510
    %v4512 = vpop.f32.mrb[0].mxu0
    %v4513 = vadd.f32 0.0, %v4512
    %4514 = vdwg.mxu0
    %4515 = vmatprep.subr.mxu0 %v4383
    %4516 = vmatpush1.msra.mxu0 %v4382
    %4517 = vmatprep.subr.mxu0 %v4387
    %4518 = vmatpush1.msra.mxu0 %v4386
    %4519 = vmatprep.subr.mxu0 %v4391
    %4520 = vmatpush1.msra.mxu0 %v4390
    %4521 = vmatprep.subr.mxu0 %v4395
    %4522 = vmatpush1.msra.mxu0 %v4394
    %4523 = vmatprep.subr.mxu0 %v4399
    %4524 = vmatpush1.msra.mxu0 %v4398
    %4525 = vmatprep.subr.mxu0 %v4403
    %4526 = vmatpush1.msra.mxu0 %v4402
    %4527 = vmatprep.subr.mxu0 %v4407
    %4528 = vmatpush1.msra.mxu0 %v4406
    %4529 = vmatprep.subr.mxu0 %v4411
    %4530 = vmatpush1.msra.mxu0 %v4410
    %4531 = vmatprep.subr.mxu0 %v4415
    %4532 = vmatpush1.msra.mxu0 %v4414
    %4533 = vmatprep.subr.mxu0 %v4419
    %4534 = vmatpush1.msra.mxu0 %v4418
    %4535 = vmatprep.subr.mxu0 %v4423
    %4536 = vmatpush1.msra.mxu0 %v4422
    %4537 = vmatprep.subr.mxu0 %v4427
    %4538 = vmatpush1.msra.mxu0 %v4426
    %4539 = vmatprep.subr.mxu0 %v4431
    %4540 = vmatpush1.msra.mxu0 %v4430
    %4541 = vmatprep.subr.mxu0 %v4435
    %4542 = vmatpush1.msra.mxu0 %v4434
    %4543 = vmatprep.subr.mxu0 %v4439
    %4544 = vmatpush1.msra.mxu0 %v4438
    %4545 = vmatprep.subr.mxu0 %v4443
    %4546 = vmatpush1.msra.mxu0 %v4442
    %4547 = vmatprep.subr.mxu0 0.0
    %4548 = vmatpush1.msra.mxu0 0.0
    %4549 = vmatprep.subr.mxu0 0.0
    %4550 = vmatpush1.msra.mxu0 0.0
    %4551 = vmatprep.subr.mxu0 0.0
    %4552 = vmatpush1.msra.mxu0 0.0
    %4553 = vmatprep.subr.mxu0 0.0
    %4554 = vmatpush1.msra.mxu0 0.0
    %4555 = vmatprep.subr.mxu0 0.0
    %4556 = vmatpush1.msra.mxu0 0.0
    %4557 = vmatprep.subr.mxu0 0.0
    %4558 = vmatpush1.msra.mxu0 0.0
    %4559 = vmatprep.subr.mxu0 0.0
    %4560 = vmatpush1.msra.mxu0 0.0
    %4561 = vmatprep.subr.mxu0 0.0
    %4562 = vmatpush1.msra.mxu0 0.0
    %4563 = vmatprep.subr.mxu0 0.0
    %4564 = vmatpush1.msra.mxu0 0.0
    %4565 = vmatprep.subr.mxu0 0.0
    %4566 = vmatpush1.msra.mxu0 0.0
    %4567 = vmatprep.subr.mxu0 0.0
    %4568 = vmatpush1.msra.mxu0 0.0
    %4569 = vmatprep.subr.mxu0 0.0
    %4570 = vmatpush1.msra.mxu0 0.0
    %4571 = vmatprep.subr.mxu0 0.0
    %4572 = vmatpush1.msra.mxu0 0.0
    %4573 = vmatprep.subr.mxu0 0.0
    %4574 = vmatpush1.msra.mxu0 0.0
    %4575 = vmatprep.subr.mxu0 0.0
    %4576 = vmatpush1.msra.mxu0 0.0
    %4577 = vmatprep.subr.mxu0 0.0
    %4578 = vmatpush1.msra.mxu0 0.0
    %4579 = vmatprep.mubr.f32.mxu0 0.0
    %4580 = vmatmul.mubr.f32.gmra.mrb[0].mxu0 %v4374
    %v4581 = vpop.f32.mrb[0].mxu0
    %v4582 = vadd.f32 0.0, %v4581
    %v4583 = vpop.f32.mrb[0].mxu0
    %v4584 = vadd.f32 0.0, %v4583
    %4585 = vdwg.mxu0
    %v4586 = vadd.f32 %v4376, %v4511
    %v4587 = vadd.f32 %v4377, %v4513
    %v4588 = vadd.f32 %v4378, %v4582
    %v4589 = vadd.f32 %v4379, %v4584
    %v4590 = vxor.u32 %v4586, 2147483648
    %v4591 = vmul.f32 %v4590, 1.442695
    %v4592 = vpow.pop %v4591
    %v4593 = vadd.f32 %v4592, 1.0
    %v4594 = vrcp.pop %v4593
    %v4595 = vmul.f32 1.0, %v4594
    %v4596 = vxor.u32 %v4587, 2147483648
    %v4597 = vmul.f32 %v4596, 1.442695
    %v4598 = vpow.pop %v4597
    %v4599 = vadd.f32 %v4598, 1.0
    %v4600 = vrcp.pop %v4599
    %v4601 = vmul.f32 1.0, %v4600
    %v4602 = vtanh.pop %v4588
    %v4603 = vxor.u32 %v4589, 2147483648
    %v4604 = vmul.f32 %v4603, 1.442695
    %v4605 = vpow.pop %v4604
    %v4606 = vadd.f32 %v4605, 1.0
    %v4607 = vrcp.pop %v4606
    %v4608 = vmul.f32 1.0, %v4607
    %v4609 = vmul.f32 %v4601, %v4372
    %v4610 = vmul.f32 %v4595, %v4602
    %v4611 = vadd.f32 %v4609, %v4610
    %v4612 = vtanh.pop %v4611
    %v4613 = vmul.f32 %v4608, %v4612
    %4614 = vst [vmem:[%s2341] sm:$0xff] %v4613
  $region62: #{alibaba_encoder_decoder_forward.1} parent=0 // loop_footer
    %s2348 = sadd.s32 1, %s2344
  $region63: #{alibaba_encoder_decoder_forward.1} parent=0 // loop_footer_branch
    %2343 = sbr.rel target = $region59
  $region64: #{alibaba_encoder_decoder_forward.1} parent=0 // loop_exit
    _
  %v4615 = vld [vmem:[%s7] sm:$0xff]
  %v4616 = vld [vmem:[%s8] sm:$0xff]
  %v4617 = vld [vmem:[%s8 + $0x8] sm:$0xff]
  %v4618 = vld [vmem:[%s8 + $0x10] sm:$0xff]
  %v4619 = vld [vmem:[%s8 + $0x18] sm:$0xff]
  %v4620 = vld [vmem:[%s8 + $0x20] sm:$0xff]
  %v4621 = vld [vmem:[%s8 + $0x28] sm:$0xff]
  %v4622 = vld [vmem:[%s8 + $0x30] sm:$0xff]
  %v4623 = vld [vmem:[%s8 + $0x38] sm:$0xff]
  %v4624 = vld [vmem:[%s8 + $0x40] sm:$0xff]
  %v4625 = vld [vmem:[%s8 + $0x48] sm:$0xff]
  %v4626 = vld [vmem:[%s8 + $0x50] sm:$0xff]
  %v4627 = vld [vmem:[%s8 + $0x58] sm:$0xff]
  %v4628 = vld [vmem:[%s8 + $0x60] sm:$0xff]
  %v4629 = vld [vmem:[%s8 + $0x68] sm:$0xff]
  %v4630 = vld [vmem:[%s8 + $0x70] sm:$0xff]
  %v4631 = vld [vmem:[%s8 + $0x78] sm:$0xff]
  %v4632 = vld [vmem:[%s9] sm:$0x1]
  %v4634 = vlaneseq
  %v4635 = vshrl.u32 %v4634, 7
  %v4636 = vsub.s32 0, %v4635
  %v4637 = vrot.slane %v4632, %v4636
  %4639 = vmatprep.subr.mxu0 0.0
  %4640 = vmatpush1.msra.mxu0 %v4616
  %4641 = vmatprep.subr.mxu0 0.0
  %4642 = vmatpush1.msra.mxu0 %v4617
  %4643 = vmatprep.subr.mxu0 0.0
  %4644 = vmatpush1.msra.mxu0 %v4618
  %4645 = vmatprep.subr.mxu0 0.0
  %4646 = vmatpush1.msra.mxu0 %v4619
  %4647 = vmatprep.subr.mxu0 0.0
  %4648 = vmatpush1.msra.mxu0 %v4620
  %4649 = vmatprep.subr.mxu0 0.0
  %4650 = vmatpush1.msra.mxu0 %v4621
  %4651 = vmatprep.subr.mxu0 0.0
  %4652 = vmatpush1.msra.mxu0 %v4622
  %4653 = vmatprep.subr.mxu0 0.0
  %4654 = vmatpush1.msra.mxu0 %v4623
  %4655 = vmatprep.subr.mxu0 0.0
  %4656 = vmatpush1.msra.mxu0 %v4624
  %4657 = vmatprep.subr.mxu0 0.0
  %4658 = vmatpush1.msra.mxu0 %v4625
  %4659 = vmatprep.subr.mxu0 0.0
  %4660 = vmatpush1.msra.mxu0 %v4626
  %4661 = vmatprep.subr.mxu0 0.0
  %4662 = vmatpush1.msra.mxu0 %v4627
  %4663 = vmatprep.subr.mxu0 0.0
  %4664 = vmatpush1.msra.mxu0 %v4628
  %4665 = vmatprep.subr.mxu0 0.0
  %4666 = vmatpush1.msra.mxu0 %v4629
  %4667 = vmatprep.subr.mxu0 0.0
  %4668 = vmatpush1.msra.mxu0 %v4630
  %4669 = vmatprep.subr.mxu0 0.0
  %4670 = vmatpush1.msra.mxu0 %v4631
  %4671 = vmatprep.subr.mxu0 0.0
  %4672 = vmatpush1.msra.mxu0 0.0
  %4673 = vmatprep.subr.mxu0 0.0
  %4674 = vmatpush1.msra.mxu0 0.0
  %4675 = vmatprep.subr.mxu0 0.0
  %4676 = vmatpush1.msra.mxu0 0.0
  %4677 = vmatprep.subr.mxu0 0.0
  %4678 = vmatpush1.msra.mxu0 0.0
  %4679 = vmatprep.subr.mxu0 0.0
  %4680 = vmatpush1.msra.mxu0 0.0
  %4681 = vmatprep.subr.mxu0 0.0
  %4682 = vmatpush1.msra.mxu0 0.0
  %4683 = vmatprep.subr.mxu0 0.0
  %4684 = vmatpush1.msra.mxu0 0.0
  %4685 = vmatprep.subr.mxu0 0.0
  %4686 = vmatpush1.msra.mxu0 0.0
  %4687 = vmatprep.subr.mxu0 0.0
  %4688 = vmatpush1.msra.mxu0 0.0
  %4689 = vmatprep.subr.mxu0 0.0
  %4690 = vmatpush1.msra.mxu0 0.0
  %4691 = vmatprep.subr.mxu0 0.0
  %4692 = vmatpush1.msra.mxu0 0.0
  %4693 = vmatprep.subr.mxu0 0.0
  %4694 = vmatpush1.msra.mxu0 0.0
  %4695 = vmatprep.subr.mxu0 0.0
  %4696 = vmatpush1.msra.mxu0 0.0
  %4697 = vmatprep.subr.mxu0 0.0
  %4698 = vmatpush1.msra.mxu0 0.0
  %4699 = vmatprep.subr.mxu0 0.0
  %4700 = vmatpush1.msra.mxu0 0.0
  %4701 = vmatprep.subr.mxu0 0.0
  %4702 = vmatpush1.msra.mxu0 0.0
  %4703 = vmatprep.mubr.f32.mxu0 0.0
  %4704 = vmatmul.mubr.f32.gmra.mrb[0].mxu0 %v4615
  %v4705 = vpop.f32.mrb[0].mxu0
  %v4706 = vadd.f32 %v4637, %v4705
  %v4707 = vpop.f32.mrb[0].mxu0
  %4708 = vdwg.mxu0
  %s4709 = sld [smem:[#allocation4]]
  %vm4710 = vcmp.ge.f32.partialorder %v4706, 0.0
  %v4711 = vstv %s4709
  %v4712 = vmul.f32 %v4711, %v4706
  %v4713 = vsel %vm4710, %v4706, %v4712
  %v4714 = vld [vmem:[%s11] sm:$0xff]
  %v4715 = vld [vmem:[%s11 + $0x8] sm:$0xff]
  %v4716 = vld [vmem:[%s11 + $0x10] sm:$0xff]
  %v4717 = vld [vmem:[%s11 + $0x18] sm:$0xff]
  %v4718 = vld [vmem:[%s11 + $0x20] sm:$0xff]
  %v4719 = vld [vmem:[%s11 + $0x28] sm:$0xff]
  %v4720 = vld [vmem:[%s11 + $0x30] sm:$0xff]
  %v4721 = vld [vmem:[%s11 + $0x38] sm:$0xff]
  %v4722 = vld [vmem:[%s11 + $0x40] sm:$0xff]
  %v4723 = vld [vmem:[%s11 + $0x48] sm:$0xff]
  %v4724 = vld [vmem:[%s11 + $0x50] sm:$0xff]
  %v4725 = vld [vmem:[%s11 + $0x58] sm:$0xff]
  %v4726 = vld [vmem:[%s11 + $0x60] sm:$0xff]
  %v4727 = vld [vmem:[%s11 + $0x68] sm:$0xff]
  %v4728 = vld [vmem:[%s11 + $0x70] sm:$0xff]
  %v4729 = vld [vmem:[%s11 + $0x78] sm:$0xff]
  %v4730 = vld [vmem:[%s12] sm:$0xff]
  %v4731 = vld [vmem:[%s12 + $0x8] sm:$0xff]
  %v4732 = vld [vmem:[%s12 + $0x10] sm:$0xff]
  %v4733 = vld [vmem:[%s12 + $0x18] sm:$0xff]
  %v4734 = vld [vmem:[%s12 + $0x20] sm:$0xff]
  %v4735 = vld [vmem:[%s12 + $0x28] sm:$0xff]
  %v4736 = vld [vmem:[%s12 + $0x30] sm:$0xff]
  %v4737 = vld [vmem:[%s12 + $0x38] sm:$0xff]
  %v4738 = vld [vmem:[%s12 + $0x40] sm:$0xff]
  %v4739 = vld [vmem:[%s12 + $0x48] sm:$0xff]
  %v4740 = vld [vmem:[%s12 + $0x50] sm:$0xff]
  %v4741 = vld [vmem:[%s12 + $0x58] sm:$0xff]
  %v4742 = vld [vmem:[%s12 + $0x60] sm:$0xff]
  %v4743 = vld [vmem:[%s12 + $0x68] sm:$0xff]
  %v4744 = vld [vmem:[%s12 + $0x70] sm:$0xff]
  %v4745 = vld [vmem:[%s12 + $0x78] sm:$0xff]
  %4746 = vmatprep.subr.mxu0 0.0
  %4747 = vmatpush1.msra.mxu0 %v4730
  %4748 = vmatprep.subr.mxu0 0.0
  %4749 = vmatpush1.msra.mxu0 %v4731
  %4750 = vmatprep.subr.mxu0 0.0
  %4751 = vmatpush1.msra.mxu0 %v4732
  %4752 = vmatprep.subr.mxu0 0.0
  %4753 = vmatpush1.msra.mxu0 %v4733
  %4754 = vmatprep.subr.mxu0 0.0
  %4755 = vmatpush1.msra.mxu0 %v4734
  %4756 = vmatprep.subr.mxu0 0.0
  %4757 = vmatpush1.msra.mxu0 %v4735
  %4758 = vmatprep.subr.mxu0 0.0
  %4759 = vmatpush1.msra.mxu0 %v4736
  %4760 = vmatprep.subr.mxu0 0.0
  %4761 = vmatpush1.msra.mxu0 %v4737
  %4762 = vmatprep.subr.mxu0 0.0
  %4763 = vmatpush1.msra.mxu0 %v4738
  %4764 = vmatprep.subr.mxu0 0.0
  %4765 = vmatpush1.msra.mxu0 %v4739
  %4766 = vmatprep.subr.mxu0 0.0
  %4767 = vmatpush1.msra.mxu0 %v4740
  %4768 = vmatprep.subr.mxu0 0.0
  %4769 = vmatpush1.msra.mxu0 %v4741
  %4770 = vmatprep.subr.mxu0 0.0
  %4771 = vmatpush1.msra.mxu0 %v4742
  %4772 = vmatprep.subr.mxu0 0.0
  %4773 = vmatpush1.msra.mxu0 %v4743
  %4774 = vmatprep.subr.mxu0 0.0
  %4775 = vmatpush1.msra.mxu0 %v4744
  %4776 = vmatprep.subr.mxu0 0.0
  %4777 = vmatpush1.msra.mxu0 %v4745
  %4778 = vmatprep.subr.mxu0 0.0
  %4779 = vmatpush1.msra.mxu0 0.0
  %4780 = vmatprep.subr.mxu0 0.0
  %4781 = vmatpush1.msra.mxu0 0.0
  %4782 = vmatprep.subr.mxu0 0.0
  %4783 = vmatpush1.msra.mxu0 0.0
  %4784 = vmatprep.subr.mxu0 0.0
  %4785 = vmatpush1.msra.mxu0 0.0
  %4786 = vmatprep.subr.mxu0 0.0
  %4787 = vmatpush1.msra.mxu0 0.0
  %4788 = vmatprep.subr.mxu0 0.0
  %4789 = vmatpush1.msra.mxu0 0.0
  %4790 = vmatprep.subr.mxu0 0.0
  %4791 = vmatpush1.msra.mxu0 0.0
  %4792 = vmatprep.subr.mxu0 0.0
  %4793 = vmatpush1.msra.mxu0 0.0
  %4794 = vmatprep.subr.mxu0 0.0
  %4795 = vmatpush1.msra.mxu0 0.0
  %4796 = vmatprep.subr.mxu0 0.0
  %4797 = vmatpush1.msra.mxu0 0.0
  %4798 = vmatprep.subr.mxu0 0.0
  %4799 = vmatpush1.msra.mxu0 0.0
  %4800 = vmatprep.subr.mxu0 0.0
  %4801 = vmatpush1.msra.mxu0 0.0
  %4802 = vmatprep.subr.mxu0 0.0
  %4803 = vmatpush1.msra.mxu0 0.0
  %4804 = vmatprep.subr.mxu0 0.0
  %4805 = vmatpush1.msra.mxu0 0.0
  %4806 = vmatprep.subr.mxu0 0.0
  %4807 = vmatpush1.msra.mxu0 0.0
  %4808 = vmatprep.subr.mxu0 0.0
  %4809 = vmatpush1.msra.mxu0 0.0
  %4810 = vmatprep.mubr.f32.mxu0 0.0
  %4811 = vmatmul.mubr.f32.gmra.mrb[0].mxu0 %v4713
  %v4812 = vpop.f32.mrb[0].mxu0
  %v4813 = vadd.f32 0.0, %v4812
  %v4814 = vpop.f32.mrb[0].mxu0
  %4815 = vdwg.mxu0
  %4816 = vmatprep.subr.mxu0 0.0
  %4817 = vmatpush1.msra.mxu0 %v4714
  %4818 = vmatprep.subr.mxu0 0.0
  %4819 = vmatpush1.msra.mxu0 %v4715
  %4820 = vmatprep.subr.mxu0 0.0
  %4821 = vmatpush1.msra.mxu0 %v4716
  %4822 = vmatprep.subr.mxu0 0.0
  %4823 = vmatpush1.msra.mxu0 %v4717
  %4824 = vmatprep.subr.mxu0 0.0
  %4825 = vmatpush1.msra.mxu0 %v4718
  %4826 = vmatprep.subr.mxu0 0.0
  %4827 = vmatpush1.msra.mxu0 %v4719
  %4828 = vmatprep.subr.mxu0 0.0
  %4829 = vmatpush1.msra.mxu0 %v4720
  %4830 = vmatprep.subr.mxu0 0.0
  %4831 = vmatpush1.msra.mxu0 %v4721
  %4832 = vmatprep.subr.mxu0 0.0
  %4833 = vmatpush1.msra.mxu0 %v4722
  %4834 = vmatprep.subr.mxu0 0.0
  %4835 = vmatpush1.msra.mxu0 %v4723
  %4836 = vmatprep.subr.mxu0 0.0
  %4837 = vmatpush1.msra.mxu0 %v4724
  %4838 = vmatprep.subr.mxu0 0.0
  %4839 = vmatpush1.msra.mxu0 %v4725
  %4840 = vmatprep.subr.mxu0 0.0
  %4841 = vmatpush1.msra.mxu0 %v4726
  %4842 = vmatprep.subr.mxu0 0.0
  %4843 = vmatpush1.msra.mxu0 %v4727
  %4844 = vmatprep.subr.mxu0 0.0
  %4845 = vmatpush1.msra.mxu0 %v4728
  %4846 = vmatprep.subr.mxu0 0.0
  %4847 = vmatpush1.msra.mxu0 %v4729
  %4848 = vmatprep.subr.mxu0 0.0
  %4849 = vmatpush1.msra.mxu0 0.0
  %4850 = vmatprep.subr.mxu0 0.0
  %4851 = vmatpush1.msra.mxu0 0.0
  %4852 = vmatprep.subr.mxu0 0.0
  %4853 = vmatpush1.msra.mxu0 0.0
  %4854 = vmatprep.subr.mxu0 0.0
  %4855 = vmatpush1.msra.mxu0 0.0
  %4856 = vmatprep.subr.mxu0 0.0
  %4857 = vmatpush1.msra.mxu0 0.0
  %4858 = vmatprep.subr.mxu0 0.0
  %4859 = vmatpush1.msra.mxu0 0.0
  %4860 = vmatprep.subr.mxu0 0.0
  %4861 = vmatpush1.msra.mxu0 0.0
  %4862 = vmatprep.subr.mxu0 0.0
  %4863 = vmatpush1.msra.mxu0 0.0
  %4864 = vmatprep.subr.mxu0 0.0
  %4865 = vmatpush1.msra.mxu0 0.0
  %4866 = vmatprep.subr.mxu0 0.0
  %4867 = vmatpush1.msra.mxu0 0.0
  %4868 = vmatprep.subr.mxu0 0.0
  %4869 = vmatpush1.msra.mxu0 0.0
  %4870 = vmatprep.subr.mxu0 0.0
  %4871 = vmatpush1.msra.mxu0 0.0
  %4872 = vmatprep.subr.mxu0 0.0
  %4873 = vmatpush1.msra.mxu0 0.0
  %4874 = vmatprep.subr.mxu0 0.0
  %4875 = vmatpush1.msra.mxu0 0.0
  %4876 = vmatprep.subr.mxu0 0.0
  %4877 = vmatpush1.msra.mxu0 0.0
  %4878 = vmatprep.subr.mxu0 0.0
  %4879 = vmatpush1.msra.mxu0 0.0
  %4880 = vmatprep.mubr.f32.mxu0 0.0
  %4881 = vmatmul.mubr.f32.gmra.mrb[0].mxu0 %v2349
  %v4882 = vpop.f32.mrb[0].mxu0
  %v4883 = vadd.f32 %v4813, %v4882
  %v4884 = vpop.f32.mrb[0].mxu0
  %4885 = vdwg.mxu0
  %v4886 = vld [vmem:[%s13] sm:$0x1]
  %v4888 = vlaneseq
  %v4889 = vshrl.u32 %v4888, 7
  %v4890 = vsub.s32 0, %v4889
  %v4891 = vrot.slane %v4886, %v4890
  %v4893 = vadd.f32 %v4883, %v4891
  %4894 = vst [vmem:[%s14] sm:$0xff] %v4893
  // Predicated region
  $region65: #{alibaba_encoder_decoder_forward.1} parent=0 // pred_check
    _
  $region66: #{alibaba_encoder_decoder_forward.1} parent=0 // pred_check_branch
    %4896 = sbr.rel (0) target = $region68
  $region67: #{alibaba_encoder_decoder_forward.1} parent=0 // pred_region
    _
  $region68: #{alibaba_encoder_decoder_forward.1} parent=0 // pred_fallthru
    _
  // Predicated region
  $region69: #{alibaba_encoder_decoder_forward.1} parent=0 // pred_check
    _
  $region70: #{alibaba_encoder_decoder_forward.1} parent=0 // pred_check_branch
    %4898 = sbr.rel (0) target = $region72
  $region71: #{alibaba_encoder_decoder_forward.1} parent=0 // pred_region
    _
  $region72: #{alibaba_encoder_decoder_forward.1} parent=0 // pred_fallthru
    _

</llo_original>
